<compile_context>
chip_gen: v7x
topology: tpu7x:2x2x1
jax: 0.10.0
libtpu: 0.0.40
codegen_flags: <defaults>
</compile_context>

<pallas_src>
import jax
import jax.numpy as jnp
from jax import lax
from jax.experimental import pallas as pl
from jax.experimental.pallas import tpu as pltpu

EPS = 1e-5
HP = 128          # lane-padded width of each GRU gate block (r | z | n)


# ------------------------------ fused kernel ---------------------------------
def _make_kernel(B, T):
    TB = B * T

    def kernel(x_ref, perm_ref,
               c1w_ref, c1b_ref, c2w_ref, c2b_ref, c3w_ref, c3b_ref, c4w_ref, c4b_ref,
               wih0_ref, whh0_ref, bih0_ref, bhh0_ref,
               wih1_ref, whh1_ref, bih1_ref, bhh1_ref,
               w1_ref, b1_ref, w2_ref, b2_ref, w3_ref, b3_ref,
               o_ref):
        f32 = jnp.float32
        bf16 = jnp.bfloat16

        # ----- (B,T)-major rows -> (T,B)-major rows via a permutation matmul (stays in VMEM)
        act = jnp.dot(perm_ref[...], x_ref[...].astype(bf16),
                      preferred_element_type=f32)                       # (T*B, F)

        # ----- 4 gated conv layers: im2col + single fused matmul (tanh | sigmoid branches)
        def gated_conv(act, w_ref, b_ref):
            cin = act.shape[1]
            cout = b_ref.shape[1] // 2
            zero = jnp.zeros((B, cin), f32)
            prev = jnp.concatenate([zero, act[:TB - B, :]], axis=0)     # x[t-1]  (zero pad)
            nxt = jnp.concatenate([act[B:, :], zero], axis=0)           # x[t+1]  (zero pad)
            xcol = jnp.concatenate([prev, act, nxt], axis=1).astype(bf16)   # (T*B, 3*cin)
            acc = jnp.dot(xcol, w_ref[...], preferred_element_type=f32) + b_ref[...]
            return jnp.tanh(acc[:, :cout]) * jax.nn.sigmoid(acc[:, cout:2 * cout])

        act = gated_conv(act, c1w_ref, c1b_ref)
        act = gated_conv(act, c2w_ref, c2b_ref)
        act = gated_conv(act, c3w_ref, c3b_ref)
        act = gated_conv(act, c4w_ref, c4b_ref)                         # (T*B, 18)

        # ----- 2-layer GRU; only final hidden states needed.  Gates lane-padded to HP=128.
        # Layer-0 input projection hoisted out of the recurrence (one batched matmul).
        gi0_all = jnp.dot(act.astype(bf16), wih0_ref[...],
                          preferred_element_type=f32) + bih0_ref[...]   # (T*B, 3*HP)
        whh0 = whh0_ref[...]; bhh0 = bhh0_ref[...]
        wih1 = wih1_ref[...]; bih1 = bih1_ref[...]
        whh1 = whh1_ref[...]; bhh1 = bhh1_ref[...]

        def gru_cell(gi, h, whh, bhh):
            gh = jnp.dot(h.astype(bf16), whh, preferred_element_type=f32) + bhh
            r = jax.nn.sigmoid(gi[:, 0:HP] + gh[:, 0:HP])               # lane-aligned slices
            z = jax.nn.sigmoid(gi[:, HP:2 * HP] + gh[:, HP:2 * HP])
            n = jnp.tanh(gi[:, 2 * HP:3 * HP] + r * gh[:, 2 * HP:3 * HP])
            return (1.0 - z) * n + z * h

        h0 = jnp.zeros((B, HP), f32)
        h1 = jnp.zeros((B, HP), f32)
        for t in range(T):                                              # fully unrolled
            h0 = gru_cell(gi0_all[t * B:(t + 1) * B, :], h0, whh0, bhh0)
            gi1 = jnp.dot(h0.astype(bf16), wih1, preferred_element_type=f32) + bih1
            h1 = gru_cell(gi1, h1, whh1, bhh1)

        # ----- hidden.view(batch, -1): flat[i] = [stacked[2i], stacked[2i+1]]
        # realized with two selection matmuls (no in-kernel (2,B,H) reshape).
        h_cat = jnp.concatenate([h0, h1], axis=0).astype(bf16)          # (2B, HP)
        ri = lax.broadcasted_iota(jnp.int32, (B, 2 * B), 0)
        ci = lax.broadcasted_iota(jnp.int32, (B, 2 * B), 1)
        se = (ci == 2 * ri).astype(bf16)
        so = (ci == 2 * ri + 1).astype(bf16)
        flat = jnp.concatenate(
            [jnp.dot(se, h_cat, preferred_element_type=f32),
             jnp.dot(so, h_cat, preferred_element_type=f32)], axis=1)   # (B, 2*HP)

        # ----- embed MLP (Linear+BN folded, Dropout identity) + softmax(dim=1)
        e1 = jnp.maximum(
            jnp.dot(flat.astype(bf16), w1_ref[...], preferred_element_type=f32) + b1_ref[...], 0.0)
        e2 = jnp.maximum(
            jnp.dot(e1.astype(bf16), w2_ref[...], preferred_element_type=f32) + b2_ref[...], 0.0)
        logits = jnp.dot(e2.astype(bf16), w3_ref[...], preferred_element_type=f32) + b3_ref[...]
        m = jnp.max(logits, axis=1, keepdims=True)
        e = jnp.exp(logits - m)
        o_ref[...] = e * pl.reciprocal(jnp.sum(e, axis=1, keepdims=True), approx=True)

    return kernel


def _forward_impl(x, params):
    B, T, F = x.shape
    x_flat = x.reshape(B * T, F)            # contiguous collapse -> free, (B,T)-major rows
    p = params
    inputs = (x_flat, p['perm'],
              p['conv1']['w'], p['conv1']['b'], p['conv2']['w'], p['conv2']['b'],
              p['conv3']['w'], p['conv3']['b'], p['conv4']['w'], p['conv4']['b'],
              p['gru']['wih0'], p['gru']['whh0'], p['gru']['bih0'], p['gru']['bhh0'],
              p['gru']['wih1'], p['gru']['whh1'], p['gru']['bih1'], p['gru']['bhh1'],
              p['embed']['w1'], p['embed']['b1'], p['embed']['w2'], p['embed']['b2'],
              p['embed']['w3'], p['embed']['b3'])
    return pl.pallas_call(
        _make_kernel(B, T),
        out_shape=jax.ShapeDtypeStruct((B, 2), jnp.float32),
        in_specs=[pl.BlockSpec(memory_space=pltpu.MemorySpace.VMEM)] * len(inputs),
        out_specs=pl.BlockSpec(memory_space=pltpu.MemorySpace.VMEM),
    )(*inputs)


nicknet_forward = jax.jit(_forward_impl)


# --------------------------- deterministic params -----------------------------
def _make_conv_params(keys, cin, cout):
    def nrm(shape, s=0.2):
        return s * jax.random.normal(next(keys), shape, jnp.float32)
    ws, bs = [], []
    for _ in range(2):                       # tanh branch, then sigmoid branch
        w = nrm((cout, cin, 3))              # torch Conv1d weight layout
        b = nrm((cout,))
        gamma = 1.0 + nrm((cout,), 0.1)
        beta = nrm((cout,), 0.1)
        mean = nrm((cout,), 0.1)
        var = 1.0 + 0.1 * jnp.abs(jax.random.normal(next(keys), (cout,), jnp.float32))
        scale = gamma / jnp.sqrt(var + EPS)
        w_taps = jnp.transpose(w, (2, 1, 0)) * scale        # (3, cin, cout), BN folded
        ws.append(w_taps.reshape(3 * cin, cout))
        bs.append((b - mean) * scale + beta)
    return {'w': jnp.concatenate(ws, axis=1).astype(jnp.bfloat16),      # (3*cin, 2*cout)
            'b': jnp.concatenate(bs).reshape(1, 2 * cout)}


def _pad_gate_cols(w_t, H):
    # (in_dim, 3H) -> (in_dim, 3*HP): each gate block placed at a 128-lane boundary.
    out = jnp.zeros((w_t.shape[0], 3 * HP), jnp.float32)
    for g in range(3):
        out = out.at[:, g * HP:g * HP + H].set(w_t[:, g * H:(g + 1) * H])
    return out


def _make_gru_params(keys, num_in, H):
    def nrm(shape, s=0.2):
        return s * jax.random.normal(next(keys), shape, jnp.float32)

    def layer(in_dim, pad_rows):
        wih = nrm((3 * H, in_dim))           # torch weight_ih_l*
        whh = nrm((3 * H, H))                # torch weight_hh_l*
        bih = nrm((3 * H,))
        bhh = nrm((3 * H,))
        wih_p = _pad_gate_cols(wih.T, H)                                # (in_dim, 3*HP)
        if pad_rows:                          # layer-1 input is the HP-padded h0
            wih_p = jnp.zeros((HP, 3 * HP), jnp.float32).at[:in_dim].set(wih_p)
        whh_p = jnp.zeros((HP, 3 * HP), jnp.float32).at[:H].set(_pad_gate_cols(whh.T, H))
        return (wih_p.astype(jnp.bfloat16), whh_p.astype(jnp.bfloat16),
                _pad_gate_cols(bih.reshape(1, -1), H),
                _pad_gate_cols(bhh.reshape(1, -1), H))

    l0 = layer(num_in, pad_rows=False)
    l1 = layer(H, pad_rows=True)
    return {'wih0': l0[0], 'whh0': l0[1], 'bih0': l0[2], 'bhh0': l0[3],
            'wih1': l1[0], 'whh1': l1[1], 'bih1': l1[2], 'bhh1': l1[3]}


def _make_embed_params(keys, H, sz):
    def nrm(shape, s=0.2):
        return s * jax.random.normal(next(keys), shape, jnp.float32)
    embed_sz = 2 * H
    d1, d2 = sz + 14, sz                                               # 32, 18 (large)
    W1, b1 = nrm((d1, embed_sz)), nrm((d1,))
    g1, be1, m1 = 1.0 + nrm((d1,), 0.1), nrm((d1,), 0.1), nrm((d1,), 0.1)
    v1 = 1.0 + 0.1 * jnp.abs(jax.random.normal(next(keys), (d1,), jnp.float32))
    W2, b2 = nrm((d2, d1)), nrm((d2,))
    g2, be2, m2 = 1.0 + nrm((d2,), 0.1), nrm((d2,), 0.1), nrm((d2,), 0.1)
    v2 = 1.0 + 0.1 * jnp.abs(jax.random.normal(next(keys), (d2,), jnp.float32))
    W3, b3 = nrm((2, d2)), nrm((2,))
    s1 = g1 / jnp.sqrt(v1 + EPS)
    s2 = g2 / jnp.sqrt(v2 + EPS)
    w1_eff = (W1 * s1[:, None]).T                                      # (2H, d1), BN folded
    # Lane-pad the two halves of the flattened hidden (each to HP lanes).
    w1_pad = jnp.zeros((2 * HP, d1), jnp.float32)
    w1_pad = w1_pad.at[0:H, :].set(w1_eff[0:H, :])
    w1_pad = w1_pad.at[HP:HP + H, :].set(w1_eff[H:2 * H, :])
    return {'w1': w1_pad.astype(jnp.bfloat16),
            'b1': ((b1 - m1) * s1 + be1).reshape(1, -1),
            'w2': ((W2 * s2[:, None]).T).astype(jnp.bfloat16),
            'b2': ((b2 - m2) * s2 + be2).reshape(1, -1),
            'w3': W3.T.astype(jnp.bfloat16),
            'b3': b3.reshape(1, -1)}


def make_params(key, features, frames, batch):
    keys = iter(jax.random.split(key, 256))
    c1, c2, c3, c4 = 32, 28, 25, 18                                    # large=True, gated=True
    H = c4 + 11                                                        # num_hidden = 29
    params = {
        'conv1': _make_conv_params(keys, features, c1),
        'conv2': _make_conv_params(keys, c1, c2),
        'conv3': _make_conv_params(keys, c2, c3),
        'conv4': _make_conv_params(keys, c3, c4),
        'gru': _make_gru_params(keys, c4, H),
        'embed': _make_embed_params(keys, H, sz=18),
    }
    # (B,T)-major rows -> (T,B)-major rows permutation: row t*B+b takes source row b*T+t.
    TB = frames * batch
    rows = jnp.arange(TB)
    src = (rows % batch) * frames + (rows // batch)
    params['perm'] = jax.nn.one_hot(src, TB, dtype=jnp.float32).astype(jnp.bfloat16)
    return params


# --------------------------- pure-JAX f32 reference ---------------------------
def nicknet_reference(x, params):
    """Same folded math in plain XLA f32 (verifies kernel layout/permutation logic)."""
    B, T, F = x.shape
    act = params['perm'].astype(jnp.float32) @ x.reshape(B * T, F)
    for name in ('conv1', 'conv2', 'conv3', 'conv4'):
        w = params[name]['w'].astype(jnp.float32)
        b = params[name]['b']
        cin = act.shape[1]
        cout = b.shape[1] // 2
        zero = jnp.zeros((B, cin), jnp.float32)
        prev = jnp.concatenate([zero, act[:-B]], axis=0)
        nxt = jnp.concatenate([act[B:], zero], axis=0)
        acc = jnp.concatenate([prev, act, nxt], axis=1) @ w + b
        act = jnp.tanh(acc[:, :cout]) * jax.nn.sigmoid(acc[:, cout:2 * cout])
    g = params['gru']
    gi0_all = act @ g['wih0'].astype(jnp.float32) + g['bih0']
    whh0 = g['whh0'].astype(jnp.float32)
    wih1 = g['wih1'].astype(jnp.float32)
    whh1 = g['whh1'].astype(jnp.float32)

    def cell(gi, h, whh, bhh):
        gh = h @ whh + bhh
        r = jax.nn.sigmoid(gi[:, :HP] + gh[:, :HP])
        z = jax.nn.sigmoid(gi[:, HP:2 * HP] + gh[:, HP:2 * HP])
        n = jnp.tanh(gi[:, 2 * HP:] + r * gh[:, 2 * HP:])
        return (1.0 - z) * n + z * h

    h0 = jnp.zeros((B, HP), jnp.float32)
    h1 = jnp.zeros((B, HP), jnp.float32)
    for t in range(T):
        h0 = cell(gi0_all[t * B:(t + 1) * B], h0, whh0, g['bhh0'])
        gi1 = h0 @ wih1 + g['bih1']
        h1 = cell(gi1, h1, whh1, g['bhh1'])
    h_cat = jnp.concatenate([h0, h1], axis=0)
    flat = jnp.concatenate([h_cat[0::2], h_cat[1::2]], axis=1)         # == hidden.view(B, -1)
    e = params['embed']
    z1 = jnp.maximum(flat @ e['w1'].astype(jnp.float32) + e['b1'], 0.0)
    z2 = jnp.maximum(z1 @ e['w2'].astype(jnp.float32) + e['b2'], 0.0)
    logits = z2 @ e['w3'].astype(jnp.float32) + e['b3']
    return jax.nn.softmax(logits, axis=1)


if __name__ == "__main__":
    B, FRAMES, FEATURES = 8, 16, 24      # args.batch_size must equal B (required by .view)
    key = jax.random.PRNGKey(0)
    kx, kp = jax.random.split(key)
    x = jax.random.normal(kx, (B, FRAMES, FEATURES), jnp.float32)
    params = make_params(kp, FEATURES, FRAMES, B)

    out = jax.block_until_ready(nicknet_forward(x, params))
    ref = nicknet_reference(x, params)

    assert out.shape == (B, 2)
    assert bool(jnp.all(jnp.isfinite(out)))
    # approx=True softmax reciprocal -> allow small deviation from exactly 1.0
    assert bool(jnp.allclose(jnp.sum(out, axis=1), 1.0, atol=5e-3))
    # bf16 MXU inputs vs f32 reference
    assert bool(jnp.allclose(out, ref, atol=3e-2))
    print("KERNEL_OK")
</pallas_src>

<mosaic_0001>
module attributes {stable_mosaic.version = 11 : i64} {
  func.func @kernel(%arg0: memref<128x24xf32, #tpu.memory_space<vmem>>, %arg1: memref<128x128xbf16, #tpu.memory_space<vmem>>, %arg2: memref<72x64xbf16, #tpu.memory_space<vmem>>, %arg3: memref<1x64xf32, #tpu.memory_space<vmem>>, %arg4: memref<96x56xbf16, #tpu.memory_space<vmem>>, %arg5: memref<1x56xf32, #tpu.memory_space<vmem>>, %arg6: memref<84x50xbf16, #tpu.memory_space<vmem>>, %arg7: memref<1x50xf32, #tpu.memory_space<vmem>>, %arg8: memref<75x36xbf16, #tpu.memory_space<vmem>>, %arg9: memref<1x36xf32, #tpu.memory_space<vmem>>, %arg10: memref<18x384xbf16, #tpu.memory_space<vmem>>, %arg11: memref<128x384xbf16, #tpu.memory_space<vmem>>, %arg12: memref<1x384xf32, #tpu.memory_space<vmem>>, %arg13: memref<1x384xf32, #tpu.memory_space<vmem>>, %arg14: memref<128x384xbf16, #tpu.memory_space<vmem>>, %arg15: memref<128x384xbf16, #tpu.memory_space<vmem>>, %arg16: memref<1x384xf32, #tpu.memory_space<vmem>>, %arg17: memref<1x384xf32, #tpu.memory_space<vmem>>, %arg18: memref<256x32xbf16, #tpu.memory_space<vmem>>, %arg19: memref<1x32xf32, #tpu.memory_space<vmem>>, %arg20: memref<32x18xbf16, #tpu.memory_space<vmem>>, %arg21: memref<1x18xf32, #tpu.memory_space<vmem>>, %arg22: memref<18x2xbf16, #tpu.memory_space<vmem>>, %arg23: memref<1x2xf32, #tpu.memory_space<vmem>>, %arg24: memref<8x2xf32, #tpu.memory_space<vmem>>) attributes {dimension_semantics = [], scalar_prefetch = 0 : i64, scratch_operands = 0 : i64, tpu.core_type = #tpu.core_type<tc>} {
    %c0 = arith.constant 0 : index
    %c0_0 = arith.constant 0 : index
    %0 = vector.load %arg1[%c0, %c0_0] : memref<128x128xbf16, #tpu.memory_space<vmem>>, vector<128x128xbf16>
    %c0_1 = arith.constant 0 : index
    %c0_2 = arith.constant 0 : index
    %1 = vector.load %arg0[%c0_1, %c0_2] : memref<128x24xf32, #tpu.memory_space<vmem>>, vector<128x24xf32>
    %2 = arith.truncf %1 : vector<128x24xf32> to vector<128x24xbf16>
    %cst = arith.constant dense<0.000000e+00> : vector<128x24xf32>
    %3 = tpu.matmul %0, %2, %cst {dimension_numbers = #tpu.dot_dimension_numbers<[1], [0], [0], [1], [0, 0, 1, 1], [], []>} : vector<128x128xbf16>, vector<128x24xbf16>, vector<128x24xf32> -> vector<128x24xf32>
    %cst_3 = arith.constant 0.000000e+00 : f32
    %4 = vector.broadcast %cst_3 : f32 to vector<8x24xf32>
    %5 = vector.extract_strided_slice %3 {offsets = [0, 0], sizes = [120, 24], strides = [1, 1]} : vector<128x24xf32> to vector<120x24xf32>
    %6 = tpu.concatenate %4, %5 in 0 : vector<8x24xf32>, vector<120x24xf32> -> vector<128x24xf32>
    %7 = vector.extract_strided_slice %3 {offsets = [8, 0], sizes = [120, 24], strides = [1, 1]} : vector<128x24xf32> to vector<120x24xf32>
    %8 = tpu.concatenate %7, %4 in 0 : vector<120x24xf32>, vector<8x24xf32> -> vector<128x24xf32>
    %9 = tpu.concatenate %6, %3, %8 in 1 : vector<128x24xf32>, vector<128x24xf32>, vector<128x24xf32> -> vector<128x72xf32>
    %10 = arith.truncf %9 : vector<128x72xf32> to vector<128x72xbf16>
    %c0_4 = arith.constant 0 : index
    %c0_5 = arith.constant 0 : index
    %11 = vector.load %arg2[%c0_4, %c0_5] : memref<72x64xbf16, #tpu.memory_space<vmem>>, vector<72x64xbf16>
    %cst_6 = arith.constant dense<0.000000e+00> : vector<128x64xf32>
    %12 = tpu.matmul %10, %11, %cst_6 {dimension_numbers = #tpu.dot_dimension_numbers<[1], [0], [0], [1], [0, 0, 1, 1], [], []>} : vector<128x72xbf16>, vector<72x64xbf16>, vector<128x64xf32> -> vector<128x64xf32>
    %c0_7 = arith.constant 0 : index
    %c0_8 = arith.constant 0 : index
    %13 = vector.load %arg3[%c0_7, %c0_8] : memref<1x64xf32, #tpu.memory_space<vmem>>, vector<1x64xf32>
    %14 = vector.broadcast %13 : vector<1x64xf32> to vector<128x64xf32>
    %15 = arith.addf %12, %14 : vector<128x64xf32>
    %16 = vector.extract_strided_slice %15 {offsets = [0, 0], sizes = [128, 32], strides = [1, 1]} : vector<128x64xf32> to vector<128x32xf32>
    %17 = math.tanh %16 : vector<128x32xf32>
    %18 = vector.extract_strided_slice %15 {offsets = [0, 32], sizes = [128, 32], strides = [1, 1]} : vector<128x64xf32> to vector<128x32xf32>
    %19 = arith.negf %18 : vector<128x32xf32>
    %20 = math.exp %19 : vector<128x32xf32>
    %cst_9 = arith.constant 1.000000e+00 : f32
    %21 = vector.broadcast %cst_9 : f32 to vector<128x32xf32>
    %22 = arith.addf %21, %20 : vector<128x32xf32>
    %23 = arith.divf %21, %22 : vector<128x32xf32>
    %24 = arith.mulf %17, %23 : vector<128x32xf32>
    %cst_10 = arith.constant 0.000000e+00 : f32
    %25 = vector.broadcast %cst_10 : f32 to vector<8x32xf32>
    %26 = vector.extract_strided_slice %24 {offsets = [0, 0], sizes = [120, 32], strides = [1, 1]} : vector<128x32xf32> to vector<120x32xf32>
    %27 = tpu.concatenate %25, %26 in 0 : vector<8x32xf32>, vector<120x32xf32> -> vector<128x32xf32>
    %28 = vector.extract_strided_slice %24 {offsets = [8, 0], sizes = [120, 32], strides = [1, 1]} : vector<128x32xf32> to vector<120x32xf32>
    %29 = tpu.concatenate %28, %25 in 0 : vector<120x32xf32>, vector<8x32xf32> -> vector<128x32xf32>
    %30 = tpu.concatenate %27, %24, %29 in 1 : vector<128x32xf32>, vector<128x32xf32>, vector<128x32xf32> -> vector<128x96xf32>
    %31 = arith.truncf %30 : vector<128x96xf32> to vector<128x96xbf16>
    %c0_11 = arith.constant 0 : index
    %c0_12 = arith.constant 0 : index
    %32 = vector.load %arg4[%c0_11, %c0_12] : memref<96x56xbf16, #tpu.memory_space<vmem>>, vector<96x56xbf16>
    %cst_13 = arith.constant dense<0.000000e+00> : vector<128x56xf32>
    %33 = tpu.matmul %31, %32, %cst_13 {dimension_numbers = #tpu.dot_dimension_numbers<[1], [0], [0], [1], [0, 0, 1, 1], [], []>} : vector<128x96xbf16>, vector<96x56xbf16>, vector<128x56xf32> -> vector<128x56xf32>
    %c0_14 = arith.constant 0 : index
    %c0_15 = arith.constant 0 : index
    %34 = vector.load %arg5[%c0_14, %c0_15] : memref<1x56xf32, #tpu.memory_space<vmem>>, vector<1x56xf32>
    %35 = vector.broadcast %34 : vector<1x56xf32> to vector<128x56xf32>
    %36 = arith.addf %33, %35 : vector<128x56xf32>
    %37 = vector.extract_strided_slice %36 {offsets = [0, 0], sizes = [128, 28], strides = [1, 1]} : vector<128x56xf32> to vector<128x28xf32>
    %38 = math.tanh %37 : vector<128x28xf32>
    %39 = vector.extract_strided_slice %36 {offsets = [0, 28], sizes = [128, 28], strides = [1, 1]} : vector<128x56xf32> to vector<128x28xf32>
    %40 = arith.negf %39 : vector<128x28xf32>
    %41 = math.exp %40 : vector<128x28xf32>
    %cst_16 = arith.constant 1.000000e+00 : f32
    %42 = vector.broadcast %cst_16 : f32 to vector<128x28xf32>
    %43 = arith.addf %42, %41 : vector<128x28xf32>
    %44 = arith.divf %42, %43 : vector<128x28xf32>
    %45 = arith.mulf %38, %44 : vector<128x28xf32>
    %cst_17 = arith.constant 0.000000e+00 : f32
    %46 = vector.broadcast %cst_17 : f32 to vector<8x28xf32>
    %47 = vector.extract_strided_slice %45 {offsets = [0, 0], sizes = [120, 28], strides = [1, 1]} : vector<128x28xf32> to vector<120x28xf32>
    %48 = tpu.concatenate %46, %47 in 0 : vector<8x28xf32>, vector<120x28xf32> -> vector<128x28xf32>
    %49 = vector.extract_strided_slice %45 {offsets = [8, 0], sizes = [120, 28], strides = [1, 1]} : vector<128x28xf32> to vector<120x28xf32>
    %50 = tpu.concatenate %49, %46 in 0 : vector<120x28xf32>, vector<8x28xf32> -> vector<128x28xf32>
    %51 = tpu.concatenate %48, %45, %50 in 1 : vector<128x28xf32>, vector<128x28xf32>, vector<128x28xf32> -> vector<128x84xf32>
    %52 = arith.truncf %51 : vector<128x84xf32> to vector<128x84xbf16>
    %c0_18 = arith.constant 0 : index
    %c0_19 = arith.constant 0 : index
    %53 = vector.load %arg6[%c0_18, %c0_19] : memref<84x50xbf16, #tpu.memory_space<vmem>>, vector<84x50xbf16>
    %cst_20 = arith.constant dense<0.000000e+00> : vector<128x50xf32>
    %54 = tpu.matmul %52, %53, %cst_20 {dimension_numbers = #tpu.dot_dimension_numbers<[1], [0], [0], [1], [0, 0, 1, 1], [], []>} : vector<128x84xbf16>, vector<84x50xbf16>, vector<128x50xf32> -> vector<128x50xf32>
    %c0_21 = arith.constant 0 : index
    %c0_22 = arith.constant 0 : index
    %55 = vector.load %arg7[%c0_21, %c0_22] : memref<1x50xf32, #tpu.memory_space<vmem>>, vector<1x50xf32>
    %56 = vector.broadcast %55 : vector<1x50xf32> to vector<128x50xf32>
    %57 = arith.addf %54, %56 : vector<128x50xf32>
    %58 = vector.extract_strided_slice %57 {offsets = [0, 0], sizes = [128, 25], strides = [1, 1]} : vector<128x50xf32> to vector<128x25xf32>
    %59 = math.tanh %58 : vector<128x25xf32>
    %60 = vector.extract_strided_slice %57 {offsets = [0, 25], sizes = [128, 25], strides = [1, 1]} : vector<128x50xf32> to vector<128x25xf32>
    %61 = arith.negf %60 : vector<128x25xf32>
    %62 = math.exp %61 : vector<128x25xf32>
    %cst_23 = arith.constant 1.000000e+00 : f32
    %63 = vector.broadcast %cst_23 : f32 to vector<128x25xf32>
    %64 = arith.addf %63, %62 : vector<128x25xf32>
    %65 = arith.divf %63, %64 : vector<128x25xf32>
    %66 = arith.mulf %59, %65 : vector<128x25xf32>
    %cst_24 = arith.constant 0.000000e+00 : f32
    %67 = vector.broadcast %cst_24 : f32 to vector<8x25xf32>
    %68 = vector.extract_strided_slice %66 {offsets = [0, 0], sizes = [120, 25], strides = [1, 1]} : vector<128x25xf32> to vector<120x25xf32>
    %69 = tpu.concatenate %67, %68 in 0 : vector<8x25xf32>, vector<120x25xf32> -> vector<128x25xf32>
    %70 = vector.extract_strided_slice %66 {offsets = [8, 0], sizes = [120, 25], strides = [1, 1]} : vector<128x25xf32> to vector<120x25xf32>
    %71 = tpu.concatenate %70, %67 in 0 : vector<120x25xf32>, vector<8x25xf32> -> vector<128x25xf32>
    %72 = tpu.concatenate %69, %66, %71 in 1 : vector<128x25xf32>, vector<128x25xf32>, vector<128x25xf32> -> vector<128x75xf32>
    %73 = arith.truncf %72 : vector<128x75xf32> to vector<128x75xbf16>
    %c0_25 = arith.constant 0 : index
    %c0_26 = arith.constant 0 : index
    %74 = vector.load %arg8[%c0_25, %c0_26] : memref<75x36xbf16, #tpu.memory_space<vmem>>, vector<75x36xbf16>
    %cst_27 = arith.constant dense<0.000000e+00> : vector<128x36xf32>
    %75 = tpu.matmul %73, %74, %cst_27 {dimension_numbers = #tpu.dot_dimension_numbers<[1], [0], [0], [1], [0, 0, 1, 1], [], []>} : vector<128x75xbf16>, vector<75x36xbf16>, vector<128x36xf32> -> vector<128x36xf32>
    %c0_28 = arith.constant 0 : index
    %c0_29 = arith.constant 0 : index
    %76 = vector.load %arg9[%c0_28, %c0_29] : memref<1x36xf32, #tpu.memory_space<vmem>>, vector<1x36xf32>
    %77 = vector.broadcast %76 : vector<1x36xf32> to vector<128x36xf32>
    %78 = arith.addf %75, %77 : vector<128x36xf32>
    %79 = vector.extract_strided_slice %78 {offsets = [0, 0], sizes = [128, 18], strides = [1, 1]} : vector<128x36xf32> to vector<128x18xf32>
    %80 = math.tanh %79 : vector<128x18xf32>
    %81 = vector.extract_strided_slice %78 {offsets = [0, 18], sizes = [128, 18], strides = [1, 1]} : vector<128x36xf32> to vector<128x18xf32>
    %82 = arith.negf %81 : vector<128x18xf32>
    %83 = math.exp %82 : vector<128x18xf32>
    %cst_30 = arith.constant 1.000000e+00 : f32
    %84 = vector.broadcast %cst_30 : f32 to vector<128x18xf32>
    %85 = arith.addf %84, %83 : vector<128x18xf32>
    %86 = arith.divf %84, %85 : vector<128x18xf32>
    %87 = arith.mulf %80, %86 : vector<128x18xf32>
    %88 = arith.truncf %87 : vector<128x18xf32> to vector<128x18xbf16>
    %c0_31 = arith.constant 0 : index
    %c0_32 = arith.constant 0 : index
    %89 = vector.load %arg10[%c0_31, %c0_32] : memref<18x384xbf16, #tpu.memory_space<vmem>>, vector<18x384xbf16>
    %cst_33 = arith.constant dense<0.000000e+00> : vector<128x384xf32>
    %90 = tpu.matmul %88, %89, %cst_33 {dimension_numbers = #tpu.dot_dimension_numbers<[1], [0], [0], [1], [0, 0, 1, 1], [], []>} : vector<128x18xbf16>, vector<18x384xbf16>, vector<128x384xf32> -> vector<128x384xf32>
    %c0_34 = arith.constant 0 : index
    %c0_35 = arith.constant 0 : index
    %91 = vector.load %arg12[%c0_34, %c0_35] : memref<1x384xf32, #tpu.memory_space<vmem>>, vector<1x384xf32>
    %92 = vector.broadcast %91 : vector<1x384xf32> to vector<128x384xf32>
    %93 = arith.addf %90, %92 : vector<128x384xf32>
    %c0_36 = arith.constant 0 : index
    %c0_37 = arith.constant 0 : index
    %94 = vector.load %arg11[%c0_36, %c0_37] : memref<128x384xbf16, #tpu.memory_space<vmem>>, vector<128x384xbf16>
    %c0_38 = arith.constant 0 : index
    %c0_39 = arith.constant 0 : index
    %95 = vector.load %arg13[%c0_38, %c0_39] : memref<1x384xf32, #tpu.memory_space<vmem>>, vector<1x384xf32>
    %c0_40 = arith.constant 0 : index
    %c0_41 = arith.constant 0 : index
    %96 = vector.load %arg14[%c0_40, %c0_41] : memref<128x384xbf16, #tpu.memory_space<vmem>>, vector<128x384xbf16>
    %c0_42 = arith.constant 0 : index
    %c0_43 = arith.constant 0 : index
    %97 = vector.load %arg16[%c0_42, %c0_43] : memref<1x384xf32, #tpu.memory_space<vmem>>, vector<1x384xf32>
    %c0_44 = arith.constant 0 : index
    %c0_45 = arith.constant 0 : index
    %98 = vector.load %arg15[%c0_44, %c0_45] : memref<128x384xbf16, #tpu.memory_space<vmem>>, vector<128x384xbf16>
    %c0_46 = arith.constant 0 : index
    %c0_47 = arith.constant 0 : index
    %99 = vector.load %arg17[%c0_46, %c0_47] : memref<1x384xf32, #tpu.memory_space<vmem>>, vector<1x384xf32>
    %cst_48 = arith.constant 0.000000e+00 : f32
    %100 = vector.broadcast %cst_48 : f32 to vector<8x128xf32>
    %cst_49 = arith.constant 0.000000e+00 : f32
    %101 = vector.broadcast %cst_49 : f32 to vector<8x128xf32>
    %102 = vector.extract_strided_slice %93 {offsets = [0, 0], sizes = [8, 384], strides = [1, 1]} : vector<128x384xf32> to vector<8x384xf32>
    %103 = arith.truncf %100 : vector<8x128xf32> to vector<8x128xbf16>
    %cst_50 = arith.constant dense<0.000000e+00> : vector<8x384xf32>
    %104 = tpu.matmul %103, %94, %cst_50 {dimension_numbers = #tpu.dot_dimension_numbers<[1], [0], [0], [1], [0, 0, 1, 1], [], []>} : vector<8x128xbf16>, vector<128x384xbf16>, vector<8x384xf32> -> vector<8x384xf32>
    %105 = vector.broadcast %95 : vector<1x384xf32> to vector<8x384xf32>
    %106 = arith.addf %104, %105 : vector<8x384xf32>
    %107 = vector.extract_strided_slice %102 {offsets = [0, 0], sizes = [8, 128], strides = [1, 1]} : vector<8x384xf32> to vector<8x128xf32>
    %108 = vector.extract_strided_slice %106 {offsets = [0, 0], sizes = [8, 128], strides = [1, 1]} : vector<8x384xf32> to vector<8x128xf32>
    %109 = arith.addf %107, %108 : vector<8x128xf32>
    %110 = arith.negf %109 : vector<8x128xf32>
    %111 = math.exp %110 : vector<8x128xf32>
    %cst_51 = arith.constant 1.000000e+00 : f32
    %112 = vector.broadcast %cst_51 : f32 to vector<8x128xf32>
    %113 = arith.addf %112, %111 : vector<8x128xf32>
    %114 = arith.divf %112, %113 : vector<8x128xf32>
    %115 = vector.extract_strided_slice %102 {offsets = [0, 128], sizes = [8, 128], strides = [1, 1]} : vector<8x384xf32> to vector<8x128xf32>
    %116 = vector.extract_strided_slice %106 {offsets = [0, 128], sizes = [8, 128], strides = [1, 1]} : vector<8x384xf32> to vector<8x128xf32>
    %117 = arith.addf %115, %116 : vector<8x128xf32>
    %118 = arith.negf %117 : vector<8x128xf32>
    %119 = math.exp %118 : vector<8x128xf32>
    %cst_52 = arith.constant 1.000000e+00 : f32
    %120 = vector.broadcast %cst_52 : f32 to vector<8x128xf32>
    %121 = arith.addf %120, %119 : vector<8x128xf32>
    %122 = arith.divf %120, %121 : vector<8x128xf32>
    %123 = vector.extract_strided_slice %102 {offsets = [0, 256], sizes = [8, 128], strides = [1, 1]} : vector<8x384xf32> to vector<8x128xf32>
    %124 = vector.extract_strided_slice %106 {offsets = [0, 256], sizes = [8, 128], strides = [1, 1]} : vector<8x384xf32> to vector<8x128xf32>
    %125 = arith.mulf %114, %124 : vector<8x128xf32>
    %126 = arith.addf %123, %125 : vector<8x128xf32>
    %127 = math.tanh %126 : vector<8x128xf32>
    %cst_53 = arith.constant 1.000000e+00 : f32
    %128 = vector.broadcast %cst_53 : f32 to vector<8x128xf32>
    %129 = arith.subf %128, %122 : vector<8x128xf32>
    %130 = arith.mulf %129, %127 : vector<8x128xf32>
    %131 = arith.mulf %122, %100 : vector<8x128xf32>
    %132 = arith.addf %130, %131 : vector<8x128xf32>
    %133 = arith.truncf %132 : vector<8x128xf32> to vector<8x128xbf16>
    %cst_54 = arith.constant dense<0.000000e+00> : vector<8x384xf32>
    %134 = tpu.matmul %133, %96, %cst_54 {dimension_numbers = #tpu.dot_dimension_numbers<[1], [0], [0], [1], [0, 0, 1, 1], [], []>} : vector<8x128xbf16>, vector<128x384xbf16>, vector<8x384xf32> -> vector<8x384xf32>
    %135 = vector.broadcast %97 : vector<1x384xf32> to vector<8x384xf32>
    %136 = arith.addf %134, %135 : vector<8x384xf32>
    %137 = arith.truncf %101 : vector<8x128xf32> to vector<8x128xbf16>
    %cst_55 = arith.constant dense<0.000000e+00> : vector<8x384xf32>
    %138 = tpu.matmul %137, %98, %cst_55 {dimension_numbers = #tpu.dot_dimension_numbers<[1], [0], [0], [1], [0, 0, 1, 1], [], []>} : vector<8x128xbf16>, vector<128x384xbf16>, vector<8x384xf32> -> vector<8x384xf32>
    %139 = vector.broadcast %99 : vector<1x384xf32> to vector<8x384xf32>
    %140 = arith.addf %138, %139 : vector<8x384xf32>
    %141 = vector.extract_strided_slice %136 {offsets = [0, 0], sizes = [8, 128], strides = [1, 1]} : vector<8x384xf32> to vector<8x128xf32>
    %142 = vector.extract_strided_slice %140 {offsets = [0, 0], sizes = [8, 128], strides = [1, 1]} : vector<8x384xf32> to vector<8x128xf32>
    %143 = arith.addf %141, %142 : vector<8x128xf32>
    %144 = arith.negf %143 : vector<8x128xf32>
    %145 = math.exp %144 : vector<8x128xf32>
    %cst_56 = arith.constant 1.000000e+00 : f32
    %146 = vector.broadcast %cst_56 : f32 to vector<8x128xf32>
    %147 = arith.addf %146, %145 : vector<8x128xf32>
    %148 = arith.divf %146, %147 : vector<8x128xf32>
    %149 = vector.extract_strided_slice %136 {offsets = [0, 128], sizes = [8, 128], strides = [1, 1]} : vector<8x384xf32> to vector<8x128xf32>
    %150 = vector.extract_strided_slice %140 {offsets = [0, 128], sizes = [8, 128], strides = [1, 1]} : vector<8x384xf32> to vector<8x128xf32>
    %151 = arith.addf %149, %150 : vector<8x128xf32>
    %152 = arith.negf %151 : vector<8x128xf32>
    %153 = math.exp %152 : vector<8x128xf32>
    %cst_57 = arith.constant 1.000000e+00 : f32
    %154 = vector.broadcast %cst_57 : f32 to vector<8x128xf32>
    %155 = arith.addf %154, %153 : vector<8x128xf32>
    %156 = arith.divf %154, %155 : vector<8x128xf32>
    %157 = vector.extract_strided_slice %136 {offsets = [0, 256], sizes = [8, 128], strides = [1, 1]} : vector<8x384xf32> to vector<8x128xf32>
    %158 = vector.extract_strided_slice %140 {offsets = [0, 256], sizes = [8, 128], strides = [1, 1]} : vector<8x384xf32> to vector<8x128xf32>
    %159 = arith.mulf %148, %158 : vector<8x128xf32>
    %160 = arith.addf %157, %159 : vector<8x128xf32>
    %161 = math.tanh %160 : vector<8x128xf32>
    %cst_58 = arith.constant 1.000000e+00 : f32
    %162 = vector.broadcast %cst_58 : f32 to vector<8x128xf32>
    %163 = arith.subf %162, %156 : vector<8x128xf32>
    %164 = arith.mulf %163, %161 : vector<8x128xf32>
    %165 = arith.mulf %156, %101 : vector<8x128xf32>
    %166 = arith.addf %164, %165 : vector<8x128xf32>
    %167 = vector.extract_strided_slice %93 {offsets = [8, 0], sizes = [8, 384], strides = [1, 1]} : vector<128x384xf32> to vector<8x384xf32>
    %168 = arith.truncf %132 : vector<8x128xf32> to vector<8x128xbf16>
    %cst_59 = arith.constant dense<0.000000e+00> : vector<8x384xf32>
    %169 = tpu.matmul %168, %94, %cst_59 {dimension_numbers = #tpu.dot_dimension_numbers<[1], [0], [0], [1], [0, 0, 1, 1], [], []>} : vector<8x128xbf16>, vector<128x384xbf16>, vector<8x384xf32> -> vector<8x384xf32>
    %170 = vector.broadcast %95 : vector<1x384xf32> to vector<8x384xf32>
    %171 = arith.addf %169, %170 : vector<8x384xf32>
    %172 = vector.extract_strided_slice %167 {offsets = [0, 0], sizes = [8, 128], strides = [1, 1]} : vector<8x384xf32> to vector<8x128xf32>
    %173 = vector.extract_strided_slice %171 {offsets = [0, 0], sizes = [8, 128], strides = [1, 1]} : vector<8x384xf32> to vector<8x128xf32>
    %174 = arith.addf %172, %173 : vector<8x128xf32>
    %175 = arith.negf %174 : vector<8x128xf32>
    %176 = math.exp %175 : vector<8x128xf32>
    %cst_60 = arith.constant 1.000000e+00 : f32
    %177 = vector.broadcast %cst_60 : f32 to vector<8x128xf32>
    %178 = arith.addf %177, %176 : vector<8x128xf32>
    %179 = arith.divf %177, %178 : vector<8x128xf32>
    %180 = vector.extract_strided_slice %167 {offsets = [0, 128], sizes = [8, 128], strides = [1, 1]} : vector<8x384xf32> to vector<8x128xf32>
    %181 = vector.extract_strided_slice %171 {offsets = [0, 128], sizes = [8, 128], strides = [1, 1]} : vector<8x384xf32> to vector<8x128xf32>
    %182 = arith.addf %180, %181 : vector<8x128xf32>
    %183 = arith.negf %182 : vector<8x128xf32>
    %184 = math.exp %183 : vector<8x128xf32>
    %cst_61 = arith.constant 1.000000e+00 : f32
    %185 = vector.broadcast %cst_61 : f32 to vector<8x128xf32>
    %186 = arith.addf %185, %184 : vector<8x128xf32>
    %187 = arith.divf %185, %186 : vector<8x128xf32>
    %188 = vector.extract_strided_slice %167 {offsets = [0, 256], sizes = [8, 128], strides = [1, 1]} : vector<8x384xf32> to vector<8x128xf32>
    %189 = vector.extract_strided_slice %171 {offsets = [0, 256], sizes = [8, 128], strides = [1, 1]} : vector<8x384xf32> to vector<8x128xf32>
    %190 = arith.mulf %179, %189 : vector<8x128xf32>
    %191 = arith.addf %188, %190 : vector<8x128xf32>
    %192 = math.tanh %191 : vector<8x128xf32>
    %cst_62 = arith.constant 1.000000e+00 : f32
    %193 = vector.broadcast %cst_62 : f32 to vector<8x128xf32>
    %194 = arith.subf %193, %187 : vector<8x128xf32>
    %195 = arith.mulf %194, %192 : vector<8x128xf32>
    %196 = arith.mulf %187, %132 : vector<8x128xf32>
    %197 = arith.addf %195, %196 : vector<8x128xf32>
    %198 = arith.truncf %197 : vector<8x128xf32> to vector<8x128xbf16>
    %cst_63 = arith.constant dense<0.000000e+00> : vector<8x384xf32>
    %199 = tpu.matmul %198, %96, %cst_63 {dimension_numbers = #tpu.dot_dimension_numbers<[1], [0], [0], [1], [0, 0, 1, 1], [], []>} : vector<8x128xbf16>, vector<128x384xbf16>, vector<8x384xf32> -> vector<8x384xf32>
    %200 = vector.broadcast %97 : vector<1x384xf32> to vector<8x384xf32>
    %201 = arith.addf %199, %200 : vector<8x384xf32>
    %202 = arith.truncf %166 : vector<8x128xf32> to vector<8x128xbf16>
    %cst_64 = arith.constant dense<0.000000e+00> : vector<8x384xf32>
    %203 = tpu.matmul %202, %98, %cst_64 {dimension_numbers = #tpu.dot_dimension_numbers<[1], [0], [0], [1], [0, 0, 1, 1], [], []>} : vector<8x128xbf16>, vector<128x384xbf16>, vector<8x384xf32> -> vector<8x384xf32>
    %204 = vector.broadcast %99 : vector<1x384xf32> to vector<8x384xf32>
    %205 = arith.addf %203, %204 : vector<8x384xf32>
    %206 = vector.extract_strided_slice %201 {offsets = [0, 0], sizes = [8, 128], strides = [1, 1]} : vector<8x384xf32> to vector<8x128xf32>
    %207 = vector.extract_strided_slice %205 {offsets = [0, 0], sizes = [8, 128], strides = [1, 1]} : vector<8x384xf32> to vector<8x128xf32>
    %208 = arith.addf %206, %207 : vector<8x128xf32>
    %209 = arith.negf %208 : vector<8x128xf32>
    %210 = math.exp %209 : vector<8x128xf32>
    %cst_65 = arith.constant 1.000000e+00 : f32
    %211 = vector.broadcast %cst_65 : f32 to vector<8x128xf32>
    %212 = arith.addf %211, %210 : vector<8x128xf32>
    %213 = arith.divf %211, %212 : vector<8x128xf32>
    %214 = vector.extract_strided_slice %201 {offsets = [0, 128], sizes = [8, 128], strides = [1, 1]} : vector<8x384xf32> to vector<8x128xf32>
    %215 = vector.extract_strided_slice %205 {offsets = [0, 128], sizes = [8, 128], strides = [1, 1]} : vector<8x384xf32> to vector<8x128xf32>
    %216 = arith.addf %214, %215 : vector<8x128xf32>
    %217 = arith.negf %216 : vector<8x128xf32>
    %218 = math.exp %217 : vector<8x128xf32>
    %cst_66 = arith.constant 1.000000e+00 : f32
    %219 = vector.broadcast %cst_66 : f32 to vector<8x128xf32>
    %220 = arith.addf %219, %218 : vector<8x128xf32>
    %221 = arith.divf %219, %220 : vector<8x128xf32>
    %222 = vector.extract_strided_slice %201 {offsets = [0, 256], sizes = [8, 128], strides = [1, 1]} : vector<8x384xf32> to vector<8x128xf32>
    %223 = vector.extract_strided_slice %205 {offsets = [0, 256], sizes = [8, 128], strides = [1, 1]} : vector<8x384xf32> to vector<8x128xf32>
    %224 = arith.mulf %213, %223 : vector<8x128xf32>
    %225 = arith.addf %222, %224 : vector<8x128xf32>
    %226 = math.tanh %225 : vector<8x128xf32>
    %cst_67 = arith.constant 1.000000e+00 : f32
    %227 = vector.broadcast %cst_67 : f32 to vector<8x128xf32>
    %228 = arith.subf %227, %221 : vector<8x128xf32>
    %229 = arith.mulf %228, %226 : vector<8x128xf32>
    %230 = arith.mulf %221, %166 : vector<8x128xf32>
    %231 = arith.addf %229, %230 : vector<8x128xf32>
    %232 = vector.extract_strided_slice %93 {offsets = [16, 0], sizes = [8, 384], strides = [1, 1]} : vector<128x384xf32> to vector<8x384xf32>
    %233 = arith.truncf %197 : vector<8x128xf32> to vector<8x128xbf16>
    %cst_68 = arith.constant dense<0.000000e+00> : vector<8x384xf32>
    %234 = tpu.matmul %233, %94, %cst_68 {dimension_numbers = #tpu.dot_dimension_numbers<[1], [0], [0], [1], [0, 0, 1, 1], [], []>} : vector<8x128xbf16>, vector<128x384xbf16>, vector<8x384xf32> -> vector<8x384xf32>
    %235 = vector.broadcast %95 : vector<1x384xf32> to vector<8x384xf32>
    %236 = arith.addf %234, %235 : vector<8x384xf32>
    %237 = vector.extract_strided_slice %232 {offsets = [0, 0], sizes = [8, 128], strides = [1, 1]} : vector<8x384xf32> to vector<8x128xf32>
    %238 = vector.extract_strided_slice %236 {offsets = [0, 0], sizes = [8, 128], strides = [1, 1]} : vector<8x384xf32> to vector<8x128xf32>
    %239 = arith.addf %237, %238 : vector<8x128xf32>
    %240 = arith.negf %239 : vector<8x128xf32>
    %241 = math.exp %240 : vector<8x128xf32>
    %cst_69 = arith.constant 1.000000e+00 : f32
    %242 = vector.broadcast %cst_69 : f32 to vector<8x128xf32>
    %243 = arith.addf %242, %241 : vector<8x128xf32>
    %244 = arith.divf %242, %243 : vector<8x128xf32>
    %245 = vector.extract_strided_slice %232 {offsets = [0, 128], sizes = [8, 128], strides = [1, 1]} : vector<8x384xf32> to vector<8x128xf32>
    %246 = vector.extract_strided_slice %236 {offsets = [0, 128], sizes = [8, 128], strides = [1, 1]} : vector<8x384xf32> to vector<8x128xf32>
    %247 = arith.addf %245, %246 : vector<8x128xf32>
    %248 = arith.negf %247 : vector<8x128xf32>
    %249 = math.exp %248 : vector<8x128xf32>
    %cst_70 = arith.constant 1.000000e+00 : f32
    %250 = vector.broadcast %cst_70 : f32 to vector<8x128xf32>
    %251 = arith.addf %250, %249 : vector<8x128xf32>
    %252 = arith.divf %250, %251 : vector<8x128xf32>
    %253 = vector.extract_strided_slice %232 {offsets = [0, 256], sizes = [8, 128], strides = [1, 1]} : vector<8x384xf32> to vector<8x128xf32>
    %254 = vector.extract_strided_slice %236 {offsets = [0, 256], sizes = [8, 128], strides = [1, 1]} : vector<8x384xf32> to vector<8x128xf32>
    %255 = arith.mulf %244, %254 : vector<8x128xf32>
    %256 = arith.addf %253, %255 : vector<8x128xf32>
    %257 = math.tanh %256 : vector<8x128xf32>
    %cst_71 = arith.constant 1.000000e+00 : f32
    %258 = vector.broadcast %cst_71 : f32 to vector<8x128xf32>
    %259 = arith.subf %258, %252 : vector<8x128xf32>
    %260 = arith.mulf %259, %257 : vector<8x128xf32>
    %261 = arith.mulf %252, %197 : vector<8x128xf32>
    %262 = arith.addf %260, %261 : vector<8x128xf32>
    %263 = arith.truncf %262 : vector<8x128xf32> to vector<8x128xbf16>
    %cst_72 = arith.constant dense<0.000000e+00> : vector<8x384xf32>
    %264 = tpu.matmul %263, %96, %cst_72 {dimension_numbers = #tpu.dot_dimension_numbers<[1], [0], [0], [1], [0, 0, 1, 1], [], []>} : vector<8x128xbf16>, vector<128x384xbf16>, vector<8x384xf32> -> vector<8x384xf32>
    %265 = vector.broadcast %97 : vector<1x384xf32> to vector<8x384xf32>
    %266 = arith.addf %264, %265 : vector<8x384xf32>
    %267 = arith.truncf %231 : vector<8x128xf32> to vector<8x128xbf16>
    %cst_73 = arith.constant dense<0.000000e+00> : vector<8x384xf32>
    %268 = tpu.matmul %267, %98, %cst_73 {dimension_numbers = #tpu.dot_dimension_numbers<[1], [0], [0], [1], [0, 0, 1, 1], [], []>} : vector<8x128xbf16>, vector<128x384xbf16>, vector<8x384xf32> -> vector<8x384xf32>
    %269 = vector.broadcast %99 : vector<1x384xf32> to vector<8x384xf32>
    %270 = arith.addf %268, %269 : vector<8x384xf32>
    %271 = vector.extract_strided_slice %266 {offsets = [0, 0], sizes = [8, 128], strides = [1, 1]} : vector<8x384xf32> to vector<8x128xf32>
    %272 = vector.extract_strided_slice %270 {offsets = [0, 0], sizes = [8, 128], strides = [1, 1]} : vector<8x384xf32> to vector<8x128xf32>
    %273 = arith.addf %271, %272 : vector<8x128xf32>
    %274 = arith.negf %273 : vector<8x128xf32>
    %275 = math.exp %274 : vector<8x128xf32>
    %cst_74 = arith.constant 1.000000e+00 : f32
    %276 = vector.broadcast %cst_74 : f32 to vector<8x128xf32>
    %277 = arith.addf %276, %275 : vector<8x128xf32>
    %278 = arith.divf %276, %277 : vector<8x128xf32>
    %279 = vector.extract_strided_slice %266 {offsets = [0, 128], sizes = [8, 128], strides = [1, 1]} : vector<8x384xf32> to vector<8x128xf32>
    %280 = vector.extract_strided_slice %270 {offsets = [0, 128], sizes = [8, 128], strides = [1, 1]} : vector<8x384xf32> to vector<8x128xf32>
    %281 = arith.addf %279, %280 : vector<8x128xf32>
    %282 = arith.negf %281 : vector<8x128xf32>
    %283 = math.exp %282 : vector<8x128xf32>
    %cst_75 = arith.constant 1.000000e+00 : f32
    %284 = vector.broadcast %cst_75 : f32 to vector<8x128xf32>
    %285 = arith.addf %284, %283 : vector<8x128xf32>
    %286 = arith.divf %284, %285 : vector<8x128xf32>
    %287 = vector.extract_strided_slice %266 {offsets = [0, 256], sizes = [8, 128], strides = [1, 1]} : vector<8x384xf32> to vector<8x128xf32>
    %288 = vector.extract_strided_slice %270 {offsets = [0, 256], sizes = [8, 128], strides = [1, 1]} : vector<8x384xf32> to vector<8x128xf32>
    %289 = arith.mulf %278, %288 : vector<8x128xf32>
    %290 = arith.addf %287, %289 : vector<8x128xf32>
    %291 = math.tanh %290 : vector<8x128xf32>
    %cst_76 = arith.constant 1.000000e+00 : f32
    %292 = vector.broadcast %cst_76 : f32 to vector<8x128xf32>
    %293 = arith.subf %292, %286 : vector<8x128xf32>
    %294 = arith.mulf %293, %291 : vector<8x128xf32>
    %295 = arith.mulf %286, %231 : vector<8x128xf32>
    %296 = arith.addf %294, %295 : vector<8x128xf32>
    %297 = vector.extract_strided_slice %93 {offsets = [24, 0], sizes = [8, 384], strides = [1, 1]} : vector<128x384xf32> to vector<8x384xf32>
    %298 = arith.truncf %262 : vector<8x128xf32> to vector<8x128xbf16>
    %cst_77 = arith.constant dense<0.000000e+00> : vector<8x384xf32>
    %299 = tpu.matmul %298, %94, %cst_77 {dimension_numbers = #tpu.dot_dimension_numbers<[1], [0], [0], [1], [0, 0, 1, 1], [], []>} : vector<8x128xbf16>, vector<128x384xbf16>, vector<8x384xf32> -> vector<8x384xf32>
    %300 = vector.broadcast %95 : vector<1x384xf32> to vector<8x384xf32>
    %301 = arith.addf %299, %300 : vector<8x384xf32>
    %302 = vector.extract_strided_slice %297 {offsets = [0, 0], sizes = [8, 128], strides = [1, 1]} : vector<8x384xf32> to vector<8x128xf32>
    %303 = vector.extract_strided_slice %301 {offsets = [0, 0], sizes = [8, 128], strides = [1, 1]} : vector<8x384xf32> to vector<8x128xf32>
    %304 = arith.addf %302, %303 : vector<8x128xf32>
    %305 = arith.negf %304 : vector<8x128xf32>
    %306 = math.exp %305 : vector<8x128xf32>
    %cst_78 = arith.constant 1.000000e+00 : f32
    %307 = vector.broadcast %cst_78 : f32 to vector<8x128xf32>
    %308 = arith.addf %307, %306 : vector<8x128xf32>
    %309 = arith.divf %307, %308 : vector<8x128xf32>
    %310 = vector.extract_strided_slice %297 {offsets = [0, 128], sizes = [8, 128], strides = [1, 1]} : vector<8x384xf32> to vector<8x128xf32>
    %311 = vector.extract_strided_slice %301 {offsets = [0, 128], sizes = [8, 128], strides = [1, 1]} : vector<8x384xf32> to vector<8x128xf32>
    %312 = arith.addf %310, %311 : vector<8x128xf32>
    %313 = arith.negf %312 : vector<8x128xf32>
    %314 = math.exp %313 : vector<8x128xf32>
    %cst_79 = arith.constant 1.000000e+00 : f32
    %315 = vector.broadcast %cst_79 : f32 to vector<8x128xf32>
    %316 = arith.addf %315, %314 : vector<8x128xf32>
    %317 = arith.divf %315, %316 : vector<8x128xf32>
    %318 = vector.extract_strided_slice %297 {offsets = [0, 256], sizes = [8, 128], strides = [1, 1]} : vector<8x384xf32> to vector<8x128xf32>
    %319 = vector.extract_strided_slice %301 {offsets = [0, 256], sizes = [8, 128], strides = [1, 1]} : vector<8x384xf32> to vector<8x128xf32>
    %320 = arith.mulf %309, %319 : vector<8x128xf32>
    %321 = arith.addf %318, %320 : vector<8x128xf32>
    %322 = math.tanh %321 : vector<8x128xf32>
    %cst_80 = arith.constant 1.000000e+00 : f32
    %323 = vector.broadcast %cst_80 : f32 to vector<8x128xf32>
    %324 = arith.subf %323, %317 : vector<8x128xf32>
    %325 = arith.mulf %324, %322 : vector<8x128xf32>
    %326 = arith.mulf %317, %262 : vector<8x128xf32>
    %327 = arith.addf %325, %326 : vector<8x128xf32>
    %328 = arith.truncf %327 : vector<8x128xf32> to vector<8x128xbf16>
    %cst_81 = arith.constant dense<0.000000e+00> : vector<8x384xf32>
    %329 = tpu.matmul %328, %96, %cst_81 {dimension_numbers = #tpu.dot_dimension_numbers<[1], [0], [0], [1], [0, 0, 1, 1], [], []>} : vector<8x128xbf16>, vector<128x384xbf16>, vector<8x384xf32> -> vector<8x384xf32>
    %330 = vector.broadcast %97 : vector<1x384xf32> to vector<8x384xf32>
    %331 = arith.addf %329, %330 : vector<8x384xf32>
    %332 = arith.truncf %296 : vector<8x128xf32> to vector<8x128xbf16>
    %cst_82 = arith.constant dense<0.000000e+00> : vector<8x384xf32>
    %333 = tpu.matmul %332, %98, %cst_82 {dimension_numbers = #tpu.dot_dimension_numbers<[1], [0], [0], [1], [0, 0, 1, 1], [], []>} : vector<8x128xbf16>, vector<128x384xbf16>, vector<8x384xf32> -> vector<8x384xf32>
    %334 = vector.broadcast %99 : vector<1x384xf32> to vector<8x384xf32>
    %335 = arith.addf %333, %334 : vector<8x384xf32>
    %336 = vector.extract_strided_slice %331 {offsets = [0, 0], sizes = [8, 128], strides = [1, 1]} : vector<8x384xf32> to vector<8x128xf32>
    %337 = vector.extract_strided_slice %335 {offsets = [0, 0], sizes = [8, 128], strides = [1, 1]} : vector<8x384xf32> to vector<8x128xf32>
    %338 = arith.addf %336, %337 : vector<8x128xf32>
    %339 = arith.negf %338 : vector<8x128xf32>
    %340 = math.exp %339 : vector<8x128xf32>
    %cst_83 = arith.constant 1.000000e+00 : f32
    %341 = vector.broadcast %cst_83 : f32 to vector<8x128xf32>
    %342 = arith.addf %341, %340 : vector<8x128xf32>
    %343 = arith.divf %341, %342 : vector<8x128xf32>
    %344 = vector.extract_strided_slice %331 {offsets = [0, 128], sizes = [8, 128], strides = [1, 1]} : vector<8x384xf32> to vector<8x128xf32>
    %345 = vector.extract_strided_slice %335 {offsets = [0, 128], sizes = [8, 128], strides = [1, 1]} : vector<8x384xf32> to vector<8x128xf32>
    %346 = arith.addf %344, %345 : vector<8x128xf32>
    %347 = arith.negf %346 : vector<8x128xf32>
    %348 = math.exp %347 : vector<8x128xf32>
    %cst_84 = arith.constant 1.000000e+00 : f32
    %349 = vector.broadcast %cst_84 : f32 to vector<8x128xf32>
    %350 = arith.addf %349, %348 : vector<8x128xf32>
    %351 = arith.divf %349, %350 : vector<8x128xf32>
    %352 = vector.extract_strided_slice %331 {offsets = [0, 256], sizes = [8, 128], strides = [1, 1]} : vector<8x384xf32> to vector<8x128xf32>
    %353 = vector.extract_strided_slice %335 {offsets = [0, 256], sizes = [8, 128], strides = [1, 1]} : vector<8x384xf32> to vector<8x128xf32>
    %354 = arith.mulf %343, %353 : vector<8x128xf32>
    %355 = arith.addf %352, %354 : vector<8x128xf32>
    %356 = math.tanh %355 : vector<8x128xf32>
    %cst_85 = arith.constant 1.000000e+00 : f32
    %357 = vector.broadcast %cst_85 : f32 to vector<8x128xf32>
    %358 = arith.subf %357, %351 : vector<8x128xf32>
    %359 = arith.mulf %358, %356 : vector<8x128xf32>
    %360 = arith.mulf %351, %296 : vector<8x128xf32>
    %361 = arith.addf %359, %360 : vector<8x128xf32>
    %362 = vector.extract_strided_slice %93 {offsets = [32, 0], sizes = [8, 384], strides = [1, 1]} : vector<128x384xf32> to vector<8x384xf32>
    %363 = arith.truncf %327 : vector<8x128xf32> to vector<8x128xbf16>
    %cst_86 = arith.constant dense<0.000000e+00> : vector<8x384xf32>
    %364 = tpu.matmul %363, %94, %cst_86 {dimension_numbers = #tpu.dot_dimension_numbers<[1], [0], [0], [1], [0, 0, 1, 1], [], []>} : vector<8x128xbf16>, vector<128x384xbf16>, vector<8x384xf32> -> vector<8x384xf32>
    %365 = vector.broadcast %95 : vector<1x384xf32> to vector<8x384xf32>
    %366 = arith.addf %364, %365 : vector<8x384xf32>
    %367 = vector.extract_strided_slice %362 {offsets = [0, 0], sizes = [8, 128], strides = [1, 1]} : vector<8x384xf32> to vector<8x128xf32>
    %368 = vector.extract_strided_slice %366 {offsets = [0, 0], sizes = [8, 128], strides = [1, 1]} : vector<8x384xf32> to vector<8x128xf32>
    %369 = arith.addf %367, %368 : vector<8x128xf32>
    %370 = arith.negf %369 : vector<8x128xf32>
    %371 = math.exp %370 : vector<8x128xf32>
    %cst_87 = arith.constant 1.000000e+00 : f32
    %372 = vector.broadcast %cst_87 : f32 to vector<8x128xf32>
    %373 = arith.addf %372, %371 : vector<8x128xf32>
    %374 = arith.divf %372, %373 : vector<8x128xf32>
    %375 = vector.extract_strided_slice %362 {offsets = [0, 128], sizes = [8, 128], strides = [1, 1]} : vector<8x384xf32> to vector<8x128xf32>
    %376 = vector.extract_strided_slice %366 {offsets = [0, 128], sizes = [8, 128], strides = [1, 1]} : vector<8x384xf32> to vector<8x128xf32>
    %377 = arith.addf %375, %376 : vector<8x128xf32>
    %378 = arith.negf %377 : vector<8x128xf32>
    %379 = math.exp %378 : vector<8x128xf32>
    %cst_88 = arith.constant 1.000000e+00 : f32
    %380 = vector.broadcast %cst_88 : f32 to vector<8x128xf32>
    %381 = arith.addf %380, %379 : vector<8x128xf32>
    %382 = arith.divf %380, %381 : vector<8x128xf32>
    %383 = vector.extract_strided_slice %362 {offsets = [0, 256], sizes = [8, 128], strides = [1, 1]} : vector<8x384xf32> to vector<8x128xf32>
    %384 = vector.extract_strided_slice %366 {offsets = [0, 256], sizes = [8, 128], strides = [1, 1]} : vector<8x384xf32> to vector<8x128xf32>
    %385 = arith.mulf %374, %384 : vector<8x128xf32>
    %386 = arith.addf %383, %385 : vector<8x128xf32>
    %387 = math.tanh %386 : vector<8x128xf32>
    %cst_89 = arith.constant 1.000000e+00 : f32
    %388 = vector.broadcast %cst_89 : f32 to vector<8x128xf32>
    %389 = arith.subf %388, %382 : vector<8x128xf32>
    %390 = arith.mulf %389, %387 : vector<8x128xf32>
    %391 = arith.mulf %382, %327 : vector<8x128xf32>
    %392 = arith.addf %390, %391 : vector<8x128xf32>
    %393 = arith.truncf %392 : vector<8x128xf32> to vector<8x128xbf16>
    %cst_90 = arith.constant dense<0.000000e+00> : vector<8x384xf32>
    %394 = tpu.matmul %393, %96, %cst_90 {dimension_numbers = #tpu.dot_dimension_numbers<[1], [0], [0], [1], [0, 0, 1, 1], [], []>} : vector<8x128xbf16>, vector<128x384xbf16>, vector<8x384xf32> -> vector<8x384xf32>
    %395 = vector.broadcast %97 : vector<1x384xf32> to vector<8x384xf32>
    %396 = arith.addf %394, %395 : vector<8x384xf32>
    %397 = arith.truncf %361 : vector<8x128xf32> to vector<8x128xbf16>
    %cst_91 = arith.constant dense<0.000000e+00> : vector<8x384xf32>
    %398 = tpu.matmul %397, %98, %cst_91 {dimension_numbers = #tpu.dot_dimension_numbers<[1], [0], [0], [1], [0, 0, 1, 1], [], []>} : vector<8x128xbf16>, vector<128x384xbf16>, vector<8x384xf32> -> vector<8x384xf32>
    %399 = vector.broadcast %99 : vector<1x384xf32> to vector<8x384xf32>
    %400 = arith.addf %398, %399 : vector<8x384xf32>
    %401 = vector.extract_strided_slice %396 {offsets = [0, 0], sizes = [8, 128], strides = [1, 1]} : vector<8x384xf32> to vector<8x128xf32>
    %402 = vector.extract_strided_slice %400 {offsets = [0, 0], sizes = [8, 128], strides = [1, 1]} : vector<8x384xf32> to vector<8x128xf32>
    %403 = arith.addf %401, %402 : vector<8x128xf32>
    %404 = arith.negf %403 : vector<8x128xf32>
    %405 = math.exp %404 : vector<8x128xf32>
    %cst_92 = arith.constant 1.000000e+00 : f32
    %406 = vector.broadcast %cst_92 : f32 to vector<8x128xf32>
    %407 = arith.addf %406, %405 : vector<8x128xf32>
    %408 = arith.divf %406, %407 : vector<8x128xf32>
    %409 = vector.extract_strided_slice %396 {offsets = [0, 128], sizes = [8, 128], strides = [1, 1]} : vector<8x384xf32> to vector<8x128xf32>
    %410 = vector.extract_strided_slice %400 {offsets = [0, 128], sizes = [8, 128], strides = [1, 1]} : vector<8x384xf32> to vector<8x128xf32>
    %411 = arith.addf %409, %410 : vector<8x128xf32>
    %412 = arith.negf %411 : vector<8x128xf32>
    %413 = math.exp %412 : vector<8x128xf32>
    %cst_93 = arith.constant 1.000000e+00 : f32
    %414 = vector.broadcast %cst_93 : f32 to vector<8x128xf32>
    %415 = arith.addf %414, %413 : vector<8x128xf32>
    %416 = arith.divf %414, %415 : vector<8x128xf32>
    %417 = vector.extract_strided_slice %396 {offsets = [0, 256], sizes = [8, 128], strides = [1, 1]} : vector<8x384xf32> to vector<8x128xf32>
    %418 = vector.extract_strided_slice %400 {offsets = [0, 256], sizes = [8, 128], strides = [1, 1]} : vector<8x384xf32> to vector<8x128xf32>
    %419 = arith.mulf %408, %418 : vector<8x128xf32>
    %420 = arith.addf %417, %419 : vector<8x128xf32>
    %421 = math.tanh %420 : vector<8x128xf32>
    %cst_94 = arith.constant 1.000000e+00 : f32
    %422 = vector.broadcast %cst_94 : f32 to vector<8x128xf32>
    %423 = arith.subf %422, %416 : vector<8x128xf32>
    %424 = arith.mulf %423, %421 : vector<8x128xf32>
    %425 = arith.mulf %416, %361 : vector<8x128xf32>
    %426 = arith.addf %424, %425 : vector<8x128xf32>
    %427 = vector.extract_strided_slice %93 {offsets = [40, 0], sizes = [8, 384], strides = [1, 1]} : vector<128x384xf32> to vector<8x384xf32>
    %428 = arith.truncf %392 : vector<8x128xf32> to vector<8x128xbf16>
    %cst_95 = arith.constant dense<0.000000e+00> : vector<8x384xf32>
    %429 = tpu.matmul %428, %94, %cst_95 {dimension_numbers = #tpu.dot_dimension_numbers<[1], [0], [0], [1], [0, 0, 1, 1], [], []>} : vector<8x128xbf16>, vector<128x384xbf16>, vector<8x384xf32> -> vector<8x384xf32>
    %430 = vector.broadcast %95 : vector<1x384xf32> to vector<8x384xf32>
    %431 = arith.addf %429, %430 : vector<8x384xf32>
    %432 = vector.extract_strided_slice %427 {offsets = [0, 0], sizes = [8, 128], strides = [1, 1]} : vector<8x384xf32> to vector<8x128xf32>
    %433 = vector.extract_strided_slice %431 {offsets = [0, 0], sizes = [8, 128], strides = [1, 1]} : vector<8x384xf32> to vector<8x128xf32>
    %434 = arith.addf %432, %433 : vector<8x128xf32>
    %435 = arith.negf %434 : vector<8x128xf32>
    %436 = math.exp %435 : vector<8x128xf32>
    %cst_96 = arith.constant 1.000000e+00 : f32
    %437 = vector.broadcast %cst_96 : f32 to vector<8x128xf32>
    %438 = arith.addf %437, %436 : vector<8x128xf32>
    %439 = arith.divf %437, %438 : vector<8x128xf32>
    %440 = vector.extract_strided_slice %427 {offsets = [0, 128], sizes = [8, 128], strides = [1, 1]} : vector<8x384xf32> to vector<8x128xf32>
    %441 = vector.extract_strided_slice %431 {offsets = [0, 128], sizes = [8, 128], strides = [1, 1]} : vector<8x384xf32> to vector<8x128xf32>
    %442 = arith.addf %440, %441 : vector<8x128xf32>
    %443 = arith.negf %442 : vector<8x128xf32>
    %444 = math.exp %443 : vector<8x128xf32>
    %cst_97 = arith.constant 1.000000e+00 : f32
    %445 = vector.broadcast %cst_97 : f32 to vector<8x128xf32>
    %446 = arith.addf %445, %444 : vector<8x128xf32>
    %447 = arith.divf %445, %446 : vector<8x128xf32>
    %448 = vector.extract_strided_slice %427 {offsets = [0, 256], sizes = [8, 128], strides = [1, 1]} : vector<8x384xf32> to vector<8x128xf32>
    %449 = vector.extract_strided_slice %431 {offsets = [0, 256], sizes = [8, 128], strides = [1, 1]} : vector<8x384xf32> to vector<8x128xf32>
    %450 = arith.mulf %439, %449 : vector<8x128xf32>
    %451 = arith.addf %448, %450 : vector<8x128xf32>
    %452 = math.tanh %451 : vector<8x128xf32>
    %cst_98 = arith.constant 1.000000e+00 : f32
    %453 = vector.broadcast %cst_98 : f32 to vector<8x128xf32>
    %454 = arith.subf %453, %447 : vector<8x128xf32>
    %455 = arith.mulf %454, %452 : vector<8x128xf32>
    %456 = arith.mulf %447, %392 : vector<8x128xf32>
    %457 = arith.addf %455, %456 : vector<8x128xf32>
    %458 = arith.truncf %457 : vector<8x128xf32> to vector<8x128xbf16>
    %cst_99 = arith.constant dense<0.000000e+00> : vector<8x384xf32>
    %459 = tpu.matmul %458, %96, %cst_99 {dimension_numbers = #tpu.dot_dimension_numbers<[1], [0], [0], [1], [0, 0, 1, 1], [], []>} : vector<8x128xbf16>, vector<128x384xbf16>, vector<8x384xf32> -> vector<8x384xf32>
    %460 = vector.broadcast %97 : vector<1x384xf32> to vector<8x384xf32>
    %461 = arith.addf %459, %460 : vector<8x384xf32>
    %462 = arith.truncf %426 : vector<8x128xf32> to vector<8x128xbf16>
    %cst_100 = arith.constant dense<0.000000e+00> : vector<8x384xf32>
    %463 = tpu.matmul %462, %98, %cst_100 {dimension_numbers = #tpu.dot_dimension_numbers<[1], [0], [0], [1], [0, 0, 1, 1], [], []>} : vector<8x128xbf16>, vector<128x384xbf16>, vector<8x384xf32> -> vector<8x384xf32>
    %464 = vector.broadcast %99 : vector<1x384xf32> to vector<8x384xf32>
    %465 = arith.addf %463, %464 : vector<8x384xf32>
    %466 = vector.extract_strided_slice %461 {offsets = [0, 0], sizes = [8, 128], strides = [1, 1]} : vector<8x384xf32> to vector<8x128xf32>
    %467 = vector.extract_strided_slice %465 {offsets = [0, 0], sizes = [8, 128], strides = [1, 1]} : vector<8x384xf32> to vector<8x128xf32>
    %468 = arith.addf %466, %467 : vector<8x128xf32>
    %469 = arith.negf %468 : vector<8x128xf32>
    %470 = math.exp %469 : vector<8x128xf32>
    %cst_101 = arith.constant 1.000000e+00 : f32
    %471 = vector.broadcast %cst_101 : f32 to vector<8x128xf32>
    %472 = arith.addf %471, %470 : vector<8x128xf32>
    %473 = arith.divf %471, %472 : vector<8x128xf32>
    %474 = vector.extract_strided_slice %461 {offsets = [0, 128], sizes = [8, 128], strides = [1, 1]} : vector<8x384xf32> to vector<8x128xf32>
    %475 = vector.extract_strided_slice %465 {offsets = [0, 128], sizes = [8, 128], strides = [1, 1]} : vector<8x384xf32> to vector<8x128xf32>
    %476 = arith.addf %474, %475 : vector<8x128xf32>
    %477 = arith.negf %476 : vector<8x128xf32>
    %478 = math.exp %477 : vector<8x128xf32>
    %cst_102 = arith.constant 1.000000e+00 : f32
    %479 = vector.broadcast %cst_102 : f32 to vector<8x128xf32>
    %480 = arith.addf %479, %478 : vector<8x128xf32>
    %481 = arith.divf %479, %480 : vector<8x128xf32>
    %482 = vector.extract_strided_slice %461 {offsets = [0, 256], sizes = [8, 128], strides = [1, 1]} : vector<8x384xf32> to vector<8x128xf32>
    %483 = vector.extract_strided_slice %465 {offsets = [0, 256], sizes = [8, 128], strides = [1, 1]} : vector<8x384xf32> to vector<8x128xf32>
    %484 = arith.mulf %473, %483 : vector<8x128xf32>
    %485 = arith.addf %482, %484 : vector<8x128xf32>
    %486 = math.tanh %485 : vector<8x128xf32>
    %cst_103 = arith.constant 1.000000e+00 : f32
    %487 = vector.broadcast %cst_103 : f32 to vector<8x128xf32>
    %488 = arith.subf %487, %481 : vector<8x128xf32>
    %489 = arith.mulf %488, %486 : vector<8x128xf32>
    %490 = arith.mulf %481, %426 : vector<8x128xf32>
    %491 = arith.addf %489, %490 : vector<8x128xf32>
    %492 = vector.extract_strided_slice %93 {offsets = [48, 0], sizes = [8, 384], strides = [1, 1]} : vector<128x384xf32> to vector<8x384xf32>
    %493 = arith.truncf %457 : vector<8x128xf32> to vector<8x128xbf16>
    %cst_104 = arith.constant dense<0.000000e+00> : vector<8x384xf32>
    %494 = tpu.matmul %493, %94, %cst_104 {dimension_numbers = #tpu.dot_dimension_numbers<[1], [0], [0], [1], [0, 0, 1, 1], [], []>} : vector<8x128xbf16>, vector<128x384xbf16>, vector<8x384xf32> -> vector<8x384xf32>
    %495 = vector.broadcast %95 : vector<1x384xf32> to vector<8x384xf32>
    %496 = arith.addf %494, %495 : vector<8x384xf32>
    %497 = vector.extract_strided_slice %492 {offsets = [0, 0], sizes = [8, 128], strides = [1, 1]} : vector<8x384xf32> to vector<8x128xf32>
    %498 = vector.extract_strided_slice %496 {offsets = [0, 0], sizes = [8, 128], strides = [1, 1]} : vector<8x384xf32> to vector<8x128xf32>
    %499 = arith.addf %497, %498 : vector<8x128xf32>
    %500 = arith.negf %499 : vector<8x128xf32>
    %501 = math.exp %500 : vector<8x128xf32>
    %cst_105 = arith.constant 1.000000e+00 : f32
    %502 = vector.broadcast %cst_105 : f32 to vector<8x128xf32>
    %503 = arith.addf %502, %501 : vector<8x128xf32>
    %504 = arith.divf %502, %503 : vector<8x128xf32>
    %505 = vector.extract_strided_slice %492 {offsets = [0, 128], sizes = [8, 128], strides = [1, 1]} : vector<8x384xf32> to vector<8x128xf32>
    %506 = vector.extract_strided_slice %496 {offsets = [0, 128], sizes = [8, 128], strides = [1, 1]} : vector<8x384xf32> to vector<8x128xf32>
    %507 = arith.addf %505, %506 : vector<8x128xf32>
    %508 = arith.negf %507 : vector<8x128xf32>
    %509 = math.exp %508 : vector<8x128xf32>
    %cst_106 = arith.constant 1.000000e+00 : f32
    %510 = vector.broadcast %cst_106 : f32 to vector<8x128xf32>
    %511 = arith.addf %510, %509 : vector<8x128xf32>
    %512 = arith.divf %510, %511 : vector<8x128xf32>
    %513 = vector.extract_strided_slice %492 {offsets = [0, 256], sizes = [8, 128], strides = [1, 1]} : vector<8x384xf32> to vector<8x128xf32>
    %514 = vector.extract_strided_slice %496 {offsets = [0, 256], sizes = [8, 128], strides = [1, 1]} : vector<8x384xf32> to vector<8x128xf32>
    %515 = arith.mulf %504, %514 : vector<8x128xf32>
    %516 = arith.addf %513, %515 : vector<8x128xf32>
    %517 = math.tanh %516 : vector<8x128xf32>
    %cst_107 = arith.constant 1.000000e+00 : f32
    %518 = vector.broadcast %cst_107 : f32 to vector<8x128xf32>
    %519 = arith.subf %518, %512 : vector<8x128xf32>
    %520 = arith.mulf %519, %517 : vector<8x128xf32>
    %521 = arith.mulf %512, %457 : vector<8x128xf32>
    %522 = arith.addf %520, %521 : vector<8x128xf32>
    %523 = arith.truncf %522 : vector<8x128xf32> to vector<8x128xbf16>
    %cst_108 = arith.constant dense<0.000000e+00> : vector<8x384xf32>
    %524 = tpu.matmul %523, %96, %cst_108 {dimension_numbers = #tpu.dot_dimension_numbers<[1], [0], [0], [1], [0, 0, 1, 1], [], []>} : vector<8x128xbf16>, vector<128x384xbf16>, vector<8x384xf32> -> vector<8x384xf32>
    %525 = vector.broadcast %97 : vector<1x384xf32> to vector<8x384xf32>
    %526 = arith.addf %524, %525 : vector<8x384xf32>
    %527 = arith.truncf %491 : vector<8x128xf32> to vector<8x128xbf16>
    %cst_109 = arith.constant dense<0.000000e+00> : vector<8x384xf32>
    %528 = tpu.matmul %527, %98, %cst_109 {dimension_numbers = #tpu.dot_dimension_numbers<[1], [0], [0], [1], [0, 0, 1, 1], [], []>} : vector<8x128xbf16>, vector<128x384xbf16>, vector<8x384xf32> -> vector<8x384xf32>
    %529 = vector.broadcast %99 : vector<1x384xf32> to vector<8x384xf32>
    %530 = arith.addf %528, %529 : vector<8x384xf32>
    %531 = vector.extract_strided_slice %526 {offsets = [0, 0], sizes = [8, 128], strides = [1, 1]} : vector<8x384xf32> to vector<8x128xf32>
    %532 = vector.extract_strided_slice %530 {offsets = [0, 0], sizes = [8, 128], strides = [1, 1]} : vector<8x384xf32> to vector<8x128xf32>
    %533 = arith.addf %531, %532 : vector<8x128xf32>
    %534 = arith.negf %533 : vector<8x128xf32>
    %535 = math.exp %534 : vector<8x128xf32>
    %cst_110 = arith.constant 1.000000e+00 : f32
    %536 = vector.broadcast %cst_110 : f32 to vector<8x128xf32>
    %537 = arith.addf %536, %535 : vector<8x128xf32>
    %538 = arith.divf %536, %537 : vector<8x128xf32>
    %539 = vector.extract_strided_slice %526 {offsets = [0, 128], sizes = [8, 128], strides = [1, 1]} : vector<8x384xf32> to vector<8x128xf32>
    %540 = vector.extract_strided_slice %530 {offsets = [0, 128], sizes = [8, 128], strides = [1, 1]} : vector<8x384xf32> to vector<8x128xf32>
    %541 = arith.addf %539, %540 : vector<8x128xf32>
    %542 = arith.negf %541 : vector<8x128xf32>
    %543 = math.exp %542 : vector<8x128xf32>
    %cst_111 = arith.constant 1.000000e+00 : f32
    %544 = vector.broadcast %cst_111 : f32 to vector<8x128xf32>
    %545 = arith.addf %544, %543 : vector<8x128xf32>
    %546 = arith.divf %544, %545 : vector<8x128xf32>
    %547 = vector.extract_strided_slice %526 {offsets = [0, 256], sizes = [8, 128], strides = [1, 1]} : vector<8x384xf32> to vector<8x128xf32>
    %548 = vector.extract_strided_slice %530 {offsets = [0, 256], sizes = [8, 128], strides = [1, 1]} : vector<8x384xf32> to vector<8x128xf32>
    %549 = arith.mulf %538, %548 : vector<8x128xf32>
    %550 = arith.addf %547, %549 : vector<8x128xf32>
    %551 = math.tanh %550 : vector<8x128xf32>
    %cst_112 = arith.constant 1.000000e+00 : f32
    %552 = vector.broadcast %cst_112 : f32 to vector<8x128xf32>
    %553 = arith.subf %552, %546 : vector<8x128xf32>
    %554 = arith.mulf %553, %551 : vector<8x128xf32>
    %555 = arith.mulf %546, %491 : vector<8x128xf32>
    %556 = arith.addf %554, %555 : vector<8x128xf32>
    %557 = vector.extract_strided_slice %93 {offsets = [56, 0], sizes = [8, 384], strides = [1, 1]} : vector<128x384xf32> to vector<8x384xf32>
    %558 = arith.truncf %522 : vector<8x128xf32> to vector<8x128xbf16>
    %cst_113 = arith.constant dense<0.000000e+00> : vector<8x384xf32>
    %559 = tpu.matmul %558, %94, %cst_113 {dimension_numbers = #tpu.dot_dimension_numbers<[1], [0], [0], [1], [0, 0, 1, 1], [], []>} : vector<8x128xbf16>, vector<128x384xbf16>, vector<8x384xf32> -> vector<8x384xf32>
    %560 = vector.broadcast %95 : vector<1x384xf32> to vector<8x384xf32>
    %561 = arith.addf %559, %560 : vector<8x384xf32>
    %562 = vector.extract_strided_slice %557 {offsets = [0, 0], sizes = [8, 128], strides = [1, 1]} : vector<8x384xf32> to vector<8x128xf32>
    %563 = vector.extract_strided_slice %561 {offsets = [0, 0], sizes = [8, 128], strides = [1, 1]} : vector<8x384xf32> to vector<8x128xf32>
    %564 = arith.addf %562, %563 : vector<8x128xf32>
    %565 = arith.negf %564 : vector<8x128xf32>
    %566 = math.exp %565 : vector<8x128xf32>
    %cst_114 = arith.constant 1.000000e+00 : f32
    %567 = vector.broadcast %cst_114 : f32 to vector<8x128xf32>
    %568 = arith.addf %567, %566 : vector<8x128xf32>
    %569 = arith.divf %567, %568 : vector<8x128xf32>
    %570 = vector.extract_strided_slice %557 {offsets = [0, 128], sizes = [8, 128], strides = [1, 1]} : vector<8x384xf32> to vector<8x128xf32>
    %571 = vector.extract_strided_slice %561 {offsets = [0, 128], sizes = [8, 128], strides = [1, 1]} : vector<8x384xf32> to vector<8x128xf32>
    %572 = arith.addf %570, %571 : vector<8x128xf32>
    %573 = arith.negf %572 : vector<8x128xf32>
    %574 = math.exp %573 : vector<8x128xf32>
    %cst_115 = arith.constant 1.000000e+00 : f32
    %575 = vector.broadcast %cst_115 : f32 to vector<8x128xf32>
    %576 = arith.addf %575, %574 : vector<8x128xf32>
    %577 = arith.divf %575, %576 : vector<8x128xf32>
    %578 = vector.extract_strided_slice %557 {offsets = [0, 256], sizes = [8, 128], strides = [1, 1]} : vector<8x384xf32> to vector<8x128xf32>
    %579 = vector.extract_strided_slice %561 {offsets = [0, 256], sizes = [8, 128], strides = [1, 1]} : vector<8x384xf32> to vector<8x128xf32>
    %580 = arith.mulf %569, %579 : vector<8x128xf32>
    %581 = arith.addf %578, %580 : vector<8x128xf32>
    %582 = math.tanh %581 : vector<8x128xf32>
    %cst_116 = arith.constant 1.000000e+00 : f32
    %583 = vector.broadcast %cst_116 : f32 to vector<8x128xf32>
    %584 = arith.subf %583, %577 : vector<8x128xf32>
    %585 = arith.mulf %584, %582 : vector<8x128xf32>
    %586 = arith.mulf %577, %522 : vector<8x128xf32>
    %587 = arith.addf %585, %586 : vector<8x128xf32>
    %588 = arith.truncf %587 : vector<8x128xf32> to vector<8x128xbf16>
    %cst_117 = arith.constant dense<0.000000e+00> : vector<8x384xf32>
    %589 = tpu.matmul %588, %96, %cst_117 {dimension_numbers = #tpu.dot_dimension_numbers<[1], [0], [0], [1], [0, 0, 1, 1], [], []>} : vector<8x128xbf16>, vector<128x384xbf16>, vector<8x384xf32> -> vector<8x384xf32>
    %590 = vector.broadcast %97 : vector<1x384xf32> to vector<8x384xf32>
    %591 = arith.addf %589, %590 : vector<8x384xf32>
    %592 = arith.truncf %556 : vector<8x128xf32> to vector<8x128xbf16>
    %cst_118 = arith.constant dense<0.000000e+00> : vector<8x384xf32>
    %593 = tpu.matmul %592, %98, %cst_118 {dimension_numbers = #tpu.dot_dimension_numbers<[1], [0], [0], [1], [0, 0, 1, 1], [], []>} : vector<8x128xbf16>, vector<128x384xbf16>, vector<8x384xf32> -> vector<8x384xf32>
    %594 = vector.broadcast %99 : vector<1x384xf32> to vector<8x384xf32>
    %595 = arith.addf %593, %594 : vector<8x384xf32>
    %596 = vector.extract_strided_slice %591 {offsets = [0, 0], sizes = [8, 128], strides = [1, 1]} : vector<8x384xf32> to vector<8x128xf32>
    %597 = vector.extract_strided_slice %595 {offsets = [0, 0], sizes = [8, 128], strides = [1, 1]} : vector<8x384xf32> to vector<8x128xf32>
    %598 = arith.addf %596, %597 : vector<8x128xf32>
    %599 = arith.negf %598 : vector<8x128xf32>
    %600 = math.exp %599 : vector<8x128xf32>
    %cst_119 = arith.constant 1.000000e+00 : f32
    %601 = vector.broadcast %cst_119 : f32 to vector<8x128xf32>
    %602 = arith.addf %601, %600 : vector<8x128xf32>
    %603 = arith.divf %601, %602 : vector<8x128xf32>
    %604 = vector.extract_strided_slice %591 {offsets = [0, 128], sizes = [8, 128], strides = [1, 1]} : vector<8x384xf32> to vector<8x128xf32>
    %605 = vector.extract_strided_slice %595 {offsets = [0, 128], sizes = [8, 128], strides = [1, 1]} : vector<8x384xf32> to vector<8x128xf32>
    %606 = arith.addf %604, %605 : vector<8x128xf32>
    %607 = arith.negf %606 : vector<8x128xf32>
    %608 = math.exp %607 : vector<8x128xf32>
    %cst_120 = arith.constant 1.000000e+00 : f32
    %609 = vector.broadcast %cst_120 : f32 to vector<8x128xf32>
    %610 = arith.addf %609, %608 : vector<8x128xf32>
    %611 = arith.divf %609, %610 : vector<8x128xf32>
    %612 = vector.extract_strided_slice %591 {offsets = [0, 256], sizes = [8, 128], strides = [1, 1]} : vector<8x384xf32> to vector<8x128xf32>
    %613 = vector.extract_strided_slice %595 {offsets = [0, 256], sizes = [8, 128], strides = [1, 1]} : vector<8x384xf32> to vector<8x128xf32>
    %614 = arith.mulf %603, %613 : vector<8x128xf32>
    %615 = arith.addf %612, %614 : vector<8x128xf32>
    %616 = math.tanh %615 : vector<8x128xf32>
    %cst_121 = arith.constant 1.000000e+00 : f32
    %617 = vector.broadcast %cst_121 : f32 to vector<8x128xf32>
    %618 = arith.subf %617, %611 : vector<8x128xf32>
    %619 = arith.mulf %618, %616 : vector<8x128xf32>
    %620 = arith.mulf %611, %556 : vector<8x128xf32>
    %621 = arith.addf %619, %620 : vector<8x128xf32>
    %622 = vector.extract_strided_slice %93 {offsets = [64, 0], sizes = [8, 384], strides = [1, 1]} : vector<128x384xf32> to vector<8x384xf32>
    %623 = arith.truncf %587 : vector<8x128xf32> to vector<8x128xbf16>
    %cst_122 = arith.constant dense<0.000000e+00> : vector<8x384xf32>
    %624 = tpu.matmul %623, %94, %cst_122 {dimension_numbers = #tpu.dot_dimension_numbers<[1], [0], [0], [1], [0, 0, 1, 1], [], []>} : vector<8x128xbf16>, vector<128x384xbf16>, vector<8x384xf32> -> vector<8x384xf32>
    %625 = vector.broadcast %95 : vector<1x384xf32> to vector<8x384xf32>
    %626 = arith.addf %624, %625 : vector<8x384xf32>
    %627 = vector.extract_strided_slice %622 {offsets = [0, 0], sizes = [8, 128], strides = [1, 1]} : vector<8x384xf32> to vector<8x128xf32>
    %628 = vector.extract_strided_slice %626 {offsets = [0, 0], sizes = [8, 128], strides = [1, 1]} : vector<8x384xf32> to vector<8x128xf32>
    %629 = arith.addf %627, %628 : vector<8x128xf32>
    %630 = arith.negf %629 : vector<8x128xf32>
    %631 = math.exp %630 : vector<8x128xf32>
    %cst_123 = arith.constant 1.000000e+00 : f32
    %632 = vector.broadcast %cst_123 : f32 to vector<8x128xf32>
    %633 = arith.addf %632, %631 : vector<8x128xf32>
    %634 = arith.divf %632, %633 : vector<8x128xf32>
    %635 = vector.extract_strided_slice %622 {offsets = [0, 128], sizes = [8, 128], strides = [1, 1]} : vector<8x384xf32> to vector<8x128xf32>
    %636 = vector.extract_strided_slice %626 {offsets = [0, 128], sizes = [8, 128], strides = [1, 1]} : vector<8x384xf32> to vector<8x128xf32>
    %637 = arith.addf %635, %636 : vector<8x128xf32>
    %638 = arith.negf %637 : vector<8x128xf32>
    %639 = math.exp %638 : vector<8x128xf32>
    %cst_124 = arith.constant 1.000000e+00 : f32
    %640 = vector.broadcast %cst_124 : f32 to vector<8x128xf32>
    %641 = arith.addf %640, %639 : vector<8x128xf32>
    %642 = arith.divf %640, %641 : vector<8x128xf32>
    %643 = vector.extract_strided_slice %622 {offsets = [0, 256], sizes = [8, 128], strides = [1, 1]} : vector<8x384xf32> to vector<8x128xf32>
    %644 = vector.extract_strided_slice %626 {offsets = [0, 256], sizes = [8, 128], strides = [1, 1]} : vector<8x384xf32> to vector<8x128xf32>
    %645 = arith.mulf %634, %644 : vector<8x128xf32>
    %646 = arith.addf %643, %645 : vector<8x128xf32>
    %647 = math.tanh %646 : vector<8x128xf32>
    %cst_125 = arith.constant 1.000000e+00 : f32
    %648 = vector.broadcast %cst_125 : f32 to vector<8x128xf32>
    %649 = arith.subf %648, %642 : vector<8x128xf32>
    %650 = arith.mulf %649, %647 : vector<8x128xf32>
    %651 = arith.mulf %642, %587 : vector<8x128xf32>
    %652 = arith.addf %650, %651 : vector<8x128xf32>
    %653 = arith.truncf %652 : vector<8x128xf32> to vector<8x128xbf16>
    %cst_126 = arith.constant dense<0.000000e+00> : vector<8x384xf32>
    %654 = tpu.matmul %653, %96, %cst_126 {dimension_numbers = #tpu.dot_dimension_numbers<[1], [0], [0], [1], [0, 0, 1, 1], [], []>} : vector<8x128xbf16>, vector<128x384xbf16>, vector<8x384xf32> -> vector<8x384xf32>
    %655 = vector.broadcast %97 : vector<1x384xf32> to vector<8x384xf32>
    %656 = arith.addf %654, %655 : vector<8x384xf32>
    %657 = arith.truncf %621 : vector<8x128xf32> to vector<8x128xbf16>
    %cst_127 = arith.constant dense<0.000000e+00> : vector<8x384xf32>
    %658 = tpu.matmul %657, %98, %cst_127 {dimension_numbers = #tpu.dot_dimension_numbers<[1], [0], [0], [1], [0, 0, 1, 1], [], []>} : vector<8x128xbf16>, vector<128x384xbf16>, vector<8x384xf32> -> vector<8x384xf32>
    %659 = vector.broadcast %99 : vector<1x384xf32> to vector<8x384xf32>
    %660 = arith.addf %658, %659 : vector<8x384xf32>
    %661 = vector.extract_strided_slice %656 {offsets = [0, 0], sizes = [8, 128], strides = [1, 1]} : vector<8x384xf32> to vector<8x128xf32>
    %662 = vector.extract_strided_slice %660 {offsets = [0, 0], sizes = [8, 128], strides = [1, 1]} : vector<8x384xf32> to vector<8x128xf32>
    %663 = arith.addf %661, %662 : vector<8x128xf32>
    %664 = arith.negf %663 : vector<8x128xf32>
    %665 = math.exp %664 : vector<8x128xf32>
    %cst_128 = arith.constant 1.000000e+00 : f32
    %666 = vector.broadcast %cst_128 : f32 to vector<8x128xf32>
    %667 = arith.addf %666, %665 : vector<8x128xf32>
    %668 = arith.divf %666, %667 : vector<8x128xf32>
    %669 = vector.extract_strided_slice %656 {offsets = [0, 128], sizes = [8, 128], strides = [1, 1]} : vector<8x384xf32> to vector<8x128xf32>
    %670 = vector.extract_strided_slice %660 {offsets = [0, 128], sizes = [8, 128], strides = [1, 1]} : vector<8x384xf32> to vector<8x128xf32>
    %671 = arith.addf %669, %670 : vector<8x128xf32>
    %672 = arith.negf %671 : vector<8x128xf32>
    %673 = math.exp %672 : vector<8x128xf32>
    %cst_129 = arith.constant 1.000000e+00 : f32
    %674 = vector.broadcast %cst_129 : f32 to vector<8x128xf32>
    %675 = arith.addf %674, %673 : vector<8x128xf32>
    %676 = arith.divf %674, %675 : vector<8x128xf32>
    %677 = vector.extract_strided_slice %656 {offsets = [0, 256], sizes = [8, 128], strides = [1, 1]} : vector<8x384xf32> to vector<8x128xf32>
    %678 = vector.extract_strided_slice %660 {offsets = [0, 256], sizes = [8, 128], strides = [1, 1]} : vector<8x384xf32> to vector<8x128xf32>
    %679 = arith.mulf %668, %678 : vector<8x128xf32>
    %680 = arith.addf %677, %679 : vector<8x128xf32>
    %681 = math.tanh %680 : vector<8x128xf32>
    %cst_130 = arith.constant 1.000000e+00 : f32
    %682 = vector.broadcast %cst_130 : f32 to vector<8x128xf32>
    %683 = arith.subf %682, %676 : vector<8x128xf32>
    %684 = arith.mulf %683, %681 : vector<8x128xf32>
    %685 = arith.mulf %676, %621 : vector<8x128xf32>
    %686 = arith.addf %684, %685 : vector<8x128xf32>
    %687 = vector.extract_strided_slice %93 {offsets = [72, 0], sizes = [8, 384], strides = [1, 1]} : vector<128x384xf32> to vector<8x384xf32>
    %688 = arith.truncf %652 : vector<8x128xf32> to vector<8x128xbf16>
    %cst_131 = arith.constant dense<0.000000e+00> : vector<8x384xf32>
    %689 = tpu.matmul %688, %94, %cst_131 {dimension_numbers = #tpu.dot_dimension_numbers<[1], [0], [0], [1], [0, 0, 1, 1], [], []>} : vector<8x128xbf16>, vector<128x384xbf16>, vector<8x384xf32> -> vector<8x384xf32>
    %690 = vector.broadcast %95 : vector<1x384xf32> to vector<8x384xf32>
    %691 = arith.addf %689, %690 : vector<8x384xf32>
    %692 = vector.extract_strided_slice %687 {offsets = [0, 0], sizes = [8, 128], strides = [1, 1]} : vector<8x384xf32> to vector<8x128xf32>
    %693 = vector.extract_strided_slice %691 {offsets = [0, 0], sizes = [8, 128], strides = [1, 1]} : vector<8x384xf32> to vector<8x128xf32>
    %694 = arith.addf %692, %693 : vector<8x128xf32>
    %695 = arith.negf %694 : vector<8x128xf32>
    %696 = math.exp %695 : vector<8x128xf32>
    %cst_132 = arith.constant 1.000000e+00 : f32
    %697 = vector.broadcast %cst_132 : f32 to vector<8x128xf32>
    %698 = arith.addf %697, %696 : vector<8x128xf32>
    %699 = arith.divf %697, %698 : vector<8x128xf32>
    %700 = vector.extract_strided_slice %687 {offsets = [0, 128], sizes = [8, 128], strides = [1, 1]} : vector<8x384xf32> to vector<8x128xf32>
    %701 = vector.extract_strided_slice %691 {offsets = [0, 128], sizes = [8, 128], strides = [1, 1]} : vector<8x384xf32> to vector<8x128xf32>
    %702 = arith.addf %700, %701 : vector<8x128xf32>
    %703 = arith.negf %702 : vector<8x128xf32>
    %704 = math.exp %703 : vector<8x128xf32>
    %cst_133 = arith.constant 1.000000e+00 : f32
    %705 = vector.broadcast %cst_133 : f32 to vector<8x128xf32>
    %706 = arith.addf %705, %704 : vector<8x128xf32>
    %707 = arith.divf %705, %706 : vector<8x128xf32>
    %708 = vector.extract_strided_slice %687 {offsets = [0, 256], sizes = [8, 128], strides = [1, 1]} : vector<8x384xf32> to vector<8x128xf32>
    %709 = vector.extract_strided_slice %691 {offsets = [0, 256], sizes = [8, 128], strides = [1, 1]} : vector<8x384xf32> to vector<8x128xf32>
    %710 = arith.mulf %699, %709 : vector<8x128xf32>
    %711 = arith.addf %708, %710 : vector<8x128xf32>
    %712 = math.tanh %711 : vector<8x128xf32>
    %cst_134 = arith.constant 1.000000e+00 : f32
    %713 = vector.broadcast %cst_134 : f32 to vector<8x128xf32>
    %714 = arith.subf %713, %707 : vector<8x128xf32>
    %715 = arith.mulf %714, %712 : vector<8x128xf32>
    %716 = arith.mulf %707, %652 : vector<8x128xf32>
    %717 = arith.addf %715, %716 : vector<8x128xf32>
    %718 = arith.truncf %717 : vector<8x128xf32> to vector<8x128xbf16>
    %cst_135 = arith.constant dense<0.000000e+00> : vector<8x384xf32>
    %719 = tpu.matmul %718, %96, %cst_135 {dimension_numbers = #tpu.dot_dimension_numbers<[1], [0], [0], [1], [0, 0, 1, 1], [], []>} : vector<8x128xbf16>, vector<128x384xbf16>, vector<8x384xf32> -> vector<8x384xf32>
    %720 = vector.broadcast %97 : vector<1x384xf32> to vector<8x384xf32>
    %721 = arith.addf %719, %720 : vector<8x384xf32>
    %722 = arith.truncf %686 : vector<8x128xf32> to vector<8x128xbf16>
    %cst_136 = arith.constant dense<0.000000e+00> : vector<8x384xf32>
    %723 = tpu.matmul %722, %98, %cst_136 {dimension_numbers = #tpu.dot_dimension_numbers<[1], [0], [0], [1], [0, 0, 1, 1], [], []>} : vector<8x128xbf16>, vector<128x384xbf16>, vector<8x384xf32> -> vector<8x384xf32>
    %724 = vector.broadcast %99 : vector<1x384xf32> to vector<8x384xf32>
    %725 = arith.addf %723, %724 : vector<8x384xf32>
    %726 = vector.extract_strided_slice %721 {offsets = [0, 0], sizes = [8, 128], strides = [1, 1]} : vector<8x384xf32> to vector<8x128xf32>
    %727 = vector.extract_strided_slice %725 {offsets = [0, 0], sizes = [8, 128], strides = [1, 1]} : vector<8x384xf32> to vector<8x128xf32>
    %728 = arith.addf %726, %727 : vector<8x128xf32>
    %729 = arith.negf %728 : vector<8x128xf32>
    %730 = math.exp %729 : vector<8x128xf32>
    %cst_137 = arith.constant 1.000000e+00 : f32
    %731 = vector.broadcast %cst_137 : f32 to vector<8x128xf32>
    %732 = arith.addf %731, %730 : vector<8x128xf32>
    %733 = arith.divf %731, %732 : vector<8x128xf32>
    %734 = vector.extract_strided_slice %721 {offsets = [0, 128], sizes = [8, 128], strides = [1, 1]} : vector<8x384xf32> to vector<8x128xf32>
    %735 = vector.extract_strided_slice %725 {offsets = [0, 128], sizes = [8, 128], strides = [1, 1]} : vector<8x384xf32> to vector<8x128xf32>
    %736 = arith.addf %734, %735 : vector<8x128xf32>
    %737 = arith.negf %736 : vector<8x128xf32>
    %738 = math.exp %737 : vector<8x128xf32>
    %cst_138 = arith.constant 1.000000e+00 : f32
    %739 = vector.broadcast %cst_138 : f32 to vector<8x128xf32>
    %740 = arith.addf %739, %738 : vector<8x128xf32>
    %741 = arith.divf %739, %740 : vector<8x128xf32>
    %742 = vector.extract_strided_slice %721 {offsets = [0, 256], sizes = [8, 128], strides = [1, 1]} : vector<8x384xf32> to vector<8x128xf32>
    %743 = vector.extract_strided_slice %725 {offsets = [0, 256], sizes = [8, 128], strides = [1, 1]} : vector<8x384xf32> to vector<8x128xf32>
    %744 = arith.mulf %733, %743 : vector<8x128xf32>
    %745 = arith.addf %742, %744 : vector<8x128xf32>
    %746 = math.tanh %745 : vector<8x128xf32>
    %cst_139 = arith.constant 1.000000e+00 : f32
    %747 = vector.broadcast %cst_139 : f32 to vector<8x128xf32>
    %748 = arith.subf %747, %741 : vector<8x128xf32>
    %749 = arith.mulf %748, %746 : vector<8x128xf32>
    %750 = arith.mulf %741, %686 : vector<8x128xf32>
    %751 = arith.addf %749, %750 : vector<8x128xf32>
    %752 = vector.extract_strided_slice %93 {offsets = [80, 0], sizes = [8, 384], strides = [1, 1]} : vector<128x384xf32> to vector<8x384xf32>
    %753 = arith.truncf %717 : vector<8x128xf32> to vector<8x128xbf16>
    %cst_140 = arith.constant dense<0.000000e+00> : vector<8x384xf32>
    %754 = tpu.matmul %753, %94, %cst_140 {dimension_numbers = #tpu.dot_dimension_numbers<[1], [0], [0], [1], [0, 0, 1, 1], [], []>} : vector<8x128xbf16>, vector<128x384xbf16>, vector<8x384xf32> -> vector<8x384xf32>
    %755 = vector.broadcast %95 : vector<1x384xf32> to vector<8x384xf32>
    %756 = arith.addf %754, %755 : vector<8x384xf32>
    %757 = vector.extract_strided_slice %752 {offsets = [0, 0], sizes = [8, 128], strides = [1, 1]} : vector<8x384xf32> to vector<8x128xf32>
    %758 = vector.extract_strided_slice %756 {offsets = [0, 0], sizes = [8, 128], strides = [1, 1]} : vector<8x384xf32> to vector<8x128xf32>
    %759 = arith.addf %757, %758 : vector<8x128xf32>
    %760 = arith.negf %759 : vector<8x128xf32>
    %761 = math.exp %760 : vector<8x128xf32>
    %cst_141 = arith.constant 1.000000e+00 : f32
    %762 = vector.broadcast %cst_141 : f32 to vector<8x128xf32>
    %763 = arith.addf %762, %761 : vector<8x128xf32>
    %764 = arith.divf %762, %763 : vector<8x128xf32>
    %765 = vector.extract_strided_slice %752 {offsets = [0, 128], sizes = [8, 128], strides = [1, 1]} : vector<8x384xf32> to vector<8x128xf32>
    %766 = vector.extract_strided_slice %756 {offsets = [0, 128], sizes = [8, 128], strides = [1, 1]} : vector<8x384xf32> to vector<8x128xf32>
    %767 = arith.addf %765, %766 : vector<8x128xf32>
    %768 = arith.negf %767 : vector<8x128xf32>
    %769 = math.exp %768 : vector<8x128xf32>
    %cst_142 = arith.constant 1.000000e+00 : f32
    %770 = vector.broadcast %cst_142 : f32 to vector<8x128xf32>
    %771 = arith.addf %770, %769 : vector<8x128xf32>
    %772 = arith.divf %770, %771 : vector<8x128xf32>
    %773 = vector.extract_strided_slice %752 {offsets = [0, 256], sizes = [8, 128], strides = [1, 1]} : vector<8x384xf32> to vector<8x128xf32>
    %774 = vector.extract_strided_slice %756 {offsets = [0, 256], sizes = [8, 128], strides = [1, 1]} : vector<8x384xf32> to vector<8x128xf32>
    %775 = arith.mulf %764, %774 : vector<8x128xf32>
    %776 = arith.addf %773, %775 : vector<8x128xf32>
    %777 = math.tanh %776 : vector<8x128xf32>
    %cst_143 = arith.constant 1.000000e+00 : f32
    %778 = vector.broadcast %cst_143 : f32 to vector<8x128xf32>
    %779 = arith.subf %778, %772 : vector<8x128xf32>
    %780 = arith.mulf %779, %777 : vector<8x128xf32>
    %781 = arith.mulf %772, %717 : vector<8x128xf32>
    %782 = arith.addf %780, %781 : vector<8x128xf32>
    %783 = arith.truncf %782 : vector<8x128xf32> to vector<8x128xbf16>
    %cst_144 = arith.constant dense<0.000000e+00> : vector<8x384xf32>
    %784 = tpu.matmul %783, %96, %cst_144 {dimension_numbers = #tpu.dot_dimension_numbers<[1], [0], [0], [1], [0, 0, 1, 1], [], []>} : vector<8x128xbf16>, vector<128x384xbf16>, vector<8x384xf32> -> vector<8x384xf32>
    %785 = vector.broadcast %97 : vector<1x384xf32> to vector<8x384xf32>
    %786 = arith.addf %784, %785 : vector<8x384xf32>
    %787 = arith.truncf %751 : vector<8x128xf32> to vector<8x128xbf16>
    %cst_145 = arith.constant dense<0.000000e+00> : vector<8x384xf32>
    %788 = tpu.matmul %787, %98, %cst_145 {dimension_numbers = #tpu.dot_dimension_numbers<[1], [0], [0], [1], [0, 0, 1, 1], [], []>} : vector<8x128xbf16>, vector<128x384xbf16>, vector<8x384xf32> -> vector<8x384xf32>
    %789 = vector.broadcast %99 : vector<1x384xf32> to vector<8x384xf32>
    %790 = arith.addf %788, %789 : vector<8x384xf32>
    %791 = vector.extract_strided_slice %786 {offsets = [0, 0], sizes = [8, 128], strides = [1, 1]} : vector<8x384xf32> to vector<8x128xf32>
    %792 = vector.extract_strided_slice %790 {offsets = [0, 0], sizes = [8, 128], strides = [1, 1]} : vector<8x384xf32> to vector<8x128xf32>
    %793 = arith.addf %791, %792 : vector<8x128xf32>
    %794 = arith.negf %793 : vector<8x128xf32>
    %795 = math.exp %794 : vector<8x128xf32>
    %cst_146 = arith.constant 1.000000e+00 : f32
    %796 = vector.broadcast %cst_146 : f32 to vector<8x128xf32>
    %797 = arith.addf %796, %795 : vector<8x128xf32>
    %798 = arith.divf %796, %797 : vector<8x128xf32>
    %799 = vector.extract_strided_slice %786 {offsets = [0, 128], sizes = [8, 128], strides = [1, 1]} : vector<8x384xf32> to vector<8x128xf32>
    %800 = vector.extract_strided_slice %790 {offsets = [0, 128], sizes = [8, 128], strides = [1, 1]} : vector<8x384xf32> to vector<8x128xf32>
    %801 = arith.addf %799, %800 : vector<8x128xf32>
    %802 = arith.negf %801 : vector<8x128xf32>
    %803 = math.exp %802 : vector<8x128xf32>
    %cst_147 = arith.constant 1.000000e+00 : f32
    %804 = vector.broadcast %cst_147 : f32 to vector<8x128xf32>
    %805 = arith.addf %804, %803 : vector<8x128xf32>
    %806 = arith.divf %804, %805 : vector<8x128xf32>
    %807 = vector.extract_strided_slice %786 {offsets = [0, 256], sizes = [8, 128], strides = [1, 1]} : vector<8x384xf32> to vector<8x128xf32>
    %808 = vector.extract_strided_slice %790 {offsets = [0, 256], sizes = [8, 128], strides = [1, 1]} : vector<8x384xf32> to vector<8x128xf32>
    %809 = arith.mulf %798, %808 : vector<8x128xf32>
    %810 = arith.addf %807, %809 : vector<8x128xf32>
    %811 = math.tanh %810 : vector<8x128xf32>
    %cst_148 = arith.constant 1.000000e+00 : f32
    %812 = vector.broadcast %cst_148 : f32 to vector<8x128xf32>
    %813 = arith.subf %812, %806 : vector<8x128xf32>
    %814 = arith.mulf %813, %811 : vector<8x128xf32>
    %815 = arith.mulf %806, %751 : vector<8x128xf32>
    %816 = arith.addf %814, %815 : vector<8x128xf32>
    %817 = vector.extract_strided_slice %93 {offsets = [88, 0], sizes = [8, 384], strides = [1, 1]} : vector<128x384xf32> to vector<8x384xf32>
    %818 = arith.truncf %782 : vector<8x128xf32> to vector<8x128xbf16>
    %cst_149 = arith.constant dense<0.000000e+00> : vector<8x384xf32>
    %819 = tpu.matmul %818, %94, %cst_149 {dimension_numbers = #tpu.dot_dimension_numbers<[1], [0], [0], [1], [0, 0, 1, 1], [], []>} : vector<8x128xbf16>, vector<128x384xbf16>, vector<8x384xf32> -> vector<8x384xf32>
    %820 = vector.broadcast %95 : vector<1x384xf32> to vector<8x384xf32>
    %821 = arith.addf %819, %820 : vector<8x384xf32>
    %822 = vector.extract_strided_slice %817 {offsets = [0, 0], sizes = [8, 128], strides = [1, 1]} : vector<8x384xf32> to vector<8x128xf32>
    %823 = vector.extract_strided_slice %821 {offsets = [0, 0], sizes = [8, 128], strides = [1, 1]} : vector<8x384xf32> to vector<8x128xf32>
    %824 = arith.addf %822, %823 : vector<8x128xf32>
    %825 = arith.negf %824 : vector<8x128xf32>
    %826 = math.exp %825 : vector<8x128xf32>
    %cst_150 = arith.constant 1.000000e+00 : f32
    %827 = vector.broadcast %cst_150 : f32 to vector<8x128xf32>
    %828 = arith.addf %827, %826 : vector<8x128xf32>
    %829 = arith.divf %827, %828 : vector<8x128xf32>
    %830 = vector.extract_strided_slice %817 {offsets = [0, 128], sizes = [8, 128], strides = [1, 1]} : vector<8x384xf32> to vector<8x128xf32>
    %831 = vector.extract_strided_slice %821 {offsets = [0, 128], sizes = [8, 128], strides = [1, 1]} : vector<8x384xf32> to vector<8x128xf32>
    %832 = arith.addf %830, %831 : vector<8x128xf32>
    %833 = arith.negf %832 : vector<8x128xf32>
    %834 = math.exp %833 : vector<8x128xf32>
    %cst_151 = arith.constant 1.000000e+00 : f32
    %835 = vector.broadcast %cst_151 : f32 to vector<8x128xf32>
    %836 = arith.addf %835, %834 : vector<8x128xf32>
    %837 = arith.divf %835, %836 : vector<8x128xf32>
    %838 = vector.extract_strided_slice %817 {offsets = [0, 256], sizes = [8, 128], strides = [1, 1]} : vector<8x384xf32> to vector<8x128xf32>
    %839 = vector.extract_strided_slice %821 {offsets = [0, 256], sizes = [8, 128], strides = [1, 1]} : vector<8x384xf32> to vector<8x128xf32>
    %840 = arith.mulf %829, %839 : vector<8x128xf32>
    %841 = arith.addf %838, %840 : vector<8x128xf32>
    %842 = math.tanh %841 : vector<8x128xf32>
    %cst_152 = arith.constant 1.000000e+00 : f32
    %843 = vector.broadcast %cst_152 : f32 to vector<8x128xf32>
    %844 = arith.subf %843, %837 : vector<8x128xf32>
    %845 = arith.mulf %844, %842 : vector<8x128xf32>
    %846 = arith.mulf %837, %782 : vector<8x128xf32>
    %847 = arith.addf %845, %846 : vector<8x128xf32>
    %848 = arith.truncf %847 : vector<8x128xf32> to vector<8x128xbf16>
    %cst_153 = arith.constant dense<0.000000e+00> : vector<8x384xf32>
    %849 = tpu.matmul %848, %96, %cst_153 {dimension_numbers = #tpu.dot_dimension_numbers<[1], [0], [0], [1], [0, 0, 1, 1], [], []>} : vector<8x128xbf16>, vector<128x384xbf16>, vector<8x384xf32> -> vector<8x384xf32>
    %850 = vector.broadcast %97 : vector<1x384xf32> to vector<8x384xf32>
    %851 = arith.addf %849, %850 : vector<8x384xf32>
    %852 = arith.truncf %816 : vector<8x128xf32> to vector<8x128xbf16>
    %cst_154 = arith.constant dense<0.000000e+00> : vector<8x384xf32>
    %853 = tpu.matmul %852, %98, %cst_154 {dimension_numbers = #tpu.dot_dimension_numbers<[1], [0], [0], [1], [0, 0, 1, 1], [], []>} : vector<8x128xbf16>, vector<128x384xbf16>, vector<8x384xf32> -> vector<8x384xf32>
    %854 = vector.broadcast %99 : vector<1x384xf32> to vector<8x384xf32>
    %855 = arith.addf %853, %854 : vector<8x384xf32>
    %856 = vector.extract_strided_slice %851 {offsets = [0, 0], sizes = [8, 128], strides = [1, 1]} : vector<8x384xf32> to vector<8x128xf32>
    %857 = vector.extract_strided_slice %855 {offsets = [0, 0], sizes = [8, 128], strides = [1, 1]} : vector<8x384xf32> to vector<8x128xf32>
    %858 = arith.addf %856, %857 : vector<8x128xf32>
    %859 = arith.negf %858 : vector<8x128xf32>
    %860 = math.exp %859 : vector<8x128xf32>
    %cst_155 = arith.constant 1.000000e+00 : f32
    %861 = vector.broadcast %cst_155 : f32 to vector<8x128xf32>
    %862 = arith.addf %861, %860 : vector<8x128xf32>
    %863 = arith.divf %861, %862 : vector<8x128xf32>
    %864 = vector.extract_strided_slice %851 {offsets = [0, 128], sizes = [8, 128], strides = [1, 1]} : vector<8x384xf32> to vector<8x128xf32>
    %865 = vector.extract_strided_slice %855 {offsets = [0, 128], sizes = [8, 128], strides = [1, 1]} : vector<8x384xf32> to vector<8x128xf32>
    %866 = arith.addf %864, %865 : vector<8x128xf32>
    %867 = arith.negf %866 : vector<8x128xf32>
    %868 = math.exp %867 : vector<8x128xf32>
    %cst_156 = arith.constant 1.000000e+00 : f32
    %869 = vector.broadcast %cst_156 : f32 to vector<8x128xf32>
    %870 = arith.addf %869, %868 : vector<8x128xf32>
    %871 = arith.divf %869, %870 : vector<8x128xf32>
    %872 = vector.extract_strided_slice %851 {offsets = [0, 256], sizes = [8, 128], strides = [1, 1]} : vector<8x384xf32> to vector<8x128xf32>
    %873 = vector.extract_strided_slice %855 {offsets = [0, 256], sizes = [8, 128], strides = [1, 1]} : vector<8x384xf32> to vector<8x128xf32>
    %874 = arith.mulf %863, %873 : vector<8x128xf32>
    %875 = arith.addf %872, %874 : vector<8x128xf32>
    %876 = math.tanh %875 : vector<8x128xf32>
    %cst_157 = arith.constant 1.000000e+00 : f32
    %877 = vector.broadcast %cst_157 : f32 to vector<8x128xf32>
    %878 = arith.subf %877, %871 : vector<8x128xf32>
    %879 = arith.mulf %878, %876 : vector<8x128xf32>
    %880 = arith.mulf %871, %816 : vector<8x128xf32>
    %881 = arith.addf %879, %880 : vector<8x128xf32>
    %882 = vector.extract_strided_slice %93 {offsets = [96, 0], sizes = [8, 384], strides = [1, 1]} : vector<128x384xf32> to vector<8x384xf32>
    %883 = arith.truncf %847 : vector<8x128xf32> to vector<8x128xbf16>
    %cst_158 = arith.constant dense<0.000000e+00> : vector<8x384xf32>
    %884 = tpu.matmul %883, %94, %cst_158 {dimension_numbers = #tpu.dot_dimension_numbers<[1], [0], [0], [1], [0, 0, 1, 1], [], []>} : vector<8x128xbf16>, vector<128x384xbf16>, vector<8x384xf32> -> vector<8x384xf32>
    %885 = vector.broadcast %95 : vector<1x384xf32> to vector<8x384xf32>
    %886 = arith.addf %884, %885 : vector<8x384xf32>
    %887 = vector.extract_strided_slice %882 {offsets = [0, 0], sizes = [8, 128], strides = [1, 1]} : vector<8x384xf32> to vector<8x128xf32>
    %888 = vector.extract_strided_slice %886 {offsets = [0, 0], sizes = [8, 128], strides = [1, 1]} : vector<8x384xf32> to vector<8x128xf32>
    %889 = arith.addf %887, %888 : vector<8x128xf32>
    %890 = arith.negf %889 : vector<8x128xf32>
    %891 = math.exp %890 : vector<8x128xf32>
    %cst_159 = arith.constant 1.000000e+00 : f32
    %892 = vector.broadcast %cst_159 : f32 to vector<8x128xf32>
    %893 = arith.addf %892, %891 : vector<8x128xf32>
    %894 = arith.divf %892, %893 : vector<8x128xf32>
    %895 = vector.extract_strided_slice %882 {offsets = [0, 128], sizes = [8, 128], strides = [1, 1]} : vector<8x384xf32> to vector<8x128xf32>
    %896 = vector.extract_strided_slice %886 {offsets = [0, 128], sizes = [8, 128], strides = [1, 1]} : vector<8x384xf32> to vector<8x128xf32>
    %897 = arith.addf %895, %896 : vector<8x128xf32>
    %898 = arith.negf %897 : vector<8x128xf32>
    %899 = math.exp %898 : vector<8x128xf32>
    %cst_160 = arith.constant 1.000000e+00 : f32
    %900 = vector.broadcast %cst_160 : f32 to vector<8x128xf32>
    %901 = arith.addf %900, %899 : vector<8x128xf32>
    %902 = arith.divf %900, %901 : vector<8x128xf32>
    %903 = vector.extract_strided_slice %882 {offsets = [0, 256], sizes = [8, 128], strides = [1, 1]} : vector<8x384xf32> to vector<8x128xf32>
    %904 = vector.extract_strided_slice %886 {offsets = [0, 256], sizes = [8, 128], strides = [1, 1]} : vector<8x384xf32> to vector<8x128xf32>
    %905 = arith.mulf %894, %904 : vector<8x128xf32>
    %906 = arith.addf %903, %905 : vector<8x128xf32>
    %907 = math.tanh %906 : vector<8x128xf32>
    %cst_161 = arith.constant 1.000000e+00 : f32
    %908 = vector.broadcast %cst_161 : f32 to vector<8x128xf32>
    %909 = arith.subf %908, %902 : vector<8x128xf32>
    %910 = arith.mulf %909, %907 : vector<8x128xf32>
    %911 = arith.mulf %902, %847 : vector<8x128xf32>
    %912 = arith.addf %910, %911 : vector<8x128xf32>
    %913 = arith.truncf %912 : vector<8x128xf32> to vector<8x128xbf16>
    %cst_162 = arith.constant dense<0.000000e+00> : vector<8x384xf32>
    %914 = tpu.matmul %913, %96, %cst_162 {dimension_numbers = #tpu.dot_dimension_numbers<[1], [0], [0], [1], [0, 0, 1, 1], [], []>} : vector<8x128xbf16>, vector<128x384xbf16>, vector<8x384xf32> -> vector<8x384xf32>
    %915 = vector.broadcast %97 : vector<1x384xf32> to vector<8x384xf32>
    %916 = arith.addf %914, %915 : vector<8x384xf32>
    %917 = arith.truncf %881 : vector<8x128xf32> to vector<8x128xbf16>
    %cst_163 = arith.constant dense<0.000000e+00> : vector<8x384xf32>
    %918 = tpu.matmul %917, %98, %cst_163 {dimension_numbers = #tpu.dot_dimension_numbers<[1], [0], [0], [1], [0, 0, 1, 1], [], []>} : vector<8x128xbf16>, vector<128x384xbf16>, vector<8x384xf32> -> vector<8x384xf32>
    %919 = vector.broadcast %99 : vector<1x384xf32> to vector<8x384xf32>
    %920 = arith.addf %918, %919 : vector<8x384xf32>
    %921 = vector.extract_strided_slice %916 {offsets = [0, 0], sizes = [8, 128], strides = [1, 1]} : vector<8x384xf32> to vector<8x128xf32>
    %922 = vector.extract_strided_slice %920 {offsets = [0, 0], sizes = [8, 128], strides = [1, 1]} : vector<8x384xf32> to vector<8x128xf32>
    %923 = arith.addf %921, %922 : vector<8x128xf32>
    %924 = arith.negf %923 : vector<8x128xf32>
    %925 = math.exp %924 : vector<8x128xf32>
    %cst_164 = arith.constant 1.000000e+00 : f32
    %926 = vector.broadcast %cst_164 : f32 to vector<8x128xf32>
    %927 = arith.addf %926, %925 : vector<8x128xf32>
    %928 = arith.divf %926, %927 : vector<8x128xf32>
    %929 = vector.extract_strided_slice %916 {offsets = [0, 128], sizes = [8, 128], strides = [1, 1]} : vector<8x384xf32> to vector<8x128xf32>
    %930 = vector.extract_strided_slice %920 {offsets = [0, 128], sizes = [8, 128], strides = [1, 1]} : vector<8x384xf32> to vector<8x128xf32>
    %931 = arith.addf %929, %930 : vector<8x128xf32>
    %932 = arith.negf %931 : vector<8x128xf32>
    %933 = math.exp %932 : vector<8x128xf32>
    %cst_165 = arith.constant 1.000000e+00 : f32
    %934 = vector.broadcast %cst_165 : f32 to vector<8x128xf32>
    %935 = arith.addf %934, %933 : vector<8x128xf32>
    %936 = arith.divf %934, %935 : vector<8x128xf32>
    %937 = vector.extract_strided_slice %916 {offsets = [0, 256], sizes = [8, 128], strides = [1, 1]} : vector<8x384xf32> to vector<8x128xf32>
    %938 = vector.extract_strided_slice %920 {offsets = [0, 256], sizes = [8, 128], strides = [1, 1]} : vector<8x384xf32> to vector<8x128xf32>
    %939 = arith.mulf %928, %938 : vector<8x128xf32>
    %940 = arith.addf %937, %939 : vector<8x128xf32>
    %941 = math.tanh %940 : vector<8x128xf32>
    %cst_166 = arith.constant 1.000000e+00 : f32
    %942 = vector.broadcast %cst_166 : f32 to vector<8x128xf32>
    %943 = arith.subf %942, %936 : vector<8x128xf32>
    %944 = arith.mulf %943, %941 : vector<8x128xf32>
    %945 = arith.mulf %936, %881 : vector<8x128xf32>
    %946 = arith.addf %944, %945 : vector<8x128xf32>
    %947 = vector.extract_strided_slice %93 {offsets = [104, 0], sizes = [8, 384], strides = [1, 1]} : vector<128x384xf32> to vector<8x384xf32>
    %948 = arith.truncf %912 : vector<8x128xf32> to vector<8x128xbf16>
    %cst_167 = arith.constant dense<0.000000e+00> : vector<8x384xf32>
    %949 = tpu.matmul %948, %94, %cst_167 {dimension_numbers = #tpu.dot_dimension_numbers<[1], [0], [0], [1], [0, 0, 1, 1], [], []>} : vector<8x128xbf16>, vector<128x384xbf16>, vector<8x384xf32> -> vector<8x384xf32>
    %950 = vector.broadcast %95 : vector<1x384xf32> to vector<8x384xf32>
    %951 = arith.addf %949, %950 : vector<8x384xf32>
    %952 = vector.extract_strided_slice %947 {offsets = [0, 0], sizes = [8, 128], strides = [1, 1]} : vector<8x384xf32> to vector<8x128xf32>
    %953 = vector.extract_strided_slice %951 {offsets = [0, 0], sizes = [8, 128], strides = [1, 1]} : vector<8x384xf32> to vector<8x128xf32>
    %954 = arith.addf %952, %953 : vector<8x128xf32>
    %955 = arith.negf %954 : vector<8x128xf32>
    %956 = math.exp %955 : vector<8x128xf32>
    %cst_168 = arith.constant 1.000000e+00 : f32
    %957 = vector.broadcast %cst_168 : f32 to vector<8x128xf32>
    %958 = arith.addf %957, %956 : vector<8x128xf32>
    %959 = arith.divf %957, %958 : vector<8x128xf32>
    %960 = vector.extract_strided_slice %947 {offsets = [0, 128], sizes = [8, 128], strides = [1, 1]} : vector<8x384xf32> to vector<8x128xf32>
    %961 = vector.extract_strided_slice %951 {offsets = [0, 128], sizes = [8, 128], strides = [1, 1]} : vector<8x384xf32> to vector<8x128xf32>
    %962 = arith.addf %960, %961 : vector<8x128xf32>
    %963 = arith.negf %962 : vector<8x128xf32>
    %964 = math.exp %963 : vector<8x128xf32>
    %cst_169 = arith.constant 1.000000e+00 : f32
    %965 = vector.broadcast %cst_169 : f32 to vector<8x128xf32>
    %966 = arith.addf %965, %964 : vector<8x128xf32>
    %967 = arith.divf %965, %966 : vector<8x128xf32>
    %968 = vector.extract_strided_slice %947 {offsets = [0, 256], sizes = [8, 128], strides = [1, 1]} : vector<8x384xf32> to vector<8x128xf32>
    %969 = vector.extract_strided_slice %951 {offsets = [0, 256], sizes = [8, 128], strides = [1, 1]} : vector<8x384xf32> to vector<8x128xf32>
    %970 = arith.mulf %959, %969 : vector<8x128xf32>
    %971 = arith.addf %968, %970 : vector<8x128xf32>
    %972 = math.tanh %971 : vector<8x128xf32>
    %cst_170 = arith.constant 1.000000e+00 : f32
    %973 = vector.broadcast %cst_170 : f32 to vector<8x128xf32>
    %974 = arith.subf %973, %967 : vector<8x128xf32>
    %975 = arith.mulf %974, %972 : vector<8x128xf32>
    %976 = arith.mulf %967, %912 : vector<8x128xf32>
    %977 = arith.addf %975, %976 : vector<8x128xf32>
    %978 = arith.truncf %977 : vector<8x128xf32> to vector<8x128xbf16>
    %cst_171 = arith.constant dense<0.000000e+00> : vector<8x384xf32>
    %979 = tpu.matmul %978, %96, %cst_171 {dimension_numbers = #tpu.dot_dimension_numbers<[1], [0], [0], [1], [0, 0, 1, 1], [], []>} : vector<8x128xbf16>, vector<128x384xbf16>, vector<8x384xf32> -> vector<8x384xf32>
    %980 = vector.broadcast %97 : vector<1x384xf32> to vector<8x384xf32>
    %981 = arith.addf %979, %980 : vector<8x384xf32>
    %982 = arith.truncf %946 : vector<8x128xf32> to vector<8x128xbf16>
    %cst_172 = arith.constant dense<0.000000e+00> : vector<8x384xf32>
    %983 = tpu.matmul %982, %98, %cst_172 {dimension_numbers = #tpu.dot_dimension_numbers<[1], [0], [0], [1], [0, 0, 1, 1], [], []>} : vector<8x128xbf16>, vector<128x384xbf16>, vector<8x384xf32> -> vector<8x384xf32>
    %984 = vector.broadcast %99 : vector<1x384xf32> to vector<8x384xf32>
    %985 = arith.addf %983, %984 : vector<8x384xf32>
    %986 = vector.extract_strided_slice %981 {offsets = [0, 0], sizes = [8, 128], strides = [1, 1]} : vector<8x384xf32> to vector<8x128xf32>
    %987 = vector.extract_strided_slice %985 {offsets = [0, 0], sizes = [8, 128], strides = [1, 1]} : vector<8x384xf32> to vector<8x128xf32>
    %988 = arith.addf %986, %987 : vector<8x128xf32>
    %989 = arith.negf %988 : vector<8x128xf32>
    %990 = math.exp %989 : vector<8x128xf32>
    %cst_173 = arith.constant 1.000000e+00 : f32
    %991 = vector.broadcast %cst_173 : f32 to vector<8x128xf32>
    %992 = arith.addf %991, %990 : vector<8x128xf32>
    %993 = arith.divf %991, %992 : vector<8x128xf32>
    %994 = vector.extract_strided_slice %981 {offsets = [0, 128], sizes = [8, 128], strides = [1, 1]} : vector<8x384xf32> to vector<8x128xf32>
    %995 = vector.extract_strided_slice %985 {offsets = [0, 128], sizes = [8, 128], strides = [1, 1]} : vector<8x384xf32> to vector<8x128xf32>
    %996 = arith.addf %994, %995 : vector<8x128xf32>
    %997 = arith.negf %996 : vector<8x128xf32>
    %998 = math.exp %997 : vector<8x128xf32>
    %cst_174 = arith.constant 1.000000e+00 : f32
    %999 = vector.broadcast %cst_174 : f32 to vector<8x128xf32>
    %1000 = arith.addf %999, %998 : vector<8x128xf32>
    %1001 = arith.divf %999, %1000 : vector<8x128xf32>
    %1002 = vector.extract_strided_slice %981 {offsets = [0, 256], sizes = [8, 128], strides = [1, 1]} : vector<8x384xf32> to vector<8x128xf32>
    %1003 = vector.extract_strided_slice %985 {offsets = [0, 256], sizes = [8, 128], strides = [1, 1]} : vector<8x384xf32> to vector<8x128xf32>
    %1004 = arith.mulf %993, %1003 : vector<8x128xf32>
    %1005 = arith.addf %1002, %1004 : vector<8x128xf32>
    %1006 = math.tanh %1005 : vector<8x128xf32>
    %cst_175 = arith.constant 1.000000e+00 : f32
    %1007 = vector.broadcast %cst_175 : f32 to vector<8x128xf32>
    %1008 = arith.subf %1007, %1001 : vector<8x128xf32>
    %1009 = arith.mulf %1008, %1006 : vector<8x128xf32>
    %1010 = arith.mulf %1001, %946 : vector<8x128xf32>
    %1011 = arith.addf %1009, %1010 : vector<8x128xf32>
    %1012 = vector.extract_strided_slice %93 {offsets = [112, 0], sizes = [8, 384], strides = [1, 1]} : vector<128x384xf32> to vector<8x384xf32>
    %1013 = arith.truncf %977 : vector<8x128xf32> to vector<8x128xbf16>
    %cst_176 = arith.constant dense<0.000000e+00> : vector<8x384xf32>
    %1014 = tpu.matmul %1013, %94, %cst_176 {dimension_numbers = #tpu.dot_dimension_numbers<[1], [0], [0], [1], [0, 0, 1, 1], [], []>} : vector<8x128xbf16>, vector<128x384xbf16>, vector<8x384xf32> -> vector<8x384xf32>
    %1015 = vector.broadcast %95 : vector<1x384xf32> to vector<8x384xf32>
    %1016 = arith.addf %1014, %1015 : vector<8x384xf32>
    %1017 = vector.extract_strided_slice %1012 {offsets = [0, 0], sizes = [8, 128], strides = [1, 1]} : vector<8x384xf32> to vector<8x128xf32>
    %1018 = vector.extract_strided_slice %1016 {offsets = [0, 0], sizes = [8, 128], strides = [1, 1]} : vector<8x384xf32> to vector<8x128xf32>
    %1019 = arith.addf %1017, %1018 : vector<8x128xf32>
    %1020 = arith.negf %1019 : vector<8x128xf32>
    %1021 = math.exp %1020 : vector<8x128xf32>
    %cst_177 = arith.constant 1.000000e+00 : f32
    %1022 = vector.broadcast %cst_177 : f32 to vector<8x128xf32>
    %1023 = arith.addf %1022, %1021 : vector<8x128xf32>
    %1024 = arith.divf %1022, %1023 : vector<8x128xf32>
    %1025 = vector.extract_strided_slice %1012 {offsets = [0, 128], sizes = [8, 128], strides = [1, 1]} : vector<8x384xf32> to vector<8x128xf32>
    %1026 = vector.extract_strided_slice %1016 {offsets = [0, 128], sizes = [8, 128], strides = [1, 1]} : vector<8x384xf32> to vector<8x128xf32>
    %1027 = arith.addf %1025, %1026 : vector<8x128xf32>
    %1028 = arith.negf %1027 : vector<8x128xf32>
    %1029 = math.exp %1028 : vector<8x128xf32>
    %cst_178 = arith.constant 1.000000e+00 : f32
    %1030 = vector.broadcast %cst_178 : f32 to vector<8x128xf32>
    %1031 = arith.addf %1030, %1029 : vector<8x128xf32>
    %1032 = arith.divf %1030, %1031 : vector<8x128xf32>
    %1033 = vector.extract_strided_slice %1012 {offsets = [0, 256], sizes = [8, 128], strides = [1, 1]} : vector<8x384xf32> to vector<8x128xf32>
    %1034 = vector.extract_strided_slice %1016 {offsets = [0, 256], sizes = [8, 128], strides = [1, 1]} : vector<8x384xf32> to vector<8x128xf32>
    %1035 = arith.mulf %1024, %1034 : vector<8x128xf32>
    %1036 = arith.addf %1033, %1035 : vector<8x128xf32>
    %1037 = math.tanh %1036 : vector<8x128xf32>
    %cst_179 = arith.constant 1.000000e+00 : f32
    %1038 = vector.broadcast %cst_179 : f32 to vector<8x128xf32>
    %1039 = arith.subf %1038, %1032 : vector<8x128xf32>
    %1040 = arith.mulf %1039, %1037 : vector<8x128xf32>
    %1041 = arith.mulf %1032, %977 : vector<8x128xf32>
    %1042 = arith.addf %1040, %1041 : vector<8x128xf32>
    %1043 = arith.truncf %1042 : vector<8x128xf32> to vector<8x128xbf16>
    %cst_180 = arith.constant dense<0.000000e+00> : vector<8x384xf32>
    %1044 = tpu.matmul %1043, %96, %cst_180 {dimension_numbers = #tpu.dot_dimension_numbers<[1], [0], [0], [1], [0, 0, 1, 1], [], []>} : vector<8x128xbf16>, vector<128x384xbf16>, vector<8x384xf32> -> vector<8x384xf32>
    %1045 = vector.broadcast %97 : vector<1x384xf32> to vector<8x384xf32>
    %1046 = arith.addf %1044, %1045 : vector<8x384xf32>
    %1047 = arith.truncf %1011 : vector<8x128xf32> to vector<8x128xbf16>
    %cst_181 = arith.constant dense<0.000000e+00> : vector<8x384xf32>
    %1048 = tpu.matmul %1047, %98, %cst_181 {dimension_numbers = #tpu.dot_dimension_numbers<[1], [0], [0], [1], [0, 0, 1, 1], [], []>} : vector<8x128xbf16>, vector<128x384xbf16>, vector<8x384xf32> -> vector<8x384xf32>
    %1049 = vector.broadcast %99 : vector<1x384xf32> to vector<8x384xf32>
    %1050 = arith.addf %1048, %1049 : vector<8x384xf32>
    %1051 = vector.extract_strided_slice %1046 {offsets = [0, 0], sizes = [8, 128], strides = [1, 1]} : vector<8x384xf32> to vector<8x128xf32>
    %1052 = vector.extract_strided_slice %1050 {offsets = [0, 0], sizes = [8, 128], strides = [1, 1]} : vector<8x384xf32> to vector<8x128xf32>
    %1053 = arith.addf %1051, %1052 : vector<8x128xf32>
    %1054 = arith.negf %1053 : vector<8x128xf32>
    %1055 = math.exp %1054 : vector<8x128xf32>
    %cst_182 = arith.constant 1.000000e+00 : f32
    %1056 = vector.broadcast %cst_182 : f32 to vector<8x128xf32>
    %1057 = arith.addf %1056, %1055 : vector<8x128xf32>
    %1058 = arith.divf %1056, %1057 : vector<8x128xf32>
    %1059 = vector.extract_strided_slice %1046 {offsets = [0, 128], sizes = [8, 128], strides = [1, 1]} : vector<8x384xf32> to vector<8x128xf32>
    %1060 = vector.extract_strided_slice %1050 {offsets = [0, 128], sizes = [8, 128], strides = [1, 1]} : vector<8x384xf32> to vector<8x128xf32>
    %1061 = arith.addf %1059, %1060 : vector<8x128xf32>
    %1062 = arith.negf %1061 : vector<8x128xf32>
    %1063 = math.exp %1062 : vector<8x128xf32>
    %cst_183 = arith.constant 1.000000e+00 : f32
    %1064 = vector.broadcast %cst_183 : f32 to vector<8x128xf32>
    %1065 = arith.addf %1064, %1063 : vector<8x128xf32>
    %1066 = arith.divf %1064, %1065 : vector<8x128xf32>
    %1067 = vector.extract_strided_slice %1046 {offsets = [0, 256], sizes = [8, 128], strides = [1, 1]} : vector<8x384xf32> to vector<8x128xf32>
    %1068 = vector.extract_strided_slice %1050 {offsets = [0, 256], sizes = [8, 128], strides = [1, 1]} : vector<8x384xf32> to vector<8x128xf32>
    %1069 = arith.mulf %1058, %1068 : vector<8x128xf32>
    %1070 = arith.addf %1067, %1069 : vector<8x128xf32>
    %1071 = math.tanh %1070 : vector<8x128xf32>
    %cst_184 = arith.constant 1.000000e+00 : f32
    %1072 = vector.broadcast %cst_184 : f32 to vector<8x128xf32>
    %1073 = arith.subf %1072, %1066 : vector<8x128xf32>
    %1074 = arith.mulf %1073, %1071 : vector<8x128xf32>
    %1075 = arith.mulf %1066, %1011 : vector<8x128xf32>
    %1076 = arith.addf %1074, %1075 : vector<8x128xf32>
    %1077 = vector.extract_strided_slice %93 {offsets = [120, 0], sizes = [8, 384], strides = [1, 1]} : vector<128x384xf32> to vector<8x384xf32>
    %1078 = arith.truncf %1042 : vector<8x128xf32> to vector<8x128xbf16>
    %cst_185 = arith.constant dense<0.000000e+00> : vector<8x384xf32>
    %1079 = tpu.matmul %1078, %94, %cst_185 {dimension_numbers = #tpu.dot_dimension_numbers<[1], [0], [0], [1], [0, 0, 1, 1], [], []>} : vector<8x128xbf16>, vector<128x384xbf16>, vector<8x384xf32> -> vector<8x384xf32>
    %1080 = vector.broadcast %95 : vector<1x384xf32> to vector<8x384xf32>
    %1081 = arith.addf %1079, %1080 : vector<8x384xf32>
    %1082 = vector.extract_strided_slice %1077 {offsets = [0, 0], sizes = [8, 128], strides = [1, 1]} : vector<8x384xf32> to vector<8x128xf32>
    %1083 = vector.extract_strided_slice %1081 {offsets = [0, 0], sizes = [8, 128], strides = [1, 1]} : vector<8x384xf32> to vector<8x128xf32>
    %1084 = arith.addf %1082, %1083 : vector<8x128xf32>
    %1085 = arith.negf %1084 : vector<8x128xf32>
    %1086 = math.exp %1085 : vector<8x128xf32>
    %cst_186 = arith.constant 1.000000e+00 : f32
    %1087 = vector.broadcast %cst_186 : f32 to vector<8x128xf32>
    %1088 = arith.addf %1087, %1086 : vector<8x128xf32>
    %1089 = arith.divf %1087, %1088 : vector<8x128xf32>
    %1090 = vector.extract_strided_slice %1077 {offsets = [0, 128], sizes = [8, 128], strides = [1, 1]} : vector<8x384xf32> to vector<8x128xf32>
    %1091 = vector.extract_strided_slice %1081 {offsets = [0, 128], sizes = [8, 128], strides = [1, 1]} : vector<8x384xf32> to vector<8x128xf32>
    %1092 = arith.addf %1090, %1091 : vector<8x128xf32>
    %1093 = arith.negf %1092 : vector<8x128xf32>
    %1094 = math.exp %1093 : vector<8x128xf32>
    %cst_187 = arith.constant 1.000000e+00 : f32
    %1095 = vector.broadcast %cst_187 : f32 to vector<8x128xf32>
    %1096 = arith.addf %1095, %1094 : vector<8x128xf32>
    %1097 = arith.divf %1095, %1096 : vector<8x128xf32>
    %1098 = vector.extract_strided_slice %1077 {offsets = [0, 256], sizes = [8, 128], strides = [1, 1]} : vector<8x384xf32> to vector<8x128xf32>
    %1099 = vector.extract_strided_slice %1081 {offsets = [0, 256], sizes = [8, 128], strides = [1, 1]} : vector<8x384xf32> to vector<8x128xf32>
    %1100 = arith.mulf %1089, %1099 : vector<8x128xf32>
    %1101 = arith.addf %1098, %1100 : vector<8x128xf32>
    %1102 = math.tanh %1101 : vector<8x128xf32>
    %cst_188 = arith.constant 1.000000e+00 : f32
    %1103 = vector.broadcast %cst_188 : f32 to vector<8x128xf32>
    %1104 = arith.subf %1103, %1097 : vector<8x128xf32>
    %1105 = arith.mulf %1104, %1102 : vector<8x128xf32>
    %1106 = arith.mulf %1097, %1042 : vector<8x128xf32>
    %1107 = arith.addf %1105, %1106 : vector<8x128xf32>
    %1108 = arith.truncf %1107 : vector<8x128xf32> to vector<8x128xbf16>
    %cst_189 = arith.constant dense<0.000000e+00> : vector<8x384xf32>
    %1109 = tpu.matmul %1108, %96, %cst_189 {dimension_numbers = #tpu.dot_dimension_numbers<[1], [0], [0], [1], [0, 0, 1, 1], [], []>} : vector<8x128xbf16>, vector<128x384xbf16>, vector<8x384xf32> -> vector<8x384xf32>
    %1110 = vector.broadcast %97 : vector<1x384xf32> to vector<8x384xf32>
    %1111 = arith.addf %1109, %1110 : vector<8x384xf32>
    %1112 = arith.truncf %1076 : vector<8x128xf32> to vector<8x128xbf16>
    %cst_190 = arith.constant dense<0.000000e+00> : vector<8x384xf32>
    %1113 = tpu.matmul %1112, %98, %cst_190 {dimension_numbers = #tpu.dot_dimension_numbers<[1], [0], [0], [1], [0, 0, 1, 1], [], []>} : vector<8x128xbf16>, vector<128x384xbf16>, vector<8x384xf32> -> vector<8x384xf32>
    %1114 = vector.broadcast %99 : vector<1x384xf32> to vector<8x384xf32>
    %1115 = arith.addf %1113, %1114 : vector<8x384xf32>
    %1116 = vector.extract_strided_slice %1111 {offsets = [0, 0], sizes = [8, 128], strides = [1, 1]} : vector<8x384xf32> to vector<8x128xf32>
    %1117 = vector.extract_strided_slice %1115 {offsets = [0, 0], sizes = [8, 128], strides = [1, 1]} : vector<8x384xf32> to vector<8x128xf32>
    %1118 = arith.addf %1116, %1117 : vector<8x128xf32>
    %1119 = arith.negf %1118 : vector<8x128xf32>
    %1120 = math.exp %1119 : vector<8x128xf32>
    %cst_191 = arith.constant 1.000000e+00 : f32
    %1121 = vector.broadcast %cst_191 : f32 to vector<8x128xf32>
    %1122 = arith.addf %1121, %1120 : vector<8x128xf32>
    %1123 = arith.divf %1121, %1122 : vector<8x128xf32>
    %1124 = vector.extract_strided_slice %1111 {offsets = [0, 128], sizes = [8, 128], strides = [1, 1]} : vector<8x384xf32> to vector<8x128xf32>
    %1125 = vector.extract_strided_slice %1115 {offsets = [0, 128], sizes = [8, 128], strides = [1, 1]} : vector<8x384xf32> to vector<8x128xf32>
    %1126 = arith.addf %1124, %1125 : vector<8x128xf32>
    %1127 = arith.negf %1126 : vector<8x128xf32>
    %1128 = math.exp %1127 : vector<8x128xf32>
    %cst_192 = arith.constant 1.000000e+00 : f32
    %1129 = vector.broadcast %cst_192 : f32 to vector<8x128xf32>
    %1130 = arith.addf %1129, %1128 : vector<8x128xf32>
    %1131 = arith.divf %1129, %1130 : vector<8x128xf32>
    %1132 = vector.extract_strided_slice %1111 {offsets = [0, 256], sizes = [8, 128], strides = [1, 1]} : vector<8x384xf32> to vector<8x128xf32>
    %1133 = vector.extract_strided_slice %1115 {offsets = [0, 256], sizes = [8, 128], strides = [1, 1]} : vector<8x384xf32> to vector<8x128xf32>
    %1134 = arith.mulf %1123, %1133 : vector<8x128xf32>
    %1135 = arith.addf %1132, %1134 : vector<8x128xf32>
    %1136 = math.tanh %1135 : vector<8x128xf32>
    %cst_193 = arith.constant 1.000000e+00 : f32
    %1137 = vector.broadcast %cst_193 : f32 to vector<8x128xf32>
    %1138 = arith.subf %1137, %1131 : vector<8x128xf32>
    %1139 = arith.mulf %1138, %1136 : vector<8x128xf32>
    %1140 = arith.mulf %1131, %1076 : vector<8x128xf32>
    %1141 = arith.addf %1139, %1140 : vector<8x128xf32>
    %1142 = tpu.concatenate %1107, %1141 in 0 : vector<8x128xf32>, vector<8x128xf32> -> vector<16x128xf32>
    %1143 = arith.truncf %1142 : vector<16x128xf32> to vector<16x128xbf16>
    %1144 = tpu.iota {dimensions = array<i32: 0>} : vector<8x16xi32>
    %1145 = tpu.iota {dimensions = array<i32: 1>} : vector<8x16xi32>
    %c2_i32 = arith.constant 2 : i32
    %1146 = vector.broadcast %c2_i32 : i32 to vector<8x16xi32>
    %1147 = arith.muli %1146, %1144 : vector<8x16xi32>
    %1148 = arith.cmpi eq, %1145, %1147 : vector<8x16xi32>
    %1149 = arith.extui %1148 : vector<8x16xi1> to vector<8x16xi32>
    %1150 = arith.sitofp %1149 : vector<8x16xi32> to vector<8x16xf32>
    %1151 = arith.truncf %1150 : vector<8x16xf32> to vector<8x16xbf16>
    %c2_i32_194 = arith.constant 2 : i32
    %1152 = vector.broadcast %c2_i32_194 : i32 to vector<8x16xi32>
    %1153 = arith.muli %1152, %1144 : vector<8x16xi32>
    %c1_i32 = arith.constant 1 : i32
    %1154 = vector.broadcast %c1_i32 : i32 to vector<8x16xi32>
    %1155 = arith.addi %1153, %1154 : vector<8x16xi32>
    %1156 = arith.cmpi eq, %1145, %1155 : vector<8x16xi32>
    %1157 = arith.extui %1156 : vector<8x16xi1> to vector<8x16xi32>
    %1158 = arith.sitofp %1157 : vector<8x16xi32> to vector<8x16xf32>
    %1159 = arith.truncf %1158 : vector<8x16xf32> to vector<8x16xbf16>
    %cst_195 = arith.constant dense<0.000000e+00> : vector<8x128xf32>
    %1160 = tpu.matmul %1151, %1143, %cst_195 {dimension_numbers = #tpu.dot_dimension_numbers<[1], [0], [0], [1], [0, 0, 1, 1], [], []>} : vector<8x16xbf16>, vector<16x128xbf16>, vector<8x128xf32> -> vector<8x128xf32>
    %cst_196 = arith.constant dense<0.000000e+00> : vector<8x128xf32>
    %1161 = tpu.matmul %1159, %1143, %cst_196 {dimension_numbers = #tpu.dot_dimension_numbers<[1], [0], [0], [1], [0, 0, 1, 1], [], []>} : vector<8x16xbf16>, vector<16x128xbf16>, vector<8x128xf32> -> vector<8x128xf32>
    %1162 = tpu.concatenate %1160, %1161 in 1 : vector<8x128xf32>, vector<8x128xf32> -> vector<8x256xf32>
    %1163 = arith.truncf %1162 : vector<8x256xf32> to vector<8x256xbf16>
    %c0_197 = arith.constant 0 : index
    %c0_198 = arith.constant 0 : index
    %1164 = vector.load %arg18[%c0_197, %c0_198] : memref<256x32xbf16, #tpu.memory_space<vmem>>, vector<256x32xbf16>
    %cst_199 = arith.constant dense<0.000000e+00> : vector<8x32xf32>
    %1165 = tpu.matmul %1163, %1164, %cst_199 {dimension_numbers = #tpu.dot_dimension_numbers<[1], [0], [0], [1], [0, 0, 1, 1], [], []>} : vector<8x256xbf16>, vector<256x32xbf16>, vector<8x32xf32> -> vector<8x32xf32>
    %c0_200 = arith.constant 0 : index
    %c0_201 = arith.constant 0 : index
    %1166 = vector.load %arg19[%c0_200, %c0_201] : memref<1x32xf32, #tpu.memory_space<vmem>>, vector<1x32xf32>
    %1167 = vector.broadcast %1166 : vector<1x32xf32> to vector<8x32xf32>
    %1168 = arith.addf %1165, %1167 : vector<8x32xf32>
    %cst_202 = arith.constant 0.000000e+00 : f32
    %1169 = vector.broadcast %cst_202 : f32 to vector<8x32xf32>
    %1170 = arith.maximumf %1168, %1169 : vector<8x32xf32>
    %1171 = arith.truncf %1170 : vector<8x32xf32> to vector<8x32xbf16>
    %c0_203 = arith.constant 0 : index
    %c0_204 = arith.constant 0 : index
    %1172 = vector.load %arg20[%c0_203, %c0_204] : memref<32x18xbf16, #tpu.memory_space<vmem>>, vector<32x18xbf16>
    %cst_205 = arith.constant dense<0.000000e+00> : vector<8x18xf32>
    %1173 = tpu.matmul %1171, %1172, %cst_205 {dimension_numbers = #tpu.dot_dimension_numbers<[1], [0], [0], [1], [0, 0, 1, 1], [], []>} : vector<8x32xbf16>, vector<32x18xbf16>, vector<8x18xf32> -> vector<8x18xf32>
    %c0_206 = arith.constant 0 : index
    %c0_207 = arith.constant 0 : index
    %1174 = vector.load %arg21[%c0_206, %c0_207] : memref<1x18xf32, #tpu.memory_space<vmem>>, vector<1x18xf32>
    %1175 = vector.broadcast %1174 : vector<1x18xf32> to vector<8x18xf32>
    %1176 = arith.addf %1173, %1175 : vector<8x18xf32>
    %cst_208 = arith.constant 0.000000e+00 : f32
    %1177 = vector.broadcast %cst_208 : f32 to vector<8x18xf32>
    %1178 = arith.maximumf %1176, %1177 : vector<8x18xf32>
    %1179 = arith.truncf %1178 : vector<8x18xf32> to vector<8x18xbf16>
    %c0_209 = arith.constant 0 : index
    %c0_210 = arith.constant 0 : index
    %1180 = vector.load %arg22[%c0_209, %c0_210] : memref<18x2xbf16, #tpu.memory_space<vmem>>, vector<18x2xbf16>
    %cst_211 = arith.constant dense<0.000000e+00> : vector<8x2xf32>
    %1181 = tpu.matmul %1179, %1180, %cst_211 {dimension_numbers = #tpu.dot_dimension_numbers<[1], [0], [0], [1], [0, 0, 1, 1], [], []>} : vector<8x18xbf16>, vector<18x2xbf16>, vector<8x2xf32> -> vector<8x2xf32>
    %c0_212 = arith.constant 0 : index
    %c0_213 = arith.constant 0 : index
    %1182 = vector.load %arg23[%c0_212, %c0_213] : memref<1x2xf32, #tpu.memory_space<vmem>>, vector<1x2xf32>
    %1183 = vector.broadcast %1182 : vector<1x2xf32> to vector<8x2xf32>
    %1184 = arith.addf %1181, %1183 : vector<8x2xf32>
    %cst_214 = arith.constant dense<0xFF800000> : vector<8xf32>
    %1185 = vector.multi_reduction <maximumf>, %1184, %cst_214 [1] : vector<8x2xf32> to vector<8xf32>
    %1186 = vector.shape_cast %1185 : vector<8xf32> to vector<8x1xf32>
    %1187 = vector.broadcast %1186 : vector<8x1xf32> to vector<8x2xf32>
    %1188 = arith.subf %1184, %1187 : vector<8x2xf32>
    %1189 = math.exp %1188 : vector<8x2xf32>
    %cst_215 = arith.constant dense<0.000000e+00> : vector<8xf32>
    %1190 = vector.multi_reduction <add>, %1189, %cst_215 [1] : vector<8x2xf32> to vector<8xf32>
    %1191 = vector.shape_cast %1190 : vector<8xf32> to vector<8x1xf32>
    %1192 = tpu.reciprocal %1191 {approx = true} : vector<8x1xf32> -> vector<8x1xf32>
    %1193 = vector.broadcast %1192 : vector<8x1xf32> to vector<8x2xf32>
    %1194 = arith.mulf %1189, %1193 : vector<8x2xf32>
    %c0_216 = arith.constant 0 : index
    %c0_217 = arith.constant 0 : index
    %1195 = vector.load %arg24[%c0_216, %c0_217] : memref<8x2xf32, #tpu.memory_space<vmem>>, vector<8x2xf32>
    tpu.vector_store %arg24[%c0_216, %c0_217], %1194 {strides = array<i32>} : memref<8x2xf32, #tpu.memory_space<vmem>>, vector<8x2xf32>,
    return
  }
}

</mosaic_0001>

<llo_original>
// kernel: _forward_impl.1
$region0: #{_forward_impl.1}
  #allocation0 [shape = 'u32[]', space=smem, size = 0x4, offset = 0x4, fixed_abs, tag = 'smem constant byte address 0x4 - core index']
  #allocation1 [shape = 'u32[144,128]{1,0:T(1,128)}', space=vmem, size = 0x12000, scoped, tag = 'internal scratch']
  %s0 = inlined_call_operand.hbm [shape: f32[128,24], index: 0, kind: input, shape index: {}]
  %s1 = inlined_call_operand.vmem [shape: bf16[128,128], index: 1, kind: input, shape index: {}]
  %s2 = inlined_call_operand.vmem [shape: bf16[72,64], index: 2, kind: input, shape index: {}]
  %s3 = inlined_call_operand.hbm [shape: f32[1,64], index: 3, kind: input, shape index: {}]
  %s4 = inlined_call_operand.vmem [shape: bf16[96,56], index: 4, kind: input, shape index: {}]
  %s5 = inlined_call_operand.hbm [shape: f32[1,56], index: 5, kind: input, shape index: {}]
  %s6 = inlined_call_operand.vmem [shape: bf16[84,50], index: 6, kind: input, shape index: {}]
  %s7 = inlined_call_operand.hbm [shape: f32[1,50], index: 7, kind: input, shape index: {}]
  %s8 = inlined_call_operand.vmem [shape: bf16[75,36], index: 8, kind: input, shape index: {}]
  %s9 = inlined_call_operand.hbm [shape: f32[1,36], index: 9, kind: input, shape index: {}]
  %s10 = inlined_call_operand.vmem [shape: bf16[18,384], index: 10, kind: input, shape index: {}]
  %s11 = inlined_call_operand.vmem [shape: bf16[128,384], index: 11, kind: input, shape index: {}]
  %s12 = inlined_call_operand.vmem [shape: f32[1,384], index: 12, kind: input, shape index: {}]
  %s13 = inlined_call_operand.vmem [shape: f32[1,384], index: 13, kind: input, shape index: {}]
  %s14 = inlined_call_operand.vmem [shape: bf16[128,384], index: 14, kind: input, shape index: {}]
  %s15 = inlined_call_operand.hbm [shape: bf16[128,384], index: 15, kind: input, shape index: {}]
  %s16 = inlined_call_operand.vmem [shape: f32[1,384], index: 16, kind: input, shape index: {}]
  %s17 = inlined_call_operand.hbm [shape: f32[1,384], index: 17, kind: input, shape index: {}]
  %s18 = inlined_call_operand.vmem [shape: bf16[256,32], index: 18, kind: input, shape index: {}]
  %s19 = inlined_call_operand.hbm [shape: f32[1,32], index: 19, kind: input, shape index: {}]
  %s20 = inlined_call_operand.vmem [shape: bf16[32,18], index: 20, kind: input, shape index: {}]
  %s21 = inlined_call_operand.hbm [shape: f32[1,18], index: 21, kind: input, shape index: {}]
  %s22 = inlined_call_operand.vmem [shape: bf16[18,2], index: 22, kind: input, shape index: {}]
  %s23 = inlined_call_operand.hbm [shape: f32[1,2], index: 23, kind: input, shape index: {}]
  %s24 = inlined_call_operand.vmem [shape: f32[8,2], index: 24, kind: output, shape index: {}]
  %s25 = sld [smem:[#allocation0]]
  $region146: #{_forward_impl.1} parent=0
    _
  %s27 = ssub.s32 1, %s25
  %s28 = scalar_select 0, %s27, %s25
  $region1: #{_forward_impl.1} parent=0
    #allocation2 [shape = 'u8[65536]{0}', space=vmem, size = 0x10000, scoped, tag = 'input window, operand 0, single buffered']
    #allocation3 [shape = 's32[1]{0}', space=sflag, size = 0x4, scoped, tag = 'scoped memory for _forward_impl.1']
    #allocation4 [shape = 'u8[512]{0}', space=vmem, size = 0x400, scoped, tag = 'input window, operand 3, single buffered']
    #allocation5 [shape = 's32[1]{0}', space=sflag, size = 0x4, scoped, tag = 'scoped memory for _forward_impl.1']
    #allocation6 [shape = 'u8[512]{0}', space=vmem, size = 0x400, scoped, tag = 'input window, operand 5, single buffered']
    #allocation7 [shape = 'u8[512]{0}', space=vmem, size = 0x400, scoped, tag = 'input window, operand 7, single buffered']
    #allocation8 [shape = 's32[1]{0}', space=sflag, size = 0x4, scoped, tag = 'scoped memory for _forward_impl.1']
    #allocation9 [shape = 'u8[512]{0}', space=vmem, size = 0x400, scoped, tag = 'input window, operand 9, single buffered']
    #allocation10 [shape = 'u8[98304]{0}', space=vmem, size = 0x18000, scoped, tag = 'input window, operand 15, single buffered']
    #allocation11 [shape = 's32[1]{0}', space=sflag, size = 0x4, scoped, tag = 'scoped memory for _forward_impl.1']
    #allocation12 [shape = 'u8[1536]{0}', space=vmem, size = 0x800, scoped, tag = 'input window, operand 17, single buffered']
    #allocation13 [shape = 'u8[512]{0}', space=vmem, size = 0x400, scoped, tag = 'input window, operand 19, single buffered']
    #allocation14 [shape = 's32[1]{0}', space=sflag, size = 0x4, scoped, tag = 'scoped memory for _forward_impl.1']
    #allocation15 [shape = 'u8[512]{0}', space=vmem, size = 0x400, scoped, tag = 'input window, operand 21, single buffered']
    #allocation16 [shape = 'u8[512]{0}', space=vmem, size = 0x400, scoped, tag = 'input window, operand 23, single buffered']
    #allocation17 [shape = 's32[1]{0}', space=sflag, size = 0x4, scoped, tag = 'scoped memory for _forward_impl.1']
    %29 = vsyncpa [#allocation3], 0
    %30 = vsyncpa [#allocation5], 0
    %31 = vsyncpa [#allocation8], 0
    %32 = vsyncpa [#allocation11], 0
    %33 = vsyncpa [#allocation14], 0
    %34 = vsyncpa [#allocation17], 0
    // Predicated region
    $region2: #{_forward_impl.1} parent=1 // pred_check
      _
    $region3: #{_forward_impl.1} parent=1 // pred_check_branch
      %36 = sbr.rel (0) target = $region5
    $region4: #{_forward_impl.1} parent=1 // pred_region
      %s38 = ssub.s32 2048, 2048
      %39 = vsyncadd [#allocation3], %s38
      %s40 = sshll.u32 [#allocation2], 4
      %s41 = int_to_ptr.vmem [resolvable:$true] %s40
      %46 = dma.hbm_to_vmem [thread:$0]  %s0, 2048, %s41, [#allocation3], 128, 128, 8
    $region5: #{_forward_impl.1} parent=1 // pred_fallthru
      _
    // Predicated region
    $region6: #{_forward_impl.1} parent=1 // pred_check
      _
    $region7: #{_forward_impl.1} parent=1 // pred_check_branch
      %48 = sbr.rel (0) target = $region9
    $region8: #{_forward_impl.1} parent=1 // pred_region
      _
    $region9: #{_forward_impl.1} parent=1 // pred_fallthru
      _
    // Predicated region
    $region10: #{_forward_impl.1} parent=1 // pred_check
      _
    $region11: #{_forward_impl.1} parent=1 // pred_check_branch
      %50 = sbr.rel (0) target = $region13
    $region12: #{_forward_impl.1} parent=1 // pred_region
      _
    $region13: #{_forward_impl.1} parent=1 // pred_fallthru
      _
    // Predicated region
    $region14: #{_forward_impl.1} parent=1 // pred_check
      _
    $region15: #{_forward_impl.1} parent=1 // pred_check_branch
      %52 = sbr.rel (0) target = $region17
    $region16: #{_forward_impl.1} parent=1 // pred_region
      %s54 = ssub.s32 16, 16
      %55 = vsyncadd [#allocation5], %s54
      %s57 = sshll.u32 [#allocation4], 4
      %s58 = int_to_ptr.vmem [resolvable:$true] %s57
      %60 = dma.hbm_to_vmem [thread:$0]  %s3, 16, %s58, [#allocation5]
    $region17: #{_forward_impl.1} parent=1 // pred_fallthru
      _
    // Predicated region
    $region18: #{_forward_impl.1} parent=1 // pred_check
      _
    $region19: #{_forward_impl.1} parent=1 // pred_check_branch
      %62 = sbr.rel (0) target = $region21
    $region20: #{_forward_impl.1} parent=1 // pred_region
      _
    $region21: #{_forward_impl.1} parent=1 // pred_fallthru
      _
    // Predicated region
    $region22: #{_forward_impl.1} parent=1 // pred_check
      _
    $region23: #{_forward_impl.1} parent=1 // pred_check_branch
      %64 = sbr.rel (0) target = $region25
    $region24: #{_forward_impl.1} parent=1 // pred_region
      %s66 = ssub.s32 16, 16
      %67 = vsyncadd [#allocation5], %s66
      %s69 = sshll.u32 [#allocation6], 4
      %s70 = int_to_ptr.vmem [resolvable:$true] %s69
      %72 = dma.hbm_to_vmem [thread:$0]  %s5, 16, %s70, [#allocation5]
    $region25: #{_forward_impl.1} parent=1 // pred_fallthru
      _
    // Predicated region
    $region26: #{_forward_impl.1} parent=1 // pred_check
      _
    $region27: #{_forward_impl.1} parent=1 // pred_check_branch
      %74 = sbr.rel (0) target = $region29
    $region28: #{_forward_impl.1} parent=1 // pred_region
      _
    $region29: #{_forward_impl.1} parent=1 // pred_fallthru
      _
    // Predicated region
    $region30: #{_forward_impl.1} parent=1 // pred_check
      _
    $region31: #{_forward_impl.1} parent=1 // pred_check_branch
      %76 = sbr.rel (0) target = $region33
    $region32: #{_forward_impl.1} parent=1 // pred_region
      %s78 = ssub.s32 16, 16
      %79 = vsyncadd [#allocation8], %s78
      %s81 = sshll.u32 [#allocation7], 4
      %s82 = int_to_ptr.vmem [resolvable:$true] %s81
      %84 = dma.hbm_to_vmem [thread:$0]  %s7, 16, %s82, [#allocation8]
    $region33: #{_forward_impl.1} parent=1 // pred_fallthru
      _
    // Predicated region
    $region34: #{_forward_impl.1} parent=1 // pred_check
      _
    $region35: #{_forward_impl.1} parent=1 // pred_check_branch
      %86 = sbr.rel (0) target = $region37
    $region36: #{_forward_impl.1} parent=1 // pred_region
      _
    $region37: #{_forward_impl.1} parent=1 // pred_fallthru
      _
    // Predicated region
    $region38: #{_forward_impl.1} parent=1 // pred_check
      _
    $region39: #{_forward_impl.1} parent=1 // pred_check_branch
      %88 = sbr.rel (0) target = $region41
    $region40: #{_forward_impl.1} parent=1 // pred_region
      %s90 = ssub.s32 16, 16
      %91 = vsyncadd [#allocation8], %s90
      %s93 = sshll.u32 [#allocation9], 4
      %s94 = int_to_ptr.vmem [resolvable:$true] %s93
      %96 = dma.hbm_to_vmem [thread:$0]  %s9, 16, %s94, [#allocation8]
    $region41: #{_forward_impl.1} parent=1 // pred_fallthru
      _
    // Predicated region
    $region42: #{_forward_impl.1} parent=1 // pred_check
      _
    $region43: #{_forward_impl.1} parent=1 // pred_check_branch
      %98 = sbr.rel (0) target = $region45
    $region44: #{_forward_impl.1} parent=1 // pred_region
      _
    $region45: #{_forward_impl.1} parent=1 // pred_fallthru
      _
    // Predicated region
    $region46: #{_forward_impl.1} parent=1 // pred_check
      _
    $region47: #{_forward_impl.1} parent=1 // pred_check_branch
      %100 = sbr.rel (0) target = $region49
    $region48: #{_forward_impl.1} parent=1 // pred_region
      _
    $region49: #{_forward_impl.1} parent=1 // pred_fallthru
      _
    // Predicated region
    $region50: #{_forward_impl.1} parent=1 // pred_check
      _
    $region51: #{_forward_impl.1} parent=1 // pred_check_branch
      %102 = sbr.rel (0) target = $region53
    $region52: #{_forward_impl.1} parent=1 // pred_region
      _
    $region53: #{_forward_impl.1} parent=1 // pred_fallthru
      _
    // Predicated region
    $region54: #{_forward_impl.1} parent=1 // pred_check
      _
    $region55: #{_forward_impl.1} parent=1 // pred_check_branch
      %104 = sbr.rel (0) target = $region57
    $region56: #{_forward_impl.1} parent=1 // pred_region
      _
    $region57: #{_forward_impl.1} parent=1 // pred_fallthru
      _
    // Predicated region
    $region58: #{_forward_impl.1} parent=1 // pred_check
      _
    $region59: #{_forward_impl.1} parent=1 // pred_check_branch
      %106 = sbr.rel (0) target = $region61
    $region60: #{_forward_impl.1} parent=1 // pred_region
      _
    $region61: #{_forward_impl.1} parent=1 // pred_fallthru
      _
    // Predicated region
    $region62: #{_forward_impl.1} parent=1 // pred_check
      _
    $region63: #{_forward_impl.1} parent=1 // pred_check_branch
      %108 = sbr.rel (0) target = $region65
    $region64: #{_forward_impl.1} parent=1 // pred_region
      %s110 = ssub.s32 3072, 3072
      %111 = vsyncadd [#allocation11], %s110
      %s112 = sshll.u32 [#allocation10], 4
      %s113 = int_to_ptr.vmem [resolvable:$true] %s112
      %118 = dma.hbm_to_vmem [thread:$0]  %s15, 3072, %s113, [#allocation11], 192, 192, 12
    $region65: #{_forward_impl.1} parent=1 // pred_fallthru
      _
    // Predicated region
    $region66: #{_forward_impl.1} parent=1 // pred_check
      _
    $region67: #{_forward_impl.1} parent=1 // pred_check_branch
      %120 = sbr.rel (0) target = $region69
    $region68: #{_forward_impl.1} parent=1 // pred_region
      _
    $region69: #{_forward_impl.1} parent=1 // pred_fallthru
      _
    // Predicated region
    $region70: #{_forward_impl.1} parent=1 // pred_check
      _
    $region71: #{_forward_impl.1} parent=1 // pred_check_branch
      %122 = sbr.rel (0) target = $region73
    $region72: #{_forward_impl.1} parent=1 // pred_region
      %s124 = ssub.s32 48, 48
      %125 = vsyncadd [#allocation11], %s124
      %s127 = sshll.u32 [#allocation12], 4
      %s128 = int_to_ptr.vmem [resolvable:$true] %s127
      %130 = dma.hbm_to_vmem [thread:$0]  %s17, 48, %s128, [#allocation11]
    $region73: #{_forward_impl.1} parent=1 // pred_fallthru
      _
    // Predicated region
    $region74: #{_forward_impl.1} parent=1 // pred_check
      _
    $region75: #{_forward_impl.1} parent=1 // pred_check_branch
      %132 = sbr.rel (0) target = $region77
    $region76: #{_forward_impl.1} parent=1 // pred_region
      _
    $region77: #{_forward_impl.1} parent=1 // pred_fallthru
      _
    // Predicated region
    $region78: #{_forward_impl.1} parent=1 // pred_check
      _
    $region79: #{_forward_impl.1} parent=1 // pred_check_branch
      %134 = sbr.rel (0) target = $region81
    $region80: #{_forward_impl.1} parent=1 // pred_region
      %s136 = ssub.s32 16, 16
      %137 = vsyncadd [#allocation14], %s136
      %s139 = sshll.u32 [#allocation13], 4
      %s140 = int_to_ptr.vmem [resolvable:$true] %s139
      %142 = dma.hbm_to_vmem [thread:$0]  %s19, 16, %s140, [#allocation14]
    $region81: #{_forward_impl.1} parent=1 // pred_fallthru
      _
    // Predicated region
    $region82: #{_forward_impl.1} parent=1 // pred_check
      _
    $region83: #{_forward_impl.1} parent=1 // pred_check_branch
      %144 = sbr.rel (0) target = $region85
    $region84: #{_forward_impl.1} parent=1 // pred_region
      _
    $region85: #{_forward_impl.1} parent=1 // pred_fallthru
      _
    // Predicated region
    $region86: #{_forward_impl.1} parent=1 // pred_check
      _
    $region87: #{_forward_impl.1} parent=1 // pred_check_branch
      %146 = sbr.rel (0) target = $region89
    $region88: #{_forward_impl.1} parent=1 // pred_region
      %s148 = ssub.s32 16, 16
      %149 = vsyncadd [#allocation14], %s148
      %s151 = sshll.u32 [#allocation15], 4
      %s152 = int_to_ptr.vmem [resolvable:$true] %s151
      %154 = dma.hbm_to_vmem [thread:$0]  %s21, 16, %s152, [#allocation14]
    $region89: #{_forward_impl.1} parent=1 // pred_fallthru
      _
    // Predicated region
    $region90: #{_forward_impl.1} parent=1 // pred_check
      _
    $region91: #{_forward_impl.1} parent=1 // pred_check_branch
      %156 = sbr.rel (0) target = $region93
    $region92: #{_forward_impl.1} parent=1 // pred_region
      _
    $region93: #{_forward_impl.1} parent=1 // pred_fallthru
      _
    // Predicated region
    $region94: #{_forward_impl.1} parent=1 // pred_check
      _
    $region95: #{_forward_impl.1} parent=1 // pred_check_branch
      %158 = sbr.rel (0) target = $region97
    $region96: #{_forward_impl.1} parent=1 // pred_region
      %s160 = ssub.s32 16, 16
      %161 = vsyncadd [#allocation17], %s160
      %s163 = sshll.u32 [#allocation16], 4
      %s164 = int_to_ptr.vmem [resolvable:$true] %s163
      %166 = dma.hbm_to_vmem [thread:$0]  %s23, 16, %s164, [#allocation17]
    $region97: #{_forward_impl.1} parent=1 // pred_fallthru
      _
    // Predicated region
    $region98: #{_forward_impl.1} parent=1 // pred_check
      _
    $region99: #{_forward_impl.1} parent=1 // pred_check_branch
      %168 = sbr.rel (0) target = $region101
    $region100: #{_forward_impl.1} parent=1 // pred_region
      %169 = dma.done [#allocation3], 2048
    $region101: #{_forward_impl.1} parent=1 // pred_fallthru
      _
    // Predicated region
    $region102: #{_forward_impl.1} parent=1 // pred_check
      _
    $region103: #{_forward_impl.1} parent=1 // pred_check_branch
      %171 = sbr.rel (0) target = $region105
    $region104: #{_forward_impl.1} parent=1 // pred_region
      %172 = dma.done [#allocation5], 16
    $region105: #{_forward_impl.1} parent=1 // pred_fallthru
      _
    // Predicated region
    $region106: #{_forward_impl.1} parent=1 // pred_check
      _
    $region107: #{_forward_impl.1} parent=1 // pred_check_branch
      %174 = sbr.rel (0) target = $region109
    $region108: #{_forward_impl.1} parent=1 // pred_region
      %175 = dma.done [#allocation5], 16
    $region109: #{_forward_impl.1} parent=1 // pred_fallthru
      _
    // Predicated region
    $region110: #{_forward_impl.1} parent=1 // pred_check
      _
    $region111: #{_forward_impl.1} parent=1 // pred_check_branch
      %177 = sbr.rel (0) target = $region113
    $region112: #{_forward_impl.1} parent=1 // pred_region
      %178 = dma.done [#allocation8], 16
    $region113: #{_forward_impl.1} parent=1 // pred_fallthru
      _
    // Predicated region
    $region114: #{_forward_impl.1} parent=1 // pred_check
      _
    $region115: #{_forward_impl.1} parent=1 // pred_check_branch
      %180 = sbr.rel (0) target = $region117
    $region116: #{_forward_impl.1} parent=1 // pred_region
      %181 = dma.done [#allocation8], 16
    $region117: #{_forward_impl.1} parent=1 // pred_fallthru
      _
    // Predicated region
    $region118: #{_forward_impl.1} parent=1 // pred_check
      _
    $region119: #{_forward_impl.1} parent=1 // pred_check_branch
      %183 = sbr.rel (0) target = $region121
    $region120: #{_forward_impl.1} parent=1 // pred_region
      %184 = dma.done [#allocation11], 3072
    $region121: #{_forward_impl.1} parent=1 // pred_fallthru
      _
    // Predicated region
    $region122: #{_forward_impl.1} parent=1 // pred_check
      _
    $region123: #{_forward_impl.1} parent=1 // pred_check_branch
      %186 = sbr.rel (0) target = $region125
    $region124: #{_forward_impl.1} parent=1 // pred_region
      %187 = dma.done [#allocation11], 48
    $region125: #{_forward_impl.1} parent=1 // pred_fallthru
      _
    // Predicated region
    $region126: #{_forward_impl.1} parent=1 // pred_check
      _
    $region127: #{_forward_impl.1} parent=1 // pred_check_branch
      %189 = sbr.rel (0) target = $region129
    $region128: #{_forward_impl.1} parent=1 // pred_region
      %190 = dma.done [#allocation14], 16
    $region129: #{_forward_impl.1} parent=1 // pred_fallthru
      _
    // Predicated region
    $region130: #{_forward_impl.1} parent=1 // pred_check
      _
    $region131: #{_forward_impl.1} parent=1 // pred_check_branch
      %192 = sbr.rel (0) target = $region133
    $region132: #{_forward_impl.1} parent=1 // pred_region
      %193 = dma.done [#allocation14], 16
    $region133: #{_forward_impl.1} parent=1 // pred_fallthru
      _
    // Predicated region
    $region134: #{_forward_impl.1} parent=1 // pred_check
      _
    $region135: #{_forward_impl.1} parent=1 // pred_check_branch
      %195 = sbr.rel (0) target = $region137
    $region136: #{_forward_impl.1} parent=1 // pred_region
      %196 = dma.done [#allocation17], 16
    $region137: #{_forward_impl.1} parent=1 // pred_fallthru
      _
    %v198 = vld [vmem:[%s1] sm:$0xf]
    %v199 = vld [vmem:[%s1 + $0x4] sm:$0xf]
    %v200 = vld [vmem:[%s1 + $0x8] sm:$0xf]
    %v201 = vld [vmem:[%s1 + $0xc] sm:$0xf]
    %v202 = vld [vmem:[%s1 + $0x10] sm:$0xf]
    %v203 = vld [vmem:[%s1 + $0x14] sm:$0xf]
    %v204 = vld [vmem:[%s1 + $0x18] sm:$0xf]
    %v205 = vld [vmem:[%s1 + $0x1c] sm:$0xf]
    %v206 = vld [vmem:[%s1 + $0x20] sm:$0xf]
    %v207 = vld [vmem:[%s1 + $0x24] sm:$0xf]
    %v208 = vld [vmem:[%s1 + $0x28] sm:$0xf]
    %v209 = vld [vmem:[%s1 + $0x2c] sm:$0xf]
    %v210 = vld [vmem:[%s1 + $0x30] sm:$0xf]
    %v211 = vld [vmem:[%s1 + $0x34] sm:$0xf]
    %v212 = vld [vmem:[%s1 + $0x38] sm:$0xf]
    %v213 = vld [vmem:[%s1 + $0x3c] sm:$0xf]
    %v214 = vld [vmem:[#allocation2] sm:$0xff]
    %v215 = vld [vmem:[#allocation2 + $0x8] sm:$0xff]
    %v216 = vld [vmem:[#allocation2 + $0x10] sm:$0xff]
    %v217 = vld [vmem:[#allocation2 + $0x18] sm:$0xff]
    %v218 = vld [vmem:[#allocation2 + $0x20] sm:$0xff]
    %v219 = vld [vmem:[#allocation2 + $0x28] sm:$0xff]
    %v220 = vld [vmem:[#allocation2 + $0x30] sm:$0xff]
    %v221 = vld [vmem:[#allocation2 + $0x38] sm:$0xff]
    %v222 = vld [vmem:[#allocation2 + $0x40] sm:$0xff]
    %v223 = vld [vmem:[#allocation2 + $0x48] sm:$0xff]
    %v224 = vld [vmem:[#allocation2 + $0x50] sm:$0xff]
    %v225 = vld [vmem:[#allocation2 + $0x58] sm:$0xff]
    %v226 = vld [vmem:[#allocation2 + $0x60] sm:$0xff]
    %v227 = vld [vmem:[#allocation2 + $0x68] sm:$0xff]
    %v228 = vld [vmem:[#allocation2 + $0x70] sm:$0xff]
    %v229 = vld [vmem:[#allocation2 + $0x78] sm:$0xff]
    %v230 = vpack.c.bf16 %v215, %v214
    %v231 = vpack.c.bf16 %v217, %v216
    %v232 = vpack.c.bf16 %v219, %v218
    %v233 = vpack.c.bf16 %v221, %v220
    %v234 = vpack.c.bf16 %v223, %v222
    %v235 = vpack.c.bf16 %v225, %v224
    %v236 = vpack.c.bf16 %v227, %v226
    %v237 = vpack.c.bf16 %v229, %v228
    %v254 = vunpack.c.l.b16 %v198
    %v255 = vunpack.c.l.b16 %v199
    %v256 = vunpack.c.l.b16 %v200
    %v257 = vunpack.c.l.b16 %v201
    %v258 = vunpack.c.l.b16 %v202
    %v259 = vunpack.c.l.b16 %v203
    %v260 = vunpack.c.l.b16 %v204
    %v261 = vunpack.c.l.b16 %v205
    %v262 = vunpack.c.l.b16 %v206
    %v263 = vunpack.c.l.b16 %v207
    %v264 = vunpack.c.l.b16 %v208
    %v265 = vunpack.c.l.b16 %v209
    %v266 = vunpack.c.l.b16 %v210
    %v267 = vunpack.c.l.b16 %v211
    %v268 = vunpack.c.l.b16 %v212
    %v269 = vunpack.c.l.b16 %v213
    %v270 = vpack.c.b16 %v255, %v254
    %v271 = vpack.c.b16 %v257, %v256
    %v272 = vpack.c.b16 %v259, %v258
    %v273 = vpack.c.b16 %v261, %v260
    %v274 = vpack.c.b16 %v263, %v262
    %v275 = vpack.c.b16 %v265, %v264
    %v276 = vpack.c.b16 %v267, %v266
    %v277 = vpack.c.b16 %v269, %v268
    %286 = vmatprep.subr.bf16.mxu0 0
    %287 = vmatpush1.bf16.msra.mxu0 %v230
    %288 = vmatprep.subr.bf16.mxu0 0
    %289 = vmatpush1.bf16.msra.mxu0 %v231
    %290 = vmatprep.subr.bf16.mxu0 0
    %291 = vmatpush1.bf16.msra.mxu0 %v232
    %292 = vmatprep.subr.bf16.mxu0 0
    %293 = vmatpush1.bf16.msra.mxu0 %v233
    %294 = vmatprep.subr.bf16.mxu0 0
    %295 = vmatpush1.bf16.msra.mxu0 %v234
    %296 = vmatprep.subr.bf16.mxu0 0
    %297 = vmatpush1.bf16.msra.mxu0 %v235
    %298 = vmatprep.subr.bf16.mxu0 0
    %299 = vmatpush1.bf16.msra.mxu0 %v236
    %300 = vmatprep.subr.bf16.mxu0 0
    %301 = vmatpush1.bf16.msra.mxu0 %v237
    %302 = vmatprep.subr.bf16.mxu0 0
    %303 = vmatpush1.bf16.msra.mxu0 0
    %304 = vmatprep.subr.bf16.mxu0 0
    %305 = vmatpush1.bf16.msra.mxu0 0
    %306 = vmatprep.subr.bf16.mxu0 0
    %307 = vmatpush1.bf16.msra.mxu0 0
    %308 = vmatprep.subr.bf16.mxu0 0
    %309 = vmatpush1.bf16.msra.mxu0 0
    %310 = vmatprep.subr.bf16.mxu0 0
    %311 = vmatpush1.bf16.msra.mxu0 0
    %312 = vmatprep.subr.bf16.mxu0 0
    %313 = vmatpush1.bf16.msra.mxu0 0
    %314 = vmatprep.subr.bf16.mxu0 0
    %315 = vmatpush1.bf16.msra.mxu0 0
    %316 = vmatprep.subr.bf16.mxu0 0
    %317 = vmatpush1.bf16.msra.mxu0 0
    %318 = vmatprep.mubr.bf16.mxu0 0
    %319 = vmatmul.mubr.bf16.gmra.mrb[0].mxu0 %v270
    %v320 = vpop.f32.mrb[0].mxu0
    %v321 = vadd.f32 0.0, %v320
    %v322 = vpop.f32.mrb[0].mxu0
    %v323 = vpop.f32.mrb[0].mxu0
    %v324 = vadd.f32 0.0, %v323
    %v325 = vpop.f32.mrb[0].mxu0
    %326 = vmatprep.mubr.bf16.mxu0 0
    %327 = vmatmul.mubr.bf16.gmra.mrb[0].mxu0 %v271
    %v328 = vpop.f32.mrb[0].mxu0
    %v329 = vadd.f32 0.0, %v328
    %v330 = vpop.f32.mrb[0].mxu0
    %v331 = vpop.f32.mrb[0].mxu0
    %v332 = vadd.f32 0.0, %v331
    %v333 = vpop.f32.mrb[0].mxu0
    %334 = vmatprep.mubr.bf16.mxu0 0
    %335 = vmatmul.mubr.bf16.gmra.mrb[0].mxu0 %v272
    %v336 = vpop.f32.mrb[0].mxu0
    %v337 = vadd.f32 0.0, %v336
    %v338 = vpop.f32.mrb[0].mxu0
    %v339 = vpop.f32.mrb[0].mxu0
    %v340 = vadd.f32 0.0, %v339
    %v341 = vpop.f32.mrb[0].mxu0
    %342 = vmatprep.mubr.bf16.mxu0 0
    %343 = vmatmul.mubr.bf16.gmra.mrb[0].mxu0 %v273
    %v344 = vpop.f32.mrb[0].mxu0
    %v345 = vadd.f32 0.0, %v344
    %v346 = vpop.f32.mrb[0].mxu0
    %v347 = vpop.f32.mrb[0].mxu0
    %v348 = vadd.f32 0.0, %v347
    %v349 = vpop.f32.mrb[0].mxu0
    %350 = vmatprep.mubr.bf16.mxu0 0
    %351 = vmatmul.mubr.bf16.gmra.mrb[0].mxu0 %v274
    %v352 = vpop.f32.mrb[0].mxu0
    %v353 = vadd.f32 0.0, %v352
    %v354 = vpop.f32.mrb[0].mxu0
    %v355 = vpop.f32.mrb[0].mxu0
    %v356 = vadd.f32 0.0, %v355
    %v357 = vpop.f32.mrb[0].mxu0
    %358 = vmatprep.mubr.bf16.mxu0 0
    %359 = vmatmul.mubr.bf16.gmra.mrb[0].mxu0 %v275
    %v360 = vpop.f32.mrb[0].mxu0
    %v361 = vadd.f32 0.0, %v360
    %v362 = vpop.f32.mrb[0].mxu0
    %v363 = vpop.f32.mrb[0].mxu0
    %v364 = vadd.f32 0.0, %v363
    %v365 = vpop.f32.mrb[0].mxu0
    %366 = vmatprep.mubr.bf16.mxu0 0
    %367 = vmatmul.mubr.bf16.gmra.mrb[0].mxu0 %v276
    %v368 = vpop.f32.mrb[0].mxu0
    %v369 = vadd.f32 0.0, %v368
    %v370 = vpop.f32.mrb[0].mxu0
    %v371 = vpop.f32.mrb[0].mxu0
    %v372 = vadd.f32 0.0, %v371
    %v373 = vpop.f32.mrb[0].mxu0
    %374 = vmatprep.mubr.bf16.mxu0 0
    %375 = vmatmul.mubr.bf16.gmra.mrb[0].mxu0 %v277
    %v376 = vpop.f32.mrb[0].mxu0
    %v377 = vadd.f32 0.0, %v376
    %v378 = vpop.f32.mrb[0].mxu0
    %v379 = vpop.f32.mrb[0].mxu0
    %v380 = vadd.f32 0.0, %v379
    %v381 = vpop.f32.mrb[0].mxu0
    %382 = vdwg.mxu0
    %399 = vrot.lane.b32.xlu0 %v321, 24
    %v400 = vpop.permute.xlu0 %399
    %401 = vrot.lane.b32.xlu0 %v324, 24
    %v402 = vpop.permute.xlu0 %401
    %403 = vrot.lane.b32.xlu0 %v329, 24
    %v404 = vpop.permute.xlu0 %403
    %405 = vrot.lane.b32.xlu0 %v332, 24
    %v406 = vpop.permute.xlu0 %405
    %407 = vrot.lane.b32.xlu0 %v337, 24
    %v408 = vpop.permute.xlu0 %407
    %409 = vrot.lane.b32.xlu0 %v340, 24
    %v410 = vpop.permute.xlu0 %409
    %411 = vrot.lane.b32.xlu0 %v345, 24
    %v412 = vpop.permute.xlu0 %411
    %413 = vrot.lane.b32.xlu0 %v348, 24
    %v414 = vpop.permute.xlu0 %413
    %415 = vrot.lane.b32.xlu0 %v353, 24
    %v416 = vpop.permute.xlu0 %415
    %417 = vrot.lane.b32.xlu0 %v356, 24
    %v418 = vpop.permute.xlu0 %417
    %419 = vrot.lane.b32.xlu0 %v361, 24
    %v420 = vpop.permute.xlu0 %419
    %421 = vrot.lane.b32.xlu0 %v364, 24
    %v422 = vpop.permute.xlu0 %421
    %423 = vrot.lane.b32.xlu0 %v369, 24
    %v424 = vpop.permute.xlu0 %423
    %425 = vrot.lane.b32.xlu0 %v372, 24
    %v426 = vpop.permute.xlu0 %425
    %427 = vrot.lane.b32.xlu0 %v377, 24
    %v428 = vpop.permute.xlu0 %427
    %429 = vrot.lane.b32.xlu0 %v380, 24
    %v430 = vpop.permute.xlu0 %429
    %448 = vrot.lane.b32.xlu0 %v324, 48
    %v449 = vpop.permute.xlu0 %448
    %450 = vrot.lane.b32.xlu0 %v329, 48
    %v451 = vpop.permute.xlu0 %450
    %452 = vrot.lane.b32.xlu0 %v332, 48
    %v453 = vpop.permute.xlu0 %452
    %454 = vrot.lane.b32.xlu0 %v337, 48
    %v455 = vpop.permute.xlu0 %454
    %456 = vrot.lane.b32.xlu0 %v340, 48
    %v457 = vpop.permute.xlu0 %456
    %458 = vrot.lane.b32.xlu0 %v345, 48
    %v459 = vpop.permute.xlu0 %458
    %460 = vrot.lane.b32.xlu0 %v348, 48
    %v461 = vpop.permute.xlu0 %460
    %462 = vrot.lane.b32.xlu0 %v353, 48
    %v463 = vpop.permute.xlu0 %462
    %464 = vrot.lane.b32.xlu0 %v356, 48
    %v465 = vpop.permute.xlu0 %464
    %466 = vrot.lane.b32.xlu0 %v361, 48
    %v467 = vpop.permute.xlu0 %466
    %468 = vrot.lane.b32.xlu0 %v364, 48
    %v469 = vpop.permute.xlu0 %468
    %470 = vrot.lane.b32.xlu0 %v369, 48
    %v471 = vpop.permute.xlu0 %470
    %472 = vrot.lane.b32.xlu0 %v372, 48
    %v473 = vpop.permute.xlu0 %472
    %474 = vrot.lane.b32.xlu0 %v377, 48
    %v475 = vpop.permute.xlu0 %474
    %476 = vrot.lane.b32.xlu0 %v380, 48
    %v477 = vpop.permute.xlu0 %476
    %478 = vrot.lane.b32.xlu0 0.0, 48
    %v479 = vpop.permute.xlu0 %478
    %vm496 = vcmask 195584
    %v497 = vsel %vm496, 0.0, %v400
    %v498 = vsel %vm496, %v321, %v402
    %v499 = vsel %vm496, %v324, %v404
    %v500 = vsel %vm496, %v329, %v406
    %v501 = vsel %vm496, %v332, %v408
    %v502 = vsel %vm496, %v337, %v410
    %v503 = vsel %vm496, %v340, %v412
    %v504 = vsel %vm496, %v345, %v414
    %v505 = vsel %vm496, %v348, %v416
    %v506 = vsel %vm496, %v353, %v418
    %v507 = vsel %vm496, %v356, %v420
    %v508 = vsel %vm496, %v361, %v422
    %v509 = vsel %vm496, %v364, %v424
    %v510 = vsel %vm496, %v369, %v426
    %v511 = vsel %vm496, %v372, %v428
    %v512 = vsel %vm496, %v377, %v430
    %vm513 = vcmask 392192
    %v514 = vsel %vm513, %v497, %v449
    %v515 = vsel %vm513, %v498, %v451
    %v516 = vsel %vm513, %v499, %v453
    %v517 = vsel %vm513, %v500, %v455
    %v518 = vsel %vm513, %v501, %v457
    %v519 = vsel %vm513, %v502, %v459
    %v520 = vsel %vm513, %v503, %v461
    %v521 = vsel %vm513, %v504, %v463
    %v522 = vsel %vm513, %v505, %v465
    %v523 = vsel %vm513, %v506, %v467
    %v524 = vsel %vm513, %v507, %v469
    %v525 = vsel %vm513, %v508, %v471
    %v526 = vsel %vm513, %v509, %v473
    %v527 = vsel %vm513, %v510, %v475
    %v528 = vsel %vm513, %v511, %v477
    %v529 = vsel %vm513, %v512, %v479
    %v530 = vpack.c.bf16 %v515, %v514
    %v531 = vpack.c.bf16 %v517, %v516
    %v532 = vpack.c.bf16 %v519, %v518
    %v533 = vpack.c.bf16 %v521, %v520
    %v534 = vpack.c.bf16 %v523, %v522
    %v535 = vpack.c.bf16 %v525, %v524
    %v536 = vpack.c.bf16 %v527, %v526
    %v537 = vpack.c.bf16 %v529, %v528
    %v538 = vld [vmem:[%s2] sm:$0xf]
    %v539 = vld [vmem:[%s2 + $0x4] sm:$0xf]
    %v540 = vld [vmem:[%s2 + $0x8] sm:$0xf]
    %v541 = vld [vmem:[%s2 + $0xc] sm:$0xf]
    %v542 = vld [vmem:[%s2 + $0x10] sm:$0xf]
    %v543 = vld [vmem:[%s2 + $0x14] sm:$0xf]
    %v544 = vld [vmem:[%s2 + $0x18] sm:$0xf]
    %v545 = vld [vmem:[%s2 + $0x1c] sm:$0xf]
    %v546 = vld [vmem:[%s2 + $0x20] sm:$0xf]
    %v547 = vld [vmem:[#allocation4] sm:$0x1]
    %v549 = vlaneseq
    %v550 = vshrl.u32 %v549, 7
    %v551 = vsub.s32 0, %v550
    %v552 = vrot.slane %v547, %v551
    %v563 = vunpack.c.l.b16 %v538
    %v564 = vunpack.c.l.b16 %v539
    %v565 = vunpack.c.l.b16 %v540
    %v566 = vunpack.c.l.b16 %v541
    %v567 = vunpack.c.l.b16 %v542
    %v568 = vunpack.c.l.b16 %v543
    %v569 = vunpack.c.l.b16 %v544
    %v570 = vunpack.c.l.b16 %v545
    %v571 = vunpack.c.l.b16 %v546
    %v572 = vpack.c.b16 %v564, %v563
    %v573 = vpack.c.b16 %v566, %v565
    %v574 = vpack.c.b16 %v568, %v567
    %v575 = vpack.c.b16 %v570, %v569
    %v576 = vpack.c.b16 %v571, %v571
    %vm581 = vcmask 588800
    %v583 = vsel %vm581, %v530, 0
    %v586 = vsel %vm581, %v531, 0
    %v589 = vsel %vm581, %v532, 0
    %v592 = vsel %vm581, %v533, 0
    %v595 = vsel %vm581, %v534, 0
    %v598 = vsel %vm581, %v535, 0
    %v601 = vsel %vm581, %v536, 0
    %v604 = vsel %vm581, %v537, 0
    %vm606 = vcmask 1043456
    %v608 = vsel %vm606, %v576, 0
    %610 = vmatprep.subr.bf16.mxu0 0
    %611 = vmatpush1.bf16.msra.mxu0 %v572
    %612 = vmatprep.subr.bf16.mxu0 0
    %613 = vmatpush1.bf16.msra.mxu0 %v573
    %614 = vmatprep.subr.bf16.mxu0 0
    %615 = vmatpush1.bf16.msra.mxu0 %v574
    %616 = vmatprep.subr.bf16.mxu0 0
    %617 = vmatpush1.bf16.msra.mxu0 %v575
    %618 = vmatprep.subr.bf16.mxu0 0
    %619 = vmatpush1.bf16.msra.mxu0 %v608
    %620 = vmatprep.subr.bf16.mxu0 0
    %621 = vmatpush1.bf16.msra.mxu0 0
    %622 = vmatprep.subr.bf16.mxu0 0
    %623 = vmatpush1.bf16.msra.mxu0 0
    %624 = vmatprep.subr.bf16.mxu0 0
    %625 = vmatpush1.bf16.msra.mxu0 0
    %626 = vmatprep.subr.bf16.mxu0 0
    %627 = vmatpush1.bf16.msra.mxu0 0
    %628 = vmatprep.subr.bf16.mxu0 0
    %629 = vmatpush1.bf16.msra.mxu0 0
    %630 = vmatprep.subr.bf16.mxu0 0
    %631 = vmatpush1.bf16.msra.mxu0 0
    %632 = vmatprep.subr.bf16.mxu0 0
    %633 = vmatpush1.bf16.msra.mxu0 0
    %634 = vmatprep.subr.bf16.mxu0 0
    %635 = vmatpush1.bf16.msra.mxu0 0
    %636 = vmatprep.subr.bf16.mxu0 0
    %637 = vmatpush1.bf16.msra.mxu0 0
    %638 = vmatprep.subr.bf16.mxu0 0
    %639 = vmatpush1.bf16.msra.mxu0 0
    %640 = vmatprep.subr.bf16.mxu0 0
    %641 = vmatpush1.bf16.msra.mxu0 0
    %642 = vmatprep.mubr.bf16.mxu0 0
    %643 = vmatmul.mubr.bf16.gmra.mrb[0].mxu0 %v583
    %v644 = vpop.f32.mrb[0].mxu0
    %v645 = vadd.f32 %v552, %v644
    %v646 = vpop.f32.mrb[0].mxu0
    %v647 = vpop.f32.mrb[0].mxu0
    %v648 = vadd.f32 %v552, %v647
    %v649 = vpop.f32.mrb[0].mxu0
    %650 = vmatprep.mubr.bf16.mxu0 0
    %651 = vmatmul.mubr.bf16.gmra.mrb[0].mxu0 %v586
    %v652 = vpop.f32.mrb[0].mxu0
    %v653 = vadd.f32 %v552, %v652
    %v654 = vpop.f32.mrb[0].mxu0
    %v655 = vpop.f32.mrb[0].mxu0
    %v656 = vadd.f32 %v552, %v655
    %v657 = vpop.f32.mrb[0].mxu0
    %658 = vmatprep.mubr.bf16.mxu0 0
    %659 = vmatmul.mubr.bf16.gmra.mrb[0].mxu0 %v589
    %v660 = vpop.f32.mrb[0].mxu0
    %v661 = vadd.f32 %v552, %v660
    %v662 = vpop.f32.mrb[0].mxu0
    %v663 = vpop.f32.mrb[0].mxu0
    %v664 = vadd.f32 %v552, %v663
    %v665 = vpop.f32.mrb[0].mxu0
    %666 = vmatprep.mubr.bf16.mxu0 0
    %667 = vmatmul.mubr.bf16.gmra.mrb[0].mxu0 %v592
    %v668 = vpop.f32.mrb[0].mxu0
    %v669 = vadd.f32 %v552, %v668
    %v670 = vpop.f32.mrb[0].mxu0
    %v671 = vpop.f32.mrb[0].mxu0
    %v672 = vadd.f32 %v552, %v671
    %v673 = vpop.f32.mrb[0].mxu0
    %674 = vmatprep.mubr.bf16.mxu0 0
    %675 = vmatmul.mubr.bf16.gmra.mrb[0].mxu0 %v595
    %v676 = vpop.f32.mrb[0].mxu0
    %v677 = vadd.f32 %v552, %v676
    %v678 = vpop.f32.mrb[0].mxu0
    %v679 = vpop.f32.mrb[0].mxu0
    %v680 = vadd.f32 %v552, %v679
    %v681 = vpop.f32.mrb[0].mxu0
    %682 = vmatprep.mubr.bf16.mxu0 0
    %683 = vmatmul.mubr.bf16.gmra.mrb[0].mxu0 %v598
    %v684 = vpop.f32.mrb[0].mxu0
    %v685 = vadd.f32 %v552, %v684
    %v686 = vpop.f32.mrb[0].mxu0
    %v687 = vpop.f32.mrb[0].mxu0
    %v688 = vadd.f32 %v552, %v687
    %v689 = vpop.f32.mrb[0].mxu0
    %690 = vmatprep.mubr.bf16.mxu0 0
    %691 = vmatmul.mubr.bf16.gmra.mrb[0].mxu0 %v601
    %v692 = vpop.f32.mrb[0].mxu0
    %v693 = vadd.f32 %v552, %v692
    %v694 = vpop.f32.mrb[0].mxu0
    %v695 = vpop.f32.mrb[0].mxu0
    %v696 = vadd.f32 %v552, %v695
    %v697 = vpop.f32.mrb[0].mxu0
    %698 = vmatprep.mubr.bf16.mxu0 0
    %699 = vmatmul.mubr.bf16.gmra.mrb[0].mxu0 %v604
    %v700 = vpop.f32.mrb[0].mxu0
    %v701 = vadd.f32 %v552, %v700
    %v702 = vpop.f32.mrb[0].mxu0
    %v703 = vpop.f32.mrb[0].mxu0
    %v704 = vadd.f32 %v552, %v703
    %v705 = vpop.f32.mrb[0].mxu0
    %706 = vdwg.mxu0
    %v707 = vtanh.pop %v645
    %v708 = vtanh.pop %v648
    %v709 = vtanh.pop %v653
    %v710 = vtanh.pop %v656
    %v711 = vtanh.pop %v661
    %v712 = vtanh.pop %v664
    %v713 = vtanh.pop %v669
    %v714 = vtanh.pop %v672
    %v715 = vtanh.pop %v677
    %v716 = vtanh.pop %v680
    %v717 = vtanh.pop %v685
    %v718 = vtanh.pop %v688
    %v719 = vtanh.pop %v693
    %v720 = vtanh.pop %v696
    %v721 = vtanh.pop %v701
    %v722 = vtanh.pop %v704
    %v723 = vxor.u32 %v645, 2147483648
    %v724 = vxor.u32 %v648, 2147483648
    %v725 = vxor.u32 %v653, 2147483648
    %v726 = vxor.u32 %v656, 2147483648
    %v727 = vxor.u32 %v661, 2147483648
    %v728 = vxor.u32 %v664, 2147483648
    %v729 = vxor.u32 %v669, 2147483648
    %v730 = vxor.u32 %v672, 2147483648
    %v731 = vxor.u32 %v677, 2147483648
    %v732 = vxor.u32 %v680, 2147483648
    %v733 = vxor.u32 %v685, 2147483648
    %v734 = vxor.u32 %v688, 2147483648
    %v735 = vxor.u32 %v693, 2147483648
    %v736 = vxor.u32 %v696, 2147483648
    %v737 = vxor.u32 %v701, 2147483648
    %v738 = vxor.u32 %v704, 2147483648
    %v739 = vmul.f32 %v723, 1.442695
    %v740 = vpow.pop %v739
    %v741 = vmul.f32 %v724, 1.442695
    %v742 = vpow.pop %v741
    %v743 = vmul.f32 %v725, 1.442695
    %v744 = vpow.pop %v743
    %v745 = vmul.f32 %v726, 1.442695
    %v746 = vpow.pop %v745
    %v747 = vmul.f32 %v727, 1.442695
    %v748 = vpow.pop %v747
    %v749 = vmul.f32 %v728, 1.442695
    %v750 = vpow.pop %v749
    %v751 = vmul.f32 %v729, 1.442695
    %v752 = vpow.pop %v751
    %v753 = vmul.f32 %v730, 1.442695
    %v754 = vpow.pop %v753
    %v755 = vmul.f32 %v731, 1.442695
    %v756 = vpow.pop %v755
    %v757 = vmul.f32 %v732, 1.442695
    %v758 = vpow.pop %v757
    %v759 = vmul.f32 %v733, 1.442695
    %v760 = vpow.pop %v759
    %v761 = vmul.f32 %v734, 1.442695
    %v762 = vpow.pop %v761
    %v763 = vmul.f32 %v735, 1.442695
    %v764 = vpow.pop %v763
    %v765 = vmul.f32 %v736, 1.442695
    %v766 = vpow.pop %v765
    %v767 = vmul.f32 %v737, 1.442695
    %v768 = vpow.pop %v767
    %v769 = vmul.f32 %v738, 1.442695
    %v770 = vpow.pop %v769
    %v771 = vadd.f32 %v740, 1.0
    %v772 = vadd.f32 %v742, 1.0
    %v773 = vadd.f32 %v744, 1.0
    %v774 = vadd.f32 %v746, 1.0
    %v775 = vadd.f32 %v748, 1.0
    %v776 = vadd.f32 %v750, 1.0
    %v777 = vadd.f32 %v752, 1.0
    %v778 = vadd.f32 %v754, 1.0
    %v779 = vadd.f32 %v756, 1.0
    %v780 = vadd.f32 %v758, 1.0
    %v781 = vadd.f32 %v760, 1.0
    %v782 = vadd.f32 %v762, 1.0
    %v783 = vadd.f32 %v764, 1.0
    %v784 = vadd.f32 %v766, 1.0
    %v785 = vadd.f32 %v768, 1.0
    %v786 = vadd.f32 %v770, 1.0
    %v787 = vrcp.pop %v771
    %v788 = vmul.f32 1.0, %v787
    %v789 = vrcp.pop %v772
    %v790 = vmul.f32 1.0, %v789
    %v791 = vrcp.pop %v773
    %v792 = vmul.f32 1.0, %v791
    %v793 = vrcp.pop %v774
    %v794 = vmul.f32 1.0, %v793
    %v795 = vrcp.pop %v775
    %v796 = vmul.f32 1.0, %v795
    %v797 = vrcp.pop %v776
    %v798 = vmul.f32 1.0, %v797
    %v799 = vrcp.pop %v777
    %v800 = vmul.f32 1.0, %v799
    %v801 = vrcp.pop %v778
    %v802 = vmul.f32 1.0, %v801
    %v803 = vrcp.pop %v779
    %v804 = vmul.f32 1.0, %v803
    %v805 = vrcp.pop %v780
    %v806 = vmul.f32 1.0, %v805
    %v807 = vrcp.pop %v781
    %v808 = vmul.f32 1.0, %v807
    %v809 = vrcp.pop %v782
    %v810 = vmul.f32 1.0, %v809
    %v811 = vrcp.pop %v783
    %v812 = vmul.f32 1.0, %v811
    %v813 = vrcp.pop %v784
    %v814 = vmul.f32 1.0, %v813
    %v815 = vrcp.pop %v785
    %v816 = vmul.f32 1.0, %v815
    %v817 = vrcp.pop %v786
    %v818 = vmul.f32 1.0, %v817
    %835 = vrot.lane.b32.xlu0 %v788, 96
    %v836 = vpop.permute.xlu0 %835
    %837 = vrot.lane.b32.xlu0 %v790, 96
    %v838 = vpop.permute.xlu0 %837
    %839 = vrot.lane.b32.xlu0 %v792, 96
    %v840 = vpop.permute.xlu0 %839
    %841 = vrot.lane.b32.xlu0 %v794, 96
    %v842 = vpop.permute.xlu0 %841
    %843 = vrot.lane.b32.xlu0 %v796, 96
    %v844 = vpop.permute.xlu0 %843
    %845 = vrot.lane.b32.xlu0 %v798, 96
    %v846 = vpop.permute.xlu0 %845
    %847 = vrot.lane.b32.xlu0 %v800, 96
    %v848 = vpop.permute.xlu0 %847
    %849 = vrot.lane.b32.xlu0 %v802, 96
    %v850 = vpop.permute.xlu0 %849
    %851 = vrot.lane.b32.xlu0 %v804, 96
    %v852 = vpop.permute.xlu0 %851
    %853 = vrot.lane.b32.xlu0 %v806, 96
    %v854 = vpop.permute.xlu0 %853
    %855 = vrot.lane.b32.xlu0 %v808, 96
    %v856 = vpop.permute.xlu0 %855
    %857 = vrot.lane.b32.xlu0 %v810, 96
    %v858 = vpop.permute.xlu0 %857
    %859 = vrot.lane.b32.xlu0 %v812, 96
    %v860 = vpop.permute.xlu0 %859
    %861 = vrot.lane.b32.xlu0 %v814, 96
    %v862 = vpop.permute.xlu0 %861
    %863 = vrot.lane.b32.xlu0 %v816, 96
    %v864 = vpop.permute.xlu0 %863
    %865 = vrot.lane.b32.xlu0 %v818, 96
    %v866 = vpop.permute.xlu0 %865
    %v883 = vmul.f32 %v707, %v836
    %v884 = vmul.f32 %v708, %v838
    %v885 = vmul.f32 %v709, %v840
    %v886 = vmul.f32 %v710, %v842
    %v887 = vmul.f32 %v711, %v844
    %v888 = vmul.f32 %v712, %v846
    %v889 = vmul.f32 %v713, %v848
    %v890 = vmul.f32 %v714, %v850
    %v891 = vmul.f32 %v715, %v852
    %v892 = vmul.f32 %v716, %v854
    %v893 = vmul.f32 %v717, %v856
    %v894 = vmul.f32 %v718, %v858
    %v895 = vmul.f32 %v719, %v860
    %v896 = vmul.f32 %v720, %v862
    %v897 = vmul.f32 %v721, %v864
    %v898 = vmul.f32 %v722, %v866
    %915 = vrot.lane.b32.xlu0 %v883, 32
    %v916 = vpop.permute.xlu0 %915
    %917 = vrot.lane.b32.xlu0 %v884, 32
    %v918 = vpop.permute.xlu0 %917
    %919 = vrot.lane.b32.xlu0 %v885, 32
    %v920 = vpop.permute.xlu0 %919
    %921 = vrot.lane.b32.xlu0 %v886, 32
    %v922 = vpop.permute.xlu0 %921
    %923 = vrot.lane.b32.xlu0 %v887, 32
    %v924 = vpop.permute.xlu0 %923
    %925 = vrot.lane.b32.xlu0 %v888, 32
    %v926 = vpop.permute.xlu0 %925
    %927 = vrot.lane.b32.xlu0 %v889, 32
    %v928 = vpop.permute.xlu0 %927
    %929 = vrot.lane.b32.xlu0 %v890, 32
    %v930 = vpop.permute.xlu0 %929
    %931 = vrot.lane.b32.xlu0 %v891, 32
    %v932 = vpop.permute.xlu0 %931
    %933 = vrot.lane.b32.xlu0 %v892, 32
    %v934 = vpop.permute.xlu0 %933
    %935 = vrot.lane.b32.xlu0 %v893, 32
    %v936 = vpop.permute.xlu0 %935
    %937 = vrot.lane.b32.xlu0 %v894, 32
    %v938 = vpop.permute.xlu0 %937
    %939 = vrot.lane.b32.xlu0 %v895, 32
    %v940 = vpop.permute.xlu0 %939
    %941 = vrot.lane.b32.xlu0 %v896, 32
    %v942 = vpop.permute.xlu0 %941
    %943 = vrot.lane.b32.xlu0 %v897, 32
    %v944 = vpop.permute.xlu0 %943
    %945 = vrot.lane.b32.xlu0 %v898, 32
    %v946 = vpop.permute.xlu0 %945
    %963 = vrot.lane.b32.xlu0 %v884, 64
    %v964 = vpop.permute.xlu0 %963
    %965 = vrot.lane.b32.xlu0 %v885, 64
    %v966 = vpop.permute.xlu0 %965
    %967 = vrot.lane.b32.xlu0 %v886, 64
    %v968 = vpop.permute.xlu0 %967
    %969 = vrot.lane.b32.xlu0 %v887, 64
    %v970 = vpop.permute.xlu0 %969
    %971 = vrot.lane.b32.xlu0 %v888, 64
    %v972 = vpop.permute.xlu0 %971
    %973 = vrot.lane.b32.xlu0 %v889, 64
    %v974 = vpop.permute.xlu0 %973
    %975 = vrot.lane.b32.xlu0 %v890, 64
    %v976 = vpop.permute.xlu0 %975
    %977 = vrot.lane.b32.xlu0 %v891, 64
    %v978 = vpop.permute.xlu0 %977
    %979 = vrot.lane.b32.xlu0 %v892, 64
    %v980 = vpop.permute.xlu0 %979
    %981 = vrot.lane.b32.xlu0 %v893, 64
    %v982 = vpop.permute.xlu0 %981
    %983 = vrot.lane.b32.xlu0 %v894, 64
    %v984 = vpop.permute.xlu0 %983
    %985 = vrot.lane.b32.xlu0 %v895, 64
    %v986 = vpop.permute.xlu0 %985
    %987 = vrot.lane.b32.xlu0 %v896, 64
    %v988 = vpop.permute.xlu0 %987
    %989 = vrot.lane.b32.xlu0 %v897, 64
    %v990 = vpop.permute.xlu0 %989
    %991 = vrot.lane.b32.xlu0 %v898, 64
    %v992 = vpop.permute.xlu0 %991
    %993 = vrot.lane.b32.xlu0 0.0, 64
    %v994 = vpop.permute.xlu0 %993
    %vm1011 = vcmask 261120
    %v1012 = vsel %vm1011, 0.0, %v916
    %v1013 = vsel %vm1011, %v883, %v918
    %v1014 = vsel %vm1011, %v884, %v920
    %v1015 = vsel %vm1011, %v885, %v922
    %v1016 = vsel %vm1011, %v886, %v924
    %v1017 = vsel %vm1011, %v887, %v926
    %v1018 = vsel %vm1011, %v888, %v928
    %v1019 = vsel %vm1011, %v889, %v930
    %v1020 = vsel %vm1011, %v890, %v932
    %v1021 = vsel %vm1011, %v891, %v934
    %v1022 = vsel %vm1011, %v892, %v936
    %v1023 = vsel %vm1011, %v893, %v938
    %v1024 = vsel %vm1011, %v894, %v940
    %v1025 = vsel %vm1011, %v895, %v942
    %v1026 = vsel %vm1011, %v896, %v944
    %v1027 = vsel %vm1011, %v897, %v946
    %vm1028 = vcmask 523264
    %v1029 = vsel %vm1028, %v1012, %v964
    %v1030 = vsel %vm1028, %v1013, %v966
    %v1031 = vsel %vm1028, %v1014, %v968
    %v1032 = vsel %vm1028, %v1015, %v970
    %v1033 = vsel %vm1028, %v1016, %v972
    %v1034 = vsel %vm1028, %v1017, %v974
    %v1035 = vsel %vm1028, %v1018, %v976
    %v1036 = vsel %vm1028, %v1019, %v978
    %v1037 = vsel %vm1028, %v1020, %v980
    %v1038 = vsel %vm1028, %v1021, %v982
    %v1039 = vsel %vm1028, %v1022, %v984
    %v1040 = vsel %vm1028, %v1023, %v986
    %v1041 = vsel %vm1028, %v1024, %v988
    %v1042 = vsel %vm1028, %v1025, %v990
    %v1043 = vsel %vm1028, %v1026, %v992
    %v1044 = vsel %vm1028, %v1027, %v994
    %v1045 = vpack.c.bf16 %v1030, %v1029
    %v1046 = vpack.c.bf16 %v1032, %v1031
    %v1047 = vpack.c.bf16 %v1034, %v1033
    %v1048 = vpack.c.bf16 %v1036, %v1035
    %v1049 = vpack.c.bf16 %v1038, %v1037
    %v1050 = vpack.c.bf16 %v1040, %v1039
    %v1051 = vpack.c.bf16 %v1042, %v1041
    %v1052 = vpack.c.bf16 %v1044, %v1043
    %v1053 = vld [vmem:[%s4] sm:$0xf]
    %v1054 = vld [vmem:[%s4 + $0x4] sm:$0xf]
    %v1055 = vld [vmem:[%s4 + $0x8] sm:$0xf]
    %v1056 = vld [vmem:[%s4 + $0xc] sm:$0xf]
    %v1057 = vld [vmem:[%s4 + $0x10] sm:$0xf]
    %v1058 = vld [vmem:[%s4 + $0x14] sm:$0xf]
    %v1059 = vld [vmem:[%s4 + $0x18] sm:$0xf]
    %v1060 = vld [vmem:[%s4 + $0x1c] sm:$0xf]
    %v1061 = vld [vmem:[%s4 + $0x20] sm:$0xf]
    %v1062 = vld [vmem:[%s4 + $0x24] sm:$0xf]
    %v1063 = vld [vmem:[%s4 + $0x28] sm:$0xf]
    %v1064 = vld [vmem:[%s4 + $0x2c] sm:$0xf]
    %v1065 = vld [vmem:[#allocation6] sm:$0x1]
    %v1067 = vlaneseq
    %v1068 = vshrl.u32 %v1067, 7
    %v1069 = vsub.s32 0, %v1068
    %v1070 = vrot.slane %v1065, %v1069
    %v1084 = vunpack.c.l.b16 %v1053
    %v1085 = vunpack.c.l.b16 %v1054
    %v1086 = vunpack.c.l.b16 %v1055
    %v1087 = vunpack.c.l.b16 %v1056
    %v1088 = vunpack.c.l.b16 %v1057
    %v1089 = vunpack.c.l.b16 %v1058
    %v1090 = vunpack.c.l.b16 %v1059
    %v1091 = vunpack.c.l.b16 %v1060
    %v1092 = vunpack.c.l.b16 %v1061
    %v1093 = vunpack.c.l.b16 %v1062
    %v1094 = vunpack.c.l.b16 %v1063
    %v1095 = vunpack.c.l.b16 %v1064
    %v1096 = vpack.c.b16 %v1085, %v1084
    %v1097 = vpack.c.b16 %v1087, %v1086
    %v1098 = vpack.c.b16 %v1089, %v1088
    %v1099 = vpack.c.b16 %v1091, %v1090
    %v1100 = vpack.c.b16 %v1093, %v1092
    %v1101 = vpack.c.b16 %v1095, %v1094
    %vm1108 = vcmask 785408
    %v1110 = vsel %vm1108, %v1045, 0
    %v1113 = vsel %vm1108, %v1046, 0
    %v1116 = vsel %vm1108, %v1047, 0
    %v1119 = vsel %vm1108, %v1048, 0
    %v1122 = vsel %vm1108, %v1049, 0
    %v1125 = vsel %vm1108, %v1050, 0
    %v1128 = vsel %vm1108, %v1051, 0
    %v1131 = vsel %vm1108, %v1052, 0
    %1133 = vmatprep.subr.bf16.mxu0 0
    %1134 = vmatpush1.bf16.msra.mxu0 %v1096
    %1135 = vmatprep.subr.bf16.mxu0 0
    %1136 = vmatpush1.bf16.msra.mxu0 %v1097
    %1137 = vmatprep.subr.bf16.mxu0 0
    %1138 = vmatpush1.bf16.msra.mxu0 %v1098
    %1139 = vmatprep.subr.bf16.mxu0 0
    %1140 = vmatpush1.bf16.msra.mxu0 %v1099
    %1141 = vmatprep.subr.bf16.mxu0 0
    %1142 = vmatpush1.bf16.msra.mxu0 %v1100
    %1143 = vmatprep.subr.bf16.mxu0 0
    %1144 = vmatpush1.bf16.msra.mxu0 %v1101
    %1145 = vmatprep.subr.bf16.mxu0 0
    %1146 = vmatpush1.bf16.msra.mxu0 0
    %1147 = vmatprep.subr.bf16.mxu0 0
    %1148 = vmatpush1.bf16.msra.mxu0 0
    %1149 = vmatprep.subr.bf16.mxu0 0
    %1150 = vmatpush1.bf16.msra.mxu0 0
    %1151 = vmatprep.subr.bf16.mxu0 0
    %1152 = vmatpush1.bf16.msra.mxu0 0
    %1153 = vmatprep.subr.bf16.mxu0 0
    %1154 = vmatpush1.bf16.msra.mxu0 0
    %1155 = vmatprep.subr.bf16.mxu0 0
    %1156 = vmatpush1.bf16.msra.mxu0 0
    %1157 = vmatprep.subr.bf16.mxu0 0
    %1158 = vmatpush1.bf16.msra.mxu0 0
    %1159 = vmatprep.subr.bf16.mxu0 0
    %1160 = vmatpush1.bf16.msra.mxu0 0
    %1161 = vmatprep.subr.bf16.mxu0 0
    %1162 = vmatpush1.bf16.msra.mxu0 0
    %1163 = vmatprep.subr.bf16.mxu0 0
    %1164 = vmatpush1.bf16.msra.mxu0 0
    %1165 = vmatprep.mubr.bf16.mxu0 0
    %1166 = vmatmul.mubr.bf16.gmra.mrb[0].mxu0 %v1110
    %v1167 = vpop.f32.mrb[0].mxu0
    %v1168 = vadd.f32 %v1070, %v1167
    %v1169 = vpop.f32.mrb[0].mxu0
    %v1170 = vpop.f32.mrb[0].mxu0
    %v1171 = vadd.f32 %v1070, %v1170
    %v1172 = vpop.f32.mrb[0].mxu0
    %1173 = vmatprep.mubr.bf16.mxu0 0
    %1174 = vmatmul.mubr.bf16.gmra.mrb[0].mxu0 %v1113
    %v1175 = vpop.f32.mrb[0].mxu0
    %v1176 = vadd.f32 %v1070, %v1175
    %v1177 = vpop.f32.mrb[0].mxu0
    %v1178 = vpop.f32.mrb[0].mxu0
    %v1179 = vadd.f32 %v1070, %v1178
    %v1180 = vpop.f32.mrb[0].mxu0
    %1181 = vmatprep.mubr.bf16.mxu0 0
    %1182 = vmatmul.mubr.bf16.gmra.mrb[0].mxu0 %v1116
    %v1183 = vpop.f32.mrb[0].mxu0
    %v1184 = vadd.f32 %v1070, %v1183
    %v1185 = vpop.f32.mrb[0].mxu0
    %v1186 = vpop.f32.mrb[0].mxu0
    %v1187 = vadd.f32 %v1070, %v1186
    %v1188 = vpop.f32.mrb[0].mxu0
    %1189 = vmatprep.mubr.bf16.mxu0 0
    %1190 = vmatmul.mubr.bf16.gmra.mrb[0].mxu0 %v1119
    %v1191 = vpop.f32.mrb[0].mxu0
    %v1192 = vadd.f32 %v1070, %v1191
    %v1193 = vpop.f32.mrb[0].mxu0
    %v1194 = vpop.f32.mrb[0].mxu0
    %v1195 = vadd.f32 %v1070, %v1194
    %v1196 = vpop.f32.mrb[0].mxu0
    %1197 = vmatprep.mubr.bf16.mxu0 0
    %1198 = vmatmul.mubr.bf16.gmra.mrb[0].mxu0 %v1122
    %v1199 = vpop.f32.mrb[0].mxu0
    %v1200 = vadd.f32 %v1070, %v1199
    %v1201 = vpop.f32.mrb[0].mxu0
    %v1202 = vpop.f32.mrb[0].mxu0
    %v1203 = vadd.f32 %v1070, %v1202
    %v1204 = vpop.f32.mrb[0].mxu0
    %1205 = vmatprep.mubr.bf16.mxu0 0
    %1206 = vmatmul.mubr.bf16.gmra.mrb[0].mxu0 %v1125
    %v1207 = vpop.f32.mrb[0].mxu0
    %v1208 = vadd.f32 %v1070, %v1207
    %v1209 = vpop.f32.mrb[0].mxu0
    %v1210 = vpop.f32.mrb[0].mxu0
    %v1211 = vadd.f32 %v1070, %v1210
    %v1212 = vpop.f32.mrb[0].mxu0
    %1213 = vmatprep.mubr.bf16.mxu0 0
    %1214 = vmatmul.mubr.bf16.gmra.mrb[0].mxu0 %v1128
    %v1215 = vpop.f32.mrb[0].mxu0
    %v1216 = vadd.f32 %v1070, %v1215
    %v1217 = vpop.f32.mrb[0].mxu0
    %v1218 = vpop.f32.mrb[0].mxu0
    %v1219 = vadd.f32 %v1070, %v1218
    %v1220 = vpop.f32.mrb[0].mxu0
    %1221 = vmatprep.mubr.bf16.mxu0 0
    %1222 = vmatmul.mubr.bf16.gmra.mrb[0].mxu0 %v1131
    %v1223 = vpop.f32.mrb[0].mxu0
    %v1224 = vadd.f32 %v1070, %v1223
    %v1225 = vpop.f32.mrb[0].mxu0
    %v1226 = vpop.f32.mrb[0].mxu0
    %v1227 = vadd.f32 %v1070, %v1226
    %v1228 = vpop.f32.mrb[0].mxu0
    %1229 = vdwg.mxu0
    %v1230 = vtanh.pop %v1168
    %v1231 = vtanh.pop %v1171
    %v1232 = vtanh.pop %v1176
    %v1233 = vtanh.pop %v1179
    %v1234 = vtanh.pop %v1184
    %v1235 = vtanh.pop %v1187
    %v1236 = vtanh.pop %v1192
    %v1237 = vtanh.pop %v1195
    %v1238 = vtanh.pop %v1200
    %v1239 = vtanh.pop %v1203
    %v1240 = vtanh.pop %v1208
    %v1241 = vtanh.pop %v1211
    %v1242 = vtanh.pop %v1216
    %v1243 = vtanh.pop %v1219
    %v1244 = vtanh.pop %v1224
    %v1245 = vtanh.pop %v1227
    %v1246 = vxor.u32 %v1168, 2147483648
    %v1247 = vxor.u32 %v1171, 2147483648
    %v1248 = vxor.u32 %v1176, 2147483648
    %v1249 = vxor.u32 %v1179, 2147483648
    %v1250 = vxor.u32 %v1184, 2147483648
    %v1251 = vxor.u32 %v1187, 2147483648
    %v1252 = vxor.u32 %v1192, 2147483648
    %v1253 = vxor.u32 %v1195, 2147483648
    %v1254 = vxor.u32 %v1200, 2147483648
    %v1255 = vxor.u32 %v1203, 2147483648
    %v1256 = vxor.u32 %v1208, 2147483648
    %v1257 = vxor.u32 %v1211, 2147483648
    %v1258 = vxor.u32 %v1216, 2147483648
    %v1259 = vxor.u32 %v1219, 2147483648
    %v1260 = vxor.u32 %v1224, 2147483648
    %v1261 = vxor.u32 %v1227, 2147483648
    %v1262 = vmul.f32 %v1246, 1.442695
    %v1263 = vpow.pop %v1262
    %v1264 = vmul.f32 %v1247, 1.442695
    %v1265 = vpow.pop %v1264
    %v1266 = vmul.f32 %v1248, 1.442695
    %v1267 = vpow.pop %v1266
    %v1268 = vmul.f32 %v1249, 1.442695
    %v1269 = vpow.pop %v1268
    %v1270 = vmul.f32 %v1250, 1.442695
    %v1271 = vpow.pop %v1270
    %v1272 = vmul.f32 %v1251, 1.442695
    %v1273 = vpow.pop %v1272
    %v1274 = vmul.f32 %v1252, 1.442695
    %v1275 = vpow.pop %v1274
    %v1276 = vmul.f32 %v1253, 1.442695
    %v1277 = vpow.pop %v1276
    %v1278 = vmul.f32 %v1254, 1.442695
    %v1279 = vpow.pop %v1278
    %v1280 = vmul.f32 %v1255, 1.442695
    %v1281 = vpow.pop %v1280
    %v1282 = vmul.f32 %v1256, 1.442695
    %v1283 = vpow.pop %v1282
    %v1284 = vmul.f32 %v1257, 1.442695
    %v1285 = vpow.pop %v1284
    %v1286 = vmul.f32 %v1258, 1.442695
    %v1287 = vpow.pop %v1286
    %v1288 = vmul.f32 %v1259, 1.442695
    %v1289 = vpow.pop %v1288
    %v1290 = vmul.f32 %v1260, 1.442695
    %v1291 = vpow.pop %v1290
    %v1292 = vmul.f32 %v1261, 1.442695
    %v1293 = vpow.pop %v1292
    %v1294 = vadd.f32 %v1263, 1.0
    %v1295 = vadd.f32 %v1265, 1.0
    %v1296 = vadd.f32 %v1267, 1.0
    %v1297 = vadd.f32 %v1269, 1.0
    %v1298 = vadd.f32 %v1271, 1.0
    %v1299 = vadd.f32 %v1273, 1.0
    %v1300 = vadd.f32 %v1275, 1.0
    %v1301 = vadd.f32 %v1277, 1.0
    %v1302 = vadd.f32 %v1279, 1.0
    %v1303 = vadd.f32 %v1281, 1.0
    %v1304 = vadd.f32 %v1283, 1.0
    %v1305 = vadd.f32 %v1285, 1.0
    %v1306 = vadd.f32 %v1287, 1.0
    %v1307 = vadd.f32 %v1289, 1.0
    %v1308 = vadd.f32 %v1291, 1.0
    %v1309 = vadd.f32 %v1293, 1.0
    %v1310 = vrcp.pop %v1294
    %v1311 = vmul.f32 1.0, %v1310
    %v1312 = vrcp.pop %v1295
    %v1313 = vmul.f32 1.0, %v1312
    %v1314 = vrcp.pop %v1296
    %v1315 = vmul.f32 1.0, %v1314
    %v1316 = vrcp.pop %v1297
    %v1317 = vmul.f32 1.0, %v1316
    %v1318 = vrcp.pop %v1298
    %v1319 = vmul.f32 1.0, %v1318
    %v1320 = vrcp.pop %v1299
    %v1321 = vmul.f32 1.0, %v1320
    %v1322 = vrcp.pop %v1300
    %v1323 = vmul.f32 1.0, %v1322
    %v1324 = vrcp.pop %v1301
    %v1325 = vmul.f32 1.0, %v1324
    %v1326 = vrcp.pop %v1302
    %v1327 = vmul.f32 1.0, %v1326
    %v1328 = vrcp.pop %v1303
    %v1329 = vmul.f32 1.0, %v1328
    %v1330 = vrcp.pop %v1304
    %v1331 = vmul.f32 1.0, %v1330
    %v1332 = vrcp.pop %v1305
    %v1333 = vmul.f32 1.0, %v1332
    %v1334 = vrcp.pop %v1306
    %v1335 = vmul.f32 1.0, %v1334
    %v1336 = vrcp.pop %v1307
    %v1337 = vmul.f32 1.0, %v1336
    %v1338 = vrcp.pop %v1308
    %v1339 = vmul.f32 1.0, %v1338
    %v1340 = vrcp.pop %v1309
    %v1341 = vmul.f32 1.0, %v1340
    %1358 = vrot.lane.b32.xlu0 %v1311, 100
    %v1359 = vpop.permute.xlu0 %1358
    %1360 = vrot.lane.b32.xlu0 %v1313, 100
    %v1361 = vpop.permute.xlu0 %1360
    %1362 = vrot.lane.b32.xlu0 %v1315, 100
    %v1363 = vpop.permute.xlu0 %1362
    %1364 = vrot.lane.b32.xlu0 %v1317, 100
    %v1365 = vpop.permute.xlu0 %1364
    %1366 = vrot.lane.b32.xlu0 %v1319, 100
    %v1367 = vpop.permute.xlu0 %1366
    %1368 = vrot.lane.b32.xlu0 %v1321, 100
    %v1369 = vpop.permute.xlu0 %1368
    %1370 = vrot.lane.b32.xlu0 %v1323, 100
    %v1371 = vpop.permute.xlu0 %1370
    %1372 = vrot.lane.b32.xlu0 %v1325, 100
    %v1373 = vpop.permute.xlu0 %1372
    %1374 = vrot.lane.b32.xlu0 %v1327, 100
    %v1375 = vpop.permute.xlu0 %1374
    %1376 = vrot.lane.b32.xlu0 %v1329, 100
    %v1377 = vpop.permute.xlu0 %1376
    %1378 = vrot.lane.b32.xlu0 %v1331, 100
    %v1379 = vpop.permute.xlu0 %1378
    %1380 = vrot.lane.b32.xlu0 %v1333, 100
    %v1381 = vpop.permute.xlu0 %1380
    %1382 = vrot.lane.b32.xlu0 %v1335, 100
    %v1383 = vpop.permute.xlu0 %1382
    %1384 = vrot.lane.b32.xlu0 %v1337, 100
    %v1385 = vpop.permute.xlu0 %1384
    %1386 = vrot.lane.b32.xlu0 %v1339, 100
    %v1387 = vpop.permute.xlu0 %1386
    %1388 = vrot.lane.b32.xlu0 %v1341, 100
    %v1389 = vpop.permute.xlu0 %1388
    %v1406 = vmul.f32 %v1230, %v1359
    %v1407 = vmul.f32 %v1231, %v1361
    %v1408 = vmul.f32 %v1232, %v1363
    %v1409 = vmul.f32 %v1233, %v1365
    %v1410 = vmul.f32 %v1234, %v1367
    %v1411 = vmul.f32 %v1235, %v1369
    %v1412 = vmul.f32 %v1236, %v1371
    %v1413 = vmul.f32 %v1237, %v1373
    %v1414 = vmul.f32 %v1238, %v1375
    %v1415 = vmul.f32 %v1239, %v1377
    %v1416 = vmul.f32 %v1240, %v1379
    %v1417 = vmul.f32 %v1241, %v1381
    %v1418 = vmul.f32 %v1242, %v1383
    %v1419 = vmul.f32 %v1243, %v1385
    %v1420 = vmul.f32 %v1244, %v1387
    %v1421 = vmul.f32 %v1245, %v1389
    %1438 = vrot.lane.b32.xlu0 %v1406, 28
    %v1439 = vpop.permute.xlu0 %1438
    %1440 = vrot.lane.b32.xlu0 %v1407, 28
    %v1441 = vpop.permute.xlu0 %1440
    %1442 = vrot.lane.b32.xlu0 %v1408, 28
    %v1443 = vpop.permute.xlu0 %1442
    %1444 = vrot.lane.b32.xlu0 %v1409, 28
    %v1445 = vpop.permute.xlu0 %1444
    %1446 = vrot.lane.b32.xlu0 %v1410, 28
    %v1447 = vpop.permute.xlu0 %1446
    %1448 = vrot.lane.b32.xlu0 %v1411, 28
    %v1449 = vpop.permute.xlu0 %1448
    %1450 = vrot.lane.b32.xlu0 %v1412, 28
    %v1451 = vpop.permute.xlu0 %1450
    %1452 = vrot.lane.b32.xlu0 %v1413, 28
    %v1453 = vpop.permute.xlu0 %1452
    %1454 = vrot.lane.b32.xlu0 %v1414, 28
    %v1455 = vpop.permute.xlu0 %1454
    %1456 = vrot.lane.b32.xlu0 %v1415, 28
    %v1457 = vpop.permute.xlu0 %1456
    %1458 = vrot.lane.b32.xlu0 %v1416, 28
    %v1459 = vpop.permute.xlu0 %1458
    %1460 = vrot.lane.b32.xlu0 %v1417, 28
    %v1461 = vpop.permute.xlu0 %1460
    %1462 = vrot.lane.b32.xlu0 %v1418, 28
    %v1463 = vpop.permute.xlu0 %1462
    %1464 = vrot.lane.b32.xlu0 %v1419, 28
    %v1465 = vpop.permute.xlu0 %1464
    %1466 = vrot.lane.b32.xlu0 %v1420, 28
    %v1467 = vpop.permute.xlu0 %1466
    %1468 = vrot.lane.b32.xlu0 %v1421, 28
    %v1469 = vpop.permute.xlu0 %1468
    %1486 = vrot.lane.b32.xlu0 %v1407, 56
    %v1487 = vpop.permute.xlu0 %1486
    %1488 = vrot.lane.b32.xlu0 %v1408, 56
    %v1489 = vpop.permute.xlu0 %1488
    %1490 = vrot.lane.b32.xlu0 %v1409, 56
    %v1491 = vpop.permute.xlu0 %1490
    %1492 = vrot.lane.b32.xlu0 %v1410, 56
    %v1493 = vpop.permute.xlu0 %1492
    %1494 = vrot.lane.b32.xlu0 %v1411, 56
    %v1495 = vpop.permute.xlu0 %1494
    %1496 = vrot.lane.b32.xlu0 %v1412, 56
    %v1497 = vpop.permute.xlu0 %1496
    %1498 = vrot.lane.b32.xlu0 %v1413, 56
    %v1499 = vpop.permute.xlu0 %1498
    %1500 = vrot.lane.b32.xlu0 %v1414, 56
    %v1501 = vpop.permute.xlu0 %1500
    %1502 = vrot.lane.b32.xlu0 %v1415, 56
    %v1503 = vpop.permute.xlu0 %1502
    %1504 = vrot.lane.b32.xlu0 %v1416, 56
    %v1505 = vpop.permute.xlu0 %1504
    %1506 = vrot.lane.b32.xlu0 %v1417, 56
    %v1507 = vpop.permute.xlu0 %1506
    %1508 = vrot.lane.b32.xlu0 %v1418, 56
    %v1509 = vpop.permute.xlu0 %1508
    %1510 = vrot.lane.b32.xlu0 %v1419, 56
    %v1511 = vpop.permute.xlu0 %1510
    %1512 = vrot.lane.b32.xlu0 %v1420, 56
    %v1513 = vpop.permute.xlu0 %1512
    %1514 = vrot.lane.b32.xlu0 %v1421, 56
    %v1515 = vpop.permute.xlu0 %1514
    %1516 = vrot.lane.b32.xlu0 0.0, 56
    %v1517 = vpop.permute.xlu0 %1516
    %vm1534 = vcmask 228352
    %v1535 = vsel %vm1534, 0.0, %v1439
    %v1536 = vsel %vm1534, %v1406, %v1441
    %v1537 = vsel %vm1534, %v1407, %v1443
    %v1538 = vsel %vm1534, %v1408, %v1445
    %v1539 = vsel %vm1534, %v1409, %v1447
    %v1540 = vsel %vm1534, %v1410, %v1449
    %v1541 = vsel %vm1534, %v1411, %v1451
    %v1542 = vsel %vm1534, %v1412, %v1453
    %v1543 = vsel %vm1534, %v1413, %v1455
    %v1544 = vsel %vm1534, %v1414, %v1457
    %v1545 = vsel %vm1534, %v1415, %v1459
    %v1546 = vsel %vm1534, %v1416, %v1461
    %v1547 = vsel %vm1534, %v1417, %v1463
    %v1548 = vsel %vm1534, %v1418, %v1465
    %v1549 = vsel %vm1534, %v1419, %v1467
    %v1550 = vsel %vm1534, %v1420, %v1469
    %vm1551 = vcmask 457728
    %v1552 = vsel %vm1551, %v1535, %v1487
    %v1553 = vsel %vm1551, %v1536, %v1489
    %v1554 = vsel %vm1551, %v1537, %v1491
    %v1555 = vsel %vm1551, %v1538, %v1493
    %v1556 = vsel %vm1551, %v1539, %v1495
    %v1557 = vsel %vm1551, %v1540, %v1497
    %v1558 = vsel %vm1551, %v1541, %v1499
    %v1559 = vsel %vm1551, %v1542, %v1501
    %v1560 = vsel %vm1551, %v1543, %v1503
    %v1561 = vsel %vm1551, %v1544, %v1505
    %v1562 = vsel %vm1551, %v1545, %v1507
    %v1563 = vsel %vm1551, %v1546, %v1509
    %v1564 = vsel %vm1551, %v1547, %v1511
    %v1565 = vsel %vm1551, %v1548, %v1513
    %v1566 = vsel %vm1551, %v1549, %v1515
    %v1567 = vsel %vm1551, %v1550, %v1517
    %v1568 = vpack.c.bf16 %v1553, %v1552
    %v1569 = vpack.c.bf16 %v1555, %v1554
    %v1570 = vpack.c.bf16 %v1557, %v1556
    %v1571 = vpack.c.bf16 %v1559, %v1558
    %v1572 = vpack.c.bf16 %v1561, %v1560
    %v1573 = vpack.c.bf16 %v1563, %v1562
    %v1574 = vpack.c.bf16 %v1565, %v1564
    %v1575 = vpack.c.bf16 %v1567, %v1566
    %v1576 = vld [vmem:[%s6] sm:$0xf]
    %v1577 = vld [vmem:[%s6 + $0x4] sm:$0xf]
    %v1578 = vld [vmem:[%s6 + $0x8] sm:$0xf]
    %v1579 = vld [vmem:[%s6 + $0xc] sm:$0xf]
    %v1580 = vld [vmem:[%s6 + $0x10] sm:$0xf]
    %v1581 = vld [vmem:[%s6 + $0x14] sm:$0xf]
    %v1582 = vld [vmem:[%s6 + $0x18] sm:$0xf]
    %v1583 = vld [vmem:[%s6 + $0x1c] sm:$0xf]
    %v1584 = vld [vmem:[%s6 + $0x20] sm:$0xf]
    %v1585 = vld [vmem:[%s6 + $0x24] sm:$0xf]
    %v1586 = vld [vmem:[%s6 + $0x28] sm:$0x3]
    %v1587 = vld [vmem:[#allocation7] sm:$0x1]
    %v1589 = vlaneseq
    %v1590 = vshrl.u32 %v1589, 7
    %v1591 = vsub.s32 0, %v1590
    %v1592 = vrot.slane %v1587, %v1591
    %v1605 = vunpack.c.l.b16 %v1576
    %v1606 = vunpack.c.l.b16 %v1577
    %v1607 = vunpack.c.l.b16 %v1578
    %v1608 = vunpack.c.l.b16 %v1579
    %v1609 = vunpack.c.l.b16 %v1580
    %v1610 = vunpack.c.l.b16 %v1581
    %v1611 = vunpack.c.l.b16 %v1582
    %v1612 = vunpack.c.l.b16 %v1583
    %v1613 = vunpack.c.l.b16 %v1584
    %v1614 = vunpack.c.l.b16 %v1585
    %v1615 = vunpack.c.l.b16 %v1586
    %v1616 = vpack.c.b16 %v1606, %v1605
    %v1617 = vpack.c.b16 %v1608, %v1607
    %v1618 = vpack.c.b16 %v1610, %v1609
    %v1619 = vpack.c.b16 %v1612, %v1611
    %v1620 = vpack.c.b16 %v1614, %v1613
    %v1621 = vpack.c.b16 %v1615, %v1615
    %vm1627 = vcmask 687104
    %v1629 = vsel %vm1627, %v1568, 0
    %v1632 = vsel %vm1627, %v1569, 0
    %v1635 = vsel %vm1627, %v1570, 0
    %v1638 = vsel %vm1627, %v1571, 0
    %v1641 = vsel %vm1627, %v1572, 0
    %v1644 = vsel %vm1627, %v1573, 0
    %v1647 = vsel %vm1627, %v1574, 0
    %v1650 = vsel %vm1627, %v1575, 0
    %vm1652 = vcmask 1041408
    %v1654 = vsel %vm1652, %v1621, 0
    %1656 = vmatprep.subr.bf16.mxu0 0
    %1657 = vmatpush1.bf16.msra.mxu0 %v1616
    %1658 = vmatprep.subr.bf16.mxu0 0
    %1659 = vmatpush1.bf16.msra.mxu0 %v1617
    %1660 = vmatprep.subr.bf16.mxu0 0
    %1661 = vmatpush1.bf16.msra.mxu0 %v1618
    %1662 = vmatprep.subr.bf16.mxu0 0
    %1663 = vmatpush1.bf16.msra.mxu0 %v1619
    %1664 = vmatprep.subr.bf16.mxu0 0
    %1665 = vmatpush1.bf16.msra.mxu0 %v1620
    %1666 = vmatprep.subr.bf16.mxu0 0
    %1667 = vmatpush1.bf16.msra.mxu0 %v1654
    %1668 = vmatprep.subr.bf16.mxu0 0
    %1669 = vmatpush1.bf16.msra.mxu0 0
    %1670 = vmatprep.subr.bf16.mxu0 0
    %1671 = vmatpush1.bf16.msra.mxu0 0
    %1672 = vmatprep.subr.bf16.mxu0 0
    %1673 = vmatpush1.bf16.msra.mxu0 0
    %1674 = vmatprep.subr.bf16.mxu0 0
    %1675 = vmatpush1.bf16.msra.mxu0 0
    %1676 = vmatprep.subr.bf16.mxu0 0
    %1677 = vmatpush1.bf16.msra.mxu0 0
    %1678 = vmatprep.subr.bf16.mxu0 0
    %1679 = vmatpush1.bf16.msra.mxu0 0
    %1680 = vmatprep.subr.bf16.mxu0 0
    %1681 = vmatpush1.bf16.msra.mxu0 0
    %1682 = vmatprep.subr.bf16.mxu0 0
    %1683 = vmatpush1.bf16.msra.mxu0 0
    %1684 = vmatprep.subr.bf16.mxu0 0
    %1685 = vmatpush1.bf16.msra.mxu0 0
    %1686 = vmatprep.subr.bf16.mxu0 0
    %1687 = vmatpush1.bf16.msra.mxu0 0
    %1688 = vmatprep.mubr.bf16.mxu0 0
    %1689 = vmatmul.mubr.bf16.gmra.mrb[0].mxu0 %v1629
    %v1690 = vpop.f32.mrb[0].mxu0
    %v1691 = vadd.f32 %v1592, %v1690
    %v1692 = vpop.f32.mrb[0].mxu0
    %v1693 = vpop.f32.mrb[0].mxu0
    %v1694 = vadd.f32 %v1592, %v1693
    %v1695 = vpop.f32.mrb[0].mxu0
    %1696 = vmatprep.mubr.bf16.mxu0 0
    %1697 = vmatmul.mubr.bf16.gmra.mrb[0].mxu0 %v1632
    %v1698 = vpop.f32.mrb[0].mxu0
    %v1699 = vadd.f32 %v1592, %v1698
    %v1700 = vpop.f32.mrb[0].mxu0
    %v1701 = vpop.f32.mrb[0].mxu0
    %v1702 = vadd.f32 %v1592, %v1701
    %v1703 = vpop.f32.mrb[0].mxu0
    %1704 = vmatprep.mubr.bf16.mxu0 0
    %1705 = vmatmul.mubr.bf16.gmra.mrb[0].mxu0 %v1635
    %v1706 = vpop.f32.mrb[0].mxu0
    %v1707 = vadd.f32 %v1592, %v1706
    %v1708 = vpop.f32.mrb[0].mxu0
    %v1709 = vpop.f32.mrb[0].mxu0
    %v1710 = vadd.f32 %v1592, %v1709
    %v1711 = vpop.f32.mrb[0].mxu0
    %1712 = vmatprep.mubr.bf16.mxu0 0
    %1713 = vmatmul.mubr.bf16.gmra.mrb[0].mxu0 %v1638
    %v1714 = vpop.f32.mrb[0].mxu0
    %v1715 = vadd.f32 %v1592, %v1714
    %v1716 = vpop.f32.mrb[0].mxu0
    %v1717 = vpop.f32.mrb[0].mxu0
    %v1718 = vadd.f32 %v1592, %v1717
    %v1719 = vpop.f32.mrb[0].mxu0
    %1720 = vmatprep.mubr.bf16.mxu0 0
    %1721 = vmatmul.mubr.bf16.gmra.mrb[0].mxu0 %v1641
    %v1722 = vpop.f32.mrb[0].mxu0
    %v1723 = vadd.f32 %v1592, %v1722
    %v1724 = vpop.f32.mrb[0].mxu0
    %v1725 = vpop.f32.mrb[0].mxu0
    %v1726 = vadd.f32 %v1592, %v1725
    %v1727 = vpop.f32.mrb[0].mxu0
    %1728 = vmatprep.mubr.bf16.mxu0 0
    %1729 = vmatmul.mubr.bf16.gmra.mrb[0].mxu0 %v1644
    %v1730 = vpop.f32.mrb[0].mxu0
    %v1731 = vadd.f32 %v1592, %v1730
    %v1732 = vpop.f32.mrb[0].mxu0
    %v1733 = vpop.f32.mrb[0].mxu0
    %v1734 = vadd.f32 %v1592, %v1733
    %v1735 = vpop.f32.mrb[0].mxu0
    %1736 = vmatprep.mubr.bf16.mxu0 0
    %1737 = vmatmul.mubr.bf16.gmra.mrb[0].mxu0 %v1647
    %v1738 = vpop.f32.mrb[0].mxu0
    %v1739 = vadd.f32 %v1592, %v1738
    %v1740 = vpop.f32.mrb[0].mxu0
    %v1741 = vpop.f32.mrb[0].mxu0
    %v1742 = vadd.f32 %v1592, %v1741
    %v1743 = vpop.f32.mrb[0].mxu0
    %1744 = vmatprep.mubr.bf16.mxu0 0
    %1745 = vmatmul.mubr.bf16.gmra.mrb[0].mxu0 %v1650
    %v1746 = vpop.f32.mrb[0].mxu0
    %v1747 = vadd.f32 %v1592, %v1746
    %v1748 = vpop.f32.mrb[0].mxu0
    %v1749 = vpop.f32.mrb[0].mxu0
    %v1750 = vadd.f32 %v1592, %v1749
    %v1751 = vpop.f32.mrb[0].mxu0
    %1752 = vdwg.mxu0
    %v1753 = vtanh.pop %v1691
    %v1754 = vtanh.pop %v1694
    %v1755 = vtanh.pop %v1699
    %v1756 = vtanh.pop %v1702
    %v1757 = vtanh.pop %v1707
    %v1758 = vtanh.pop %v1710
    %v1759 = vtanh.pop %v1715
    %v1760 = vtanh.pop %v1718
    %v1761 = vtanh.pop %v1723
    %v1762 = vtanh.pop %v1726
    %v1763 = vtanh.pop %v1731
    %v1764 = vtanh.pop %v1734
    %v1765 = vtanh.pop %v1739
    %v1766 = vtanh.pop %v1742
    %v1767 = vtanh.pop %v1747
    %v1768 = vtanh.pop %v1750
    %v1769 = vxor.u32 %v1691, 2147483648
    %v1770 = vxor.u32 %v1694, 2147483648
    %v1771 = vxor.u32 %v1699, 2147483648
    %v1772 = vxor.u32 %v1702, 2147483648
    %v1773 = vxor.u32 %v1707, 2147483648
    %v1774 = vxor.u32 %v1710, 2147483648
    %v1775 = vxor.u32 %v1715, 2147483648
    %v1776 = vxor.u32 %v1718, 2147483648
    %v1777 = vxor.u32 %v1723, 2147483648
    %v1778 = vxor.u32 %v1726, 2147483648
    %v1779 = vxor.u32 %v1731, 2147483648
    %v1780 = vxor.u32 %v1734, 2147483648
    %v1781 = vxor.u32 %v1739, 2147483648
    %v1782 = vxor.u32 %v1742, 2147483648
    %v1783 = vxor.u32 %v1747, 2147483648
    %v1784 = vxor.u32 %v1750, 2147483648
    %v1785 = vmul.f32 %v1769, 1.442695
    %v1786 = vpow.pop %v1785
    %v1787 = vmul.f32 %v1770, 1.442695
    %v1788 = vpow.pop %v1787
    %v1789 = vmul.f32 %v1771, 1.442695
    %v1790 = vpow.pop %v1789
    %v1791 = vmul.f32 %v1772, 1.442695
    %v1792 = vpow.pop %v1791
    %v1793 = vmul.f32 %v1773, 1.442695
    %v1794 = vpow.pop %v1793
    %v1795 = vmul.f32 %v1774, 1.442695
    %v1796 = vpow.pop %v1795
    %v1797 = vmul.f32 %v1775, 1.442695
    %v1798 = vpow.pop %v1797
    %v1799 = vmul.f32 %v1776, 1.442695
    %v1800 = vpow.pop %v1799
    %v1801 = vmul.f32 %v1777, 1.442695
    %v1802 = vpow.pop %v1801
    %v1803 = vmul.f32 %v1778, 1.442695
    %v1804 = vpow.pop %v1803
    %v1805 = vmul.f32 %v1779, 1.442695
    %v1806 = vpow.pop %v1805
    %v1807 = vmul.f32 %v1780, 1.442695
    %v1808 = vpow.pop %v1807
    %v1809 = vmul.f32 %v1781, 1.442695
    %v1810 = vpow.pop %v1809
    %v1811 = vmul.f32 %v1782, 1.442695
    %v1812 = vpow.pop %v1811
    %v1813 = vmul.f32 %v1783, 1.442695
    %v1814 = vpow.pop %v1813
    %v1815 = vmul.f32 %v1784, 1.442695
    %v1816 = vpow.pop %v1815
    %v1817 = vadd.f32 %v1786, 1.0
    %v1818 = vadd.f32 %v1788, 1.0
    %v1819 = vadd.f32 %v1790, 1.0
    %v1820 = vadd.f32 %v1792, 1.0
    %v1821 = vadd.f32 %v1794, 1.0
    %v1822 = vadd.f32 %v1796, 1.0
    %v1823 = vadd.f32 %v1798, 1.0
    %v1824 = vadd.f32 %v1800, 1.0
    %v1825 = vadd.f32 %v1802, 1.0
    %v1826 = vadd.f32 %v1804, 1.0
    %v1827 = vadd.f32 %v1806, 1.0
    %v1828 = vadd.f32 %v1808, 1.0
    %v1829 = vadd.f32 %v1810, 1.0
    %v1830 = vadd.f32 %v1812, 1.0
    %v1831 = vadd.f32 %v1814, 1.0
    %v1832 = vadd.f32 %v1816, 1.0
    %v1833 = vrcp.pop %v1817
    %v1834 = vmul.f32 1.0, %v1833
    %v1835 = vrcp.pop %v1818
    %v1836 = vmul.f32 1.0, %v1835
    %v1837 = vrcp.pop %v1819
    %v1838 = vmul.f32 1.0, %v1837
    %v1839 = vrcp.pop %v1820
    %v1840 = vmul.f32 1.0, %v1839
    %v1841 = vrcp.pop %v1821
    %v1842 = vmul.f32 1.0, %v1841
    %v1843 = vrcp.pop %v1822
    %v1844 = vmul.f32 1.0, %v1843
    %v1845 = vrcp.pop %v1823
    %v1846 = vmul.f32 1.0, %v1845
    %v1847 = vrcp.pop %v1824
    %v1848 = vmul.f32 1.0, %v1847
    %v1849 = vrcp.pop %v1825
    %v1850 = vmul.f32 1.0, %v1849
    %v1851 = vrcp.pop %v1826
    %v1852 = vmul.f32 1.0, %v1851
    %v1853 = vrcp.pop %v1827
    %v1854 = vmul.f32 1.0, %v1853
    %v1855 = vrcp.pop %v1828
    %v1856 = vmul.f32 1.0, %v1855
    %v1857 = vrcp.pop %v1829
    %v1858 = vmul.f32 1.0, %v1857
    %v1859 = vrcp.pop %v1830
    %v1860 = vmul.f32 1.0, %v1859
    %v1861 = vrcp.pop %v1831
    %v1862 = vmul.f32 1.0, %v1861
    %v1863 = vrcp.pop %v1832
    %v1864 = vmul.f32 1.0, %v1863
    %1881 = vrot.lane.b32.xlu0 %v1834, 103
    %v1882 = vpop.permute.xlu0 %1881
    %1883 = vrot.lane.b32.xlu0 %v1836, 103
    %v1884 = vpop.permute.xlu0 %1883
    %1885 = vrot.lane.b32.xlu0 %v1838, 103
    %v1886 = vpop.permute.xlu0 %1885
    %1887 = vrot.lane.b32.xlu0 %v1840, 103
    %v1888 = vpop.permute.xlu0 %1887
    %1889 = vrot.lane.b32.xlu0 %v1842, 103
    %v1890 = vpop.permute.xlu0 %1889
    %1891 = vrot.lane.b32.xlu0 %v1844, 103
    %v1892 = vpop.permute.xlu0 %1891
    %1893 = vrot.lane.b32.xlu0 %v1846, 103
    %v1894 = vpop.permute.xlu0 %1893
    %1895 = vrot.lane.b32.xlu0 %v1848, 103
    %v1896 = vpop.permute.xlu0 %1895
    %1897 = vrot.lane.b32.xlu0 %v1850, 103
    %v1898 = vpop.permute.xlu0 %1897
    %1899 = vrot.lane.b32.xlu0 %v1852, 103
    %v1900 = vpop.permute.xlu0 %1899
    %1901 = vrot.lane.b32.xlu0 %v1854, 103
    %v1902 = vpop.permute.xlu0 %1901
    %1903 = vrot.lane.b32.xlu0 %v1856, 103
    %v1904 = vpop.permute.xlu0 %1903
    %1905 = vrot.lane.b32.xlu0 %v1858, 103
    %v1906 = vpop.permute.xlu0 %1905
    %1907 = vrot.lane.b32.xlu0 %v1860, 103
    %v1908 = vpop.permute.xlu0 %1907
    %1909 = vrot.lane.b32.xlu0 %v1862, 103
    %v1910 = vpop.permute.xlu0 %1909
    %1911 = vrot.lane.b32.xlu0 %v1864, 103
    %v1912 = vpop.permute.xlu0 %1911
    %v1929 = vmul.f32 %v1753, %v1882
    %v1930 = vmul.f32 %v1754, %v1884
    %v1931 = vmul.f32 %v1755, %v1886
    %v1932 = vmul.f32 %v1756, %v1888
    %v1933 = vmul.f32 %v1757, %v1890
    %v1934 = vmul.f32 %v1758, %v1892
    %v1935 = vmul.f32 %v1759, %v1894
    %v1936 = vmul.f32 %v1760, %v1896
    %v1937 = vmul.f32 %v1761, %v1898
    %v1938 = vmul.f32 %v1762, %v1900
    %v1939 = vmul.f32 %v1763, %v1902
    %v1940 = vmul.f32 %v1764, %v1904
    %v1941 = vmul.f32 %v1765, %v1906
    %v1942 = vmul.f32 %v1766, %v1908
    %v1943 = vmul.f32 %v1767, %v1910
    %v1944 = vmul.f32 %v1768, %v1912
    %1961 = vrot.lane.b32.xlu0 %v1929, 25
    %v1962 = vpop.permute.xlu0 %1961
    %1963 = vrot.lane.b32.xlu0 %v1930, 25
    %v1964 = vpop.permute.xlu0 %1963
    %1965 = vrot.lane.b32.xlu0 %v1931, 25
    %v1966 = vpop.permute.xlu0 %1965
    %1967 = vrot.lane.b32.xlu0 %v1932, 25
    %v1968 = vpop.permute.xlu0 %1967
    %1969 = vrot.lane.b32.xlu0 %v1933, 25
    %v1970 = vpop.permute.xlu0 %1969
    %1971 = vrot.lane.b32.xlu0 %v1934, 25
    %v1972 = vpop.permute.xlu0 %1971
    %1973 = vrot.lane.b32.xlu0 %v1935, 25
    %v1974 = vpop.permute.xlu0 %1973
    %1975 = vrot.lane.b32.xlu0 %v1936, 25
    %v1976 = vpop.permute.xlu0 %1975
    %1977 = vrot.lane.b32.xlu0 %v1937, 25
    %v1978 = vpop.permute.xlu0 %1977
    %1979 = vrot.lane.b32.xlu0 %v1938, 25
    %v1980 = vpop.permute.xlu0 %1979
    %1981 = vrot.lane.b32.xlu0 %v1939, 25
    %v1982 = vpop.permute.xlu0 %1981
    %1983 = vrot.lane.b32.xlu0 %v1940, 25
    %v1984 = vpop.permute.xlu0 %1983
    %1985 = vrot.lane.b32.xlu0 %v1941, 25
    %v1986 = vpop.permute.xlu0 %1985
    %1987 = vrot.lane.b32.xlu0 %v1942, 25
    %v1988 = vpop.permute.xlu0 %1987
    %1989 = vrot.lane.b32.xlu0 %v1943, 25
    %v1990 = vpop.permute.xlu0 %1989
    %1991 = vrot.lane.b32.xlu0 %v1944, 25
    %v1992 = vpop.permute.xlu0 %1991
    %2009 = vrot.lane.b32.xlu0 %v1930, 50
    %v2010 = vpop.permute.xlu0 %2009
    %2011 = vrot.lane.b32.xlu0 %v1931, 50
    %v2012 = vpop.permute.xlu0 %2011
    %2013 = vrot.lane.b32.xlu0 %v1932, 50
    %v2014 = vpop.permute.xlu0 %2013
    %2015 = vrot.lane.b32.xlu0 %v1933, 50
    %v2016 = vpop.permute.xlu0 %2015
    %2017 = vrot.lane.b32.xlu0 %v1934, 50
    %v2018 = vpop.permute.xlu0 %2017
    %2019 = vrot.lane.b32.xlu0 %v1935, 50
    %v2020 = vpop.permute.xlu0 %2019
    %2021 = vrot.lane.b32.xlu0 %v1936, 50
    %v2022 = vpop.permute.xlu0 %2021
    %2023 = vrot.lane.b32.xlu0 %v1937, 50
    %v2024 = vpop.permute.xlu0 %2023
    %2025 = vrot.lane.b32.xlu0 %v1938, 50
    %v2026 = vpop.permute.xlu0 %2025
    %2027 = vrot.lane.b32.xlu0 %v1939, 50
    %v2028 = vpop.permute.xlu0 %2027
    %2029 = vrot.lane.b32.xlu0 %v1940, 50
    %v2030 = vpop.permute.xlu0 %2029
    %2031 = vrot.lane.b32.xlu0 %v1941, 50
    %v2032 = vpop.permute.xlu0 %2031
    %2033 = vrot.lane.b32.xlu0 %v1942, 50
    %v2034 = vpop.permute.xlu0 %2033
    %2035 = vrot.lane.b32.xlu0 %v1943, 50
    %v2036 = vpop.permute.xlu0 %2035
    %2037 = vrot.lane.b32.xlu0 %v1944, 50
    %v2038 = vpop.permute.xlu0 %2037
    %2039 = vrot.lane.b32.xlu0 0.0, 50
    %v2040 = vpop.permute.xlu0 %2039
    %vm2057 = vcmask 203776
    %v2058 = vsel %vm2057, 0.0, %v1962
    %v2059 = vsel %vm2057, %v1929, %v1964
    %v2060 = vsel %vm2057, %v1930, %v1966
    %v2061 = vsel %vm2057, %v1931, %v1968
    %v2062 = vsel %vm2057, %v1932, %v1970
    %v2063 = vsel %vm2057, %v1933, %v1972
    %v2064 = vsel %vm2057, %v1934, %v1974
    %v2065 = vsel %vm2057, %v1935, %v1976
    %v2066 = vsel %vm2057, %v1936, %v1978
    %v2067 = vsel %vm2057, %v1937, %v1980
    %v2068 = vsel %vm2057, %v1938, %v1982
    %v2069 = vsel %vm2057, %v1939, %v1984
    %v2070 = vsel %vm2057, %v1940, %v1986
    %v2071 = vsel %vm2057, %v1941, %v1988
    %v2072 = vsel %vm2057, %v1942, %v1990
    %v2073 = vsel %vm2057, %v1943, %v1992
    %vm2074 = vcmask 408576
    %v2075 = vsel %vm2074, %v2058, %v2010
    %v2076 = vsel %vm2074, %v2059, %v2012
    %v2077 = vsel %vm2074, %v2060, %v2014
    %v2078 = vsel %vm2074, %v2061, %v2016
    %v2079 = vsel %vm2074, %v2062, %v2018
    %v2080 = vsel %vm2074, %v2063, %v2020
    %v2081 = vsel %vm2074, %v2064, %v2022
    %v2082 = vsel %vm2074, %v2065, %v2024
    %v2083 = vsel %vm2074, %v2066, %v2026
    %v2084 = vsel %vm2074, %v2067, %v2028
    %v2085 = vsel %vm2074, %v2068, %v2030
    %v2086 = vsel %vm2074, %v2069, %v2032
    %v2087 = vsel %vm2074, %v2070, %v2034
    %v2088 = vsel %vm2074, %v2071, %v2036
    %v2089 = vsel %vm2074, %v2072, %v2038
    %v2090 = vsel %vm2074, %v2073, %v2040
    %v2091 = vpack.c.bf16 %v2076, %v2075
    %v2092 = vpack.c.bf16 %v2078, %v2077
    %v2093 = vpack.c.bf16 %v2080, %v2079
    %v2094 = vpack.c.bf16 %v2082, %v2081
    %v2095 = vpack.c.bf16 %v2084, %v2083
    %v2096 = vpack.c.bf16 %v2086, %v2085
    %v2097 = vpack.c.bf16 %v2088, %v2087
    %v2098 = vpack.c.bf16 %v2090, %v2089
    %v2099 = vld [vmem:[%s8] sm:$0xf]
    %v2100 = vld [vmem:[%s8 + $0x4] sm:$0xf]
    %v2101 = vld [vmem:[%s8 + $0x8] sm:$0xf]
    %v2102 = vld [vmem:[%s8 + $0xc] sm:$0xf]
    %v2103 = vld [vmem:[%s8 + $0x10] sm:$0xf]
    %v2104 = vld [vmem:[%s8 + $0x14] sm:$0xf]
    %v2105 = vld [vmem:[%s8 + $0x18] sm:$0xf]
    %v2106 = vld [vmem:[%s8 + $0x1c] sm:$0xf]
    %v2107 = vld [vmem:[%s8 + $0x20] sm:$0xf]
    %v2108 = vld [vmem:[%s8 + $0x24] sm:$0x3]
    %v2109 = vld [vmem:[#allocation9] sm:$0x1]
    %v2111 = vlaneseq
    %v2112 = vshrl.u32 %v2111, 7
    %v2113 = vsub.s32 0, %v2112
    %v2114 = vrot.slane %v2109, %v2113
    %v2126 = vunpack.c.l.b16 %v2099
    %v2127 = vunpack.c.l.b16 %v2100
    %v2128 = vunpack.c.l.b16 %v2101
    %v2129 = vunpack.c.l.b16 %v2102
    %v2130 = vunpack.c.l.b16 %v2103
    %v2131 = vunpack.c.l.b16 %v2104
    %v2132 = vunpack.c.l.b16 %v2105
    %v2133 = vunpack.c.l.b16 %v2106
    %v2134 = vunpack.c.l.b16 %v2107
    %v2135 = vunpack.c.l.b16 %v2108
    %v2136 = vpack.c.b16 %v2127, %v2126
    %v2137 = vpack.c.b16 %v2129, %v2128
    %v2138 = vpack.c.b16 %v2131, %v2130
    %v2139 = vpack.c.b16 %v2133, %v2132
    %v2140 = vpack.c.b16 %v2135, %v2134
    %vm2145 = vcmask 613376
    %v2147 = vsel %vm2145, %v2091, 0
    %v2150 = vsel %vm2145, %v2092, 0
    %v2153 = vsel %vm2145, %v2093, 0
    %v2156 = vsel %vm2145, %v2094, 0
    %v2159 = vsel %vm2145, %v2095, 0
    %v2162 = vsel %vm2145, %v2096, 0
    %v2165 = vsel %vm2145, %v2097, 0
    %v2168 = vsel %vm2145, %v2098, 0
    %vm2170 = vcmask 1044480
    %vm2171 = vcmask 1045504
    %v2172 = vsel %vm2170, 4294967295, 65535
    %v2173 = vsel %vm2171, %v2172, 0
    %v2175 = vand.u32 %v2140, %v2173
    %2177 = vmatprep.subr.bf16.mxu0 0
    %2178 = vmatpush1.bf16.msra.mxu0 %v2136
    %2179 = vmatprep.subr.bf16.mxu0 0
    %2180 = vmatpush1.bf16.msra.mxu0 %v2137
    %2181 = vmatprep.subr.bf16.mxu0 0
    %2182 = vmatpush1.bf16.msra.mxu0 %v2138
    %2183 = vmatprep.subr.bf16.mxu0 0
    %2184 = vmatpush1.bf16.msra.mxu0 %v2139
    %2185 = vmatprep.subr.bf16.mxu0 0
    %2186 = vmatpush1.bf16.msra.mxu0 %v2175
    %2187 = vmatprep.subr.bf16.mxu0 0
    %2188 = vmatpush1.bf16.msra.mxu0 0
    %2189 = vmatprep.subr.bf16.mxu0 0
    %2190 = vmatpush1.bf16.msra.mxu0 0
    %2191 = vmatprep.subr.bf16.mxu0 0
    %2192 = vmatpush1.bf16.msra.mxu0 0
    %2193 = vmatprep.subr.bf16.mxu0 0
    %2194 = vmatpush1.bf16.msra.mxu0 0
    %2195 = vmatprep.subr.bf16.mxu0 0
    %2196 = vmatpush1.bf16.msra.mxu0 0
    %2197 = vmatprep.subr.bf16.mxu0 0
    %2198 = vmatpush1.bf16.msra.mxu0 0
    %2199 = vmatprep.subr.bf16.mxu0 0
    %2200 = vmatpush1.bf16.msra.mxu0 0
    %2201 = vmatprep.subr.bf16.mxu0 0
    %2202 = vmatpush1.bf16.msra.mxu0 0
    %2203 = vmatprep.subr.bf16.mxu0 0
    %2204 = vmatpush1.bf16.msra.mxu0 0
    %2205 = vmatprep.subr.bf16.mxu0 0
    %2206 = vmatpush1.bf16.msra.mxu0 0
    %2207 = vmatprep.subr.bf16.mxu0 0
    %2208 = vmatpush1.bf16.msra.mxu0 0
    %2209 = vmatprep.mubr.bf16.mxu0 0
    %2210 = vmatmul.mubr.bf16.gmra.mrb[0].mxu0 %v2147
    %v2211 = vpop.f32.mrb[0].mxu0
    %v2212 = vadd.f32 %v2114, %v2211
    %v2213 = vpop.f32.mrb[0].mxu0
    %v2214 = vpop.f32.mrb[0].mxu0
    %v2215 = vadd.f32 %v2114, %v2214
    %v2216 = vpop.f32.mrb[0].mxu0
    %2217 = vmatprep.mubr.bf16.mxu0 0
    %2218 = vmatmul.mubr.bf16.gmra.mrb[0].mxu0 %v2150
    %v2219 = vpop.f32.mrb[0].mxu0
    %v2220 = vadd.f32 %v2114, %v2219
    %v2221 = vpop.f32.mrb[0].mxu0
    %v2222 = vpop.f32.mrb[0].mxu0
    %v2223 = vadd.f32 %v2114, %v2222
    %v2224 = vpop.f32.mrb[0].mxu0
    %2225 = vmatprep.mubr.bf16.mxu0 0
    %2226 = vmatmul.mubr.bf16.gmra.mrb[0].mxu0 %v2153
    %v2227 = vpop.f32.mrb[0].mxu0
    %v2228 = vadd.f32 %v2114, %v2227
    %v2229 = vpop.f32.mrb[0].mxu0
    %v2230 = vpop.f32.mrb[0].mxu0
    %v2231 = vadd.f32 %v2114, %v2230
    %v2232 = vpop.f32.mrb[0].mxu0
    %2233 = vmatprep.mubr.bf16.mxu0 0
    %2234 = vmatmul.mubr.bf16.gmra.mrb[0].mxu0 %v2156
    %v2235 = vpop.f32.mrb[0].mxu0
    %v2236 = vadd.f32 %v2114, %v2235
    %v2237 = vpop.f32.mrb[0].mxu0
    %v2238 = vpop.f32.mrb[0].mxu0
    %v2239 = vadd.f32 %v2114, %v2238
    %v2240 = vpop.f32.mrb[0].mxu0
    %2241 = vmatprep.mubr.bf16.mxu0 0
    %2242 = vmatmul.mubr.bf16.gmra.mrb[0].mxu0 %v2159
    %v2243 = vpop.f32.mrb[0].mxu0
    %v2244 = vadd.f32 %v2114, %v2243
    %v2245 = vpop.f32.mrb[0].mxu0
    %v2246 = vpop.f32.mrb[0].mxu0
    %v2247 = vadd.f32 %v2114, %v2246
    %v2248 = vpop.f32.mrb[0].mxu0
    %2249 = vmatprep.mubr.bf16.mxu0 0
    %2250 = vmatmul.mubr.bf16.gmra.mrb[0].mxu0 %v2162
    %v2251 = vpop.f32.mrb[0].mxu0
    %v2252 = vadd.f32 %v2114, %v2251
    %v2253 = vpop.f32.mrb[0].mxu0
    %v2254 = vpop.f32.mrb[0].mxu0
    %v2255 = vadd.f32 %v2114, %v2254
    %v2256 = vpop.f32.mrb[0].mxu0
    %2257 = vmatprep.mubr.bf16.mxu0 0
    %2258 = vmatmul.mubr.bf16.gmra.mrb[0].mxu0 %v2165
    %v2259 = vpop.f32.mrb[0].mxu0
    %v2260 = vadd.f32 %v2114, %v2259
    %v2261 = vpop.f32.mrb[0].mxu0
    %v2262 = vpop.f32.mrb[0].mxu0
    %v2263 = vadd.f32 %v2114, %v2262
    %v2264 = vpop.f32.mrb[0].mxu0
    %2265 = vmatprep.mubr.bf16.mxu0 0
    %2266 = vmatmul.mubr.bf16.gmra.mrb[0].mxu0 %v2168
    %v2267 = vpop.f32.mrb[0].mxu0
    %v2268 = vadd.f32 %v2114, %v2267
    %v2269 = vpop.f32.mrb[0].mxu0
    %v2270 = vpop.f32.mrb[0].mxu0
    %v2271 = vadd.f32 %v2114, %v2270
    %v2272 = vpop.f32.mrb[0].mxu0
    %2273 = vdwg.mxu0
    %v2274 = vtanh.pop %v2212
    %v2275 = vtanh.pop %v2215
    %v2276 = vtanh.pop %v2220
    %v2277 = vtanh.pop %v2223
    %v2278 = vtanh.pop %v2228
    %v2279 = vtanh.pop %v2231
    %v2280 = vtanh.pop %v2236
    %v2281 = vtanh.pop %v2239
    %v2282 = vtanh.pop %v2244
    %v2283 = vtanh.pop %v2247
    %v2284 = vtanh.pop %v2252
    %v2285 = vtanh.pop %v2255
    %v2286 = vtanh.pop %v2260
    %v2287 = vtanh.pop %v2263
    %v2288 = vtanh.pop %v2268
    %v2289 = vtanh.pop %v2271
    %v2290 = vxor.u32 %v2212, 2147483648
    %v2291 = vxor.u32 %v2215, 2147483648
    %v2292 = vxor.u32 %v2220, 2147483648
    %v2293 = vxor.u32 %v2223, 2147483648
    %v2294 = vxor.u32 %v2228, 2147483648
    %v2295 = vxor.u32 %v2231, 2147483648
    %v2296 = vxor.u32 %v2236, 2147483648
    %v2297 = vxor.u32 %v2239, 2147483648
    %v2298 = vxor.u32 %v2244, 2147483648
    %v2299 = vxor.u32 %v2247, 2147483648
    %v2300 = vxor.u32 %v2252, 2147483648
    %v2301 = vxor.u32 %v2255, 2147483648
    %v2302 = vxor.u32 %v2260, 2147483648
    %v2303 = vxor.u32 %v2263, 2147483648
    %v2304 = vxor.u32 %v2268, 2147483648
    %v2305 = vxor.u32 %v2271, 2147483648
    %v2306 = vmul.f32 %v2290, 1.442695
    %v2307 = vpow.pop %v2306
    %v2308 = vmul.f32 %v2291, 1.442695
    %v2309 = vpow.pop %v2308
    %v2310 = vmul.f32 %v2292, 1.442695
    %v2311 = vpow.pop %v2310
    %v2312 = vmul.f32 %v2293, 1.442695
    %v2313 = vpow.pop %v2312
    %v2314 = vmul.f32 %v2294, 1.442695
    %v2315 = vpow.pop %v2314
    %v2316 = vmul.f32 %v2295, 1.442695
    %v2317 = vpow.pop %v2316
    %v2318 = vmul.f32 %v2296, 1.442695
    %v2319 = vpow.pop %v2318
    %v2320 = vmul.f32 %v2297, 1.442695
    %v2321 = vpow.pop %v2320
    %v2322 = vmul.f32 %v2298, 1.442695
    %v2323 = vpow.pop %v2322
    %v2324 = vmul.f32 %v2299, 1.442695
    %v2325 = vpow.pop %v2324
    %v2326 = vmul.f32 %v2300, 1.442695
    %v2327 = vpow.pop %v2326
    %v2328 = vmul.f32 %v2301, 1.442695
    %v2329 = vpow.pop %v2328
    %v2330 = vmul.f32 %v2302, 1.442695
    %v2331 = vpow.pop %v2330
    %v2332 = vmul.f32 %v2303, 1.442695
    %v2333 = vpow.pop %v2332
    %v2334 = vmul.f32 %v2304, 1.442695
    %v2335 = vpow.pop %v2334
    %v2336 = vmul.f32 %v2305, 1.442695
    %v2337 = vpow.pop %v2336
    %v2338 = vadd.f32 %v2307, 1.0
    %v2339 = vadd.f32 %v2309, 1.0
    %v2340 = vadd.f32 %v2311, 1.0
    %v2341 = vadd.f32 %v2313, 1.0
    %v2342 = vadd.f32 %v2315, 1.0
    %v2343 = vadd.f32 %v2317, 1.0
    %v2344 = vadd.f32 %v2319, 1.0
    %v2345 = vadd.f32 %v2321, 1.0
    %v2346 = vadd.f32 %v2323, 1.0
    %v2347 = vadd.f32 %v2325, 1.0
    %v2348 = vadd.f32 %v2327, 1.0
    %v2349 = vadd.f32 %v2329, 1.0
    %v2350 = vadd.f32 %v2331, 1.0
    %v2351 = vadd.f32 %v2333, 1.0
    %v2352 = vadd.f32 %v2335, 1.0
    %v2353 = vadd.f32 %v2337, 1.0
    %v2354 = vrcp.pop %v2338
    %v2355 = vmul.f32 1.0, %v2354
    %v2356 = vrcp.pop %v2339
    %v2357 = vmul.f32 1.0, %v2356
    %v2358 = vrcp.pop %v2340
    %v2359 = vmul.f32 1.0, %v2358
    %v2360 = vrcp.pop %v2341
    %v2361 = vmul.f32 1.0, %v2360
    %v2362 = vrcp.pop %v2342
    %v2363 = vmul.f32 1.0, %v2362
    %v2364 = vrcp.pop %v2343
    %v2365 = vmul.f32 1.0, %v2364
    %v2366 = vrcp.pop %v2344
    %v2367 = vmul.f32 1.0, %v2366
    %v2368 = vrcp.pop %v2345
    %v2369 = vmul.f32 1.0, %v2368
    %v2370 = vrcp.pop %v2346
    %v2371 = vmul.f32 1.0, %v2370
    %v2372 = vrcp.pop %v2347
    %v2373 = vmul.f32 1.0, %v2372
    %v2374 = vrcp.pop %v2348
    %v2375 = vmul.f32 1.0, %v2374
    %v2376 = vrcp.pop %v2349
    %v2377 = vmul.f32 1.0, %v2376
    %v2378 = vrcp.pop %v2350
    %v2379 = vmul.f32 1.0, %v2378
    %v2380 = vrcp.pop %v2351
    %v2381 = vmul.f32 1.0, %v2380
    %v2382 = vrcp.pop %v2352
    %v2383 = vmul.f32 1.0, %v2382
    %v2384 = vrcp.pop %v2353
    %v2385 = vmul.f32 1.0, %v2384
    %2402 = vrot.lane.b32.xlu0 %v2355, 110
    %v2403 = vpop.permute.xlu0 %2402
    %2404 = vrot.lane.b32.xlu0 %v2357, 110
    %v2405 = vpop.permute.xlu0 %2404
    %2406 = vrot.lane.b32.xlu0 %v2359, 110
    %v2407 = vpop.permute.xlu0 %2406
    %2408 = vrot.lane.b32.xlu0 %v2361, 110
    %v2409 = vpop.permute.xlu0 %2408
    %2410 = vrot.lane.b32.xlu0 %v2363, 110
    %v2411 = vpop.permute.xlu0 %2410
    %2412 = vrot.lane.b32.xlu0 %v2365, 110
    %v2413 = vpop.permute.xlu0 %2412
    %2414 = vrot.lane.b32.xlu0 %v2367, 110
    %v2415 = vpop.permute.xlu0 %2414
    %2416 = vrot.lane.b32.xlu0 %v2369, 110
    %v2417 = vpop.permute.xlu0 %2416
    %2418 = vrot.lane.b32.xlu0 %v2371, 110
    %v2419 = vpop.permute.xlu0 %2418
    %2420 = vrot.lane.b32.xlu0 %v2373, 110
    %v2421 = vpop.permute.xlu0 %2420
    %2422 = vrot.lane.b32.xlu0 %v2375, 110
    %v2423 = vpop.permute.xlu0 %2422
    %2424 = vrot.lane.b32.xlu0 %v2377, 110
    %v2425 = vpop.permute.xlu0 %2424
    %2426 = vrot.lane.b32.xlu0 %v2379, 110
    %v2427 = vpop.permute.xlu0 %2426
    %2428 = vrot.lane.b32.xlu0 %v2381, 110
    %v2429 = vpop.permute.xlu0 %2428
    %2430 = vrot.lane.b32.xlu0 %v2383, 110
    %v2431 = vpop.permute.xlu0 %2430
    %2432 = vrot.lane.b32.xlu0 %v2385, 110
    %v2433 = vpop.permute.xlu0 %2432
    %v2450 = vmul.f32 %v2274, %v2403
    %v2451 = vmul.f32 %v2275, %v2405
    %v2452 = vmul.f32 %v2276, %v2407
    %v2453 = vmul.f32 %v2277, %v2409
    %v2454 = vmul.f32 %v2278, %v2411
    %v2455 = vmul.f32 %v2279, %v2413
    %v2456 = vmul.f32 %v2280, %v2415
    %v2457 = vmul.f32 %v2281, %v2417
    %v2458 = vmul.f32 %v2282, %v2419
    %v2459 = vmul.f32 %v2283, %v2421
    %v2460 = vmul.f32 %v2284, %v2423
    %v2461 = vmul.f32 %v2285, %v2425
    %v2462 = vmul.f32 %v2286, %v2427
    %v2463 = vmul.f32 %v2287, %v2429
    %v2464 = vmul.f32 %v2288, %v2431
    %v2465 = vmul.f32 %v2289, %v2433
    %v2466 = vpack.c.bf16 %v2451, %v2450
    %v2467 = vpack.c.bf16 %v2453, %v2452
    %v2468 = vpack.c.bf16 %v2455, %v2454
    %v2469 = vpack.c.bf16 %v2457, %v2456
    %v2470 = vpack.c.bf16 %v2459, %v2458
    %v2471 = vpack.c.bf16 %v2461, %v2460
    %v2472 = vpack.c.bf16 %v2463, %v2462
    %v2473 = vpack.c.bf16 %v2465, %v2464
    %v2474 = vld [vmem:[%s10] sm:$0xff]
    %v2475 = vld [vmem:[%s10 + $0x8] sm:$0xf]
    %v2476 = vld [vmem:[%s10 + $0xc] sm:$0xff]
    %v2477 = vld [vmem:[%s10 + $0x14] sm:$0xf]
    %v2478 = vld [vmem:[%s10 + $0x18] sm:$0x11]
    %v2479 = vld [vmem:[%s10 + $0x20] sm:$0x1]
    %v2480 = vld [vmem:[%s12] sm:$0x7]
    %v2482 = vlaneseq
    %v2483 = vshrl.u32 %v2482, 7
    %v2484 = vsub.s32 0, %v2483
    %v2485 = vrot.slane %v2480, %v2484
    %v2486 = vlaneseq
    %v2487 = vshrl.u32 %v2486, 7
    %v2488 = vsub.s32 1, %v2487
    %v2489 = vrot.slane %v2480, %v2488
    %v2490 = vlaneseq
    %v2491 = vshrl.u32 %v2490, 7
    %v2492 = vsub.s32 2, %v2491
    %v2493 = vrot.slane %v2480, %v2492
    %v2503 = vunpack.c.l.b16 %v2474
    %v2504 = vunpack.c.h.b16 %v2474
    %v2505 = vunpack.c.l.b16 %v2475
    %v2506 = vunpack.c.l.b16 %v2476
    %v2507 = vunpack.c.h.b16 %v2476
    %v2508 = vunpack.c.l.b16 %v2477
    %v2509 = vunpack.c.l.b16 %v2478
    %v2510 = vunpack.c.h.b16 %v2478
    %v2511 = vunpack.c.l.b16 %v2479
    %v2512 = vpack.c.b16 %v2506, %v2503
    %v2513 = vpack.c.b16 %v2507, %v2504
    %v2514 = vpack.c.b16 %v2508, %v2505
    %v2515 = vpack.c.b16 %v2509, %v2509
    %v2516 = vpack.c.b16 %v2510, %v2510
    %v2517 = vpack.c.b16 %v2511, %v2511
    %vm2521 = vcmask 146432
    %v2523 = vsel %vm2521, %v2466, 0
    %v2526 = vsel %vm2521, %v2467, 0
    %v2529 = vsel %vm2521, %v2468, 0
    %v2532 = vsel %vm2521, %v2469, 0
    %v2535 = vsel %vm2521, %v2470, 0
    %v2538 = vsel %vm2521, %v2471, 0
    %v2541 = vsel %vm2521, %v2472, 0
    %v2544 = vsel %vm2521, %v2473, 0
    %vm2546 = vcmask 1040384
    %v2548 = vsel %vm2546, %v2515, 0
    %v2551 = vsel %vm2546, %v2516, 0
    %v2554 = vsel %vm2546, %v2517, 0
    %2556 = vmatprep.subr.bf16.mxu0 %v2513
    %2557 = vmatpush1.bf16.msra.mxu0 %v2512
    %2558 = vmatprep.subr.bf16.mxu0 %v2551
    %2559 = vmatpush1.bf16.msra.mxu0 %v2548
    %2560 = vmatprep.subr.bf16.mxu0 0
    %2561 = vmatpush1.bf16.msra.mxu0 0
    %2562 = vmatprep.subr.bf16.mxu0 0
    %2563 = vmatpush1.bf16.msra.mxu0 0
    %2564 = vmatprep.subr.bf16.mxu0 0
    %2565 = vmatpush1.bf16.msra.mxu0 0
    %2566 = vmatprep.subr.bf16.mxu0 0
    %2567 = vmatpush1.bf16.msra.mxu0 0
    %2568 = vmatprep.subr.bf16.mxu0 0
    %2569 = vmatpush1.bf16.msra.mxu0 0
    %2570 = vmatprep.subr.bf16.mxu0 0
    %2571 = vmatpush1.bf16.msra.mxu0 0
    %2572 = vmatprep.subr.bf16.mxu0 0
    %2573 = vmatpush1.bf16.msra.mxu0 0
    %2574 = vmatprep.subr.bf16.mxu0 0
    %2575 = vmatpush1.bf16.msra.mxu0 0
    %2576 = vmatprep.subr.bf16.mxu0 0
    %2577 = vmatpush1.bf16.msra.mxu0 0
    %2578 = vmatprep.subr.bf16.mxu0 0
    %2579 = vmatpush1.bf16.msra.mxu0 0
    %2580 = vmatprep.subr.bf16.mxu0 0
    %2581 = vmatpush1.bf16.msra.mxu0 0
    %2582 = vmatprep.subr.bf16.mxu0 0
    %2583 = vmatpush1.bf16.msra.mxu0 0
    %2584 = vmatprep.subr.bf16.mxu0 0
    %2585 = vmatpush1.bf16.msra.mxu0 0
    %2586 = vmatprep.subr.bf16.mxu0 0
    %2587 = vmatpush1.bf16.msra.mxu0 0
    %2588 = vmatprep.mubr.bf16.mxu0 0
    %2589 = vmatmul.mubr.bf16.gmra.mrb[0].mxu0 %v2523
    %v2590 = vpop.f32.mrb[0].mxu0
    %v2591 = vadd.f32 %v2485, %v2590
    %v2592 = vpop.f32.mrb[0].mxu0
    %v2593 = vadd.f32 %v2489, %v2592
    %v2594 = vpop.f32.mrb[0].mxu0
    %v2595 = vadd.f32 %v2485, %v2594
    %v2596 = vpop.f32.mrb[0].mxu0
    %v2597 = vadd.f32 %v2489, %v2596
    %2598 = vmatprep.mubr.bf16.mxu0 0
    %2599 = vmatmul.mubr.bf16.gmra.mrb[0].mxu0 %v2526
    %v2600 = vpop.f32.mrb[0].mxu0
    %v2601 = vadd.f32 %v2485, %v2600
    %v2602 = vpop.f32.mrb[0].mxu0
    %v2603 = vadd.f32 %v2489, %v2602
    %v2604 = vpop.f32.mrb[0].mxu0
    %v2605 = vadd.f32 %v2485, %v2604
    %v2606 = vpop.f32.mrb[0].mxu0
    %v2607 = vadd.f32 %v2489, %v2606
    %2608 = vmatprep.mubr.bf16.mxu0 0
    %2609 = vmatmul.mubr.bf16.gmra.mrb[0].mxu0 %v2529
    %v2610 = vpop.f32.mrb[0].mxu0
    %v2611 = vadd.f32 %v2485, %v2610
    %v2612 = vpop.f32.mrb[0].mxu0
    %v2613 = vadd.f32 %v2489, %v2612
    %v2614 = vpop.f32.mrb[0].mxu0
    %v2615 = vadd.f32 %v2485, %v2614
    %v2616 = vpop.f32.mrb[0].mxu0
    %v2617 = vadd.f32 %v2489, %v2616
    %2618 = vmatprep.mubr.bf16.mxu0 0
    %2619 = vmatmul.mubr.bf16.gmra.mrb[0].mxu0 %v2532
    %v2620 = vpop.f32.mrb[0].mxu0
    %v2621 = vadd.f32 %v2485, %v2620
    %v2622 = vpop.f32.mrb[0].mxu0
    %v2623 = vadd.f32 %v2489, %v2622
    %v2624 = vpop.f32.mrb[0].mxu0
    %v2625 = vadd.f32 %v2485, %v2624
    %v2626 = vpop.f32.mrb[0].mxu0
    %v2627 = vadd.f32 %v2489, %v2626
    %2628 = vmatprep.mubr.bf16.mxu0 0
    %2629 = vmatmul.mubr.bf16.gmra.mrb[0].mxu0 %v2535
    %v2630 = vpop.f32.mrb[0].mxu0
    %v2631 = vadd.f32 %v2485, %v2630
    %v2632 = vpop.f32.mrb[0].mxu0
    %v2633 = vadd.f32 %v2489, %v2632
    %v2634 = vpop.f32.mrb[0].mxu0
    %v2635 = vadd.f32 %v2485, %v2634
    %v2636 = vpop.f32.mrb[0].mxu0
    %v2637 = vadd.f32 %v2489, %v2636
    %2638 = vmatprep.mubr.bf16.mxu0 0
    %2639 = vmatmul.mubr.bf16.gmra.mrb[0].mxu0 %v2538
    %v2640 = vpop.f32.mrb[0].mxu0
    %v2641 = vadd.f32 %v2485, %v2640
    %v2642 = vpop.f32.mrb[0].mxu0
    %v2643 = vadd.f32 %v2489, %v2642
    %v2644 = vpop.f32.mrb[0].mxu0
    %v2645 = vadd.f32 %v2485, %v2644
    %v2646 = vpop.f32.mrb[0].mxu0
    %v2647 = vadd.f32 %v2489, %v2646
    %2648 = vmatprep.mubr.bf16.mxu0 0
    %2649 = vmatmul.mubr.bf16.gmra.mrb[0].mxu0 %v2541
    %v2650 = vpop.f32.mrb[0].mxu0
    %v2651 = vadd.f32 %v2485, %v2650
    %v2652 = vpop.f32.mrb[0].mxu0
    %v2653 = vadd.f32 %v2489, %v2652
    %v2654 = vpop.f32.mrb[0].mxu0
    %v2655 = vadd.f32 %v2485, %v2654
    %v2656 = vpop.f32.mrb[0].mxu0
    %v2657 = vadd.f32 %v2489, %v2656
    %2658 = vmatprep.mubr.bf16.mxu0 0
    %2659 = vmatmul.mubr.bf16.gmra.mrb[0].mxu0 %v2544
    %v2660 = vpop.f32.mrb[0].mxu0
    %v2661 = vadd.f32 %v2485, %v2660
    %v2662 = vpop.f32.mrb[0].mxu0
    %v2663 = vadd.f32 %v2489, %v2662
    %v2664 = vpop.f32.mrb[0].mxu0
    %v2665 = vadd.f32 %v2485, %v2664
    %v2666 = vpop.f32.mrb[0].mxu0
    %v2667 = vadd.f32 %v2489, %v2666
    %2668 = vdwg.mxu0
    %2669 = vmatprep.subr.bf16.mxu0 0
    %2670 = vmatpush1.bf16.msra.mxu0 %v2514
    %2671 = vmatprep.subr.bf16.mxu0 0
    %2672 = vmatpush1.bf16.msra.mxu0 %v2554
    %2673 = vmatprep.subr.bf16.mxu0 0
    %2674 = vmatpush1.bf16.msra.mxu0 0
    %2675 = vmatprep.subr.bf16.mxu0 0
    %2676 = vmatpush1.bf16.msra.mxu0 0
    %2677 = vmatprep.subr.bf16.mxu0 0
    %2678 = vmatpush1.bf16.msra.mxu0 0
    %2679 = vmatprep.subr.bf16.mxu0 0
    %2680 = vmatpush1.bf16.msra.mxu0 0
    %2681 = vmatprep.subr.bf16.mxu0 0
    %2682 = vmatpush1.bf16.msra.mxu0 0
    %2683 = vmatprep.subr.bf16.mxu0 0
    %2684 = vmatpush1.bf16.msra.mxu0 0
    %2685 = vmatprep.subr.bf16.mxu0 0
    %2686 = vmatpush1.bf16.msra.mxu0 0
    %2687 = vmatprep.subr.bf16.mxu0 0
    %2688 = vmatpush1.bf16.msra.mxu0 0
    %2689 = vmatprep.subr.bf16.mxu0 0
    %2690 = vmatpush1.bf16.msra.mxu0 0
    %2691 = vmatprep.subr.bf16.mxu0 0
    %2692 = vmatpush1.bf16.msra.mxu0 0
    %2693 = vmatprep.subr.bf16.mxu0 0
    %2694 = vmatpush1.bf16.msra.mxu0 0
    %2695 = vmatprep.subr.bf16.mxu0 0
    %2696 = vmatpush1.bf16.msra.mxu0 0
    %2697 = vmatprep.subr.bf16.mxu0 0
    %2698 = vmatpush1.bf16.msra.mxu0 0
    %2699 = vmatprep.subr.bf16.mxu0 0
    %2700 = vmatpush1.bf16.msra.mxu0 0
    %2701 = vmatprep.mubr.bf16.mxu0 0
    %2702 = vmatmul.mubr.bf16.gmra.mrb[0].mxu0 %v2523
    %v2703 = vpop.f32.mrb[0].mxu0
    %v2704 = vadd.f32 %v2493, %v2703
    %v2705 = vpop.f32.mrb[0].mxu0
    %v2706 = vpop.f32.mrb[0].mxu0
    %v2707 = vadd.f32 %v2493, %v2706
    %v2708 = vpop.f32.mrb[0].mxu0
    %2709 = vmatprep.mubr.bf16.mxu0 0
    %2710 = vmatmul.mubr.bf16.gmra.mrb[0].mxu0 %v2526
    %v2711 = vpop.f32.mrb[0].mxu0
    %v2712 = vadd.f32 %v2493, %v2711
    %v2713 = vpop.f32.mrb[0].mxu0
    %v2714 = vpop.f32.mrb[0].mxu0
    %v2715 = vadd.f32 %v2493, %v2714
    %v2716 = vpop.f32.mrb[0].mxu0
    %2717 = vmatprep.mubr.bf16.mxu0 0
    %2718 = vmatmul.mubr.bf16.gmra.mrb[0].mxu0 %v2529
    %v2719 = vpop.f32.mrb[0].mxu0
    %v2720 = vadd.f32 %v2493, %v2719
    %v2721 = vpop.f32.mrb[0].mxu0
    %v2722 = vpop.f32.mrb[0].mxu0
    %v2723 = vadd.f32 %v2493, %v2722
    %v2724 = vpop.f32.mrb[0].mxu0
    %2725 = vmatprep.mubr.bf16.mxu0 0
    %2726 = vmatmul.mubr.bf16.gmra.mrb[0].mxu0 %v2532
    %v2727 = vpop.f32.mrb[0].mxu0
    %v2728 = vadd.f32 %v2493, %v2727
    %v2729 = vpop.f32.mrb[0].mxu0
    %v2730 = vpop.f32.mrb[0].mxu0
    %v2731 = vadd.f32 %v2493, %v2730
    %v2732 = vpop.f32.mrb[0].mxu0
    %2733 = vmatprep.mubr.bf16.mxu0 0
    %2734 = vmatmul.mubr.bf16.gmra.mrb[0].mxu0 %v2535
    %v2735 = vpop.f32.mrb[0].mxu0
    %v2736 = vadd.f32 %v2493, %v2735
    %v2737 = vpop.f32.mrb[0].mxu0
    %v2738 = vpop.f32.mrb[0].mxu0
    %v2739 = vadd.f32 %v2493, %v2738
    %v2740 = vpop.f32.mrb[0].mxu0
    %2741 = vmatprep.mubr.bf16.mxu0 0
    %2742 = vmatmul.mubr.bf16.gmra.mrb[0].mxu0 %v2538
    %v2743 = vpop.f32.mrb[0].mxu0
    %v2744 = vadd.f32 %v2493, %v2743
    %v2745 = vpop.f32.mrb[0].mxu0
    %v2746 = vpop.f32.mrb[0].mxu0
    %v2747 = vadd.f32 %v2493, %v2746
    %v2748 = vpop.f32.mrb[0].mxu0
    %2749 = vmatprep.mubr.bf16.mxu0 0
    %2750 = vmatmul.mubr.bf16.gmra.mrb[0].mxu0 %v2541
    %v2751 = vpop.f32.mrb[0].mxu0
    %v2752 = vadd.f32 %v2493, %v2751
    %v2753 = vpop.f32.mrb[0].mxu0
    %v2754 = vpop.f32.mrb[0].mxu0
    %v2755 = vadd.f32 %v2493, %v2754
    %v2756 = vpop.f32.mrb[0].mxu0
    %2757 = vmatprep.mubr.bf16.mxu0 0
    %2758 = vmatmul.mubr.bf16.gmra.mrb[0].mxu0 %v2544
    %v2759 = vpop.f32.mrb[0].mxu0
    %v2760 = vadd.f32 %v2493, %v2759
    %v2761 = vpop.f32.mrb[0].mxu0
    %v2762 = vpop.f32.mrb[0].mxu0
    %v2763 = vadd.f32 %v2493, %v2762
    %v2764 = vpop.f32.mrb[0].mxu0
    %2765 = vdwg.mxu0
    %v2766 = vld [vmem:[%s11] sm:$0xff]
    %v2767 = vld [vmem:[%s11 + $0x8] sm:$0xf]
    %v2768 = vld [vmem:[%s11 + $0xc] sm:$0xff]
    %v2769 = vld [vmem:[%s11 + $0x14] sm:$0xf]
    %v2770 = vld [vmem:[%s11 + $0x18] sm:$0xff]
    %v2771 = vld [vmem:[%s11 + $0x20] sm:$0xf]
    %v2772 = vld [vmem:[%s11 + $0x24] sm:$0xff]
    %v2773 = vld [vmem:[%s11 + $0x2c] sm:$0xf]
    %v2774 = vld [vmem:[%s11 + $0x30] sm:$0xff]
    %v2775 = vld [vmem:[%s11 + $0x38] sm:$0xf]
    %v2776 = vld [vmem:[%s11 + $0x3c] sm:$0xff]
    %v2777 = vld [vmem:[%s11 + $0x44] sm:$0xf]
    %v2778 = vld [vmem:[%s11 + $0x48] sm:$0xff]
    %v2779 = vld [vmem:[%s11 + $0x50] sm:$0xf]
    %v2780 = vld [vmem:[%s11 + $0x54] sm:$0xff]
    %v2781 = vld [vmem:[%s11 + $0x5c] sm:$0xf]
    %v2782 = vld [vmem:[%s11 + $0x60] sm:$0xff]
    %v2783 = vld [vmem:[%s11 + $0x68] sm:$0xf]
    %v2784 = vld [vmem:[%s11 + $0x6c] sm:$0xff]
    %v2785 = vld [vmem:[%s11 + $0x74] sm:$0xf]
    %v2786 = vld [vmem:[%s11 + $0x78] sm:$0xff]
    %v2787 = vld [vmem:[%s11 + $0x80] sm:$0xf]
    %v2788 = vld [vmem:[%s11 + $0x84] sm:$0xff]
    %v2789 = vld [vmem:[%s11 + $0x8c] sm:$0xf]
    %v2790 = vld [vmem:[%s11 + $0x90] sm:$0xff]
    %v2791 = vld [vmem:[%s11 + $0x98] sm:$0xf]
    %v2792 = vld [vmem:[%s11 + $0x9c] sm:$0xff]
    %v2793 = vld [vmem:[%s11 + $0xa4] sm:$0xf]
    %v2794 = vld [vmem:[%s11 + $0xa8] sm:$0xff]
    %v2795 = vld [vmem:[%s11 + $0xb0] sm:$0xf]
    %v2796 = vld [vmem:[%s11 + $0xb4] sm:$0xff]
    %v2797 = vld [vmem:[%s11 + $0xbc] sm:$0xf]
    %v2798 = vld [vmem:[%s13] sm:$0x7]
    %v2799 = vld [vmem:[%s14] sm:$0xff]
    %v2800 = vld [vmem:[%s14 + $0x8] sm:$0xf]
    %v2801 = vld [vmem:[%s14 + $0xc] sm:$0xff]
    %v2802 = vld [vmem:[%s14 + $0x14] sm:$0xf]
    %v2803 = vld [vmem:[%s14 + $0x18] sm:$0xff]
    %v2804 = vld [vmem:[%s14 + $0x20] sm:$0xf]
    %v2805 = vld [vmem:[%s14 + $0x24] sm:$0xff]
    %v2806 = vld [vmem:[%s14 + $0x2c] sm:$0xf]
    %v2807 = vld [vmem:[%s14 + $0x30] sm:$0xff]
    %v2808 = vld [vmem:[%s14 + $0x38] sm:$0xf]
    %v2809 = vld [vmem:[%s14 + $0x3c] sm:$0xff]
    %v2810 = vld [vmem:[%s14 + $0x44] sm:$0xf]
    %v2811 = vld [vmem:[%s14 + $0x48] sm:$0xff]
    %v2812 = vld [vmem:[%s14 + $0x50] sm:$0xf]
    %v2813 = vld [vmem:[%s14 + $0x54] sm:$0xff]
    %v2814 = vld [vmem:[%s14 + $0x5c] sm:$0xf]
    %v2815 = vld [vmem:[%s14 + $0x60] sm:$0xff]
    %v2816 = vld [vmem:[%s14 + $0x68] sm:$0xf]
    %v2817 = vld [vmem:[%s14 + $0x6c] sm:$0xff]
    %v2818 = vld [vmem:[%s14 + $0x74] sm:$0xf]
    %v2819 = vld [vmem:[%s14 + $0x78] sm:$0xff]
    %v2820 = vld [vmem:[%s14 + $0x80] sm:$0xf]
    %v2821 = vld [vmem:[%s14 + $0x84] sm:$0xff]
    %v2822 = vld [vmem:[%s14 + $0x8c] sm:$0xf]
    %v2823 = vld [vmem:[%s14 + $0x90] sm:$0xff]
    %v2824 = vld [vmem:[%s14 + $0x98] sm:$0xf]
    %v2825 = vld [vmem:[%s14 + $0x9c] sm:$0xff]
    %v2826 = vld [vmem:[%s14 + $0xa4] sm:$0xf]
    %v2827 = vld [vmem:[%s14 + $0xa8] sm:$0xff]
    %v2828 = vld [vmem:[%s14 + $0xb0] sm:$0xf]
    %v2829 = vld [vmem:[%s14 + $0xb4] sm:$0xff]
    %v2830 = vld [vmem:[%s14 + $0xbc] sm:$0xf]
    %v2831 = vld [vmem:[%s16] sm:$0x7]
    %v2832 = vld [vmem:[#allocation10] sm:$0xff]
    %v2833 = vld [vmem:[#allocation10 + $0x8] sm:$0xf]
    %v2834 = vld [vmem:[#allocation10 + $0xc] sm:$0xff]
    %v2835 = vld [vmem:[#allocation10 + $0x14] sm:$0xf]
    %v2836 = vld [vmem:[#allocation10 + $0x18] sm:$0xff]
    %v2837 = vld [vmem:[#allocation10 + $0x20] sm:$0xf]
    %v2838 = vld [vmem:[#allocation10 + $0x24] sm:$0xff]
    %v2839 = vld [vmem:[#allocation10 + $0x2c] sm:$0xf]
    %v2840 = vld [vmem:[#allocation10 + $0x30] sm:$0xff]
    %v2841 = vld [vmem:[#allocation10 + $0x38] sm:$0xf]
    %v2842 = vld [vmem:[#allocation10 + $0x3c] sm:$0xff]
    %v2843 = vld [vmem:[#allocation10 + $0x44] sm:$0xf]
    %v2844 = vld [vmem:[#allocation10 + $0x48] sm:$0xff]
    %v2845 = vld [vmem:[#allocation10 + $0x50] sm:$0xf]
    %v2846 = vld [vmem:[#allocation10 + $0x54] sm:$0xff]
    %v2847 = vld [vmem:[#allocation10 + $0x5c] sm:$0xf]
    %v2848 = vld [vmem:[#allocation10 + $0x60] sm:$0xff]
    %v2849 = vld [vmem:[#allocation10 + $0x68] sm:$0xf]
    %v2850 = vld [vmem:[#allocation10 + $0x6c] sm:$0xff]
    %v2851 = vld [vmem:[#allocation10 + $0x74] sm:$0xf]
    %v2852 = vld [vmem:[#allocation10 + $0x78] sm:$0xff]
    %v2853 = vld [vmem:[#allocation10 + $0x80] sm:$0xf]
    %v2854 = vld [vmem:[#allocation10 + $0x84] sm:$0xff]
    %v2855 = vld [vmem:[#allocation10 + $0x8c] sm:$0xf]
    %v2856 = vld [vmem:[#allocation10 + $0x90] sm:$0xff]
    %v2857 = vld [vmem:[#allocation10 + $0x98] sm:$0xf]
    %v2858 = vld [vmem:[#allocation10 + $0x9c] sm:$0xff]
    %v2859 = vld [vmem:[#allocation10 + $0xa4] sm:$0xf]
    %v2860 = vld [vmem:[#allocation10 + $0xa8] sm:$0xff]
    %v2861 = vld [vmem:[#allocation10 + $0xb0] sm:$0xf]
    %v2862 = vld [vmem:[#allocation10 + $0xb4] sm:$0xff]
    %v2863 = vld [vmem:[#allocation10 + $0xbc] sm:$0xf]
    %v2864 = vld [vmem:[#allocation12] sm:$0x7]
    %v2866 = vlaneseq
    %v2867 = vshrl.u32 %v2866, 7
    %v2868 = vsub.s32 0, %v2867
    %v2869 = vrot.slane %v2798, %v2868
    %v2870 = vlaneseq
    %v2871 = vshrl.u32 %v2870, 7
    %v2872 = vsub.s32 1, %v2871
    %v2873 = vrot.slane %v2798, %v2872
    %v2874 = vlaneseq
    %v2875 = vshrl.u32 %v2874, 7
    %v2876 = vsub.s32 2, %v2875
    %v2877 = vrot.slane %v2798, %v2876
    %v2913 = vunpack.c.l.b16 %v2766
    %v2914 = vunpack.c.h.b16 %v2766
    %v2915 = vunpack.c.l.b16 %v2767
    %v2916 = vunpack.c.l.b16 %v2768
    %v2917 = vunpack.c.h.b16 %v2768
    %v2918 = vunpack.c.l.b16 %v2769
    %v2919 = vunpack.c.l.b16 %v2770
    %v2920 = vunpack.c.h.b16 %v2770
    %v2921 = vunpack.c.l.b16 %v2771
    %v2922 = vunpack.c.l.b16 %v2772
    %v2923 = vunpack.c.h.b16 %v2772
    %v2924 = vunpack.c.l.b16 %v2773
    %v2925 = vunpack.c.l.b16 %v2774
    %v2926 = vunpack.c.h.b16 %v2774
    %v2927 = vunpack.c.l.b16 %v2775
    %v2928 = vunpack.c.l.b16 %v2776
    %v2929 = vunpack.c.h.b16 %v2776
    %v2930 = vunpack.c.l.b16 %v2777
    %v2931 = vunpack.c.l.b16 %v2778
    %v2932 = vunpack.c.h.b16 %v2778
    %v2933 = vunpack.c.l.b16 %v2779
    %v2934 = vunpack.c.l.b16 %v2780
    %v2935 = vunpack.c.h.b16 %v2780
    %v2936 = vunpack.c.l.b16 %v2781
    %v2937 = vunpack.c.l.b16 %v2782
    %v2938 = vunpack.c.h.b16 %v2782
    %v2939 = vunpack.c.l.b16 %v2783
    %v2940 = vunpack.c.l.b16 %v2784
    %v2941 = vunpack.c.h.b16 %v2784
    %v2942 = vunpack.c.l.b16 %v2785
    %v2943 = vunpack.c.l.b16 %v2786
    %v2944 = vunpack.c.h.b16 %v2786
    %v2945 = vunpack.c.l.b16 %v2787
    %v2946 = vunpack.c.l.b16 %v2788
    %v2947 = vunpack.c.h.b16 %v2788
    %v2948 = vunpack.c.l.b16 %v2789
    %v2949 = vunpack.c.l.b16 %v2790
    %v2950 = vunpack.c.h.b16 %v2790
    %v2951 = vunpack.c.l.b16 %v2791
    %v2952 = vunpack.c.l.b16 %v2792
    %v2953 = vunpack.c.h.b16 %v2792
    %v2954 = vunpack.c.l.b16 %v2793
    %v2955 = vunpack.c.l.b16 %v2794
    %v2956 = vunpack.c.h.b16 %v2794
    %v2957 = vunpack.c.l.b16 %v2795
    %v2958 = vunpack.c.l.b16 %v2796
    %v2959 = vunpack.c.h.b16 %v2796
    %v2960 = vunpack.c.l.b16 %v2797
    %v2961 = vpack.c.b16 %v2916, %v2913
    %v2962 = vpack.c.b16 %v2917, %v2914
    %v2963 = vpack.c.b16 %v2918, %v2915
    %v2964 = vpack.c.b16 %v2922, %v2919
    %v2965 = vpack.c.b16 %v2923, %v2920
    %v2966 = vpack.c.b16 %v2924, %v2921
    %v2967 = vpack.c.b16 %v2928, %v2925
    %v2968 = vpack.c.b16 %v2929, %v2926
    %v2969 = vpack.c.b16 %v2930, %v2927
    %v2970 = vpack.c.b16 %v2934, %v2931
    %v2971 = vpack.c.b16 %v2935, %v2932
    %v2972 = vpack.c.b16 %v2936, %v2933
    %v2973 = vpack.c.b16 %v2940, %v2937
    %v2974 = vpack.c.b16 %v2941, %v2938
    %v2975 = vpack.c.b16 %v2942, %v2939
    %v2976 = vpack.c.b16 %v2946, %v2943
    %v2977 = vpack.c.b16 %v2947, %v2944
    %v2978 = vpack.c.b16 %v2948, %v2945
    %v2979 = vpack.c.b16 %v2952, %v2949
    %v2980 = vpack.c.b16 %v2953, %v2950
    %v2981 = vpack.c.b16 %v2954, %v2951
    %v2982 = vpack.c.b16 %v2958, %v2955
    %v2983 = vpack.c.b16 %v2959, %v2956
    %v2984 = vpack.c.b16 %v2960, %v2957
    %3009 = vmatprep.subr.bf16.mxu0 %v2962
    %3010 = vmatpush1.bf16.msra.mxu0 %v2961
    %3011 = vmatprep.subr.bf16.mxu0 %v2965
    %3012 = vmatpush1.bf16.msra.mxu0 %v2964
    %3013 = vmatprep.subr.bf16.mxu0 %v2968
    %3014 = vmatpush1.bf16.msra.mxu0 %v2967
    %3015 = vmatprep.subr.bf16.mxu0 %v2971
    %3016 = vmatpush1.bf16.msra.mxu0 %v2970
    %3017 = vmatprep.subr.bf16.mxu0 %v2974
    %3018 = vmatpush1.bf16.msra.mxu0 %v2973
    %3019 = vmatprep.subr.bf16.mxu0 %v2977
    %3020 = vmatpush1.bf16.msra.mxu0 %v2976
    %3021 = vmatprep.subr.bf16.mxu0 %v2980
    %3022 = vmatpush1.bf16.msra.mxu0 %v2979
    %3023 = vmatprep.subr.bf16.mxu0 %v2983
    %3024 = vmatpush1.bf16.msra.mxu0 %v2982
    %3025 = vmatprep.subr.bf16.mxu0 0
    %3026 = vmatpush1.bf16.msra.mxu0 0
    %3027 = vmatprep.subr.bf16.mxu0 0
    %3028 = vmatpush1.bf16.msra.mxu0 0
    %3029 = vmatprep.subr.bf16.mxu0 0
    %3030 = vmatpush1.bf16.msra.mxu0 0
    %3031 = vmatprep.subr.bf16.mxu0 0
    %3032 = vmatpush1.bf16.msra.mxu0 0
    %3033 = vmatprep.subr.bf16.mxu0 0
    %3034 = vmatpush1.bf16.msra.mxu0 0
    %3035 = vmatprep.subr.bf16.mxu0 0
    %3036 = vmatpush1.bf16.msra.mxu0 0
    %3037 = vmatprep.subr.bf16.mxu0 0
    %3038 = vmatpush1.bf16.msra.mxu0 0
    %3039 = vmatprep.subr.bf16.mxu0 0
    %3040 = vmatpush1.bf16.msra.mxu0 0
    %3041 = vmatprep.mubr.bf16.mxu0 0
    %3042 = vmatmul.mubr.bf16.gmra.mrb[0].mxu0 0
    %v3043 = vpop.f32.mrb[0].mxu0
    %v3044 = vadd.f32 %v2869, %v3043
    %v3045 = vpop.f32.mrb[0].mxu0
    %v3046 = vadd.f32 %v2873, %v3045
    %v3047 = vpop.f32.mrb[0].mxu0
    %v3048 = vpop.f32.mrb[0].mxu0
    %3049 = vdwg.mxu0
    %3050 = vmatprep.subr.bf16.mxu0 0
    %3051 = vmatpush1.bf16.msra.mxu0 %v2963
    %3052 = vmatprep.subr.bf16.mxu0 0
    %3053 = vmatpush1.bf16.msra.mxu0 %v2966
    %3054 = vmatprep.subr.bf16.mxu0 0
    %3055 = vmatpush1.bf16.msra.mxu0 %v2969
    %3056 = vmatprep.subr.bf16.mxu0 0
    %3057 = vmatpush1.bf16.msra.mxu0 %v2972
    %3058 = vmatprep.subr.bf16.mxu0 0
    %3059 = vmatpush1.bf16.msra.mxu0 %v2975
    %3060 = vmatprep.subr.bf16.mxu0 0
    %3061 = vmatpush1.bf16.msra.mxu0 %v2978
    %3062 = vmatprep.subr.bf16.mxu0 0
    %3063 = vmatpush1.bf16.msra.mxu0 %v2981
    %3064 = vmatprep.subr.bf16.mxu0 0
    %3065 = vmatpush1.bf16.msra.mxu0 %v2984
    %3066 = vmatprep.subr.bf16.mxu0 0
    %3067 = vmatpush1.bf16.msra.mxu0 0
    %3068 = vmatprep.subr.bf16.mxu0 0
    %3069 = vmatpush1.bf16.msra.mxu0 0
    %3070 = vmatprep.subr.bf16.mxu0 0
    %3071 = vmatpush1.bf16.msra.mxu0 0
    %3072 = vmatprep.subr.bf16.mxu0 0
    %3073 = vmatpush1.bf16.msra.mxu0 0
    %3074 = vmatprep.subr.bf16.mxu0 0
    %3075 = vmatpush1.bf16.msra.mxu0 0
    %3076 = vmatprep.subr.bf16.mxu0 0
    %3077 = vmatpush1.bf16.msra.mxu0 0
    %3078 = vmatprep.subr.bf16.mxu0 0
    %3079 = vmatpush1.bf16.msra.mxu0 0
    %3080 = vmatprep.subr.bf16.mxu0 0
    %3081 = vmatpush1.bf16.msra.mxu0 0
    %3082 = vmatprep.mubr.bf16.mxu0 0
    %3083 = vmatmul.mubr.bf16.gmra.mrb[0].mxu0 0
    %v3084 = vpop.f32.mrb[0].mxu0
    %v3085 = vadd.f32 %v2877, %v3084
    %v3086 = vpop.f32.mrb[0].mxu0
    %v3087 = vpop.f32.mrb[0].mxu0
    %v3088 = vpop.f32.mrb[0].mxu0
    %3089 = vdwg.mxu0
    %v3090 = vadd.f32 %v2591, %v3044
    %v3091 = vxor.u32 %v3090, 2147483648
    %v3092 = vmul.f32 %v3091, 1.442695
    %v3093 = vpow.pop %v3092
    %v3094 = vadd.f32 %v3093, 1.0
    %v3095 = vrcp.pop %v3094
    %v3096 = vmul.f32 1.0, %v3095
    %v3097 = vadd.f32 %v2593, %v3046
    %v3098 = vxor.u32 %v3097, 2147483648
    %v3099 = vmul.f32 %v3098, 1.442695
    %v3100 = vpow.pop %v3099
    %v3101 = vadd.f32 %v3100, 1.0
    %v3102 = vrcp.pop %v3101
    %v3103 = vmul.f32 1.0, %v3102
    %v3104 = vmul.f32 %v3096, %v3085
    %v3105 = vadd.f32 %v2704, %v3104
    %v3106 = vtanh.pop %v3105
    %v3107 = vsub.f32 1.0, %v3103
    %v3108 = vmul.f32 %v3107, %v3106
    %v3109 = vmul.f32 %v3103, 0.0
    %v3110 = vadd.f32 %v3108, %v3109
    %v3111 = vpack.c.bf16 %v3110, %v3110
    %v3113 = vlaneseq
    %v3114 = vshrl.u32 %v3113, 7
    %v3115 = vsub.s32 0, %v3114
    %v3116 = vrot.slane %v2831, %v3115
    %v3117 = vlaneseq
    %v3118 = vshrl.u32 %v3117, 7
    %v3119 = vsub.s32 1, %v3118
    %v3120 = vrot.slane %v2831, %v3119
    %v3121 = vlaneseq
    %v3122 = vshrl.u32 %v3121, 7
    %v3123 = vsub.s32 2, %v3122
    %v3124 = vrot.slane %v2831, %v3123
    %v3160 = vunpack.c.l.b16 %v2799
    %v3161 = vunpack.c.h.b16 %v2799
    %v3162 = vunpack.c.l.b16 %v2800
    %v3163 = vunpack.c.l.b16 %v2801
    %v3164 = vunpack.c.h.b16 %v2801
    %v3165 = vunpack.c.l.b16 %v2802
    %v3166 = vunpack.c.l.b16 %v2803
    %v3167 = vunpack.c.h.b16 %v2803
    %v3168 = vunpack.c.l.b16 %v2804
    %v3169 = vunpack.c.l.b16 %v2805
    %v3170 = vunpack.c.h.b16 %v2805
    %v3171 = vunpack.c.l.b16 %v2806
    %v3172 = vunpack.c.l.b16 %v2807
    %v3173 = vunpack.c.h.b16 %v2807
    %v3174 = vunpack.c.l.b16 %v2808
    %v3175 = vunpack.c.l.b16 %v2809
    %v3176 = vunpack.c.h.b16 %v2809
    %v3177 = vunpack.c.l.b16 %v2810
    %v3178 = vunpack.c.l.b16 %v2811
    %v3179 = vunpack.c.h.b16 %v2811
    %v3180 = vunpack.c.l.b16 %v2812
    %v3181 = vunpack.c.l.b16 %v2813
    %v3182 = vunpack.c.h.b16 %v2813
    %v3183 = vunpack.c.l.b16 %v2814
    %v3184 = vunpack.c.l.b16 %v2815
    %v3185 = vunpack.c.h.b16 %v2815
    %v3186 = vunpack.c.l.b16 %v2816
    %v3187 = vunpack.c.l.b16 %v2817
    %v3188 = vunpack.c.h.b16 %v2817
    %v3189 = vunpack.c.l.b16 %v2818
    %v3190 = vunpack.c.l.b16 %v2819
    %v3191 = vunpack.c.h.b16 %v2819
    %v3192 = vunpack.c.l.b16 %v2820
    %v3193 = vunpack.c.l.b16 %v2821
    %v3194 = vunpack.c.h.b16 %v2821
    %v3195 = vunpack.c.l.b16 %v2822
    %v3196 = vunpack.c.l.b16 %v2823
    %v3197 = vunpack.c.h.b16 %v2823
    %v3198 = vunpack.c.l.b16 %v2824
    %v3199 = vunpack.c.l.b16 %v2825
    %v3200 = vunpack.c.h.b16 %v2825
    %v3201 = vunpack.c.l.b16 %v2826
    %v3202 = vunpack.c.l.b16 %v2827
    %v3203 = vunpack.c.h.b16 %v2827
    %v3204 = vunpack.c.l.b16 %v2828
    %v3205 = vunpack.c.l.b16 %v2829
    %v3206 = vunpack.c.h.b16 %v2829
    %v3207 = vunpack.c.l.b16 %v2830
    %v3208 = vpack.c.b16 %v3163, %v3160
    %v3209 = vpack.c.b16 %v3164, %v3161
    %v3210 = vpack.c.b16 %v3165, %v3162
    %v3211 = vpack.c.b16 %v3169, %v3166
    %v3212 = vpack.c.b16 %v3170, %v3167
    %v3213 = vpack.c.b16 %v3171, %v3168
    %v3214 = vpack.c.b16 %v3175, %v3172
    %v3215 = vpack.c.b16 %v3176, %v3173
    %v3216 = vpack.c.b16 %v3177, %v3174
    %v3217 = vpack.c.b16 %v3181, %v3178
    %v3218 = vpack.c.b16 %v3182, %v3179
    %v3219 = vpack.c.b16 %v3183, %v3180
    %v3220 = vpack.c.b16 %v3187, %v3184
    %v3221 = vpack.c.b16 %v3188, %v3185
    %v3222 = vpack.c.b16 %v3189, %v3186
    %v3223 = vpack.c.b16 %v3193, %v3190
    %v3224 = vpack.c.b16 %v3194, %v3191
    %v3225 = vpack.c.b16 %v3195, %v3192
    %v3226 = vpack.c.b16 %v3199, %v3196
    %v3227 = vpack.c.b16 %v3200, %v3197
    %v3228 = vpack.c.b16 %v3201, %v3198
    %v3229 = vpack.c.b16 %v3205, %v3202
    %v3230 = vpack.c.b16 %v3206, %v3203
    %v3231 = vpack.c.b16 %v3207, %v3204
    %3256 = vmatprep.subr.bf16.mxu0 %v3209
    %3257 = vmatpush1.bf16.msra.mxu0 %v3208
    %3258 = vmatprep.subr.bf16.mxu0 %v3212
    %3259 = vmatpush1.bf16.msra.mxu0 %v3211
    %3260 = vmatprep.subr.bf16.mxu0 %v3215
    %3261 = vmatpush1.bf16.msra.mxu0 %v3214
    %3262 = vmatprep.subr.bf16.mxu0 %v3218
    %3263 = vmatpush1.bf16.msra.mxu0 %v3217
    %3264 = vmatprep.subr.bf16.mxu0 %v3221
    %3265 = vmatpush1.bf16.msra.mxu0 %v3220
    %3266 = vmatprep.subr.bf16.mxu0 %v3224
    %3267 = vmatpush1.bf16.msra.mxu0 %v3223
    %3268 = vmatprep.subr.bf16.mxu0 %v3227
    %3269 = vmatpush1.bf16.msra.mxu0 %v3226
    %3270 = vmatprep.subr.bf16.mxu0 %v3230
    %3271 = vmatpush1.bf16.msra.mxu0 %v3229
    %3272 = vmatprep.subr.bf16.mxu0 0
    %3273 = vmatpush1.bf16.msra.mxu0 0
    %3274 = vmatprep.subr.bf16.mxu0 0
    %3275 = vmatpush1.bf16.msra.mxu0 0
    %3276 = vmatprep.subr.bf16.mxu0 0
    %3277 = vmatpush1.bf16.msra.mxu0 0
    %3278 = vmatprep.subr.bf16.mxu0 0
    %3279 = vmatpush1.bf16.msra.mxu0 0
    %3280 = vmatprep.subr.bf16.mxu0 0
    %3281 = vmatpush1.bf16.msra.mxu0 0
    %3282 = vmatprep.subr.bf16.mxu0 0
    %3283 = vmatpush1.bf16.msra.mxu0 0
    %3284 = vmatprep.subr.bf16.mxu0 0
    %3285 = vmatpush1.bf16.msra.mxu0 0
    %3286 = vmatprep.subr.bf16.mxu0 0
    %3287 = vmatpush1.bf16.msra.mxu0 0
    %3288 = vmatprep.mubr.bf16.mxu0 0
    %3289 = vmatmul.mubr.bf16.gmra.mrb[0].mxu0 %v3111
    %v3290 = vpop.f32.mrb[0].mxu0
    %v3291 = vadd.f32 %v3116, %v3290
    %v3292 = vpop.f32.mrb[0].mxu0
    %v3293 = vadd.f32 %v3120, %v3292
    %v3294 = vpop.f32.mrb[0].mxu0
    %v3295 = vpop.f32.mrb[0].mxu0
    %3296 = vdwg.mxu0
    %3297 = vmatprep.subr.bf16.mxu0 0
    %3298 = vmatpush1.bf16.msra.mxu0 %v3210
    %3299 = vmatprep.subr.bf16.mxu0 0
    %3300 = vmatpush1.bf16.msra.mxu0 %v3213
    %3301 = vmatprep.subr.bf16.mxu0 0
    %3302 = vmatpush1.bf16.msra.mxu0 %v3216
    %3303 = vmatprep.subr.bf16.mxu0 0
    %3304 = vmatpush1.bf16.msra.mxu0 %v3219
    %3305 = vmatprep.subr.bf16.mxu0 0
    %3306 = vmatpush1.bf16.msra.mxu0 %v3222
    %3307 = vmatprep.subr.bf16.mxu0 0
    %3308 = vmatpush1.bf16.msra.mxu0 %v3225
    %3309 = vmatprep.subr.bf16.mxu0 0
    %3310 = vmatpush1.bf16.msra.mxu0 %v3228
    %3311 = vmatprep.subr.bf16.mxu0 0
    %3312 = vmatpush1.bf16.msra.mxu0 %v3231
    %3313 = vmatprep.subr.bf16.mxu0 0
    %3314 = vmatpush1.bf16.msra.mxu0 0
    %3315 = vmatprep.subr.bf16.mxu0 0
    %3316 = vmatpush1.bf16.msra.mxu0 0
    %3317 = vmatprep.subr.bf16.mxu0 0
    %3318 = vmatpush1.bf16.msra.mxu0 0
    %3319 = vmatprep.subr.bf16.mxu0 0
    %3320 = vmatpush1.bf16.msra.mxu0 0
    %3321 = vmatprep.subr.bf16.mxu0 0
    %3322 = vmatpush1.bf16.msra.mxu0 0
    %3323 = vmatprep.subr.bf16.mxu0 0
    %3324 = vmatpush1.bf16.msra.mxu0 0
    %3325 = vmatprep.subr.bf16.mxu0 0
    %3326 = vmatpush1.bf16.msra.mxu0 0
    %3327 = vmatprep.subr.bf16.mxu0 0
    %3328 = vmatpush1.bf16.msra.mxu0 0
    %3329 = vmatprep.mubr.bf16.mxu0 0
    %3330 = vmatmul.mubr.bf16.gmra.mrb[0].mxu0 %v3111
    %v3331 = vpop.f32.mrb[0].mxu0
    %v3332 = vadd.f32 %v3124, %v3331
    %v3333 = vpop.f32.mrb[0].mxu0
    %v3334 = vpop.f32.mrb[0].mxu0
    %v3335 = vpop.f32.mrb[0].mxu0
    %3336 = vdwg.mxu0
    %v3338 = vlaneseq
    %v3339 = vshrl.u32 %v3338, 7
    %v3340 = vsub.s32 0, %v3339
    %v3341 = vrot.slane %v2864, %v3340
    %v3342 = vlaneseq
    %v3343 = vshrl.u32 %v3342, 7
    %v3344 = vsub.s32 1, %v3343
    %v3345 = vrot.slane %v2864, %v3344
    %v3346 = vlaneseq
    %v3347 = vshrl.u32 %v3346, 7
    %v3348 = vsub.s32 2, %v3347
    %v3349 = vrot.slane %v2864, %v3348
    %v3385 = vunpack.c.l.b16 %v2832
    %v3386 = vunpack.c.h.b16 %v2832
    %v3387 = vunpack.c.l.b16 %v2833
    %v3388 = vunpack.c.l.b16 %v2834
    %v3389 = vunpack.c.h.b16 %v2834
    %v3390 = vunpack.c.l.b16 %v2835
    %v3391 = vunpack.c.l.b16 %v2836
    %v3392 = vunpack.c.h.b16 %v2836
    %v3393 = vunpack.c.l.b16 %v2837
    %v3394 = vunpack.c.l.b16 %v2838
    %v3395 = vunpack.c.h.b16 %v2838
    %v3396 = vunpack.c.l.b16 %v2839
    %v3397 = vunpack.c.l.b16 %v2840
    %v3398 = vunpack.c.h.b16 %v2840
    %v3399 = vunpack.c.l.b16 %v2841
    %v3400 = vunpack.c.l.b16 %v2842
    %v3401 = vunpack.c.h.b16 %v2842
    %v3402 = vunpack.c.l.b16 %v2843
    %v3403 = vunpack.c.l.b16 %v2844
    %v3404 = vunpack.c.h.b16 %v2844
    %v3405 = vunpack.c.l.b16 %v2845
    %v3406 = vunpack.c.l.b16 %v2846
    %v3407 = vunpack.c.h.b16 %v2846
    %v3408 = vunpack.c.l.b16 %v2847
    %v3409 = vunpack.c.l.b16 %v2848
    %v3410 = vunpack.c.h.b16 %v2848
    %v3411 = vunpack.c.l.b16 %v2849
    %v3412 = vunpack.c.l.b16 %v2850
    %v3413 = vunpack.c.h.b16 %v2850
    %v3414 = vunpack.c.l.b16 %v2851
    %v3415 = vunpack.c.l.b16 %v2852
    %v3416 = vunpack.c.h.b16 %v2852
    %v3417 = vunpack.c.l.b16 %v2853
    %v3418 = vunpack.c.l.b16 %v2854
    %v3419 = vunpack.c.h.b16 %v2854
    %v3420 = vunpack.c.l.b16 %v2855
    %v3421 = vunpack.c.l.b16 %v2856
    %v3422 = vunpack.c.h.b16 %v2856
    %v3423 = vunpack.c.l.b16 %v2857
    %v3424 = vunpack.c.l.b16 %v2858
    %v3425 = vunpack.c.h.b16 %v2858
    %v3426 = vunpack.c.l.b16 %v2859
    %v3427 = vunpack.c.l.b16 %v2860
    %v3428 = vunpack.c.h.b16 %v2860
    %v3429 = vunpack.c.l.b16 %v2861
    %v3430 = vunpack.c.l.b16 %v2862
    %v3431 = vunpack.c.h.b16 %v2862
    %v3432 = vunpack.c.l.b16 %v2863
    %v3433 = vpack.c.b16 %v3388, %v3385
    %v3434 = vpack.c.b16 %v3389, %v3386
    %v3435 = vpack.c.b16 %v3390, %v3387
    %v3436 = vpack.c.b16 %v3394, %v3391
    %v3437 = vpack.c.b16 %v3395, %v3392
    %v3438 = vpack.c.b16 %v3396, %v3393
    %v3439 = vpack.c.b16 %v3400, %v3397
    %v3440 = vpack.c.b16 %v3401, %v3398
    %v3441 = vpack.c.b16 %v3402, %v3399
    %v3442 = vpack.c.b16 %v3406, %v3403
    %v3443 = vpack.c.b16 %v3407, %v3404
    %v3444 = vpack.c.b16 %v3408, %v3405
    %v3445 = vpack.c.b16 %v3412, %v3409
    %v3446 = vpack.c.b16 %v3413, %v3410
    %v3447 = vpack.c.b16 %v3414, %v3411
    %v3448 = vpack.c.b16 %v3418, %v3415
    %v3449 = vpack.c.b16 %v3419, %v3416
    %v3450 = vpack.c.b16 %v3420, %v3417
    %v3451 = vpack.c.b16 %v3424, %v3421
    %v3452 = vpack.c.b16 %v3425, %v3422
    %v3453 = vpack.c.b16 %v3426, %v3423
    %v3454 = vpack.c.b16 %v3430, %v3427
    %v3455 = vpack.c.b16 %v3431, %v3428
    %v3456 = vpack.c.b16 %v3432, %v3429
    %3481 = vmatprep.subr.bf16.mxu0 %v3434
    %3482 = vmatpush1.bf16.msra.mxu0 %v3433
    %3483 = vmatprep.subr.bf16.mxu0 %v3437
    %3484 = vmatpush1.bf16.msra.mxu0 %v3436
    %3485 = vmatprep.subr.bf16.mxu0 %v3440
    %3486 = vmatpush1.bf16.msra.mxu0 %v3439
    %3487 = vmatprep.subr.bf16.mxu0 %v3443
    %3488 = vmatpush1.bf16.msra.mxu0 %v3442
    %3489 = vmatprep.subr.bf16.mxu0 %v3446
    %3490 = vmatpush1.bf16.msra.mxu0 %v3445
    %3491 = vmatprep.subr.bf16.mxu0 %v3449
    %3492 = vmatpush1.bf16.msra.mxu0 %v3448
    %3493 = vmatprep.subr.bf16.mxu0 %v3452
    %3494 = vmatpush1.bf16.msra.mxu0 %v3451
    %3495 = vmatprep.subr.bf16.mxu0 %v3455
    %3496 = vmatpush1.bf16.msra.mxu0 %v3454
    %3497 = vmatprep.subr.bf16.mxu0 0
    %3498 = vmatpush1.bf16.msra.mxu0 0
    %3499 = vmatprep.subr.bf16.mxu0 0
    %3500 = vmatpush1.bf16.msra.mxu0 0
    %3501 = vmatprep.subr.bf16.mxu0 0
    %3502 = vmatpush1.bf16.msra.mxu0 0
    %3503 = vmatprep.subr.bf16.mxu0 0
    %3504 = vmatpush1.bf16.msra.mxu0 0
    %3505 = vmatprep.subr.bf16.mxu0 0
    %3506 = vmatpush1.bf16.msra.mxu0 0
    %3507 = vmatprep.subr.bf16.mxu0 0
    %3508 = vmatpush1.bf16.msra.mxu0 0
    %3509 = vmatprep.subr.bf16.mxu0 0
    %3510 = vmatpush1.bf16.msra.mxu0 0
    %3511 = vmatprep.subr.bf16.mxu0 0
    %3512 = vmatpush1.bf16.msra.mxu0 0
    %3513 = vmatprep.mubr.bf16.mxu0 0
    %3514 = vmatmul.mubr.bf16.gmra.mrb[0].mxu0 0
    %v3515 = vpop.f32.mrb[0].mxu0
    %v3516 = vadd.f32 %v3341, %v3515
    %v3517 = vpop.f32.mrb[0].mxu0
    %v3518 = vadd.f32 %v3345, %v3517
    %v3519 = vpop.f32.mrb[0].mxu0
    %v3520 = vpop.f32.mrb[0].mxu0
    %3521 = vdwg.mxu0
    %3522 = vmatprep.subr.bf16.mxu0 0
    %3523 = vmatpush1.bf16.msra.mxu0 %v3435
    %3524 = vmatprep.subr.bf16.mxu0 0
    %3525 = vmatpush1.bf16.msra.mxu0 %v3438
    %3526 = vmatprep.subr.bf16.mxu0 0
    %3527 = vmatpush1.bf16.msra.mxu0 %v3441
    %3528 = vmatprep.subr.bf16.mxu0 0
    %3529 = vmatpush1.bf16.msra.mxu0 %v3444
    %3530 = vmatprep.subr.bf16.mxu0 0
    %3531 = vmatpush1.bf16.msra.mxu0 %v3447
    %3532 = vmatprep.subr.bf16.mxu0 0
    %3533 = vmatpush1.bf16.msra.mxu0 %v3450
    %3534 = vmatprep.subr.bf16.mxu0 0
    %3535 = vmatpush1.bf16.msra.mxu0 %v3453
    %3536 = vmatprep.subr.bf16.mxu0 0
    %3537 = vmatpush1.bf16.msra.mxu0 %v3456
    %3538 = vmatprep.subr.bf16.mxu0 0
    %3539 = vmatpush1.bf16.msra.mxu0 0
    %3540 = vmatprep.subr.bf16.mxu0 0
    %3541 = vmatpush1.bf16.msra.mxu0 0
    %3542 = vmatprep.subr.bf16.mxu0 0
    %3543 = vmatpush1.bf16.msra.mxu0 0
    %3544 = vmatprep.subr.bf16.mxu0 0
    %3545 = vmatpush1.bf16.msra.mxu0 0
    %3546 = vmatprep.subr.bf16.mxu0 0
    %3547 = vmatpush1.bf16.msra.mxu0 0
    %3548 = vmatprep.subr.bf16.mxu0 0
    %3549 = vmatpush1.bf16.msra.mxu0 0
    %3550 = vmatprep.subr.bf16.mxu0 0
    %3551 = vmatpush1.bf16.msra.mxu0 0
    %3552 = vmatprep.subr.bf16.mxu0 0
    %3553 = vmatpush1.bf16.msra.mxu0 0
    %3554 = vmatprep.mubr.bf16.mxu0 0
    %3555 = vmatmul.mubr.bf16.gmra.mrb[0].mxu0 0
    %v3556 = vpop.f32.mrb[0].mxu0
    %v3557 = vadd.f32 %v3349, %v3556
    %v3558 = vpop.f32.mrb[0].mxu0
    %v3559 = vpop.f32.mrb[0].mxu0
    %v3560 = vpop.f32.mrb[0].mxu0
    %3561 = vdwg.mxu0
    %v3562 = vadd.f32 %v3291, %v3516
    %v3563 = vxor.u32 %v3562, 2147483648
    %v3564 = vmul.f32 %v3563, 1.442695
    %v3565 = vpow.pop %v3564
    %v3566 = vadd.f32 %v3565, 1.0
    %v3567 = vrcp.pop %v3566
    %v3568 = vmul.f32 1.0, %v3567
    %v3569 = vadd.f32 %v3293, %v3518
    %v3570 = vxor.u32 %v3569, 2147483648
    %v3571 = vmul.f32 %v3570, 1.442695
    %v3572 = vpow.pop %v3571
    %v3573 = vadd.f32 %v3572, 1.0
    %v3574 = vrcp.pop %v3573
    %v3575 = vmul.f32 1.0, %v3574
    %v3576 = vmul.f32 %v3568, %v3557
    %v3577 = vadd.f32 %v3332, %v3576
    %v3578 = vtanh.pop %v3577
    %v3579 = vsub.f32 1.0, %v3575
    %v3580 = vmul.f32 %v3579, %v3578
    %v3581 = vmul.f32 %v3575, 0.0
    %v3582 = vadd.f32 %v3580, %v3581
    %3583 = vmatprep.subr.bf16.mxu0 %v2962
    %3584 = vmatpush1.bf16.msra.mxu0 %v2961
    %3585 = vmatprep.subr.bf16.mxu0 %v2965
    %3586 = vmatpush1.bf16.msra.mxu0 %v2964
    %3587 = vmatprep.subr.bf16.mxu0 %v2968
    %3588 = vmatpush1.bf16.msra.mxu0 %v2967
    %3589 = vmatprep.subr.bf16.mxu0 %v2971
    %3590 = vmatpush1.bf16.msra.mxu0 %v2970
    %3591 = vmatprep.subr.bf16.mxu0 %v2974
    %3592 = vmatpush1.bf16.msra.mxu0 %v2973
    %3593 = vmatprep.subr.bf16.mxu0 %v2977
    %3594 = vmatpush1.bf16.msra.mxu0 %v2976
    %3595 = vmatprep.subr.bf16.mxu0 %v2980
    %3596 = vmatpush1.bf16.msra.mxu0 %v2979
    %3597 = vmatprep.subr.bf16.mxu0 %v2983
    %3598 = vmatpush1.bf16.msra.mxu0 %v2982
    %3599 = vmatprep.subr.bf16.mxu0 0
    %3600 = vmatpush1.bf16.msra.mxu0 0
    %3601 = vmatprep.subr.bf16.mxu0 0
    %3602 = vmatpush1.bf16.msra.mxu0 0
    %3603 = vmatprep.subr.bf16.mxu0 0
    %3604 = vmatpush1.bf16.msra.mxu0 0
    %3605 = vmatprep.subr.bf16.mxu0 0
    %3606 = vmatpush1.bf16.msra.mxu0 0
    %3607 = vmatprep.subr.bf16.mxu0 0
    %3608 = vmatpush1.bf16.msra.mxu0 0
    %3609 = vmatprep.subr.bf16.mxu0 0
    %3610 = vmatpush1.bf16.msra.mxu0 0
    %3611 = vmatprep.subr.bf16.mxu0 0
    %3612 = vmatpush1.bf16.msra.mxu0 0
    %3613 = vmatprep.subr.bf16.mxu0 0
    %3614 = vmatpush1.bf16.msra.mxu0 0
    %3615 = vmatprep.mubr.bf16.mxu0 0
    %3616 = vmatmul.mubr.bf16.gmra.mrb[0].mxu0 %v3111
    %v3617 = vpop.f32.mrb[0].mxu0
    %v3618 = vadd.f32 %v2869, %v3617
    %v3619 = vpop.f32.mrb[0].mxu0
    %v3620 = vadd.f32 %v2873, %v3619
    %v3621 = vpop.f32.mrb[0].mxu0
    %v3622 = vpop.f32.mrb[0].mxu0
    %3623 = vdwg.mxu0
    %3624 = vmatprep.subr.bf16.mxu0 0
    %3625 = vmatpush1.bf16.msra.mxu0 %v2963
    %3626 = vmatprep.subr.bf16.mxu0 0
    %3627 = vmatpush1.bf16.msra.mxu0 %v2966
    %3628 = vmatprep.subr.bf16.mxu0 0
    %3629 = vmatpush1.bf16.msra.mxu0 %v2969
    %3630 = vmatprep.subr.bf16.mxu0 0
    %3631 = vmatpush1.bf16.msra.mxu0 %v2972
    %3632 = vmatprep.subr.bf16.mxu0 0
    %3633 = vmatpush1.bf16.msra.mxu0 %v2975
    %3634 = vmatprep.subr.bf16.mxu0 0
    %3635 = vmatpush1.bf16.msra.mxu0 %v2978
    %3636 = vmatprep.subr.bf16.mxu0 0
    %3637 = vmatpush1.bf16.msra.mxu0 %v2981
    %3638 = vmatprep.subr.bf16.mxu0 0
    %3639 = vmatpush1.bf16.msra.mxu0 %v2984
    %3640 = vmatprep.subr.bf16.mxu0 0
    %3641 = vmatpush1.bf16.msra.mxu0 0
    %3642 = vmatprep.subr.bf16.mxu0 0
    %3643 = vmatpush1.bf16.msra.mxu0 0
    %3644 = vmatprep.subr.bf16.mxu0 0
    %3645 = vmatpush1.bf16.msra.mxu0 0
    %3646 = vmatprep.subr.bf16.mxu0 0
    %3647 = vmatpush1.bf16.msra.mxu0 0
    %3648 = vmatprep.subr.bf16.mxu0 0
    %3649 = vmatpush1.bf16.msra.mxu0 0
    %3650 = vmatprep.subr.bf16.mxu0 0
    %3651 = vmatpush1.bf16.msra.mxu0 0
    %3652 = vmatprep.subr.bf16.mxu0 0
    %3653 = vmatpush1.bf16.msra.mxu0 0
    %3654 = vmatprep.subr.bf16.mxu0 0
    %3655 = vmatpush1.bf16.msra.mxu0 0
    %3656 = vmatprep.mubr.bf16.mxu0 0
    %3657 = vmatmul.mubr.bf16.gmra.mrb[0].mxu0 %v3111
    %v3658 = vpop.f32.mrb[0].mxu0
    %v3659 = vadd.f32 %v2877, %v3658
    %v3660 = vpop.f32.mrb[0].mxu0
    %v3661 = vpop.f32.mrb[0].mxu0
    %v3662 = vpop.f32.mrb[0].mxu0
    %3663 = vdwg.mxu0
    %v3664 = vadd.f32 %v2595, %v3618
    %v3665 = vxor.u32 %v3664, 2147483648
    %v3666 = vmul.f32 %v3665, 1.442695
    %v3667 = vpow.pop %v3666
    %v3668 = vadd.f32 %v3667, 1.0
    %v3669 = vrcp.pop %v3668
    %v3670 = vmul.f32 1.0, %v3669
    %v3671 = vadd.f32 %v2597, %v3620
    %v3672 = vxor.u32 %v3671, 2147483648
    %v3673 = vmul.f32 %v3672, 1.442695
    %v3674 = vpow.pop %v3673
    %v3675 = vadd.f32 %v3674, 1.0
    %v3676 = vrcp.pop %v3675
    %v3677 = vmul.f32 1.0, %v3676
    %v3678 = vmul.f32 %v3670, %v3659
    %v3679 = vadd.f32 %v2707, %v3678
    %v3680 = vtanh.pop %v3679
    %v3681 = vsub.f32 1.0, %v3677
    %v3682 = vmul.f32 %v3681, %v3680
    %v3683 = vmul.f32 %v3677, %v3110
    %v3684 = vadd.f32 %v3682, %v3683
    %v3685 = vpack.c.bf16 %v3684, %v3684
    %3686 = vmatprep.subr.bf16.mxu0 %v3209
    %3687 = vmatpush1.bf16.msra.mxu0 %v3208
    %3688 = vmatprep.subr.bf16.mxu0 %v3212
    %3689 = vmatpush1.bf16.msra.mxu0 %v3211
    %3690 = vmatprep.subr.bf16.mxu0 %v3215
    %3691 = vmatpush1.bf16.msra.mxu0 %v3214
    %3692 = vmatprep.subr.bf16.mxu0 %v3218
    %3693 = vmatpush1.bf16.msra.mxu0 %v3217
    %3694 = vmatprep.subr.bf16.mxu0 %v3221
    %3695 = vmatpush1.bf16.msra.mxu0 %v3220
    %3696 = vmatprep.subr.bf16.mxu0 %v3224
    %3697 = vmatpush1.bf16.msra.mxu0 %v3223
    %3698 = vmatprep.subr.bf16.mxu0 %v3227
    %3699 = vmatpush1.bf16.msra.mxu0 %v3226
    %3700 = vmatprep.subr.bf16.mxu0 %v3230
    %3701 = vmatpush1.bf16.msra.mxu0 %v3229
    %3702 = vmatprep.subr.bf16.mxu0 0
    %3703 = vmatpush1.bf16.msra.mxu0 0
    %3704 = vmatprep.subr.bf16.mxu0 0
    %3705 = vmatpush1.bf16.msra.mxu0 0
    %3706 = vmatprep.subr.bf16.mxu0 0
    %3707 = vmatpush1.bf16.msra.mxu0 0
    %3708 = vmatprep.subr.bf16.mxu0 0
    %3709 = vmatpush1.bf16.msra.mxu0 0
    %3710 = vmatprep.subr.bf16.mxu0 0
    %3711 = vmatpush1.bf16.msra.mxu0 0
    %3712 = vmatprep.subr.bf16.mxu0 0
    %3713 = vmatpush1.bf16.msra.mxu0 0
    %3714 = vmatprep.subr.bf16.mxu0 0
    %3715 = vmatpush1.bf16.msra.mxu0 0
    %3716 = vmatprep.subr.bf16.mxu0 0
    %3717 = vmatpush1.bf16.msra.mxu0 0
    %3718 = vmatprep.mubr.bf16.mxu0 0
    %3719 = vmatmul.mubr.bf16.gmra.mrb[0].mxu0 %v3685
    %v3720 = vpop.f32.mrb[0].mxu0
    %v3721 = vadd.f32 %v3116, %v3720
    %v3722 = vpop.f32.mrb[0].mxu0
    %v3723 = vadd.f32 %v3120, %v3722
    %v3724 = vpop.f32.mrb[0].mxu0
    %v3725 = vpop.f32.mrb[0].mxu0
    %3726 = vdwg.mxu0
    %3727 = vmatprep.subr.bf16.mxu0 0
    %3728 = vmatpush1.bf16.msra.mxu0 %v3210
    %3729 = vmatprep.subr.bf16.mxu0 0
    %3730 = vmatpush1.bf16.msra.mxu0 %v3213
    %3731 = vmatprep.subr.bf16.mxu0 0
    %3732 = vmatpush1.bf16.msra.mxu0 %v3216
    %3733 = vmatprep.subr.bf16.mxu0 0
    %3734 = vmatpush1.bf16.msra.mxu0 %v3219
    %3735 = vmatprep.subr.bf16.mxu0 0
    %3736 = vmatpush1.bf16.msra.mxu0 %v3222
    %3737 = vmatprep.subr.bf16.mxu0 0
    %3738 = vmatpush1.bf16.msra.mxu0 %v3225
    %3739 = vmatprep.subr.bf16.mxu0 0
    %3740 = vmatpush1.bf16.msra.mxu0 %v3228
    %3741 = vmatprep.subr.bf16.mxu0 0
    %3742 = vmatpush1.bf16.msra.mxu0 %v3231
    %3743 = vmatprep.subr.bf16.mxu0 0
    %3744 = vmatpush1.bf16.msra.mxu0 0
    %3745 = vmatprep.subr.bf16.mxu0 0
    %3746 = vmatpush1.bf16.msra.mxu0 0
    %3747 = vmatprep.subr.bf16.mxu0 0
    %3748 = vmatpush1.bf16.msra.mxu0 0
    %3749 = vmatprep.subr.bf16.mxu0 0
    %3750 = vmatpush1.bf16.msra.mxu0 0
    %3751 = vmatprep.subr.bf16.mxu0 0
    %3752 = vmatpush1.bf16.msra.mxu0 0
    %3753 = vmatprep.subr.bf16.mxu0 0
    %3754 = vmatpush1.bf16.msra.mxu0 0
    %3755 = vmatprep.subr.bf16.mxu0 0
    %3756 = vmatpush1.bf16.msra.mxu0 0
    %3757 = vmatprep.subr.bf16.mxu0 0
    %3758 = vmatpush1.bf16.msra.mxu0 0
    %3759 = vmatprep.mubr.bf16.mxu0 0
    %3760 = vmatmul.mubr.bf16.gmra.mrb[0].mxu0 %v3685
    %v3761 = vpop.f32.mrb[0].mxu0
    %v3762 = vadd.f32 %v3124, %v3761
    %v3763 = vpop.f32.mrb[0].mxu0
    %v3764 = vpop.f32.mrb[0].mxu0
    %v3765 = vpop.f32.mrb[0].mxu0
    %3766 = vdwg.mxu0
    %v3767 = vpack.c.bf16 %v3582, %v3582
    %3768 = vmatprep.subr.bf16.mxu0 %v3434
    %3769 = vmatpush1.bf16.msra.mxu0 %v3433
    %3770 = vmatprep.subr.bf16.mxu0 %v3437
    %3771 = vmatpush1.bf16.msra.mxu0 %v3436
    %3772 = vmatprep.subr.bf16.mxu0 %v3440
    %3773 = vmatpush1.bf16.msra.mxu0 %v3439
    %3774 = vmatprep.subr.bf16.mxu0 %v3443
    %3775 = vmatpush1.bf16.msra.mxu0 %v3442
    %3776 = vmatprep.subr.bf16.mxu0 %v3446
    %3777 = vmatpush1.bf16.msra.mxu0 %v3445
    %3778 = vmatprep.subr.bf16.mxu0 %v3449
    %3779 = vmatpush1.bf16.msra.mxu0 %v3448
    %3780 = vmatprep.subr.bf16.mxu0 %v3452
    %3781 = vmatpush1.bf16.msra.mxu0 %v3451
    %3782 = vmatprep.subr.bf16.mxu0 %v3455
    %3783 = vmatpush1.bf16.msra.mxu0 %v3454
    %3784 = vmatprep.subr.bf16.mxu0 0
    %3785 = vmatpush1.bf16.msra.mxu0 0
    %3786 = vmatprep.subr.bf16.mxu0 0
    %3787 = vmatpush1.bf16.msra.mxu0 0
    %3788 = vmatprep.subr.bf16.mxu0 0
    %3789 = vmatpush1.bf16.msra.mxu0 0
    %3790 = vmatprep.subr.bf16.mxu0 0
    %3791 = vmatpush1.bf16.msra.mxu0 0
    %3792 = vmatprep.subr.bf16.mxu0 0
    %3793 = vmatpush1.bf16.msra.mxu0 0
    %3794 = vmatprep.subr.bf16.mxu0 0
    %3795 = vmatpush1.bf16.msra.mxu0 0
    %3796 = vmatprep.subr.bf16.mxu0 0
    %3797 = vmatpush1.bf16.msra.mxu0 0
    %3798 = vmatprep.subr.bf16.mxu0 0
    %3799 = vmatpush1.bf16.msra.mxu0 0
    %3800 = vmatprep.mubr.bf16.mxu0 0
    %3801 = vmatmul.mubr.bf16.gmra.mrb[0].mxu0 %v3767
    %v3802 = vpop.f32.mrb[0].mxu0
    %v3803 = vadd.f32 %v3341, %v3802
    %v3804 = vpop.f32.mrb[0].mxu0
    %v3805 = vadd.f32 %v3345, %v3804
    %v3806 = vpop.f32.mrb[0].mxu0
    %v3807 = vpop.f32.mrb[0].mxu0
    %3808 = vdwg.mxu0
    %3809 = vmatprep.subr.bf16.mxu0 0
    %3810 = vmatpush1.bf16.msra.mxu0 %v3435
    %3811 = vmatprep.subr.bf16.mxu0 0
    %3812 = vmatpush1.bf16.msra.mxu0 %v3438
    %3813 = vmatprep.subr.bf16.mxu0 0
    %3814 = vmatpush1.bf16.msra.mxu0 %v3441
    %3815 = vmatprep.subr.bf16.mxu0 0
    %3816 = vmatpush1.bf16.msra.mxu0 %v3444
    %3817 = vmatprep.subr.bf16.mxu0 0
    %3818 = vmatpush1.bf16.msra.mxu0 %v3447
    %3819 = vmatprep.subr.bf16.mxu0 0
    %3820 = vmatpush1.bf16.msra.mxu0 %v3450
    %3821 = vmatprep.subr.bf16.mxu0 0
    %3822 = vmatpush1.bf16.msra.mxu0 %v3453
    %3823 = vmatprep.subr.bf16.mxu0 0
    %3824 = vmatpush1.bf16.msra.mxu0 %v3456
    %3825 = vmatprep.subr.bf16.mxu0 0
    %3826 = vmatpush1.bf16.msra.mxu0 0
    %3827 = vmatprep.subr.bf16.mxu0 0
    %3828 = vmatpush1.bf16.msra.mxu0 0
    %3829 = vmatprep.subr.bf16.mxu0 0
    %3830 = vmatpush1.bf16.msra.mxu0 0
    %3831 = vmatprep.subr.bf16.mxu0 0
    %3832 = vmatpush1.bf16.msra.mxu0 0
    %3833 = vmatprep.subr.bf16.mxu0 0
    %3834 = vmatpush1.bf16.msra.mxu0 0
    %3835 = vmatprep.subr.bf16.mxu0 0
    %3836 = vmatpush1.bf16.msra.mxu0 0
    %3837 = vmatprep.subr.bf16.mxu0 0
    %3838 = vmatpush1.bf16.msra.mxu0 0
    %3839 = vmatprep.subr.bf16.mxu0 0
    %3840 = vmatpush1.bf16.msra.mxu0 0
    %3841 = vmatprep.mubr.bf16.mxu0 0
    %3842 = vmatmul.mubr.bf16.gmra.mrb[0].mxu0 %v3767
    %v3843 = vpop.f32.mrb[0].mxu0
    %v3844 = vadd.f32 %v3349, %v3843
    %v3845 = vpop.f32.mrb[0].mxu0
    %v3846 = vpop.f32.mrb[0].mxu0
    %v3847 = vpop.f32.mrb[0].mxu0
    %3848 = vdwg.mxu0
    %v3849 = vadd.f32 %v3721, %v3803
    %v3850 = vxor.u32 %v3849, 2147483648
    %v3851 = vmul.f32 %v3850, 1.442695
    %v3852 = vpow.pop %v3851
    %v3853 = vadd.f32 %v3852, 1.0
    %v3854 = vrcp.pop %v3853
    %v3855 = vmul.f32 1.0, %v3854
    %v3856 = vadd.f32 %v3723, %v3805
    %v3857 = vxor.u32 %v3856, 2147483648
    %v3858 = vmul.f32 %v3857, 1.442695
    %v3859 = vpow.pop %v3858
    %v3860 = vadd.f32 %v3859, 1.0
    %v3861 = vrcp.pop %v3860
    %v3862 = vmul.f32 1.0, %v3861
    %v3863 = vmul.f32 %v3855, %v3844
    %v3864 = vadd.f32 %v3762, %v3863
    %v3865 = vtanh.pop %v3864
    %v3866 = vsub.f32 1.0, %v3862
    %v3867 = vmul.f32 %v3866, %v3865
    %v3868 = vmul.f32 %v3862, %v3582
    %v3869 = vadd.f32 %v3867, %v3868
    %3870 = vmatprep.subr.bf16.mxu0 %v2962
    %3871 = vmatpush1.bf16.msra.mxu0 %v2961
    %3872 = vmatprep.subr.bf16.mxu0 %v2965
    %3873 = vmatpush1.bf16.msra.mxu0 %v2964
    %3874 = vmatprep.subr.bf16.mxu0 %v2968
    %3875 = vmatpush1.bf16.msra.mxu0 %v2967
    %3876 = vmatprep.subr.bf16.mxu0 %v2971
    %3877 = vmatpush1.bf16.msra.mxu0 %v2970
    %3878 = vmatprep.subr.bf16.mxu0 %v2974
    %3879 = vmatpush1.bf16.msra.mxu0 %v2973
    %3880 = vmatprep.subr.bf16.mxu0 %v2977
    %3881 = vmatpush1.bf16.msra.mxu0 %v2976
    %3882 = vmatprep.subr.bf16.mxu0 %v2980
    %3883 = vmatpush1.bf16.msra.mxu0 %v2979
    %3884 = vmatprep.subr.bf16.mxu0 %v2983
    %3885 = vmatpush1.bf16.msra.mxu0 %v2982
    %3886 = vmatprep.subr.bf16.mxu0 0
    %3887 = vmatpush1.bf16.msra.mxu0 0
    %3888 = vmatprep.subr.bf16.mxu0 0
    %3889 = vmatpush1.bf16.msra.mxu0 0
    %3890 = vmatprep.subr.bf16.mxu0 0
    %3891 = vmatpush1.bf16.msra.mxu0 0
    %3892 = vmatprep.subr.bf16.mxu0 0
    %3893 = vmatpush1.bf16.msra.mxu0 0
    %3894 = vmatprep.subr.bf16.mxu0 0
    %3895 = vmatpush1.bf16.msra.mxu0 0
    %3896 = vmatprep.subr.bf16.mxu0 0
    %3897 = vmatpush1.bf16.msra.mxu0 0
    %3898 = vmatprep.subr.bf16.mxu0 0
    %3899 = vmatpush1.bf16.msra.mxu0 0
    %3900 = vmatprep.subr.bf16.mxu0 0
    %3901 = vmatpush1.bf16.msra.mxu0 0
    %3902 = vmatprep.mubr.bf16.mxu0 0
    %3903 = vmatmul.mubr.bf16.gmra.mrb[0].mxu0 %v3685
    %v3904 = vpop.f32.mrb[0].mxu0
    %v3905 = vadd.f32 %v2869, %v3904
    %v3906 = vpop.f32.mrb[0].mxu0
    %v3907 = vadd.f32 %v2873, %v3906
    %v3908 = vpop.f32.mrb[0].mxu0
    %v3909 = vpop.f32.mrb[0].mxu0
    %3910 = vdwg.mxu0
    %3911 = vmatprep.subr.bf16.mxu0 0
    %3912 = vmatpush1.bf16.msra.mxu0 %v2963
    %3913 = vmatprep.subr.bf16.mxu0 0
    %3914 = vmatpush1.bf16.msra.mxu0 %v2966
    %3915 = vmatprep.subr.bf16.mxu0 0
    %3916 = vmatpush1.bf16.msra.mxu0 %v2969
    %3917 = vmatprep.subr.bf16.mxu0 0
    %3918 = vmatpush1.bf16.msra.mxu0 %v2972
    %3919 = vmatprep.subr.bf16.mxu0 0
    %3920 = vmatpush1.bf16.msra.mxu0 %v2975
    %3921 = vmatprep.subr.bf16.mxu0 0
    %3922 = vmatpush1.bf16.msra.mxu0 %v2978
    %3923 = vmatprep.subr.bf16.mxu0 0
    %3924 = vmatpush1.bf16.msra.mxu0 %v2981
    %3925 = vmatprep.subr.bf16.mxu0 0
    %3926 = vmatpush1.bf16.msra.mxu0 %v2984
    %3927 = vmatprep.subr.bf16.mxu0 0
    %3928 = vmatpush1.bf16.msra.mxu0 0
    %3929 = vmatprep.subr.bf16.mxu0 0
    %3930 = vmatpush1.bf16.msra.mxu0 0
    %3931 = vmatprep.subr.bf16.mxu0 0
    %3932 = vmatpush1.bf16.msra.mxu0 0
    %3933 = vmatprep.subr.bf16.mxu0 0
    %3934 = vmatpush1.bf16.msra.mxu0 0
    %3935 = vmatprep.subr.bf16.mxu0 0
    %3936 = vmatpush1.bf16.msra.mxu0 0
    %3937 = vmatprep.subr.bf16.mxu0 0
    %3938 = vmatpush1.bf16.msra.mxu0 0
    %3939 = vmatprep.subr.bf16.mxu0 0
    %3940 = vmatpush1.bf16.msra.mxu0 0
    %3941 = vmatprep.subr.bf16.mxu0 0
    %3942 = vmatpush1.bf16.msra.mxu0 0
    %3943 = vmatprep.mubr.bf16.mxu0 0
    %3944 = vmatmul.mubr.bf16.gmra.mrb[0].mxu0 %v3685
    %v3945 = vpop.f32.mrb[0].mxu0
    %v3946 = vadd.f32 %v2877, %v3945
    %v3947 = vpop.f32.mrb[0].mxu0
    %v3948 = vpop.f32.mrb[0].mxu0
    %v3949 = vpop.f32.mrb[0].mxu0
    %3950 = vdwg.mxu0
    %v3951 = vadd.f32 %v2601, %v3905
    %v3952 = vxor.u32 %v3951, 2147483648
    %v3953 = vmul.f32 %v3952, 1.442695
    %v3954 = vpow.pop %v3953
    %v3955 = vadd.f32 %v3954, 1.0
    %v3956 = vrcp.pop %v3955
    %v3957 = vmul.f32 1.0, %v3956
    %v3958 = vadd.f32 %v2603, %v3907
    %v3959 = vxor.u32 %v3958, 2147483648
    %v3960 = vmul.f32 %v3959, 1.442695
    %v3961 = vpow.pop %v3960
    %v3962 = vadd.f32 %v3961, 1.0
    %v3963 = vrcp.pop %v3962
    %v3964 = vmul.f32 1.0, %v3963
    %v3965 = vmul.f32 %v3957, %v3946
    %v3966 = vadd.f32 %v2712, %v3965
    %v3967 = vtanh.pop %v3966
    %v3968 = vsub.f32 1.0, %v3964
    %v3969 = vmul.f32 %v3968, %v3967
    %v3970 = vmul.f32 %v3964, %v3684
    %v3971 = vadd.f32 %v3969, %v3970
    %v3972 = vpack.c.bf16 %v3971, %v3971
    %3973 = vmatprep.subr.bf16.mxu0 %v3209
    %3974 = vmatpush1.bf16.msra.mxu0 %v3208
    %3975 = vmatprep.subr.bf16.mxu0 %v3212
    %3976 = vmatpush1.bf16.msra.mxu0 %v3211
    %3977 = vmatprep.subr.bf16.mxu0 %v3215
    %3978 = vmatpush1.bf16.msra.mxu0 %v3214
    %3979 = vmatprep.subr.bf16.mxu0 %v3218
    %3980 = vmatpush1.bf16.msra.mxu0 %v3217
    %3981 = vmatprep.subr.bf16.mxu0 %v3221
    %3982 = vmatpush1.bf16.msra.mxu0 %v3220
    %3983 = vmatprep.subr.bf16.mxu0 %v3224
    %3984 = vmatpush1.bf16.msra.mxu0 %v3223
    %3985 = vmatprep.subr.bf16.mxu0 %v3227
    %3986 = vmatpush1.bf16.msra.mxu0 %v3226
    %3987 = vmatprep.subr.bf16.mxu0 %v3230
    %3988 = vmatpush1.bf16.msra.mxu0 %v3229
    %3989 = vmatprep.subr.bf16.mxu0 0
    %3990 = vmatpush1.bf16.msra.mxu0 0
    %3991 = vmatprep.subr.bf16.mxu0 0
    %3992 = vmatpush1.bf16.msra.mxu0 0
    %3993 = vmatprep.subr.bf16.mxu0 0
    %3994 = vmatpush1.bf16.msra.mxu0 0
    %3995 = vmatprep.subr.bf16.mxu0 0
    %3996 = vmatpush1.bf16.msra.mxu0 0
    %3997 = vmatprep.subr.bf16.mxu0 0
    %3998 = vmatpush1.bf16.msra.mxu0 0
    %3999 = vmatprep.subr.bf16.mxu0 0
    %4000 = vmatpush1.bf16.msra.mxu0 0
    %4001 = vmatprep.subr.bf16.mxu0 0
    %4002 = vmatpush1.bf16.msra.mxu0 0
    %4003 = vmatprep.subr.bf16.mxu0 0
    %4004 = vmatpush1.bf16.msra.mxu0 0
    %4005 = vmatprep.mubr.bf16.mxu0 0
    %4006 = vmatmul.mubr.bf16.gmra.mrb[0].mxu0 %v3972
    %v4007 = vpop.f32.mrb[0].mxu0
    %v4008 = vadd.f32 %v3116, %v4007
    %v4009 = vpop.f32.mrb[0].mxu0
    %v4010 = vadd.f32 %v3120, %v4009
    %v4011 = vpop.f32.mrb[0].mxu0
    %v4012 = vpop.f32.mrb[0].mxu0
    %4013 = vdwg.mxu0
    %4014 = vmatprep.subr.bf16.mxu0 0
    %4015 = vmatpush1.bf16.msra.mxu0 %v3210
    %4016 = vmatprep.subr.bf16.mxu0 0
    %4017 = vmatpush1.bf16.msra.mxu0 %v3213
    %4018 = vmatprep.subr.bf16.mxu0 0
    %4019 = vmatpush1.bf16.msra.mxu0 %v3216
    %4020 = vmatprep.subr.bf16.mxu0 0
    %4021 = vmatpush1.bf16.msra.mxu0 %v3219
    %4022 = vmatprep.subr.bf16.mxu0 0
    %4023 = vmatpush1.bf16.msra.mxu0 %v3222
    %4024 = vmatprep.subr.bf16.mxu0 0
    %4025 = vmatpush1.bf16.msra.mxu0 %v3225
    %4026 = vmatprep.subr.bf16.mxu0 0
    %4027 = vmatpush1.bf16.msra.mxu0 %v3228
    %4028 = vmatprep.subr.bf16.mxu0 0
    %4029 = vmatpush1.bf16.msra.mxu0 %v3231
    %4030 = vmatprep.subr.bf16.mxu0 0
    %4031 = vmatpush1.bf16.msra.mxu0 0
    %4032 = vmatprep.subr.bf16.mxu0 0
    %4033 = vmatpush1.bf16.msra.mxu0 0
    %4034 = vmatprep.subr.bf16.mxu0 0
    %4035 = vmatpush1.bf16.msra.mxu0 0
    %4036 = vmatprep.subr.bf16.mxu0 0
    %4037 = vmatpush1.bf16.msra.mxu0 0
    %4038 = vmatprep.subr.bf16.mxu0 0
    %4039 = vmatpush1.bf16.msra.mxu0 0
    %4040 = vmatprep.subr.bf16.mxu0 0
    %4041 = vmatpush1.bf16.msra.mxu0 0
    %4042 = vmatprep.subr.bf16.mxu0 0
    %4043 = vmatpush1.bf16.msra.mxu0 0
    %4044 = vmatprep.subr.bf16.mxu0 0
    %4045 = vmatpush1.bf16.msra.mxu0 0
    %4046 = vmatprep.mubr.bf16.mxu0 0
    %4047 = vmatmul.mubr.bf16.gmra.mrb[0].mxu0 %v3972
    %v4048 = vpop.f32.mrb[0].mxu0
    %v4049 = vadd.f32 %v3124, %v4048
    %v4050 = vpop.f32.mrb[0].mxu0
    %v4051 = vpop.f32.mrb[0].mxu0
    %v4052 = vpop.f32.mrb[0].mxu0
    %4053 = vdwg.mxu0
    %v4054 = vpack.c.bf16 %v3869, %v3869
    %4055 = vmatprep.subr.bf16.mxu0 %v3434
    %4056 = vmatpush1.bf16.msra.mxu0 %v3433
    %4057 = vmatprep.subr.bf16.mxu0 %v3437
    %4058 = vmatpush1.bf16.msra.mxu0 %v3436
    %4059 = vmatprep.subr.bf16.mxu0 %v3440
    %4060 = vmatpush1.bf16.msra.mxu0 %v3439
    %4061 = vmatprep.subr.bf16.mxu0 %v3443
    %4062 = vmatpush1.bf16.msra.mxu0 %v3442
    %4063 = vmatprep.subr.bf16.mxu0 %v3446
    %4064 = vmatpush1.bf16.msra.mxu0 %v3445
    %4065 = vmatprep.subr.bf16.mxu0 %v3449
    %4066 = vmatpush1.bf16.msra.mxu0 %v3448
    %4067 = vmatprep.subr.bf16.mxu0 %v3452
    %4068 = vmatpush1.bf16.msra.mxu0 %v3451
    %4069 = vmatprep.subr.bf16.mxu0 %v3455
    %4070 = vmatpush1.bf16.msra.mxu0 %v3454
    %4071 = vmatprep.subr.bf16.mxu0 0
    %4072 = vmatpush1.bf16.msra.mxu0 0
    %4073 = vmatprep.subr.bf16.mxu0 0
    %4074 = vmatpush1.bf16.msra.mxu0 0
    %4075 = vmatprep.subr.bf16.mxu0 0
    %4076 = vmatpush1.bf16.msra.mxu0 0
    %4077 = vmatprep.subr.bf16.mxu0 0
    %4078 = vmatpush1.bf16.msra.mxu0 0
    %4079 = vmatprep.subr.bf16.mxu0 0
    %4080 = vmatpush1.bf16.msra.mxu0 0
    %4081 = vmatprep.subr.bf16.mxu0 0
    %4082 = vmatpush1.bf16.msra.mxu0 0
    %4083 = vmatprep.subr.bf16.mxu0 0
    %4084 = vmatpush1.bf16.msra.mxu0 0
    %4085 = vmatprep.subr.bf16.mxu0 0
    %4086 = vmatpush1.bf16.msra.mxu0 0
    %4087 = vmatprep.mubr.bf16.mxu0 0
    %4088 = vmatmul.mubr.bf16.gmra.mrb[0].mxu0 %v4054
    %v4089 = vpop.f32.mrb[0].mxu0
    %v4090 = vadd.f32 %v3341, %v4089
    %v4091 = vpop.f32.mrb[0].mxu0
    %v4092 = vadd.f32 %v3345, %v4091
    %v4093 = vpop.f32.mrb[0].mxu0
    %v4094 = vpop.f32.mrb[0].mxu0
    %4095 = vdwg.mxu0
    %4096 = vmatprep.subr.bf16.mxu0 0
    %4097 = vmatpush1.bf16.msra.mxu0 %v3435
    %4098 = vmatprep.subr.bf16.mxu0 0
    %4099 = vmatpush1.bf16.msra.mxu0 %v3438
    %4100 = vmatprep.subr.bf16.mxu0 0
    %4101 = vmatpush1.bf16.msra.mxu0 %v3441
    %4102 = vmatprep.subr.bf16.mxu0 0
    %4103 = vmatpush1.bf16.msra.mxu0 %v3444
    %4104 = vmatprep.subr.bf16.mxu0 0
    %4105 = vmatpush1.bf16.msra.mxu0 %v3447
    %4106 = vmatprep.subr.bf16.mxu0 0
    %4107 = vmatpush1.bf16.msra.mxu0 %v3450
    %4108 = vmatprep.subr.bf16.mxu0 0
    %4109 = vmatpush1.bf16.msra.mxu0 %v3453
    %4110 = vmatprep.subr.bf16.mxu0 0
    %4111 = vmatpush1.bf16.msra.mxu0 %v3456
    %4112 = vmatprep.subr.bf16.mxu0 0
    %4113 = vmatpush1.bf16.msra.mxu0 0
    %4114 = vmatprep.subr.bf16.mxu0 0
    %4115 = vmatpush1.bf16.msra.mxu0 0
    %4116 = vmatprep.subr.bf16.mxu0 0
    %4117 = vmatpush1.bf16.msra.mxu0 0
    %4118 = vmatprep.subr.bf16.mxu0 0
    %4119 = vmatpush1.bf16.msra.mxu0 0
    %4120 = vmatprep.subr.bf16.mxu0 0
    %4121 = vmatpush1.bf16.msra.mxu0 0
    %4122 = vmatprep.subr.bf16.mxu0 0
    %4123 = vmatpush1.bf16.msra.mxu0 0
    %4124 = vmatprep.subr.bf16.mxu0 0
    %4125 = vmatpush1.bf16.msra.mxu0 0
    %4126 = vmatprep.subr.bf16.mxu0 0
    %4127 = vmatpush1.bf16.msra.mxu0 0
    %4128 = vmatprep.mubr.bf16.mxu0 0
    %4129 = vmatmul.mubr.bf16.gmra.mrb[0].mxu0 %v4054
    %v4130 = vpop.f32.mrb[0].mxu0
    %v4131 = vadd.f32 %v3349, %v4130
    %v4132 = vpop.f32.mrb[0].mxu0
    %v4133 = vpop.f32.mrb[0].mxu0
    %v4134 = vpop.f32.mrb[0].mxu0
    %4135 = vdwg.mxu0
    %v4136 = vadd.f32 %v4008, %v4090
    %v4137 = vxor.u32 %v4136, 2147483648
    %v4138 = vmul.f32 %v4137, 1.442695
    %v4139 = vpow.pop %v4138
    %v4140 = vadd.f32 %v4139, 1.0
    %v4141 = vrcp.pop %v4140
    %v4142 = vmul.f32 1.0, %v4141
    %v4143 = vadd.f32 %v4010, %v4092
    %v4144 = vxor.u32 %v4143, 2147483648
    %v4145 = vmul.f32 %v4144, 1.442695
    %v4146 = vpow.pop %v4145
    %v4147 = vadd.f32 %v4146, 1.0
    %v4148 = vrcp.pop %v4147
    %v4149 = vmul.f32 1.0, %v4148
    %v4150 = vmul.f32 %v4142, %v4131
    %v4151 = vadd.f32 %v4049, %v4150
    %v4152 = vtanh.pop %v4151
    %v4153 = vsub.f32 1.0, %v4149
    %v4154 = vmul.f32 %v4153, %v4152
    %v4155 = vmul.f32 %v4149, %v3869
    %v4156 = vadd.f32 %v4154, %v4155
    %4157 = vmatprep.subr.bf16.mxu0 %v2962
    %4158 = vmatpush1.bf16.msra.mxu0 %v2961
    %4159 = vmatprep.subr.bf16.mxu0 %v2965
    %4160 = vmatpush1.bf16.msra.mxu0 %v2964
    %4161 = vmatprep.subr.bf16.mxu0 %v2968
    %4162 = vmatpush1.bf16.msra.mxu0 %v2967
    %4163 = vmatprep.subr.bf16.mxu0 %v2971
    %4164 = vmatpush1.bf16.msra.mxu0 %v2970
    %4165 = vmatprep.subr.bf16.mxu0 %v2974
    %4166 = vmatpush1.bf16.msra.mxu0 %v2973
    %4167 = vmatprep.subr.bf16.mxu0 %v2977
    %4168 = vmatpush1.bf16.msra.mxu0 %v2976
    %4169 = vmatprep.subr.bf16.mxu0 %v2980
    %4170 = vmatpush1.bf16.msra.mxu0 %v2979
    %4171 = vmatprep.subr.bf16.mxu0 %v2983
    %4172 = vmatpush1.bf16.msra.mxu0 %v2982
    %4173 = vmatprep.subr.bf16.mxu0 0
    %4174 = vmatpush1.bf16.msra.mxu0 0
    %4175 = vmatprep.subr.bf16.mxu0 0
    %4176 = vmatpush1.bf16.msra.mxu0 0
    %4177 = vmatprep.subr.bf16.mxu0 0
    %4178 = vmatpush1.bf16.msra.mxu0 0
    %4179 = vmatprep.subr.bf16.mxu0 0
    %4180 = vmatpush1.bf16.msra.mxu0 0
    %4181 = vmatprep.subr.bf16.mxu0 0
    %4182 = vmatpush1.bf16.msra.mxu0 0
    %4183 = vmatprep.subr.bf16.mxu0 0
    %4184 = vmatpush1.bf16.msra.mxu0 0
    %4185 = vmatprep.subr.bf16.mxu0 0
    %4186 = vmatpush1.bf16.msra.mxu0 0
    %4187 = vmatprep.subr.bf16.mxu0 0
    %4188 = vmatpush1.bf16.msra.mxu0 0
    %4189 = vmatprep.mubr.bf16.mxu0 0
    %4190 = vmatmul.mubr.bf16.gmra.mrb[0].mxu0 %v3972
    %v4191 = vpop.f32.mrb[0].mxu0
    %v4192 = vadd.f32 %v2869, %v4191
    %v4193 = vpop.f32.mrb[0].mxu0
    %v4194 = vadd.f32 %v2873, %v4193
    %v4195 = vpop.f32.mrb[0].mxu0
    %v4196 = vpop.f32.mrb[0].mxu0
    %4197 = vdwg.mxu0
    %4198 = vmatprep.subr.bf16.mxu0 0
    %4199 = vmatpush1.bf16.msra.mxu0 %v2963
    %4200 = vmatprep.subr.bf16.mxu0 0
    %4201 = vmatpush1.bf16.msra.mxu0 %v2966
    %4202 = vmatprep.subr.bf16.mxu0 0
    %4203 = vmatpush1.bf16.msra.mxu0 %v2969
    %4204 = vmatprep.subr.bf16.mxu0 0
    %4205 = vmatpush1.bf16.msra.mxu0 %v2972
    %4206 = vmatprep.subr.bf16.mxu0 0
    %4207 = vmatpush1.bf16.msra.mxu0 %v2975
    %4208 = vmatprep.subr.bf16.mxu0 0
    %4209 = vmatpush1.bf16.msra.mxu0 %v2978
    %4210 = vmatprep.subr.bf16.mxu0 0
    %4211 = vmatpush1.bf16.msra.mxu0 %v2981
    %4212 = vmatprep.subr.bf16.mxu0 0
    %4213 = vmatpush1.bf16.msra.mxu0 %v2984
    %4214 = vmatprep.subr.bf16.mxu0 0
    %4215 = vmatpush1.bf16.msra.mxu0 0
    %4216 = vmatprep.subr.bf16.mxu0 0
    %4217 = vmatpush1.bf16.msra.mxu0 0
    %4218 = vmatprep.subr.bf16.mxu0 0
    %4219 = vmatpush1.bf16.msra.mxu0 0
    %4220 = vmatprep.subr.bf16.mxu0 0
    %4221 = vmatpush1.bf16.msra.mxu0 0
    %4222 = vmatprep.subr.bf16.mxu0 0
    %4223 = vmatpush1.bf16.msra.mxu0 0
    %4224 = vmatprep.subr.bf16.mxu0 0
    %4225 = vmatpush1.bf16.msra.mxu0 0
    %4226 = vmatprep.subr.bf16.mxu0 0
    %4227 = vmatpush1.bf16.msra.mxu0 0
    %4228 = vmatprep.subr.bf16.mxu0 0
    %4229 = vmatpush1.bf16.msra.mxu0 0
    %4230 = vmatprep.mubr.bf16.mxu0 0
    %4231 = vmatmul.mubr.bf16.gmra.mrb[0].mxu0 %v3972
    %v4232 = vpop.f32.mrb[0].mxu0
    %v4233 = vadd.f32 %v2877, %v4232
    %v4234 = vpop.f32.mrb[0].mxu0
    %v4235 = vpop.f32.mrb[0].mxu0
    %v4236 = vpop.f32.mrb[0].mxu0
    %4237 = vdwg.mxu0
    %v4238 = vadd.f32 %v2605, %v4192
    %v4239 = vxor.u32 %v4238, 2147483648
    %v4240 = vmul.f32 %v4239, 1.442695
    %v4241 = vpow.pop %v4240
    %v4242 = vadd.f32 %v4241, 1.0
    %v4243 = vrcp.pop %v4242
    %v4244 = vmul.f32 1.0, %v4243
    %v4245 = vadd.f32 %v2607, %v4194
    %v4246 = vxor.u32 %v4245, 2147483648
    %v4247 = vmul.f32 %v4246, 1.442695
    %v4248 = vpow.pop %v4247
    %v4249 = vadd.f32 %v4248, 1.0
    %v4250 = vrcp.pop %v4249
    %v4251 = vmul.f32 1.0, %v4250
    %v4252 = vmul.f32 %v4244, %v4233
    %v4253 = vadd.f32 %v2715, %v4252
    %v4254 = vtanh.pop %v4253
    %v4255 = vsub.f32 1.0, %v4251
    %v4256 = vmul.f32 %v4255, %v4254
    %v4257 = vmul.f32 %v4251, %v3971
    %v4258 = vadd.f32 %v4256, %v4257
    %v4259 = vpack.c.bf16 %v4258, %v4258
    %4260 = vmatprep.subr.bf16.mxu0 %v3209
    %4261 = vmatpush1.bf16.msra.mxu0 %v3208
    %4262 = vmatprep.subr.bf16.mxu0 %v3212
    %4263 = vmatpush1.bf16.msra.mxu0 %v3211
    %4264 = vmatprep.subr.bf16.mxu0 %v3215
    %4265 = vmatpush1.bf16.msra.mxu0 %v3214
    %4266 = vmatprep.subr.bf16.mxu0 %v3218
    %4267 = vmatpush1.bf16.msra.mxu0 %v3217
    %4268 = vmatprep.subr.bf16.mxu0 %v3221
    %4269 = vmatpush1.bf16.msra.mxu0 %v3220
    %4270 = vmatprep.subr.bf16.mxu0 %v3224
    %4271 = vmatpush1.bf16.msra.mxu0 %v3223
    %4272 = vmatprep.subr.bf16.mxu0 %v3227
    %4273 = vmatpush1.bf16.msra.mxu0 %v3226
    %4274 = vmatprep.subr.bf16.mxu0 %v3230
    %4275 = vmatpush1.bf16.msra.mxu0 %v3229
    %4276 = vmatprep.subr.bf16.mxu0 0
    %4277 = vmatpush1.bf16.msra.mxu0 0
    %4278 = vmatprep.subr.bf16.mxu0 0
    %4279 = vmatpush1.bf16.msra.mxu0 0
    %4280 = vmatprep.subr.bf16.mxu0 0
    %4281 = vmatpush1.bf16.msra.mxu0 0
    %4282 = vmatprep.subr.bf16.mxu0 0
    %4283 = vmatpush1.bf16.msra.mxu0 0
    %4284 = vmatprep.subr.bf16.mxu0 0
    %4285 = vmatpush1.bf16.msra.mxu0 0
    %4286 = vmatprep.subr.bf16.mxu0 0
    %4287 = vmatpush1.bf16.msra.mxu0 0
    %4288 = vmatprep.subr.bf16.mxu0 0
    %4289 = vmatpush1.bf16.msra.mxu0 0
    %4290 = vmatprep.subr.bf16.mxu0 0
    %4291 = vmatpush1.bf16.msra.mxu0 0
    %4292 = vmatprep.mubr.bf16.mxu0 0
    %4293 = vmatmul.mubr.bf16.gmra.mrb[0].mxu0 %v4259
    %v4294 = vpop.f32.mrb[0].mxu0
    %v4295 = vadd.f32 %v3116, %v4294
    %v4296 = vpop.f32.mrb[0].mxu0
    %v4297 = vadd.f32 %v3120, %v4296
    %v4298 = vpop.f32.mrb[0].mxu0
    %v4299 = vpop.f32.mrb[0].mxu0
    %4300 = vdwg.mxu0
    %4301 = vmatprep.subr.bf16.mxu0 0
    %4302 = vmatpush1.bf16.msra.mxu0 %v3210
    %4303 = vmatprep.subr.bf16.mxu0 0
    %4304 = vmatpush1.bf16.msra.mxu0 %v3213
    %4305 = vmatprep.subr.bf16.mxu0 0
    %4306 = vmatpush1.bf16.msra.mxu0 %v3216
    %4307 = vmatprep.subr.bf16.mxu0 0
    %4308 = vmatpush1.bf16.msra.mxu0 %v3219
    %4309 = vmatprep.subr.bf16.mxu0 0
    %4310 = vmatpush1.bf16.msra.mxu0 %v3222
    %4311 = vmatprep.subr.bf16.mxu0 0
    %4312 = vmatpush1.bf16.msra.mxu0 %v3225
    %4313 = vmatprep.subr.bf16.mxu0 0
    %4314 = vmatpush1.bf16.msra.mxu0 %v3228
    %4315 = vmatprep.subr.bf16.mxu0 0
    %4316 = vmatpush1.bf16.msra.mxu0 %v3231
    %4317 = vmatprep.subr.bf16.mxu0 0
    %4318 = vmatpush1.bf16.msra.mxu0 0
    %4319 = vmatprep.subr.bf16.mxu0 0
    %4320 = vmatpush1.bf16.msra.mxu0 0
    %4321 = vmatprep.subr.bf16.mxu0 0
    %4322 = vmatpush1.bf16.msra.mxu0 0
    %4323 = vmatprep.subr.bf16.mxu0 0
    %4324 = vmatpush1.bf16.msra.mxu0 0
    %4325 = vmatprep.subr.bf16.mxu0 0
    %4326 = vmatpush1.bf16.msra.mxu0 0
    %4327 = vmatprep.subr.bf16.mxu0 0
    %4328 = vmatpush1.bf16.msra.mxu0 0
    %4329 = vmatprep.subr.bf16.mxu0 0
    %4330 = vmatpush1.bf16.msra.mxu0 0
    %4331 = vmatprep.subr.bf16.mxu0 0
    %4332 = vmatpush1.bf16.msra.mxu0 0
    %4333 = vmatprep.mubr.bf16.mxu0 0
    %4334 = vmatmul.mubr.bf16.gmra.mrb[0].mxu0 %v4259
    %v4335 = vpop.f32.mrb[0].mxu0
    %v4336 = vadd.f32 %v3124, %v4335
    %v4337 = vpop.f32.mrb[0].mxu0
    %v4338 = vpop.f32.mrb[0].mxu0
    %v4339 = vpop.f32.mrb[0].mxu0
    %4340 = vdwg.mxu0
    %v4341 = vpack.c.bf16 %v4156, %v4156
    %4342 = vmatprep.subr.bf16.mxu0 %v3434
    %4343 = vmatpush1.bf16.msra.mxu0 %v3433
    %4344 = vmatprep.subr.bf16.mxu0 %v3437
    %4345 = vmatpush1.bf16.msra.mxu0 %v3436
    %4346 = vmatprep.subr.bf16.mxu0 %v3440
    %4347 = vmatpush1.bf16.msra.mxu0 %v3439
    %4348 = vmatprep.subr.bf16.mxu0 %v3443
    %4349 = vmatpush1.bf16.msra.mxu0 %v3442
    %4350 = vmatprep.subr.bf16.mxu0 %v3446
    %4351 = vmatpush1.bf16.msra.mxu0 %v3445
    %4352 = vmatprep.subr.bf16.mxu0 %v3449
    %4353 = vmatpush1.bf16.msra.mxu0 %v3448
    %4354 = vmatprep.subr.bf16.mxu0 %v3452
    %4355 = vmatpush1.bf16.msra.mxu0 %v3451
    %4356 = vmatprep.subr.bf16.mxu0 %v3455
    %4357 = vmatpush1.bf16.msra.mxu0 %v3454
    %4358 = vmatprep.subr.bf16.mxu0 0
    %4359 = vmatpush1.bf16.msra.mxu0 0
    %4360 = vmatprep.subr.bf16.mxu0 0
    %4361 = vmatpush1.bf16.msra.mxu0 0
    %4362 = vmatprep.subr.bf16.mxu0 0
    %4363 = vmatpush1.bf16.msra.mxu0 0
    %4364 = vmatprep.subr.bf16.mxu0 0
    %4365 = vmatpush1.bf16.msra.mxu0 0
    %4366 = vmatprep.subr.bf16.mxu0 0
    %4367 = vmatpush1.bf16.msra.mxu0 0
    %4368 = vmatprep.subr.bf16.mxu0 0
    %4369 = vmatpush1.bf16.msra.mxu0 0
    %4370 = vmatprep.subr.bf16.mxu0 0
    %4371 = vmatpush1.bf16.msra.mxu0 0
    %4372 = vmatprep.subr.bf16.mxu0 0
    %4373 = vmatpush1.bf16.msra.mxu0 0
    %4374 = vmatprep.mubr.bf16.mxu0 0
    %4375 = vmatmul.mubr.bf16.gmra.mrb[0].mxu0 %v4341
    %v4376 = vpop.f32.mrb[0].mxu0
    %v4377 = vadd.f32 %v3341, %v4376
    %v4378 = vpop.f32.mrb[0].mxu0
    %v4379 = vadd.f32 %v3345, %v4378
    %v4380 = vpop.f32.mrb[0].mxu0
    %v4381 = vpop.f32.mrb[0].mxu0
    %4382 = vdwg.mxu0
    %4383 = vmatprep.subr.bf16.mxu0 0
    %4384 = vmatpush1.bf16.msra.mxu0 %v3435
    %4385 = vmatprep.subr.bf16.mxu0 0
    %4386 = vmatpush1.bf16.msra.mxu0 %v3438
    %4387 = vmatprep.subr.bf16.mxu0 0
    %4388 = vmatpush1.bf16.msra.mxu0 %v3441
    %4389 = vmatprep.subr.bf16.mxu0 0
    %4390 = vmatpush1.bf16.msra.mxu0 %v3444
    %4391 = vmatprep.subr.bf16.mxu0 0
    %4392 = vmatpush1.bf16.msra.mxu0 %v3447
    %4393 = vmatprep.subr.bf16.mxu0 0
    %4394 = vmatpush1.bf16.msra.mxu0 %v3450
    %4395 = vmatprep.subr.bf16.mxu0 0
    %4396 = vmatpush1.bf16.msra.mxu0 %v3453
    %4397 = vmatprep.subr.bf16.mxu0 0
    %4398 = vmatpush1.bf16.msra.mxu0 %v3456
    %4399 = vmatprep.subr.bf16.mxu0 0
    %4400 = vmatpush1.bf16.msra.mxu0 0
    %4401 = vmatprep.subr.bf16.mxu0 0
    %4402 = vmatpush1.bf16.msra.mxu0 0
    %4403 = vmatprep.subr.bf16.mxu0 0
    %4404 = vmatpush1.bf16.msra.mxu0 0
    %4405 = vmatprep.subr.bf16.mxu0 0
    %4406 = vmatpush1.bf16.msra.mxu0 0
    %4407 = vmatprep.subr.bf16.mxu0 0
    %4408 = vmatpush1.bf16.msra.mxu0 0
    %4409 = vmatprep.subr.bf16.mxu0 0
    %4410 = vmatpush1.bf16.msra.mxu0 0
    %4411 = vmatprep.subr.bf16.mxu0 0
    %4412 = vmatpush1.bf16.msra.mxu0 0
    %4413 = vmatprep.subr.bf16.mxu0 0
    %4414 = vmatpush1.bf16.msra.mxu0 0
    %4415 = vmatprep.mubr.bf16.mxu0 0
    %4416 = vmatmul.mubr.bf16.gmra.mrb[0].mxu0 %v4341
    %v4417 = vpop.f32.mrb[0].mxu0
    %v4418 = vadd.f32 %v3349, %v4417
    %v4419 = vpop.f32.mrb[0].mxu0
    %v4420 = vpop.f32.mrb[0].mxu0
    %v4421 = vpop.f32.mrb[0].mxu0
    %4422 = vdwg.mxu0
    %v4423 = vadd.f32 %v4295, %v4377
    %v4424 = vxor.u32 %v4423, 2147483648
    %v4425 = vmul.f32 %v4424, 1.442695
    %v4426 = vpow.pop %v4425
    %v4427 = vadd.f32 %v4426, 1.0
    %v4428 = vrcp.pop %v4427
    %v4429 = vmul.f32 1.0, %v4428
    %v4430 = vadd.f32 %v4297, %v4379
    %v4431 = vxor.u32 %v4430, 2147483648
    %v4432 = vmul.f32 %v4431, 1.442695
    %v4433 = vpow.pop %v4432
    %v4434 = vadd.f32 %v4433, 1.0
    %v4435 = vrcp.pop %v4434
    %v4436 = vmul.f32 1.0, %v4435
    %v4437 = vmul.f32 %v4429, %v4418
    %v4438 = vadd.f32 %v4336, %v4437
    %v4439 = vtanh.pop %v4438
    %v4440 = vsub.f32 1.0, %v4436
    %v4441 = vmul.f32 %v4440, %v4439
    %v4442 = vmul.f32 %v4436, %v4156
    %v4443 = vadd.f32 %v4441, %v4442
    %4444 = vmatprep.subr.bf16.mxu0 %v2962
    %4445 = vmatpush1.bf16.msra.mxu0 %v2961
    %4446 = vmatprep.subr.bf16.mxu0 %v2965
    %4447 = vmatpush1.bf16.msra.mxu0 %v2964
    %4448 = vmatprep.subr.bf16.mxu0 %v2968
    %4449 = vmatpush1.bf16.msra.mxu0 %v2967
    %4450 = vmatprep.subr.bf16.mxu0 %v2971
    %4451 = vmatpush1.bf16.msra.mxu0 %v2970
    %4452 = vmatprep.subr.bf16.mxu0 %v2974
    %4453 = vmatpush1.bf16.msra.mxu0 %v2973
    %4454 = vmatprep.subr.bf16.mxu0 %v2977
    %4455 = vmatpush1.bf16.msra.mxu0 %v2976
    %4456 = vmatprep.subr.bf16.mxu0 %v2980
    %4457 = vmatpush1.bf16.msra.mxu0 %v2979
    %4458 = vmatprep.subr.bf16.mxu0 %v2983
    %4459 = vmatpush1.bf16.msra.mxu0 %v2982
    %4460 = vmatprep.subr.bf16.mxu0 0
    %4461 = vmatpush1.bf16.msra.mxu0 0
    %4462 = vmatprep.subr.bf16.mxu0 0
    %4463 = vmatpush1.bf16.msra.mxu0 0
    %4464 = vmatprep.subr.bf16.mxu0 0
    %4465 = vmatpush1.bf16.msra.mxu0 0
    %4466 = vmatprep.subr.bf16.mxu0 0
    %4467 = vmatpush1.bf16.msra.mxu0 0
    %4468 = vmatprep.subr.bf16.mxu0 0
    %4469 = vmatpush1.bf16.msra.mxu0 0
    %4470 = vmatprep.subr.bf16.mxu0 0
    %4471 = vmatpush1.bf16.msra.mxu0 0
    %4472 = vmatprep.subr.bf16.mxu0 0
    %4473 = vmatpush1.bf16.msra.mxu0 0
    %4474 = vmatprep.subr.bf16.mxu0 0
    %4475 = vmatpush1.bf16.msra.mxu0 0
    %4476 = vmatprep.mubr.bf16.mxu0 0
    %4477 = vmatmul.mubr.bf16.gmra.mrb[0].mxu0 %v4259
    %v4478 = vpop.f32.mrb[0].mxu0
    %v4479 = vadd.f32 %v2869, %v4478
    %v4480 = vpop.f32.mrb[0].mxu0
    %v4481 = vadd.f32 %v2873, %v4480
    %v4482 = vpop.f32.mrb[0].mxu0
    %v4483 = vpop.f32.mrb[0].mxu0
    %4484 = vdwg.mxu0
    %4485 = vmatprep.subr.bf16.mxu0 0
    %4486 = vmatpush1.bf16.msra.mxu0 %v2963
    %4487 = vmatprep.subr.bf16.mxu0 0
    %4488 = vmatpush1.bf16.msra.mxu0 %v2966
    %4489 = vmatprep.subr.bf16.mxu0 0
    %4490 = vmatpush1.bf16.msra.mxu0 %v2969
    %4491 = vmatprep.subr.bf16.mxu0 0
    %4492 = vmatpush1.bf16.msra.mxu0 %v2972
    %4493 = vmatprep.subr.bf16.mxu0 0
    %4494 = vmatpush1.bf16.msra.mxu0 %v2975
    %4495 = vmatprep.subr.bf16.mxu0 0
    %4496 = vmatpush1.bf16.msra.mxu0 %v2978
    %4497 = vmatprep.subr.bf16.mxu0 0
    %4498 = vmatpush1.bf16.msra.mxu0 %v2981
    %4499 = vmatprep.subr.bf16.mxu0 0
    %4500 = vmatpush1.bf16.msra.mxu0 %v2984
    %4501 = vmatprep.subr.bf16.mxu0 0
    %4502 = vmatpush1.bf16.msra.mxu0 0
    %4503 = vmatprep.subr.bf16.mxu0 0
    %4504 = vmatpush1.bf16.msra.mxu0 0
    %4505 = vmatprep.subr.bf16.mxu0 0
    %4506 = vmatpush1.bf16.msra.mxu0 0
    %4507 = vmatprep.subr.bf16.mxu0 0
    %4508 = vmatpush1.bf16.msra.mxu0 0
    %4509 = vmatprep.subr.bf16.mxu0 0
    %4510 = vmatpush1.bf16.msra.mxu0 0
    %4511 = vmatprep.subr.bf16.mxu0 0
    %4512 = vmatpush1.bf16.msra.mxu0 0
    %4513 = vmatprep.subr.bf16.mxu0 0
    %4514 = vmatpush1.bf16.msra.mxu0 0
    %4515 = vmatprep.subr.bf16.mxu0 0
    %4516 = vmatpush1.bf16.msra.mxu0 0
    %4517 = vmatprep.mubr.bf16.mxu0 0
    %4518 = vmatmul.mubr.bf16.gmra.mrb[0].mxu0 %v4259
    %v4519 = vpop.f32.mrb[0].mxu0
    %v4520 = vadd.f32 %v2877, %v4519
    %v4521 = vpop.f32.mrb[0].mxu0
    %v4522 = vpop.f32.mrb[0].mxu0
    %v4523 = vpop.f32.mrb[0].mxu0
    %4524 = vdwg.mxu0
    %v4525 = vadd.f32 %v2611, %v4479
    %v4526 = vxor.u32 %v4525, 2147483648
    %v4527 = vmul.f32 %v4526, 1.442695
    %v4528 = vpow.pop %v4527
    %v4529 = vadd.f32 %v4528, 1.0
    %v4530 = vrcp.pop %v4529
    %v4531 = vmul.f32 1.0, %v4530
    %v4532 = vadd.f32 %v2613, %v4481
    %v4533 = vxor.u32 %v4532, 2147483648
    %v4534 = vmul.f32 %v4533, 1.442695
    %v4535 = vpow.pop %v4534
    %v4536 = vadd.f32 %v4535, 1.0
    %v4537 = vrcp.pop %v4536
    %v4538 = vmul.f32 1.0, %v4537
    %v4539 = vmul.f32 %v4531, %v4520
    %v4540 = vadd.f32 %v2720, %v4539
    %v4541 = vtanh.pop %v4540
    %v4542 = vsub.f32 1.0, %v4538
    %v4543 = vmul.f32 %v4542, %v4541
    %v4544 = vmul.f32 %v4538, %v4258
    %v4545 = vadd.f32 %v4543, %v4544
    %v4546 = vpack.c.bf16 %v4545, %v4545
    %4547 = vmatprep.subr.bf16.mxu0 %v3209
    %4548 = vmatpush1.bf16.msra.mxu0 %v3208
    %4549 = vmatprep.subr.bf16.mxu0 %v3212
    %4550 = vmatpush1.bf16.msra.mxu0 %v3211
    %4551 = vmatprep.subr.bf16.mxu0 %v3215
    %4552 = vmatpush1.bf16.msra.mxu0 %v3214
    %4553 = vmatprep.subr.bf16.mxu0 %v3218
    %4554 = vmatpush1.bf16.msra.mxu0 %v3217
    %4555 = vmatprep.subr.bf16.mxu0 %v3221
    %4556 = vmatpush1.bf16.msra.mxu0 %v3220
    %4557 = vmatprep.subr.bf16.mxu0 %v3224
    %4558 = vmatpush1.bf16.msra.mxu0 %v3223
    %4559 = vmatprep.subr.bf16.mxu0 %v3227
    %4560 = vmatpush1.bf16.msra.mxu0 %v3226
    %4561 = vmatprep.subr.bf16.mxu0 %v3230
    %4562 = vmatpush1.bf16.msra.mxu0 %v3229
    %4563 = vmatprep.subr.bf16.mxu0 0
    %4564 = vmatpush1.bf16.msra.mxu0 0
    %4565 = vmatprep.subr.bf16.mxu0 0
    %4566 = vmatpush1.bf16.msra.mxu0 0
    %4567 = vmatprep.subr.bf16.mxu0 0
    %4568 = vmatpush1.bf16.msra.mxu0 0
    %4569 = vmatprep.subr.bf16.mxu0 0
    %4570 = vmatpush1.bf16.msra.mxu0 0
    %4571 = vmatprep.subr.bf16.mxu0 0
    %4572 = vmatpush1.bf16.msra.mxu0 0
    %4573 = vmatprep.subr.bf16.mxu0 0
    %4574 = vmatpush1.bf16.msra.mxu0 0
    %4575 = vmatprep.subr.bf16.mxu0 0
    %4576 = vmatpush1.bf16.msra.mxu0 0
    %4577 = vmatprep.subr.bf16.mxu0 0
    %4578 = vmatpush1.bf16.msra.mxu0 0
    %4579 = vmatprep.mubr.bf16.mxu0 0
    %4580 = vmatmul.mubr.bf16.gmra.mrb[0].mxu0 %v4546
    %v4581 = vpop.f32.mrb[0].mxu0
    %v4582 = vadd.f32 %v3116, %v4581
    %v4583 = vpop.f32.mrb[0].mxu0
    %v4584 = vadd.f32 %v3120, %v4583
    %v4585 = vpop.f32.mrb[0].mxu0
    %v4586 = vpop.f32.mrb[0].mxu0
    %4587 = vdwg.mxu0
    %4588 = vmatprep.subr.bf16.mxu0 0
    %4589 = vmatpush1.bf16.msra.mxu0 %v3210
    %4590 = vmatprep.subr.bf16.mxu0 0
    %4591 = vmatpush1.bf16.msra.mxu0 %v3213
    %4592 = vmatprep.subr.bf16.mxu0 0
    %4593 = vmatpush1.bf16.msra.mxu0 %v3216
    %4594 = vmatprep.subr.bf16.mxu0 0
    %4595 = vmatpush1.bf16.msra.mxu0 %v3219
    %4596 = vmatprep.subr.bf16.mxu0 0
    %4597 = vmatpush1.bf16.msra.mxu0 %v3222
    %4598 = vmatprep.subr.bf16.mxu0 0
    %4599 = vmatpush1.bf16.msra.mxu0 %v3225
    %4600 = vmatprep.subr.bf16.mxu0 0
    %4601 = vmatpush1.bf16.msra.mxu0 %v3228
    %4602 = vmatprep.subr.bf16.mxu0 0
    %4603 = vmatpush1.bf16.msra.mxu0 %v3231
    %4604 = vmatprep.subr.bf16.mxu0 0
    %4605 = vmatpush1.bf16.msra.mxu0 0
    %4606 = vmatprep.subr.bf16.mxu0 0
    %4607 = vmatpush1.bf16.msra.mxu0 0
    %4608 = vmatprep.subr.bf16.mxu0 0
    %4609 = vmatpush1.bf16.msra.mxu0 0
    %4610 = vmatprep.subr.bf16.mxu0 0
    %4611 = vmatpush1.bf16.msra.mxu0 0
    %4612 = vmatprep.subr.bf16.mxu0 0
    %4613 = vmatpush1.bf16.msra.mxu0 0
    %4614 = vmatprep.subr.bf16.mxu0 0
    %4615 = vmatpush1.bf16.msra.mxu0 0
    %4616 = vmatprep.subr.bf16.mxu0 0
    %4617 = vmatpush1.bf16.msra.mxu0 0
    %4618 = vmatprep.subr.bf16.mxu0 0
    %4619 = vmatpush1.bf16.msra.mxu0 0
    %4620 = vmatprep.mubr.bf16.mxu0 0
    %4621 = vmatmul.mubr.bf16.gmra.mrb[0].mxu0 %v4546
    %v4622 = vpop.f32.mrb[0].mxu0
    %v4623 = vadd.f32 %v3124, %v4622
    %v4624 = vpop.f32.mrb[0].mxu0
    %v4625 = vpop.f32.mrb[0].mxu0
    %v4626 = vpop.f32.mrb[0].mxu0
    %4627 = vdwg.mxu0
    %v4628 = vpack.c.bf16 %v4443, %v4443
    %4629 = vmatprep.subr.bf16.mxu0 %v3434
    %4630 = vmatpush1.bf16.msra.mxu0 %v3433
    %4631 = vmatprep.subr.bf16.mxu0 %v3437
    %4632 = vmatpush1.bf16.msra.mxu0 %v3436
    %4633 = vmatprep.subr.bf16.mxu0 %v3440
    %4634 = vmatpush1.bf16.msra.mxu0 %v3439
    %4635 = vmatprep.subr.bf16.mxu0 %v3443
    %4636 = vmatpush1.bf16.msra.mxu0 %v3442
    %4637 = vmatprep.subr.bf16.mxu0 %v3446
    %4638 = vmatpush1.bf16.msra.mxu0 %v3445
    %4639 = vmatprep.subr.bf16.mxu0 %v3449
    %4640 = vmatpush1.bf16.msra.mxu0 %v3448
    %4641 = vmatprep.subr.bf16.mxu0 %v3452
    %4642 = vmatpush1.bf16.msra.mxu0 %v3451
    %4643 = vmatprep.subr.bf16.mxu0 %v3455
    %4644 = vmatpush1.bf16.msra.mxu0 %v3454
    %4645 = vmatprep.subr.bf16.mxu0 0
    %4646 = vmatpush1.bf16.msra.mxu0 0
    %4647 = vmatprep.subr.bf16.mxu0 0
    %4648 = vmatpush1.bf16.msra.mxu0 0
    %4649 = vmatprep.subr.bf16.mxu0 0
    %4650 = vmatpush1.bf16.msra.mxu0 0
    %4651 = vmatprep.subr.bf16.mxu0 0
    %4652 = vmatpush1.bf16.msra.mxu0 0
    %4653 = vmatprep.subr.bf16.mxu0 0
    %4654 = vmatpush1.bf16.msra.mxu0 0
    %4655 = vmatprep.subr.bf16.mxu0 0
    %4656 = vmatpush1.bf16.msra.mxu0 0
    %4657 = vmatprep.subr.bf16.mxu0 0
    %4658 = vmatpush1.bf16.msra.mxu0 0
    %4659 = vmatprep.subr.bf16.mxu0 0
    %4660 = vmatpush1.bf16.msra.mxu0 0
    %4661 = vmatprep.mubr.bf16.mxu0 0
    %4662 = vmatmul.mubr.bf16.gmra.mrb[0].mxu0 %v4628
    %v4663 = vpop.f32.mrb[0].mxu0
    %v4664 = vadd.f32 %v3341, %v4663
    %v4665 = vpop.f32.mrb[0].mxu0
    %v4666 = vadd.f32 %v3345, %v4665
    %v4667 = vpop.f32.mrb[0].mxu0
    %v4668 = vpop.f32.mrb[0].mxu0
    %4669 = vdwg.mxu0
    %4670 = vmatprep.subr.bf16.mxu0 0
    %4671 = vmatpush1.bf16.msra.mxu0 %v3435
    %4672 = vmatprep.subr.bf16.mxu0 0
    %4673 = vmatpush1.bf16.msra.mxu0 %v3438
    %4674 = vmatprep.subr.bf16.mxu0 0
    %4675 = vmatpush1.bf16.msra.mxu0 %v3441
    %4676 = vmatprep.subr.bf16.mxu0 0
    %4677 = vmatpush1.bf16.msra.mxu0 %v3444
    %4678 = vmatprep.subr.bf16.mxu0 0
    %4679 = vmatpush1.bf16.msra.mxu0 %v3447
    %4680 = vmatprep.subr.bf16.mxu0 0
    %4681 = vmatpush1.bf16.msra.mxu0 %v3450
    %4682 = vmatprep.subr.bf16.mxu0 0
    %4683 = vmatpush1.bf16.msra.mxu0 %v3453
    %4684 = vmatprep.subr.bf16.mxu0 0
    %4685 = vmatpush1.bf16.msra.mxu0 %v3456
    %4686 = vmatprep.subr.bf16.mxu0 0
    %4687 = vmatpush1.bf16.msra.mxu0 0
    %4688 = vmatprep.subr.bf16.mxu0 0
    %4689 = vmatpush1.bf16.msra.mxu0 0
    %4690 = vmatprep.subr.bf16.mxu0 0
    %4691 = vmatpush1.bf16.msra.mxu0 0
    %4692 = vmatprep.subr.bf16.mxu0 0
    %4693 = vmatpush1.bf16.msra.mxu0 0
    %4694 = vmatprep.subr.bf16.mxu0 0
    %4695 = vmatpush1.bf16.msra.mxu0 0
    %4696 = vmatprep.subr.bf16.mxu0 0
    %4697 = vmatpush1.bf16.msra.mxu0 0
    %4698 = vmatprep.subr.bf16.mxu0 0
    %4699 = vmatpush1.bf16.msra.mxu0 0
    %4700 = vmatprep.subr.bf16.mxu0 0
    %4701 = vmatpush1.bf16.msra.mxu0 0
    %4702 = vmatprep.mubr.bf16.mxu0 0
    %4703 = vmatmul.mubr.bf16.gmra.mrb[0].mxu0 %v4628
    %v4704 = vpop.f32.mrb[0].mxu0
    %v4705 = vadd.f32 %v3349, %v4704
    %v4706 = vpop.f32.mrb[0].mxu0
    %v4707 = vpop.f32.mrb[0].mxu0
    %v4708 = vpop.f32.mrb[0].mxu0
    %4709 = vdwg.mxu0
    %v4710 = vadd.f32 %v4582, %v4664
    %v4711 = vxor.u32 %v4710, 2147483648
    %v4712 = vmul.f32 %v4711, 1.442695
    %v4713 = vpow.pop %v4712
    %v4714 = vadd.f32 %v4713, 1.0
    %v4715 = vrcp.pop %v4714
    %v4716 = vmul.f32 1.0, %v4715
    %v4717 = vadd.f32 %v4584, %v4666
    %v4718 = vxor.u32 %v4717, 2147483648
    %v4719 = vmul.f32 %v4718, 1.442695
    %v4720 = vpow.pop %v4719
    %v4721 = vadd.f32 %v4720, 1.0
    %v4722 = vrcp.pop %v4721
    %v4723 = vmul.f32 1.0, %v4722
    %v4724 = vmul.f32 %v4716, %v4705
    %v4725 = vadd.f32 %v4623, %v4724
    %v4726 = vtanh.pop %v4725
    %v4727 = vsub.f32 1.0, %v4723
    %v4728 = vmul.f32 %v4727, %v4726
    %v4729 = vmul.f32 %v4723, %v4443
    %v4730 = vadd.f32 %v4728, %v4729
    %4731 = vmatprep.subr.bf16.mxu0 %v2962
    %4732 = vmatpush1.bf16.msra.mxu0 %v2961
    %4733 = vmatprep.subr.bf16.mxu0 %v2965
    %4734 = vmatpush1.bf16.msra.mxu0 %v2964
    %4735 = vmatprep.subr.bf16.mxu0 %v2968
    %4736 = vmatpush1.bf16.msra.mxu0 %v2967
    %4737 = vmatprep.subr.bf16.mxu0 %v2971
    %4738 = vmatpush1.bf16.msra.mxu0 %v2970
    %4739 = vmatprep.subr.bf16.mxu0 %v2974
    %4740 = vmatpush1.bf16.msra.mxu0 %v2973
    %4741 = vmatprep.subr.bf16.mxu0 %v2977
    %4742 = vmatpush1.bf16.msra.mxu0 %v2976
    %4743 = vmatprep.subr.bf16.mxu0 %v2980
    %4744 = vmatpush1.bf16.msra.mxu0 %v2979
    %4745 = vmatprep.subr.bf16.mxu0 %v2983
    %4746 = vmatpush1.bf16.msra.mxu0 %v2982
    %4747 = vmatprep.subr.bf16.mxu0 0
    %4748 = vmatpush1.bf16.msra.mxu0 0
    %4749 = vmatprep.subr.bf16.mxu0 0
    %4750 = vmatpush1.bf16.msra.mxu0 0
    %4751 = vmatprep.subr.bf16.mxu0 0
    %4752 = vmatpush1.bf16.msra.mxu0 0
    %4753 = vmatprep.subr.bf16.mxu0 0
    %4754 = vmatpush1.bf16.msra.mxu0 0
    %4755 = vmatprep.subr.bf16.mxu0 0
    %4756 = vmatpush1.bf16.msra.mxu0 0
    %4757 = vmatprep.subr.bf16.mxu0 0
    %4758 = vmatpush1.bf16.msra.mxu0 0
    %4759 = vmatprep.subr.bf16.mxu0 0
    %4760 = vmatpush1.bf16.msra.mxu0 0
    %4761 = vmatprep.subr.bf16.mxu0 0
    %4762 = vmatpush1.bf16.msra.mxu0 0
    %4763 = vmatprep.mubr.bf16.mxu0 0
    %4764 = vmatmul.mubr.bf16.gmra.mrb[0].mxu0 %v4546
    %v4765 = vpop.f32.mrb[0].mxu0
    %v4766 = vadd.f32 %v2869, %v4765
    %v4767 = vpop.f32.mrb[0].mxu0
    %v4768 = vadd.f32 %v2873, %v4767
    %v4769 = vpop.f32.mrb[0].mxu0
    %v4770 = vpop.f32.mrb[0].mxu0
    %4771 = vdwg.mxu0
    %4772 = vmatprep.subr.bf16.mxu0 0
    %4773 = vmatpush1.bf16.msra.mxu0 %v2963
    %4774 = vmatprep.subr.bf16.mxu0 0
    %4775 = vmatpush1.bf16.msra.mxu0 %v2966
    %4776 = vmatprep.subr.bf16.mxu0 0
    %4777 = vmatpush1.bf16.msra.mxu0 %v2969
    %4778 = vmatprep.subr.bf16.mxu0 0
    %4779 = vmatpush1.bf16.msra.mxu0 %v2972
    %4780 = vmatprep.subr.bf16.mxu0 0
    %4781 = vmatpush1.bf16.msra.mxu0 %v2975
    %4782 = vmatprep.subr.bf16.mxu0 0
    %4783 = vmatpush1.bf16.msra.mxu0 %v2978
    %4784 = vmatprep.subr.bf16.mxu0 0
    %4785 = vmatpush1.bf16.msra.mxu0 %v2981
    %4786 = vmatprep.subr.bf16.mxu0 0
    %4787 = vmatpush1.bf16.msra.mxu0 %v2984
    %4788 = vmatprep.subr.bf16.mxu0 0
    %4789 = vmatpush1.bf16.msra.mxu0 0
    %4790 = vmatprep.subr.bf16.mxu0 0
    %4791 = vmatpush1.bf16.msra.mxu0 0
    %4792 = vmatprep.subr.bf16.mxu0 0
    %4793 = vmatpush1.bf16.msra.mxu0 0
    %4794 = vmatprep.subr.bf16.mxu0 0
    %4795 = vmatpush1.bf16.msra.mxu0 0
    %4796 = vmatprep.subr.bf16.mxu0 0
    %4797 = vmatpush1.bf16.msra.mxu0 0
    %4798 = vmatprep.subr.bf16.mxu0 0
    %4799 = vmatpush1.bf16.msra.mxu0 0
    %4800 = vmatprep.subr.bf16.mxu0 0
    %4801 = vmatpush1.bf16.msra.mxu0 0
    %4802 = vmatprep.subr.bf16.mxu0 0
    %4803 = vmatpush1.bf16.msra.mxu0 0
    %4804 = vmatprep.mubr.bf16.mxu0 0
    %4805 = vmatmul.mubr.bf16.gmra.mrb[0].mxu0 %v4546
    %v4806 = vpop.f32.mrb[0].mxu0
    %v4807 = vadd.f32 %v2877, %v4806
    %v4808 = vpop.f32.mrb[0].mxu0
    %v4809 = vpop.f32.mrb[0].mxu0
    %v4810 = vpop.f32.mrb[0].mxu0
    %4811 = vdwg.mxu0
    %v4812 = vadd.f32 %v2615, %v4766
    %v4813 = vxor.u32 %v4812, 2147483648
    %v4814 = vmul.f32 %v4813, 1.442695
    %v4815 = vpow.pop %v4814
    %v4816 = vadd.f32 %v4815, 1.0
    %v4817 = vrcp.pop %v4816
    %v4818 = vmul.f32 1.0, %v4817
    %v4819 = vadd.f32 %v2617, %v4768
    %v4820 = vxor.u32 %v4819, 2147483648
    %v4821 = vmul.f32 %v4820, 1.442695
    %v4822 = vpow.pop %v4821
    %v4823 = vadd.f32 %v4822, 1.0
    %v4824 = vrcp.pop %v4823
    %v4825 = vmul.f32 1.0, %v4824
    %v4826 = vmul.f32 %v4818, %v4807
    %v4827 = vadd.f32 %v2723, %v4826
    %v4828 = vtanh.pop %v4827
    %v4829 = vsub.f32 1.0, %v4825
    %v4830 = vmul.f32 %v4829, %v4828
    %v4831 = vmul.f32 %v4825, %v4545
    %v4832 = vadd.f32 %v4830, %v4831
    %v4833 = vpack.c.bf16 %v4832, %v4832
    %4834 = vmatprep.subr.bf16.mxu0 %v3209
    %4835 = vmatpush1.bf16.msra.mxu0 %v3208
    %4836 = vmatprep.subr.bf16.mxu0 %v3212
    %4837 = vmatpush1.bf16.msra.mxu0 %v3211
    %4838 = vmatprep.subr.bf16.mxu0 %v3215
    %4839 = vmatpush1.bf16.msra.mxu0 %v3214
    %4840 = vmatprep.subr.bf16.mxu0 %v3218
    %4841 = vmatpush1.bf16.msra.mxu0 %v3217
    %4842 = vmatprep.subr.bf16.mxu0 %v3221
    %4843 = vmatpush1.bf16.msra.mxu0 %v3220
    %4844 = vmatprep.subr.bf16.mxu0 %v3224
    %4845 = vmatpush1.bf16.msra.mxu0 %v3223
    %4846 = vmatprep.subr.bf16.mxu0 %v3227
    %4847 = vmatpush1.bf16.msra.mxu0 %v3226
    %4848 = vmatprep.subr.bf16.mxu0 %v3230
    %4849 = vmatpush1.bf16.msra.mxu0 %v3229
    %4850 = vmatprep.subr.bf16.mxu0 0
    %4851 = vmatpush1.bf16.msra.mxu0 0
    %4852 = vmatprep.subr.bf16.mxu0 0
    %4853 = vmatpush1.bf16.msra.mxu0 0
    %4854 = vmatprep.subr.bf16.mxu0 0
    %4855 = vmatpush1.bf16.msra.mxu0 0
    %4856 = vmatprep.subr.bf16.mxu0 0
    %4857 = vmatpush1.bf16.msra.mxu0 0
    %4858 = vmatprep.subr.bf16.mxu0 0
    %4859 = vmatpush1.bf16.msra.mxu0 0
    %4860 = vmatprep.subr.bf16.mxu0 0
    %4861 = vmatpush1.bf16.msra.mxu0 0
    %4862 = vmatprep.subr.bf16.mxu0 0
    %4863 = vmatpush1.bf16.msra.mxu0 0
    %4864 = vmatprep.subr.bf16.mxu0 0
    %4865 = vmatpush1.bf16.msra.mxu0 0
    %4866 = vmatprep.mubr.bf16.mxu0 0
    %4867 = vmatmul.mubr.bf16.gmra.mrb[0].mxu0 %v4833
    %v4868 = vpop.f32.mrb[0].mxu0
    %v4869 = vadd.f32 %v3116, %v4868
    %v4870 = vpop.f32.mrb[0].mxu0
    %v4871 = vadd.f32 %v3120, %v4870
    %v4872 = vpop.f32.mrb[0].mxu0
    %v4873 = vpop.f32.mrb[0].mxu0
    %4874 = vdwg.mxu0
    %4875 = vmatprep.subr.bf16.mxu0 0
    %4876 = vmatpush1.bf16.msra.mxu0 %v3210
    %4877 = vmatprep.subr.bf16.mxu0 0
    %4878 = vmatpush1.bf16.msra.mxu0 %v3213
    %4879 = vmatprep.subr.bf16.mxu0 0
    %4880 = vmatpush1.bf16.msra.mxu0 %v3216
    %4881 = vmatprep.subr.bf16.mxu0 0
    %4882 = vmatpush1.bf16.msra.mxu0 %v3219
    %4883 = vmatprep.subr.bf16.mxu0 0
    %4884 = vmatpush1.bf16.msra.mxu0 %v3222
    %4885 = vmatprep.subr.bf16.mxu0 0
    %4886 = vmatpush1.bf16.msra.mxu0 %v3225
    %4887 = vmatprep.subr.bf16.mxu0 0
    %4888 = vmatpush1.bf16.msra.mxu0 %v3228
    %4889 = vmatprep.subr.bf16.mxu0 0
    %4890 = vmatpush1.bf16.msra.mxu0 %v3231
    %4891 = vmatprep.subr.bf16.mxu0 0
    %4892 = vmatpush1.bf16.msra.mxu0 0
    %4893 = vmatprep.subr.bf16.mxu0 0
    %4894 = vmatpush1.bf16.msra.mxu0 0
    %4895 = vmatprep.subr.bf16.mxu0 0
    %4896 = vmatpush1.bf16.msra.mxu0 0
    %4897 = vmatprep.subr.bf16.mxu0 0
    %4898 = vmatpush1.bf16.msra.mxu0 0
    %4899 = vmatprep.subr.bf16.mxu0 0
    %4900 = vmatpush1.bf16.msra.mxu0 0
    %4901 = vmatprep.subr.bf16.mxu0 0
    %4902 = vmatpush1.bf16.msra.mxu0 0
    %4903 = vmatprep.subr.bf16.mxu0 0
    %4904 = vmatpush1.bf16.msra.mxu0 0
    %4905 = vmatprep.subr.bf16.mxu0 0
    %4906 = vmatpush1.bf16.msra.mxu0 0
    %4907 = vmatprep.mubr.bf16.mxu0 0
    %4908 = vmatmul.mubr.bf16.gmra.mrb[0].mxu0 %v4833
    %v4909 = vpop.f32.mrb[0].mxu0
    %v4910 = vadd.f32 %v3124, %v4909
    %v4911 = vpop.f32.mrb[0].mxu0
    %v4912 = vpop.f32.mrb[0].mxu0
    %v4913 = vpop.f32.mrb[0].mxu0
    %4914 = vdwg.mxu0
    %v4915 = vpack.c.bf16 %v4730, %v4730
    %4916 = vmatprep.subr.bf16.mxu0 %v3434
    %4917 = vmatpush1.bf16.msra.mxu0 %v3433
    %4918 = vmatprep.subr.bf16.mxu0 %v3437
    %4919 = vmatpush1.bf16.msra.mxu0 %v3436
    %4920 = vmatprep.subr.bf16.mxu0 %v3440
    %4921 = vmatpush1.bf16.msra.mxu0 %v3439
    %4922 = vmatprep.subr.bf16.mxu0 %v3443
    %4923 = vmatpush1.bf16.msra.mxu0 %v3442
    %4924 = vmatprep.subr.bf16.mxu0 %v3446
    %4925 = vmatpush1.bf16.msra.mxu0 %v3445
    %4926 = vmatprep.subr.bf16.mxu0 %v3449
    %4927 = vmatpush1.bf16.msra.mxu0 %v3448
    %4928 = vmatprep.subr.bf16.mxu0 %v3452
    %4929 = vmatpush1.bf16.msra.mxu0 %v3451
    %4930 = vmatprep.subr.bf16.mxu0 %v3455
    %4931 = vmatpush1.bf16.msra.mxu0 %v3454
    %4932 = vmatprep.subr.bf16.mxu0 0
    %4933 = vmatpush1.bf16.msra.mxu0 0
    %4934 = vmatprep.subr.bf16.mxu0 0
    %4935 = vmatpush1.bf16.msra.mxu0 0
    %4936 = vmatprep.subr.bf16.mxu0 0
    %4937 = vmatpush1.bf16.msra.mxu0 0
    %4938 = vmatprep.subr.bf16.mxu0 0
    %4939 = vmatpush1.bf16.msra.mxu0 0
    %4940 = vmatprep.subr.bf16.mxu0 0
    %4941 = vmatpush1.bf16.msra.mxu0 0
    %4942 = vmatprep.subr.bf16.mxu0 0
    %4943 = vmatpush1.bf16.msra.mxu0 0
    %4944 = vmatprep.subr.bf16.mxu0 0
    %4945 = vmatpush1.bf16.msra.mxu0 0
    %4946 = vmatprep.subr.bf16.mxu0 0
    %4947 = vmatpush1.bf16.msra.mxu0 0
    %4948 = vmatprep.mubr.bf16.mxu0 0
    %4949 = vmatmul.mubr.bf16.gmra.mrb[0].mxu0 %v4915
    %v4950 = vpop.f32.mrb[0].mxu0
    %v4951 = vadd.f32 %v3341, %v4950
    %v4952 = vpop.f32.mrb[0].mxu0
    %v4953 = vadd.f32 %v3345, %v4952
    %v4954 = vpop.f32.mrb[0].mxu0
    %v4955 = vpop.f32.mrb[0].mxu0
    %4956 = vdwg.mxu0
    %4957 = vmatprep.subr.bf16.mxu0 0
    %4958 = vmatpush1.bf16.msra.mxu0 %v3435
    %4959 = vmatprep.subr.bf16.mxu0 0
    %4960 = vmatpush1.bf16.msra.mxu0 %v3438
    %4961 = vmatprep.subr.bf16.mxu0 0
    %4962 = vmatpush1.bf16.msra.mxu0 %v3441
    %4963 = vmatprep.subr.bf16.mxu0 0
    %4964 = vmatpush1.bf16.msra.mxu0 %v3444
    %4965 = vmatprep.subr.bf16.mxu0 0
    %4966 = vmatpush1.bf16.msra.mxu0 %v3447
    %4967 = vmatprep.subr.bf16.mxu0 0
    %4968 = vmatpush1.bf16.msra.mxu0 %v3450
    %4969 = vmatprep.subr.bf16.mxu0 0
    %4970 = vmatpush1.bf16.msra.mxu0 %v3453
    %4971 = vmatprep.subr.bf16.mxu0 0
    %4972 = vmatpush1.bf16.msra.mxu0 %v3456
    %4973 = vmatprep.subr.bf16.mxu0 0
    %4974 = vmatpush1.bf16.msra.mxu0 0
    %4975 = vmatprep.subr.bf16.mxu0 0
    %4976 = vmatpush1.bf16.msra.mxu0 0
    %4977 = vmatprep.subr.bf16.mxu0 0
    %4978 = vmatpush1.bf16.msra.mxu0 0
    %4979 = vmatprep.subr.bf16.mxu0 0
    %4980 = vmatpush1.bf16.msra.mxu0 0
    %4981 = vmatprep.subr.bf16.mxu0 0
    %4982 = vmatpush1.bf16.msra.mxu0 0
    %4983 = vmatprep.subr.bf16.mxu0 0
    %4984 = vmatpush1.bf16.msra.mxu0 0
    %4985 = vmatprep.subr.bf16.mxu0 0
    %4986 = vmatpush1.bf16.msra.mxu0 0
    %4987 = vmatprep.subr.bf16.mxu0 0
    %4988 = vmatpush1.bf16.msra.mxu0 0
    %4989 = vmatprep.mubr.bf16.mxu0 0
    %4990 = vmatmul.mubr.bf16.gmra.mrb[0].mxu0 %v4915
    %v4991 = vpop.f32.mrb[0].mxu0
    %v4992 = vadd.f32 %v3349, %v4991
    %v4993 = vpop.f32.mrb[0].mxu0
    %v4994 = vpop.f32.mrb[0].mxu0
    %v4995 = vpop.f32.mrb[0].mxu0
    %4996 = vdwg.mxu0
    %v4997 = vadd.f32 %v4869, %v4951
    %v4998 = vxor.u32 %v4997, 2147483648
    %v4999 = vmul.f32 %v4998, 1.442695
    %v5000 = vpow.pop %v4999
    %v5001 = vadd.f32 %v5000, 1.0
    %v5002 = vrcp.pop %v5001
    %v5003 = vmul.f32 1.0, %v5002
    %v5004 = vadd.f32 %v4871, %v4953
    %v5005 = vxor.u32 %v5004, 2147483648
    %v5006 = vmul.f32 %v5005, 1.442695
    %v5007 = vpow.pop %v5006
    %v5008 = vadd.f32 %v5007, 1.0
    %v5009 = vrcp.pop %v5008
    %v5010 = vmul.f32 1.0, %v5009
    %v5011 = vmul.f32 %v5003, %v4992
    %v5012 = vadd.f32 %v4910, %v5011
    %v5013 = vtanh.pop %v5012
    %v5014 = vsub.f32 1.0, %v5010
    %v5015 = vmul.f32 %v5014, %v5013
    %v5016 = vmul.f32 %v5010, %v4730
    %v5017 = vadd.f32 %v5015, %v5016
    %5018 = vmatprep.subr.bf16.mxu0 %v2962
    %5019 = vmatpush1.bf16.msra.mxu0 %v2961
    %5020 = vmatprep.subr.bf16.mxu0 %v2965
    %5021 = vmatpush1.bf16.msra.mxu0 %v2964
    %5022 = vmatprep.subr.bf16.mxu0 %v2968
    %5023 = vmatpush1.bf16.msra.mxu0 %v2967
    %5024 = vmatprep.subr.bf16.mxu0 %v2971
    %5025 = vmatpush1.bf16.msra.mxu0 %v2970
    %5026 = vmatprep.subr.bf16.mxu0 %v2974
    %5027 = vmatpush1.bf16.msra.mxu0 %v2973
    %5028 = vmatprep.subr.bf16.mxu0 %v2977
    %5029 = vmatpush1.bf16.msra.mxu0 %v2976
    %5030 = vmatprep.subr.bf16.mxu0 %v2980
    %5031 = vmatpush1.bf16.msra.mxu0 %v2979
    %5032 = vmatprep.subr.bf16.mxu0 %v2983
    %5033 = vmatpush1.bf16.msra.mxu0 %v2982
    %5034 = vmatprep.subr.bf16.mxu0 0
    %5035 = vmatpush1.bf16.msra.mxu0 0
    %5036 = vmatprep.subr.bf16.mxu0 0
    %5037 = vmatpush1.bf16.msra.mxu0 0
    %5038 = vmatprep.subr.bf16.mxu0 0
    %5039 = vmatpush1.bf16.msra.mxu0 0
    %5040 = vmatprep.subr.bf16.mxu0 0
    %5041 = vmatpush1.bf16.msra.mxu0 0
    %5042 = vmatprep.subr.bf16.mxu0 0
    %5043 = vmatpush1.bf16.msra.mxu0 0
    %5044 = vmatprep.subr.bf16.mxu0 0
    %5045 = vmatpush1.bf16.msra.mxu0 0
    %5046 = vmatprep.subr.bf16.mxu0 0
    %5047 = vmatpush1.bf16.msra.mxu0 0
    %5048 = vmatprep.subr.bf16.mxu0 0
    %5049 = vmatpush1.bf16.msra.mxu0 0
    %5050 = vmatprep.mubr.bf16.mxu0 0
    %5051 = vmatmul.mubr.bf16.gmra.mrb[0].mxu0 %v4833
    %v5052 = vpop.f32.mrb[0].mxu0
    %v5053 = vadd.f32 %v2869, %v5052
    %v5054 = vpop.f32.mrb[0].mxu0
    %v5055 = vadd.f32 %v2873, %v5054
    %v5056 = vpop.f32.mrb[0].mxu0
    %v5057 = vpop.f32.mrb[0].mxu0
    %5058 = vdwg.mxu0
    %5059 = vmatprep.subr.bf16.mxu0 0
    %5060 = vmatpush1.bf16.msra.mxu0 %v2963
    %5061 = vmatprep.subr.bf16.mxu0 0
    %5062 = vmatpush1.bf16.msra.mxu0 %v2966
    %5063 = vmatprep.subr.bf16.mxu0 0
    %5064 = vmatpush1.bf16.msra.mxu0 %v2969
    %5065 = vmatprep.subr.bf16.mxu0 0
    %5066 = vmatpush1.bf16.msra.mxu0 %v2972
    %5067 = vmatprep.subr.bf16.mxu0 0
    %5068 = vmatpush1.bf16.msra.mxu0 %v2975
    %5069 = vmatprep.subr.bf16.mxu0 0
    %5070 = vmatpush1.bf16.msra.mxu0 %v2978
    %5071 = vmatprep.subr.bf16.mxu0 0
    %5072 = vmatpush1.bf16.msra.mxu0 %v2981
    %5073 = vmatprep.subr.bf16.mxu0 0
    %5074 = vmatpush1.bf16.msra.mxu0 %v2984
    %5075 = vmatprep.subr.bf16.mxu0 0
    %5076 = vmatpush1.bf16.msra.mxu0 0
    %5077 = vmatprep.subr.bf16.mxu0 0
    %5078 = vmatpush1.bf16.msra.mxu0 0
    %5079 = vmatprep.subr.bf16.mxu0 0
    %5080 = vmatpush1.bf16.msra.mxu0 0
    %5081 = vmatprep.subr.bf16.mxu0 0
    %5082 = vmatpush1.bf16.msra.mxu0 0
    %5083 = vmatprep.subr.bf16.mxu0 0
    %5084 = vmatpush1.bf16.msra.mxu0 0
    %5085 = vmatprep.subr.bf16.mxu0 0
    %5086 = vmatpush1.bf16.msra.mxu0 0
    %5087 = vmatprep.subr.bf16.mxu0 0
    %5088 = vmatpush1.bf16.msra.mxu0 0
    %5089 = vmatprep.subr.bf16.mxu0 0
    %5090 = vmatpush1.bf16.msra.mxu0 0
    %5091 = vmatprep.mubr.bf16.mxu0 0
    %5092 = vmatmul.mubr.bf16.gmra.mrb[0].mxu0 %v4833
    %v5093 = vpop.f32.mrb[0].mxu0
    %v5094 = vadd.f32 %v2877, %v5093
    %v5095 = vpop.f32.mrb[0].mxu0
    %v5096 = vpop.f32.mrb[0].mxu0
    %v5097 = vpop.f32.mrb[0].mxu0
    %5098 = vdwg.mxu0
    %v5099 = vadd.f32 %v2621, %v5053
    %v5100 = vxor.u32 %v5099, 2147483648
    %v5101 = vmul.f32 %v5100, 1.442695
    %v5102 = vpow.pop %v5101
    %v5103 = vadd.f32 %v5102, 1.0
    %v5104 = vrcp.pop %v5103
    %v5105 = vmul.f32 1.0, %v5104
    %v5106 = vadd.f32 %v2623, %v5055
    %v5107 = vxor.u32 %v5106, 2147483648
    %v5108 = vmul.f32 %v5107, 1.442695
    %v5109 = vpow.pop %v5108
    %v5110 = vadd.f32 %v5109, 1.0
    %v5111 = vrcp.pop %v5110
    %v5112 = vmul.f32 1.0, %v5111
    %v5113 = vmul.f32 %v5105, %v5094
    %v5114 = vadd.f32 %v2728, %v5113
    %v5115 = vtanh.pop %v5114
    %v5116 = vsub.f32 1.0, %v5112
    %v5117 = vmul.f32 %v5116, %v5115
    %v5118 = vmul.f32 %v5112, %v4832
    %v5119 = vadd.f32 %v5117, %v5118
    %v5120 = vpack.c.bf16 %v5119, %v5119
    %5121 = vmatprep.subr.bf16.mxu0 %v3209
    %5122 = vmatpush1.bf16.msra.mxu0 %v3208
    %5123 = vmatprep.subr.bf16.mxu0 %v3212
    %5124 = vmatpush1.bf16.msra.mxu0 %v3211
    %5125 = vmatprep.subr.bf16.mxu0 %v3215
    %5126 = vmatpush1.bf16.msra.mxu0 %v3214
    %5127 = vmatprep.subr.bf16.mxu0 %v3218
    %5128 = vmatpush1.bf16.msra.mxu0 %v3217
    %5129 = vmatprep.subr.bf16.mxu0 %v3221
    %5130 = vmatpush1.bf16.msra.mxu0 %v3220
    %5131 = vmatprep.subr.bf16.mxu0 %v3224
    %5132 = vmatpush1.bf16.msra.mxu0 %v3223
    %5133 = vmatprep.subr.bf16.mxu0 %v3227
    %5134 = vmatpush1.bf16.msra.mxu0 %v3226
    %5135 = vmatprep.subr.bf16.mxu0 %v3230
    %5136 = vmatpush1.bf16.msra.mxu0 %v3229
    %5137 = vmatprep.subr.bf16.mxu0 0
    %5138 = vmatpush1.bf16.msra.mxu0 0
    %5139 = vmatprep.subr.bf16.mxu0 0
    %5140 = vmatpush1.bf16.msra.mxu0 0
    %5141 = vmatprep.subr.bf16.mxu0 0
    %5142 = vmatpush1.bf16.msra.mxu0 0
    %5143 = vmatprep.subr.bf16.mxu0 0
    %5144 = vmatpush1.bf16.msra.mxu0 0
    %5145 = vmatprep.subr.bf16.mxu0 0
    %5146 = vmatpush1.bf16.msra.mxu0 0
    %5147 = vmatprep.subr.bf16.mxu0 0
    %5148 = vmatpush1.bf16.msra.mxu0 0
    %5149 = vmatprep.subr.bf16.mxu0 0
    %5150 = vmatpush1.bf16.msra.mxu0 0
    %5151 = vmatprep.subr.bf16.mxu0 0
    %5152 = vmatpush1.bf16.msra.mxu0 0
    %5153 = vmatprep.mubr.bf16.mxu0 0
    %5154 = vmatmul.mubr.bf16.gmra.mrb[0].mxu0 %v5120
    %v5155 = vpop.f32.mrb[0].mxu0
    %v5156 = vadd.f32 %v3116, %v5155
    %v5157 = vpop.f32.mrb[0].mxu0
    %v5158 = vadd.f32 %v3120, %v5157
    %v5159 = vpop.f32.mrb[0].mxu0
    %v5160 = vpop.f32.mrb[0].mxu0
    %5161 = vdwg.mxu0
    %5162 = vmatprep.subr.bf16.mxu0 0
    %5163 = vmatpush1.bf16.msra.mxu0 %v3210
    %5164 = vmatprep.subr.bf16.mxu0 0
    %5165 = vmatpush1.bf16.msra.mxu0 %v3213
    %5166 = vmatprep.subr.bf16.mxu0 0
    %5167 = vmatpush1.bf16.msra.mxu0 %v3216
    %5168 = vmatprep.subr.bf16.mxu0 0
    %5169 = vmatpush1.bf16.msra.mxu0 %v3219
    %5170 = vmatprep.subr.bf16.mxu0 0
    %5171 = vmatpush1.bf16.msra.mxu0 %v3222
    %5172 = vmatprep.subr.bf16.mxu0 0
    %5173 = vmatpush1.bf16.msra.mxu0 %v3225
    %5174 = vmatprep.subr.bf16.mxu0 0
    %5175 = vmatpush1.bf16.msra.mxu0 %v3228
    %5176 = vmatprep.subr.bf16.mxu0 0
    %5177 = vmatpush1.bf16.msra.mxu0 %v3231
    %5178 = vmatprep.subr.bf16.mxu0 0
    %5179 = vmatpush1.bf16.msra.mxu0 0
    %5180 = vmatprep.subr.bf16.mxu0 0
    %5181 = vmatpush1.bf16.msra.mxu0 0
    %5182 = vmatprep.subr.bf16.mxu0 0
    %5183 = vmatpush1.bf16.msra.mxu0 0
    %5184 = vmatprep.subr.bf16.mxu0 0
    %5185 = vmatpush1.bf16.msra.mxu0 0
    %5186 = vmatprep.subr.bf16.mxu0 0
    %5187 = vmatpush1.bf16.msra.mxu0 0
    %5188 = vmatprep.subr.bf16.mxu0 0
    %5189 = vmatpush1.bf16.msra.mxu0 0
    %5190 = vmatprep.subr.bf16.mxu0 0
    %5191 = vmatpush1.bf16.msra.mxu0 0
    %5192 = vmatprep.subr.bf16.mxu0 0
    %5193 = vmatpush1.bf16.msra.mxu0 0
    %5194 = vmatprep.mubr.bf16.mxu0 0
    %5195 = vmatmul.mubr.bf16.gmra.mrb[0].mxu0 %v5120
    %v5196 = vpop.f32.mrb[0].mxu0
    %v5197 = vadd.f32 %v3124, %v5196
    %v5198 = vpop.f32.mrb[0].mxu0
    %v5199 = vpop.f32.mrb[0].mxu0
    %v5200 = vpop.f32.mrb[0].mxu0
    %5201 = vdwg.mxu0
    %v5202 = vpack.c.bf16 %v5017, %v5017
    %5203 = vmatprep.subr.bf16.mxu0 %v3434
    %5204 = vmatpush1.bf16.msra.mxu0 %v3433
    %5205 = vmatprep.subr.bf16.mxu0 %v3437
    %5206 = vmatpush1.bf16.msra.mxu0 %v3436
    %5207 = vmatprep.subr.bf16.mxu0 %v3440
    %5208 = vmatpush1.bf16.msra.mxu0 %v3439
    %5209 = vmatprep.subr.bf16.mxu0 %v3443
    %5210 = vmatpush1.bf16.msra.mxu0 %v3442
    %5211 = vmatprep.subr.bf16.mxu0 %v3446
    %5212 = vmatpush1.bf16.msra.mxu0 %v3445
    %5213 = vmatprep.subr.bf16.mxu0 %v3449
    %5214 = vmatpush1.bf16.msra.mxu0 %v3448
    %5215 = vmatprep.subr.bf16.mxu0 %v3452
    %5216 = vmatpush1.bf16.msra.mxu0 %v3451
    %5217 = vmatprep.subr.bf16.mxu0 %v3455
    %5218 = vmatpush1.bf16.msra.mxu0 %v3454
    %5219 = vmatprep.subr.bf16.mxu0 0
    %5220 = vmatpush1.bf16.msra.mxu0 0
    %5221 = vmatprep.subr.bf16.mxu0 0
    %5222 = vmatpush1.bf16.msra.mxu0 0
    %5223 = vmatprep.subr.bf16.mxu0 0
    %5224 = vmatpush1.bf16.msra.mxu0 0
    %5225 = vmatprep.subr.bf16.mxu0 0
    %5226 = vmatpush1.bf16.msra.mxu0 0
    %5227 = vmatprep.subr.bf16.mxu0 0
    %5228 = vmatpush1.bf16.msra.mxu0 0
    %5229 = vmatprep.subr.bf16.mxu0 0
    %5230 = vmatpush1.bf16.msra.mxu0 0
    %5231 = vmatprep.subr.bf16.mxu0 0
    %5232 = vmatpush1.bf16.msra.mxu0 0
    %5233 = vmatprep.subr.bf16.mxu0 0
    %5234 = vmatpush1.bf16.msra.mxu0 0
    %5235 = vmatprep.mubr.bf16.mxu0 0
    %5236 = vmatmul.mubr.bf16.gmra.mrb[0].mxu0 %v5202
    %v5237 = vpop.f32.mrb[0].mxu0
    %v5238 = vadd.f32 %v3341, %v5237
    %v5239 = vpop.f32.mrb[0].mxu0
    %v5240 = vadd.f32 %v3345, %v5239
    %v5241 = vpop.f32.mrb[0].mxu0
    %v5242 = vpop.f32.mrb[0].mxu0
    %5243 = vdwg.mxu0
    %5244 = vmatprep.subr.bf16.mxu0 0
    %5245 = vmatpush1.bf16.msra.mxu0 %v3435
    %5246 = vmatprep.subr.bf16.mxu0 0
    %5247 = vmatpush1.bf16.msra.mxu0 %v3438
    %5248 = vmatprep.subr.bf16.mxu0 0
    %5249 = vmatpush1.bf16.msra.mxu0 %v3441
    %5250 = vmatprep.subr.bf16.mxu0 0
    %5251 = vmatpush1.bf16.msra.mxu0 %v3444
    %5252 = vmatprep.subr.bf16.mxu0 0
    %5253 = vmatpush1.bf16.msra.mxu0 %v3447
    %5254 = vmatprep.subr.bf16.mxu0 0
    %5255 = vmatpush1.bf16.msra.mxu0 %v3450
    %5256 = vmatprep.subr.bf16.mxu0 0
    %5257 = vmatpush1.bf16.msra.mxu0 %v3453
    %5258 = vmatprep.subr.bf16.mxu0 0
    %5259 = vmatpush1.bf16.msra.mxu0 %v3456
    %5260 = vmatprep.subr.bf16.mxu0 0
    %5261 = vmatpush1.bf16.msra.mxu0 0
    %5262 = vmatprep.subr.bf16.mxu0 0
    %5263 = vmatpush1.bf16.msra.mxu0 0
    %5264 = vmatprep.subr.bf16.mxu0 0
    %5265 = vmatpush1.bf16.msra.mxu0 0
    %5266 = vmatprep.subr.bf16.mxu0 0
    %5267 = vmatpush1.bf16.msra.mxu0 0
    %5268 = vmatprep.subr.bf16.mxu0 0
    %5269 = vmatpush1.bf16.msra.mxu0 0
    %5270 = vmatprep.subr.bf16.mxu0 0
    %5271 = vmatpush1.bf16.msra.mxu0 0
    %5272 = vmatprep.subr.bf16.mxu0 0
    %5273 = vmatpush1.bf16.msra.mxu0 0
    %5274 = vmatprep.subr.bf16.mxu0 0
    %5275 = vmatpush1.bf16.msra.mxu0 0
    %5276 = vmatprep.mubr.bf16.mxu0 0
    %5277 = vmatmul.mubr.bf16.gmra.mrb[0].mxu0 %v5202
    %v5278 = vpop.f32.mrb[0].mxu0
    %v5279 = vadd.f32 %v3349, %v5278
    %v5280 = vpop.f32.mrb[0].mxu0
    %v5281 = vpop.f32.mrb[0].mxu0
    %v5282 = vpop.f32.mrb[0].mxu0
    %5283 = vdwg.mxu0
    %v5284 = vadd.f32 %v5156, %v5238
    %v5285 = vxor.u32 %v5284, 2147483648
    %v5286 = vmul.f32 %v5285, 1.442695
    %v5287 = vpow.pop %v5286
    %v5288 = vadd.f32 %v5287, 1.0
    %v5289 = vrcp.pop %v5288
    %v5290 = vmul.f32 1.0, %v5289
    %v5291 = vadd.f32 %v5158, %v5240
    %v5292 = vxor.u32 %v5291, 2147483648
    %v5293 = vmul.f32 %v5292, 1.442695
    %v5294 = vpow.pop %v5293
    %v5295 = vadd.f32 %v5294, 1.0
    %v5296 = vrcp.pop %v5295
    %v5297 = vmul.f32 1.0, %v5296
    %v5298 = vmul.f32 %v5290, %v5279
    %v5299 = vadd.f32 %v5197, %v5298
    %v5300 = vtanh.pop %v5299
    %v5301 = vsub.f32 1.0, %v5297
    %v5302 = vmul.f32 %v5301, %v5300
    %v5303 = vmul.f32 %v5297, %v5017
    %v5304 = vadd.f32 %v5302, %v5303
    %5305 = vmatprep.subr.bf16.mxu0 %v2962
    %5306 = vmatpush1.bf16.msra.mxu0 %v2961
    %5307 = vmatprep.subr.bf16.mxu0 %v2965
    %5308 = vmatpush1.bf16.msra.mxu0 %v2964
    %5309 = vmatprep.subr.bf16.mxu0 %v2968
    %5310 = vmatpush1.bf16.msra.mxu0 %v2967
    %5311 = vmatprep.subr.bf16.mxu0 %v2971
    %5312 = vmatpush1.bf16.msra.mxu0 %v2970
    %5313 = vmatprep.subr.bf16.mxu0 %v2974
    %5314 = vmatpush1.bf16.msra.mxu0 %v2973
    %5315 = vmatprep.subr.bf16.mxu0 %v2977
    %5316 = vmatpush1.bf16.msra.mxu0 %v2976
    %5317 = vmatprep.subr.bf16.mxu0 %v2980
    %5318 = vmatpush1.bf16.msra.mxu0 %v2979
    %5319 = vmatprep.subr.bf16.mxu0 %v2983
    %5320 = vmatpush1.bf16.msra.mxu0 %v2982
    %5321 = vmatprep.subr.bf16.mxu0 0
    %5322 = vmatpush1.bf16.msra.mxu0 0
    %5323 = vmatprep.subr.bf16.mxu0 0
    %5324 = vmatpush1.bf16.msra.mxu0 0
    %5325 = vmatprep.subr.bf16.mxu0 0
    %5326 = vmatpush1.bf16.msra.mxu0 0
    %5327 = vmatprep.subr.bf16.mxu0 0
    %5328 = vmatpush1.bf16.msra.mxu0 0
    %5329 = vmatprep.subr.bf16.mxu0 0
    %5330 = vmatpush1.bf16.msra.mxu0 0
    %5331 = vmatprep.subr.bf16.mxu0 0
    %5332 = vmatpush1.bf16.msra.mxu0 0
    %5333 = vmatprep.subr.bf16.mxu0 0
    %5334 = vmatpush1.bf16.msra.mxu0 0
    %5335 = vmatprep.subr.bf16.mxu0 0
    %5336 = vmatpush1.bf16.msra.mxu0 0
    %5337 = vmatprep.mubr.bf16.mxu0 0
    %5338 = vmatmul.mubr.bf16.gmra.mrb[0].mxu0 %v5120
    %v5339 = vpop.f32.mrb[0].mxu0
    %v5340 = vadd.f32 %v2869, %v5339
    %v5341 = vpop.f32.mrb[0].mxu0
    %v5342 = vadd.f32 %v2873, %v5341
    %v5343 = vpop.f32.mrb[0].mxu0
    %v5344 = vpop.f32.mrb[0].mxu0
    %5345 = vdwg.mxu0
    %5346 = vmatprep.subr.bf16.mxu0 0
    %5347 = vmatpush1.bf16.msra.mxu0 %v2963
    %5348 = vmatprep.subr.bf16.mxu0 0
    %5349 = vmatpush1.bf16.msra.mxu0 %v2966
    %5350 = vmatprep.subr.bf16.mxu0 0
    %5351 = vmatpush1.bf16.msra.mxu0 %v2969
    %5352 = vmatprep.subr.bf16.mxu0 0
    %5353 = vmatpush1.bf16.msra.mxu0 %v2972
    %5354 = vmatprep.subr.bf16.mxu0 0
    %5355 = vmatpush1.bf16.msra.mxu0 %v2975
    %5356 = vmatprep.subr.bf16.mxu0 0
    %5357 = vmatpush1.bf16.msra.mxu0 %v2978
    %5358 = vmatprep.subr.bf16.mxu0 0
    %5359 = vmatpush1.bf16.msra.mxu0 %v2981
    %5360 = vmatprep.subr.bf16.mxu0 0
    %5361 = vmatpush1.bf16.msra.mxu0 %v2984
    %5362 = vmatprep.subr.bf16.mxu0 0
    %5363 = vmatpush1.bf16.msra.mxu0 0
    %5364 = vmatprep.subr.bf16.mxu0 0
    %5365 = vmatpush1.bf16.msra.mxu0 0
    %5366 = vmatprep.subr.bf16.mxu0 0
    %5367 = vmatpush1.bf16.msra.mxu0 0
    %5368 = vmatprep.subr.bf16.mxu0 0
    %5369 = vmatpush1.bf16.msra.mxu0 0
    %5370 = vmatprep.subr.bf16.mxu0 0
    %5371 = vmatpush1.bf16.msra.mxu0 0
    %5372 = vmatprep.subr.bf16.mxu0 0
    %5373 = vmatpush1.bf16.msra.mxu0 0
    %5374 = vmatprep.subr.bf16.mxu0 0
    %5375 = vmatpush1.bf16.msra.mxu0 0
    %5376 = vmatprep.subr.bf16.mxu0 0
    %5377 = vmatpush1.bf16.msra.mxu0 0
    %5378 = vmatprep.mubr.bf16.mxu0 0
    %5379 = vmatmul.mubr.bf16.gmra.mrb[0].mxu0 %v5120
    %v5380 = vpop.f32.mrb[0].mxu0
    %v5381 = vadd.f32 %v2877, %v5380
    %v5382 = vpop.f32.mrb[0].mxu0
    %v5383 = vpop.f32.mrb[0].mxu0
    %v5384 = vpop.f32.mrb[0].mxu0
    %5385 = vdwg.mxu0
    %v5386 = vadd.f32 %v2625, %v5340
    %v5387 = vxor.u32 %v5386, 2147483648
    %v5388 = vmul.f32 %v5387, 1.442695
    %v5389 = vpow.pop %v5388
    %v5390 = vadd.f32 %v5389, 1.0
    %v5391 = vrcp.pop %v5390
    %v5392 = vmul.f32 1.0, %v5391
    %v5393 = vadd.f32 %v2627, %v5342
    %v5394 = vxor.u32 %v5393, 2147483648
    %v5395 = vmul.f32 %v5394, 1.442695
    %v5396 = vpow.pop %v5395
    %v5397 = vadd.f32 %v5396, 1.0
    %v5398 = vrcp.pop %v5397
    %v5399 = vmul.f32 1.0, %v5398
    %v5400 = vmul.f32 %v5392, %v5381
    %v5401 = vadd.f32 %v2731, %v5400
    %v5402 = vtanh.pop %v5401
    %v5403 = vsub.f32 1.0, %v5399
    %v5404 = vmul.f32 %v5403, %v5402
    %v5405 = vmul.f32 %v5399, %v5119
    %v5406 = vadd.f32 %v5404, %v5405
    %v5407 = vpack.c.bf16 %v5406, %v5406
    %5408 = vmatprep.subr.bf16.mxu0 %v3209
    %5409 = vmatpush1.bf16.msra.mxu0 %v3208
    %5410 = vmatprep.subr.bf16.mxu0 %v3212
    %5411 = vmatpush1.bf16.msra.mxu0 %v3211
    %5412 = vmatprep.subr.bf16.mxu0 %v3215
    %5413 = vmatpush1.bf16.msra.mxu0 %v3214
    %5414 = vmatprep.subr.bf16.mxu0 %v3218
    %5415 = vmatpush1.bf16.msra.mxu0 %v3217
    %5416 = vmatprep.subr.bf16.mxu0 %v3221
    %5417 = vmatpush1.bf16.msra.mxu0 %v3220
    %5418 = vmatprep.subr.bf16.mxu0 %v3224
    %5419 = vmatpush1.bf16.msra.mxu0 %v3223
    %5420 = vmatprep.subr.bf16.mxu0 %v3227
    %5421 = vmatpush1.bf16.msra.mxu0 %v3226
    %5422 = vmatprep.subr.bf16.mxu0 %v3230
    %5423 = vmatpush1.bf16.msra.mxu0 %v3229
    %5424 = vmatprep.subr.bf16.mxu0 0
    %5425 = vmatpush1.bf16.msra.mxu0 0
    %5426 = vmatprep.subr.bf16.mxu0 0
    %5427 = vmatpush1.bf16.msra.mxu0 0
    %5428 = vmatprep.subr.bf16.mxu0 0
    %5429 = vmatpush1.bf16.msra.mxu0 0
    %5430 = vmatprep.subr.bf16.mxu0 0
    %5431 = vmatpush1.bf16.msra.mxu0 0
    %5432 = vmatprep.subr.bf16.mxu0 0
    %5433 = vmatpush1.bf16.msra.mxu0 0
    %5434 = vmatprep.subr.bf16.mxu0 0
    %5435 = vmatpush1.bf16.msra.mxu0 0
    %5436 = vmatprep.subr.bf16.mxu0 0
    %5437 = vmatpush1.bf16.msra.mxu0 0
    %5438 = vmatprep.subr.bf16.mxu0 0
    %5439 = vmatpush1.bf16.msra.mxu0 0
    %5440 = vmatprep.mubr.bf16.mxu0 0
    %5441 = vmatmul.mubr.bf16.gmra.mrb[0].mxu0 %v5407
    %v5442 = vpop.f32.mrb[0].mxu0
    %v5443 = vadd.f32 %v3116, %v5442
    %v5444 = vpop.f32.mrb[0].mxu0
    %v5445 = vadd.f32 %v3120, %v5444
    %v5446 = vpop.f32.mrb[0].mxu0
    %v5447 = vpop.f32.mrb[0].mxu0
    %5448 = vdwg.mxu0
    %5449 = vmatprep.subr.bf16.mxu0 0
    %5450 = vmatpush1.bf16.msra.mxu0 %v3210
    %5451 = vmatprep.subr.bf16.mxu0 0
    %5452 = vmatpush1.bf16.msra.mxu0 %v3213
    %5453 = vmatprep.subr.bf16.mxu0 0
    %5454 = vmatpush1.bf16.msra.mxu0 %v3216
    %5455 = vmatprep.subr.bf16.mxu0 0
    %5456 = vmatpush1.bf16.msra.mxu0 %v3219
    %5457 = vmatprep.subr.bf16.mxu0 0
    %5458 = vmatpush1.bf16.msra.mxu0 %v3222
    %5459 = vmatprep.subr.bf16.mxu0 0
    %5460 = vmatpush1.bf16.msra.mxu0 %v3225
    %5461 = vmatprep.subr.bf16.mxu0 0
    %5462 = vmatpush1.bf16.msra.mxu0 %v3228
    %5463 = vmatprep.subr.bf16.mxu0 0
    %5464 = vmatpush1.bf16.msra.mxu0 %v3231
    %5465 = vmatprep.subr.bf16.mxu0 0
    %5466 = vmatpush1.bf16.msra.mxu0 0
    %5467 = vmatprep.subr.bf16.mxu0 0
    %5468 = vmatpush1.bf16.msra.mxu0 0
    %5469 = vmatprep.subr.bf16.mxu0 0
    %5470 = vmatpush1.bf16.msra.mxu0 0
    %5471 = vmatprep.subr.bf16.mxu0 0
    %5472 = vmatpush1.bf16.msra.mxu0 0
    %5473 = vmatprep.subr.bf16.mxu0 0
    %5474 = vmatpush1.bf16.msra.mxu0 0
    %5475 = vmatprep.subr.bf16.mxu0 0
    %5476 = vmatpush1.bf16.msra.mxu0 0
    %5477 = vmatprep.subr.bf16.mxu0 0
    %5478 = vmatpush1.bf16.msra.mxu0 0
    %5479 = vmatprep.subr.bf16.mxu0 0
    %5480 = vmatpush1.bf16.msra.mxu0 0
    %5481 = vmatprep.mubr.bf16.mxu0 0
    %5482 = vmatmul.mubr.bf16.gmra.mrb[0].mxu0 %v5407
    %v5483 = vpop.f32.mrb[0].mxu0
    %v5484 = vadd.f32 %v3124, %v5483
    %v5485 = vpop.f32.mrb[0].mxu0
    %v5486 = vpop.f32.mrb[0].mxu0
    %v5487 = vpop.f32.mrb[0].mxu0
    %5488 = vdwg.mxu0
    %v5489 = vpack.c.bf16 %v5304, %v5304
    %5490 = vmatprep.subr.bf16.mxu0 %v3434
    %5491 = vmatpush1.bf16.msra.mxu0 %v3433
    %5492 = vmatprep.subr.bf16.mxu0 %v3437
    %5493 = vmatpush1.bf16.msra.mxu0 %v3436
    %5494 = vmatprep.subr.bf16.mxu0 %v3440
    %5495 = vmatpush1.bf16.msra.mxu0 %v3439
    %5496 = vmatprep.subr.bf16.mxu0 %v3443
    %5497 = vmatpush1.bf16.msra.mxu0 %v3442
    %5498 = vmatprep.subr.bf16.mxu0 %v3446
    %5499 = vmatpush1.bf16.msra.mxu0 %v3445
    %5500 = vmatprep.subr.bf16.mxu0 %v3449
    %5501 = vmatpush1.bf16.msra.mxu0 %v3448
    %5502 = vmatprep.subr.bf16.mxu0 %v3452
    %5503 = vmatpush1.bf16.msra.mxu0 %v3451
    %5504 = vmatprep.subr.bf16.mxu0 %v3455
    %5505 = vmatpush1.bf16.msra.mxu0 %v3454
    %5506 = vmatprep.subr.bf16.mxu0 0
    %5507 = vmatpush1.bf16.msra.mxu0 0
    %5508 = vmatprep.subr.bf16.mxu0 0
    %5509 = vmatpush1.bf16.msra.mxu0 0
    %5510 = vmatprep.subr.bf16.mxu0 0
    %5511 = vmatpush1.bf16.msra.mxu0 0
    %5512 = vmatprep.subr.bf16.mxu0 0
    %5513 = vmatpush1.bf16.msra.mxu0 0
    %5514 = vmatprep.subr.bf16.mxu0 0
    %5515 = vmatpush1.bf16.msra.mxu0 0
    %5516 = vmatprep.subr.bf16.mxu0 0
    %5517 = vmatpush1.bf16.msra.mxu0 0
    %5518 = vmatprep.subr.bf16.mxu0 0
    %5519 = vmatpush1.bf16.msra.mxu0 0
    %5520 = vmatprep.subr.bf16.mxu0 0
    %5521 = vmatpush1.bf16.msra.mxu0 0
    %5522 = vmatprep.mubr.bf16.mxu0 0
    %5523 = vmatmul.mubr.bf16.gmra.mrb[0].mxu0 %v5489
    %v5524 = vpop.f32.mrb[0].mxu0
    %v5525 = vadd.f32 %v3341, %v5524
    %v5526 = vpop.f32.mrb[0].mxu0
    %v5527 = vadd.f32 %v3345, %v5526
    %v5528 = vpop.f32.mrb[0].mxu0
    %v5529 = vpop.f32.mrb[0].mxu0
    %5530 = vdwg.mxu0
    %5531 = vmatprep.subr.bf16.mxu0 0
    %5532 = vmatpush1.bf16.msra.mxu0 %v3435
    %5533 = vmatprep.subr.bf16.mxu0 0
    %5534 = vmatpush1.bf16.msra.mxu0 %v3438
    %5535 = vmatprep.subr.bf16.mxu0 0
    %5536 = vmatpush1.bf16.msra.mxu0 %v3441
    %5537 = vmatprep.subr.bf16.mxu0 0
    %5538 = vmatpush1.bf16.msra.mxu0 %v3444
    %5539 = vmatprep.subr.bf16.mxu0 0
    %5540 = vmatpush1.bf16.msra.mxu0 %v3447
    %5541 = vmatprep.subr.bf16.mxu0 0
    %5542 = vmatpush1.bf16.msra.mxu0 %v3450
    %5543 = vmatprep.subr.bf16.mxu0 0
    %5544 = vmatpush1.bf16.msra.mxu0 %v3453
    %5545 = vmatprep.subr.bf16.mxu0 0
    %5546 = vmatpush1.bf16.msra.mxu0 %v3456
    %5547 = vmatprep.subr.bf16.mxu0 0
    %5548 = vmatpush1.bf16.msra.mxu0 0
    %5549 = vmatprep.subr.bf16.mxu0 0
    %5550 = vmatpush1.bf16.msra.mxu0 0
    %5551 = vmatprep.subr.bf16.mxu0 0
    %5552 = vmatpush1.bf16.msra.mxu0 0
    %5553 = vmatprep.subr.bf16.mxu0 0
    %5554 = vmatpush1.bf16.msra.mxu0 0
    %5555 = vmatprep.subr.bf16.mxu0 0
    %5556 = vmatpush1.bf16.msra.mxu0 0
    %5557 = vmatprep.subr.bf16.mxu0 0
    %5558 = vmatpush1.bf16.msra.mxu0 0
    %5559 = vmatprep.subr.bf16.mxu0 0
    %5560 = vmatpush1.bf16.msra.mxu0 0
    %5561 = vmatprep.subr.bf16.mxu0 0
    %5562 = vmatpush1.bf16.msra.mxu0 0
    %5563 = vmatprep.mubr.bf16.mxu0 0
    %5564 = vmatmul.mubr.bf16.gmra.mrb[0].mxu0 %v5489
    %v5565 = vpop.f32.mrb[0].mxu0
    %v5566 = vadd.f32 %v3349, %v5565
    %v5567 = vpop.f32.mrb[0].mxu0
    %v5568 = vpop.f32.mrb[0].mxu0
    %v5569 = vpop.f32.mrb[0].mxu0
    %5570 = vdwg.mxu0
    %v5571 = vadd.f32 %v5443, %v5525
    %v5572 = vxor.u32 %v5571, 2147483648
    %v5573 = vmul.f32 %v5572, 1.442695
    %v5574 = vpow.pop %v5573
    %v5575 = vadd.f32 %v5574, 1.0
    %v5576 = vrcp.pop %v5575
    %v5577 = vmul.f32 1.0, %v5576
    %v5578 = vadd.f32 %v5445, %v5527
    %v5579 = vxor.u32 %v5578, 2147483648
    %v5580 = vmul.f32 %v5579, 1.442695
    %v5581 = vpow.pop %v5580
    %v5582 = vadd.f32 %v5581, 1.0
    %v5583 = vrcp.pop %v5582
    %v5584 = vmul.f32 1.0, %v5583
    %v5585 = vmul.f32 %v5577, %v5566
    %v5586 = vadd.f32 %v5484, %v5585
    %v5587 = vtanh.pop %v5586
    %v5588 = vsub.f32 1.0, %v5584
    %v5589 = vmul.f32 %v5588, %v5587
    %v5590 = vmul.f32 %v5584, %v5304
    %v5591 = vadd.f32 %v5589, %v5590
    %5592 = vmatprep.subr.bf16.mxu0 %v2962
    %5593 = vmatpush1.bf16.msra.mxu0 %v2961
    %5594 = vmatprep.subr.bf16.mxu0 %v2965
    %5595 = vmatpush1.bf16.msra.mxu0 %v2964
    %5596 = vmatprep.subr.bf16.mxu0 %v2968
    %5597 = vmatpush1.bf16.msra.mxu0 %v2967
    %5598 = vmatprep.subr.bf16.mxu0 %v2971
    %5599 = vmatpush1.bf16.msra.mxu0 %v2970
    %5600 = vmatprep.subr.bf16.mxu0 %v2974
    %5601 = vmatpush1.bf16.msra.mxu0 %v2973
    %5602 = vmatprep.subr.bf16.mxu0 %v2977
    %5603 = vmatpush1.bf16.msra.mxu0 %v2976
    %5604 = vmatprep.subr.bf16.mxu0 %v2980
    %5605 = vmatpush1.bf16.msra.mxu0 %v2979
    %5606 = vmatprep.subr.bf16.mxu0 %v2983
    %5607 = vmatpush1.bf16.msra.mxu0 %v2982
    %5608 = vmatprep.subr.bf16.mxu0 0
    %5609 = vmatpush1.bf16.msra.mxu0 0
    %5610 = vmatprep.subr.bf16.mxu0 0
    %5611 = vmatpush1.bf16.msra.mxu0 0
    %5612 = vmatprep.subr.bf16.mxu0 0
    %5613 = vmatpush1.bf16.msra.mxu0 0
    %5614 = vmatprep.subr.bf16.mxu0 0
    %5615 = vmatpush1.bf16.msra.mxu0 0
    %5616 = vmatprep.subr.bf16.mxu0 0
    %5617 = vmatpush1.bf16.msra.mxu0 0
    %5618 = vmatprep.subr.bf16.mxu0 0
    %5619 = vmatpush1.bf16.msra.mxu0 0
    %5620 = vmatprep.subr.bf16.mxu0 0
    %5621 = vmatpush1.bf16.msra.mxu0 0
    %5622 = vmatprep.subr.bf16.mxu0 0
    %5623 = vmatpush1.bf16.msra.mxu0 0
    %5624 = vmatprep.mubr.bf16.mxu0 0
    %5625 = vmatmul.mubr.bf16.gmra.mrb[0].mxu0 %v5407
    %v5626 = vpop.f32.mrb[0].mxu0
    %v5627 = vadd.f32 %v2869, %v5626
    %v5628 = vpop.f32.mrb[0].mxu0
    %v5629 = vadd.f32 %v2873, %v5628
    %v5630 = vpop.f32.mrb[0].mxu0
    %v5631 = vpop.f32.mrb[0].mxu0
    %5632 = vdwg.mxu0
    %5633 = vmatprep.subr.bf16.mxu0 0
    %5634 = vmatpush1.bf16.msra.mxu0 %v2963
    %5635 = vmatprep.subr.bf16.mxu0 0
    %5636 = vmatpush1.bf16.msra.mxu0 %v2966
    %5637 = vmatprep.subr.bf16.mxu0 0
    %5638 = vmatpush1.bf16.msra.mxu0 %v2969
    %5639 = vmatprep.subr.bf16.mxu0 0
    %5640 = vmatpush1.bf16.msra.mxu0 %v2972
    %5641 = vmatprep.subr.bf16.mxu0 0
    %5642 = vmatpush1.bf16.msra.mxu0 %v2975
    %5643 = vmatprep.subr.bf16.mxu0 0
    %5644 = vmatpush1.bf16.msra.mxu0 %v2978
    %5645 = vmatprep.subr.bf16.mxu0 0
    %5646 = vmatpush1.bf16.msra.mxu0 %v2981
    %5647 = vmatprep.subr.bf16.mxu0 0
    %5648 = vmatpush1.bf16.msra.mxu0 %v2984
    %5649 = vmatprep.subr.bf16.mxu0 0
    %5650 = vmatpush1.bf16.msra.mxu0 0
    %5651 = vmatprep.subr.bf16.mxu0 0
    %5652 = vmatpush1.bf16.msra.mxu0 0
    %5653 = vmatprep.subr.bf16.mxu0 0
    %5654 = vmatpush1.bf16.msra.mxu0 0
    %5655 = vmatprep.subr.bf16.mxu0 0
    %5656 = vmatpush1.bf16.msra.mxu0 0
    %5657 = vmatprep.subr.bf16.mxu0 0
    %5658 = vmatpush1.bf16.msra.mxu0 0
    %5659 = vmatprep.subr.bf16.mxu0 0
    %5660 = vmatpush1.bf16.msra.mxu0 0
    %5661 = vmatprep.subr.bf16.mxu0 0
    %5662 = vmatpush1.bf16.msra.mxu0 0
    %5663 = vmatprep.subr.bf16.mxu0 0
    %5664 = vmatpush1.bf16.msra.mxu0 0
    %5665 = vmatprep.mubr.bf16.mxu0 0
    %5666 = vmatmul.mubr.bf16.gmra.mrb[0].mxu0 %v5407
    %v5667 = vpop.f32.mrb[0].mxu0
    %v5668 = vadd.f32 %v2877, %v5667
    %v5669 = vpop.f32.mrb[0].mxu0
    %v5670 = vpop.f32.mrb[0].mxu0
    %v5671 = vpop.f32.mrb[0].mxu0
    %5672 = vdwg.mxu0
    %v5673 = vadd.f32 %v2631, %v5627
    %v5674 = vxor.u32 %v5673, 2147483648
    %v5675 = vmul.f32 %v5674, 1.442695
    %v5676 = vpow.pop %v5675
    %v5677 = vadd.f32 %v5676, 1.0
    %v5678 = vrcp.pop %v5677
    %v5679 = vmul.f32 1.0, %v5678
    %v5680 = vadd.f32 %v2633, %v5629
    %v5681 = vxor.u32 %v5680, 2147483648
    %v5682 = vmul.f32 %v5681, 1.442695
    %v5683 = vpow.pop %v5682
    %v5684 = vadd.f32 %v5683, 1.0
    %v5685 = vrcp.pop %v5684
    %v5686 = vmul.f32 1.0, %v5685
    %v5687 = vmul.f32 %v5679, %v5668
    %v5688 = vadd.f32 %v2736, %v5687
    %v5689 = vtanh.pop %v5688
    %v5690 = vsub.f32 1.0, %v5686
    %v5691 = vmul.f32 %v5690, %v5689
    %v5692 = vmul.f32 %v5686, %v5406
    %v5693 = vadd.f32 %v5691, %v5692
    %v5694 = vpack.c.bf16 %v5693, %v5693
    %5695 = vmatprep.subr.bf16.mxu0 %v3209
    %5696 = vmatpush1.bf16.msra.mxu0 %v3208
    %5697 = vmatprep.subr.bf16.mxu0 %v3212
    %5698 = vmatpush1.bf16.msra.mxu0 %v3211
    %5699 = vmatprep.subr.bf16.mxu0 %v3215
    %5700 = vmatpush1.bf16.msra.mxu0 %v3214
    %5701 = vmatprep.subr.bf16.mxu0 %v3218
    %5702 = vmatpush1.bf16.msra.mxu0 %v3217
    %5703 = vmatprep.subr.bf16.mxu0 %v3221
    %5704 = vmatpush1.bf16.msra.mxu0 %v3220
    %5705 = vmatprep.subr.bf16.mxu0 %v3224
    %5706 = vmatpush1.bf16.msra.mxu0 %v3223
    %5707 = vmatprep.subr.bf16.mxu0 %v3227
    %5708 = vmatpush1.bf16.msra.mxu0 %v3226
    %5709 = vmatprep.subr.bf16.mxu0 %v3230
    %5710 = vmatpush1.bf16.msra.mxu0 %v3229
    %5711 = vmatprep.subr.bf16.mxu0 0
    %5712 = vmatpush1.bf16.msra.mxu0 0
    %5713 = vmatprep.subr.bf16.mxu0 0
    %5714 = vmatpush1.bf16.msra.mxu0 0
    %5715 = vmatprep.subr.bf16.mxu0 0
    %5716 = vmatpush1.bf16.msra.mxu0 0
    %5717 = vmatprep.subr.bf16.mxu0 0
    %5718 = vmatpush1.bf16.msra.mxu0 0
    %5719 = vmatprep.subr.bf16.mxu0 0
    %5720 = vmatpush1.bf16.msra.mxu0 0
    %5721 = vmatprep.subr.bf16.mxu0 0
    %5722 = vmatpush1.bf16.msra.mxu0 0
    %5723 = vmatprep.subr.bf16.mxu0 0
    %5724 = vmatpush1.bf16.msra.mxu0 0
    %5725 = vmatprep.subr.bf16.mxu0 0
    %5726 = vmatpush1.bf16.msra.mxu0 0
    %5727 = vmatprep.mubr.bf16.mxu0 0
    %5728 = vmatmul.mubr.bf16.gmra.mrb[0].mxu0 %v5694
    %v5729 = vpop.f32.mrb[0].mxu0
    %v5730 = vadd.f32 %v3116, %v5729
    %v5731 = vpop.f32.mrb[0].mxu0
    %v5732 = vadd.f32 %v3120, %v5731
    %v5733 = vpop.f32.mrb[0].mxu0
    %v5734 = vpop.f32.mrb[0].mxu0
    %5735 = vdwg.mxu0
    %5736 = vmatprep.subr.bf16.mxu0 0
    %5737 = vmatpush1.bf16.msra.mxu0 %v3210
    %5738 = vmatprep.subr.bf16.mxu0 0
    %5739 = vmatpush1.bf16.msra.mxu0 %v3213
    %5740 = vmatprep.subr.bf16.mxu0 0
    %5741 = vmatpush1.bf16.msra.mxu0 %v3216
    %5742 = vmatprep.subr.bf16.mxu0 0
    %5743 = vmatpush1.bf16.msra.mxu0 %v3219
    %5744 = vmatprep.subr.bf16.mxu0 0
    %5745 = vmatpush1.bf16.msra.mxu0 %v3222
    %5746 = vmatprep.subr.bf16.mxu0 0
    %5747 = vmatpush1.bf16.msra.mxu0 %v3225
    %5748 = vmatprep.subr.bf16.mxu0 0
    %5749 = vmatpush1.bf16.msra.mxu0 %v3228
    %5750 = vmatprep.subr.bf16.mxu0 0
    %5751 = vmatpush1.bf16.msra.mxu0 %v3231
    %5752 = vmatprep.subr.bf16.mxu0 0
    %5753 = vmatpush1.bf16.msra.mxu0 0
    %5754 = vmatprep.subr.bf16.mxu0 0
    %5755 = vmatpush1.bf16.msra.mxu0 0
    %5756 = vmatprep.subr.bf16.mxu0 0
    %5757 = vmatpush1.bf16.msra.mxu0 0
    %5758 = vmatprep.subr.bf16.mxu0 0
    %5759 = vmatpush1.bf16.msra.mxu0 0
    %5760 = vmatprep.subr.bf16.mxu0 0
    %5761 = vmatpush1.bf16.msra.mxu0 0
    %5762 = vmatprep.subr.bf16.mxu0 0
    %5763 = vmatpush1.bf16.msra.mxu0 0
    %5764 = vmatprep.subr.bf16.mxu0 0
    %5765 = vmatpush1.bf16.msra.mxu0 0
    %5766 = vmatprep.subr.bf16.mxu0 0
    %5767 = vmatpush1.bf16.msra.mxu0 0
    %5768 = vmatprep.mubr.bf16.mxu0 0
    %5769 = vmatmul.mubr.bf16.gmra.mrb[0].mxu0 %v5694
    %v5770 = vpop.f32.mrb[0].mxu0
    %v5771 = vadd.f32 %v3124, %v5770
    %v5772 = vpop.f32.mrb[0].mxu0
    %v5773 = vpop.f32.mrb[0].mxu0
    %v5774 = vpop.f32.mrb[0].mxu0
    %5775 = vdwg.mxu0
    %v5776 = vpack.c.bf16 %v5591, %v5591
    %5777 = vmatprep.subr.bf16.mxu0 %v3434
    %5778 = vmatpush1.bf16.msra.mxu0 %v3433
    %5779 = vmatprep.subr.bf16.mxu0 %v3437
    %5780 = vmatpush1.bf16.msra.mxu0 %v3436
    %5781 = vmatprep.subr.bf16.mxu0 %v3440
    %5782 = vmatpush1.bf16.msra.mxu0 %v3439
    %5783 = vmatprep.subr.bf16.mxu0 %v3443
    %5784 = vmatpush1.bf16.msra.mxu0 %v3442
    %5785 = vmatprep.subr.bf16.mxu0 %v3446
    %5786 = vmatpush1.bf16.msra.mxu0 %v3445
    %5787 = vmatprep.subr.bf16.mxu0 %v3449
    %5788 = vmatpush1.bf16.msra.mxu0 %v3448
    %5789 = vmatprep.subr.bf16.mxu0 %v3452
    %5790 = vmatpush1.bf16.msra.mxu0 %v3451
    %5791 = vmatprep.subr.bf16.mxu0 %v3455
    %5792 = vmatpush1.bf16.msra.mxu0 %v3454
    %5793 = vmatprep.subr.bf16.mxu0 0
    %5794 = vmatpush1.bf16.msra.mxu0 0
    %5795 = vmatprep.subr.bf16.mxu0 0
    %5796 = vmatpush1.bf16.msra.mxu0 0
    %5797 = vmatprep.subr.bf16.mxu0 0
    %5798 = vmatpush1.bf16.msra.mxu0 0
    %5799 = vmatprep.subr.bf16.mxu0 0
    %5800 = vmatpush1.bf16.msra.mxu0 0
    %5801 = vmatprep.subr.bf16.mxu0 0
    %5802 = vmatpush1.bf16.msra.mxu0 0
    %5803 = vmatprep.subr.bf16.mxu0 0
    %5804 = vmatpush1.bf16.msra.mxu0 0
    %5805 = vmatprep.subr.bf16.mxu0 0
    %5806 = vmatpush1.bf16.msra.mxu0 0
    %5807 = vmatprep.subr.bf16.mxu0 0
    %5808 = vmatpush1.bf16.msra.mxu0 0
    %5809 = vmatprep.mubr.bf16.mxu0 0
    %5810 = vmatmul.mubr.bf16.gmra.mrb[0].mxu0 %v5776
    %v5811 = vpop.f32.mrb[0].mxu0
    %v5812 = vadd.f32 %v3341, %v5811
    %v5813 = vpop.f32.mrb[0].mxu0
    %v5814 = vadd.f32 %v3345, %v5813
    %v5815 = vpop.f32.mrb[0].mxu0
    %v5816 = vpop.f32.mrb[0].mxu0
    %5817 = vdwg.mxu0
    %5818 = vmatprep.subr.bf16.mxu0 0
    %5819 = vmatpush1.bf16.msra.mxu0 %v3435
    %5820 = vmatprep.subr.bf16.mxu0 0
    %5821 = vmatpush1.bf16.msra.mxu0 %v3438
    %5822 = vmatprep.subr.bf16.mxu0 0
    %5823 = vmatpush1.bf16.msra.mxu0 %v3441
    %5824 = vmatprep.subr.bf16.mxu0 0
    %5825 = vmatpush1.bf16.msra.mxu0 %v3444
    %5826 = vmatprep.subr.bf16.mxu0 0
    %5827 = vmatpush1.bf16.msra.mxu0 %v3447
    %5828 = vmatprep.subr.bf16.mxu0 0
    %5829 = vmatpush1.bf16.msra.mxu0 %v3450
    %5830 = vmatprep.subr.bf16.mxu0 0
    %5831 = vmatpush1.bf16.msra.mxu0 %v3453
    %5832 = vmatprep.subr.bf16.mxu0 0
    %5833 = vmatpush1.bf16.msra.mxu0 %v3456
    %5834 = vmatprep.subr.bf16.mxu0 0
    %5835 = vmatpush1.bf16.msra.mxu0 0
    %5836 = vmatprep.subr.bf16.mxu0 0
    %5837 = vmatpush1.bf16.msra.mxu0 0
    %5838 = vmatprep.subr.bf16.mxu0 0
    %5839 = vmatpush1.bf16.msra.mxu0 0
    %5840 = vmatprep.subr.bf16.mxu0 0
    %5841 = vmatpush1.bf16.msra.mxu0 0
    %5842 = vmatprep.subr.bf16.mxu0 0
    %5843 = vmatpush1.bf16.msra.mxu0 0
    %5844 = vmatprep.subr.bf16.mxu0 0
    %5845 = vmatpush1.bf16.msra.mxu0 0
    %5846 = vmatprep.subr.bf16.mxu0 0
    %5847 = vmatpush1.bf16.msra.mxu0 0
    %5848 = vmatprep.subr.bf16.mxu0 0
    %5849 = vmatpush1.bf16.msra.mxu0 0
    %5850 = vmatprep.mubr.bf16.mxu0 0
    %5851 = vmatmul.mubr.bf16.gmra.mrb[0].mxu0 %v5776
    %v5852 = vpop.f32.mrb[0].mxu0
    %v5853 = vadd.f32 %v3349, %v5852
    %v5854 = vpop.f32.mrb[0].mxu0
    %v5855 = vpop.f32.mrb[0].mxu0
    %v5856 = vpop.f32.mrb[0].mxu0
    %5857 = vdwg.mxu0
    %v5858 = vadd.f32 %v5730, %v5812
    %v5859 = vxor.u32 %v5858, 2147483648
    %v5860 = vmul.f32 %v5859, 1.442695
    %v5861 = vpow.pop %v5860
    %v5862 = vadd.f32 %v5861, 1.0
    %v5863 = vrcp.pop %v5862
    %v5864 = vmul.f32 1.0, %v5863
    %v5865 = vadd.f32 %v5732, %v5814
    %v5866 = vxor.u32 %v5865, 2147483648
    %v5867 = vmul.f32 %v5866, 1.442695
    %v5868 = vpow.pop %v5867
    %v5869 = vadd.f32 %v5868, 1.0
    %v5870 = vrcp.pop %v5869
    %v5871 = vmul.f32 1.0, %v5870
    %v5872 = vmul.f32 %v5864, %v5853
    %v5873 = vadd.f32 %v5771, %v5872
    %v5874 = vtanh.pop %v5873
    %v5875 = vsub.f32 1.0, %v5871
    %v5876 = vmul.f32 %v5875, %v5874
    %v5877 = vmul.f32 %v5871, %v5591
    %v5878 = vadd.f32 %v5876, %v5877
    %5879 = vmatprep.subr.bf16.mxu0 %v2962
    %5880 = vmatpush1.bf16.msra.mxu0 %v2961
    %5881 = vmatprep.subr.bf16.mxu0 %v2965
    %5882 = vmatpush1.bf16.msra.mxu0 %v2964
    %5883 = vmatprep.subr.bf16.mxu0 %v2968
    %5884 = vmatpush1.bf16.msra.mxu0 %v2967
    %5885 = vmatprep.subr.bf16.mxu0 %v2971
    %5886 = vmatpush1.bf16.msra.mxu0 %v2970
    %5887 = vmatprep.subr.bf16.mxu0 %v2974
    %5888 = vmatpush1.bf16.msra.mxu0 %v2973
    %5889 = vmatprep.subr.bf16.mxu0 %v2977
    %5890 = vmatpush1.bf16.msra.mxu0 %v2976
    %5891 = vmatprep.subr.bf16.mxu0 %v2980
    %5892 = vmatpush1.bf16.msra.mxu0 %v2979
    %5893 = vmatprep.subr.bf16.mxu0 %v2983
    %5894 = vmatpush1.bf16.msra.mxu0 %v2982
    %5895 = vmatprep.subr.bf16.mxu0 0
    %5896 = vmatpush1.bf16.msra.mxu0 0
    %5897 = vmatprep.subr.bf16.mxu0 0
    %5898 = vmatpush1.bf16.msra.mxu0 0
    %5899 = vmatprep.subr.bf16.mxu0 0
    %5900 = vmatpush1.bf16.msra.mxu0 0
    %5901 = vmatprep.subr.bf16.mxu0 0
    %5902 = vmatpush1.bf16.msra.mxu0 0
    %5903 = vmatprep.subr.bf16.mxu0 0
    %5904 = vmatpush1.bf16.msra.mxu0 0
    %5905 = vmatprep.subr.bf16.mxu0 0
    %5906 = vmatpush1.bf16.msra.mxu0 0
    %5907 = vmatprep.subr.bf16.mxu0 0
    %5908 = vmatpush1.bf16.msra.mxu0 0
    %5909 = vmatprep.subr.bf16.mxu0 0
    %5910 = vmatpush1.bf16.msra.mxu0 0
    %5911 = vmatprep.mubr.bf16.mxu0 0
    %5912 = vmatmul.mubr.bf16.gmra.mrb[0].mxu0 %v5694
    %v5913 = vpop.f32.mrb[0].mxu0
    %v5914 = vadd.f32 %v2869, %v5913
    %v5915 = vpop.f32.mrb[0].mxu0
    %v5916 = vadd.f32 %v2873, %v5915
    %v5917 = vpop.f32.mrb[0].mxu0
    %v5918 = vpop.f32.mrb[0].mxu0
    %5919 = vdwg.mxu0
    %5920 = vmatprep.subr.bf16.mxu0 0
    %5921 = vmatpush1.bf16.msra.mxu0 %v2963
    %5922 = vmatprep.subr.bf16.mxu0 0
    %5923 = vmatpush1.bf16.msra.mxu0 %v2966
    %5924 = vmatprep.subr.bf16.mxu0 0
    %5925 = vmatpush1.bf16.msra.mxu0 %v2969
    %5926 = vmatprep.subr.bf16.mxu0 0
    %5927 = vmatpush1.bf16.msra.mxu0 %v2972
    %5928 = vmatprep.subr.bf16.mxu0 0
    %5929 = vmatpush1.bf16.msra.mxu0 %v2975
    %5930 = vmatprep.subr.bf16.mxu0 0
    %5931 = vmatpush1.bf16.msra.mxu0 %v2978
    %5932 = vmatprep.subr.bf16.mxu0 0
    %5933 = vmatpush1.bf16.msra.mxu0 %v2981
    %5934 = vmatprep.subr.bf16.mxu0 0
    %5935 = vmatpush1.bf16.msra.mxu0 %v2984
    %5936 = vmatprep.subr.bf16.mxu0 0
    %5937 = vmatpush1.bf16.msra.mxu0 0
    %5938 = vmatprep.subr.bf16.mxu0 0
    %5939 = vmatpush1.bf16.msra.mxu0 0
    %5940 = vmatprep.subr.bf16.mxu0 0
    %5941 = vmatpush1.bf16.msra.mxu0 0
    %5942 = vmatprep.subr.bf16.mxu0 0
    %5943 = vmatpush1.bf16.msra.mxu0 0
    %5944 = vmatprep.subr.bf16.mxu0 0
    %5945 = vmatpush1.bf16.msra.mxu0 0
    %5946 = vmatprep.subr.bf16.mxu0 0
    %5947 = vmatpush1.bf16.msra.mxu0 0
    %5948 = vmatprep.subr.bf16.mxu0 0
    %5949 = vmatpush1.bf16.msra.mxu0 0
    %5950 = vmatprep.subr.bf16.mxu0 0
    %5951 = vmatpush1.bf16.msra.mxu0 0
    %5952 = vmatprep.mubr.bf16.mxu0 0
    %5953 = vmatmul.mubr.bf16.gmra.mrb[0].mxu0 %v5694
    %v5954 = vpop.f32.mrb[0].mxu0
    %v5955 = vadd.f32 %v2877, %v5954
    %v5956 = vpop.f32.mrb[0].mxu0
    %v5957 = vpop.f32.mrb[0].mxu0
    %v5958 = vpop.f32.mrb[0].mxu0
    %5959 = vdwg.mxu0
    %v5960 = vadd.f32 %v2635, %v5914
    %v5961 = vxor.u32 %v5960, 2147483648
    %v5962 = vmul.f32 %v5961, 1.442695
    %v5963 = vpow.pop %v5962
    %v5964 = vadd.f32 %v5963, 1.0
    %v5965 = vrcp.pop %v5964
    %v5966 = vmul.f32 1.0, %v5965
    %v5967 = vadd.f32 %v2637, %v5916
    %v5968 = vxor.u32 %v5967, 2147483648
    %v5969 = vmul.f32 %v5968, 1.442695
    %v5970 = vpow.pop %v5969
    %v5971 = vadd.f32 %v5970, 1.0
    %v5972 = vrcp.pop %v5971
    %v5973 = vmul.f32 1.0, %v5972
    %v5974 = vmul.f32 %v5966, %v5955
    %v5975 = vadd.f32 %v2739, %v5974
    %v5976 = vtanh.pop %v5975
    %v5977 = vsub.f32 1.0, %v5973
    %v5978 = vmul.f32 %v5977, %v5976
    %v5979 = vmul.f32 %v5973, %v5693
    %v5980 = vadd.f32 %v5978, %v5979
    %v5981 = vpack.c.bf16 %v5980, %v5980
    %5982 = vmatprep.subr.bf16.mxu0 %v3209
    %5983 = vmatpush1.bf16.msra.mxu0 %v3208
    %5984 = vmatprep.subr.bf16.mxu0 %v3212
    %5985 = vmatpush1.bf16.msra.mxu0 %v3211
    %5986 = vmatprep.subr.bf16.mxu0 %v3215
    %5987 = vmatpush1.bf16.msra.mxu0 %v3214
    %5988 = vmatprep.subr.bf16.mxu0 %v3218
    %5989 = vmatpush1.bf16.msra.mxu0 %v3217
    %5990 = vmatprep.subr.bf16.mxu0 %v3221
    %5991 = vmatpush1.bf16.msra.mxu0 %v3220
    %5992 = vmatprep.subr.bf16.mxu0 %v3224
    %5993 = vmatpush1.bf16.msra.mxu0 %v3223
    %5994 = vmatprep.subr.bf16.mxu0 %v3227
    %5995 = vmatpush1.bf16.msra.mxu0 %v3226
    %5996 = vmatprep.subr.bf16.mxu0 %v3230
    %5997 = vmatpush1.bf16.msra.mxu0 %v3229
    %5998 = vmatprep.subr.bf16.mxu0 0
    %5999 = vmatpush1.bf16.msra.mxu0 0
    %6000 = vmatprep.subr.bf16.mxu0 0
    %6001 = vmatpush1.bf16.msra.mxu0 0
    %6002 = vmatprep.subr.bf16.mxu0 0
    %6003 = vmatpush1.bf16.msra.mxu0 0
    %6004 = vmatprep.subr.bf16.mxu0 0
    %6005 = vmatpush1.bf16.msra.mxu0 0
    %6006 = vmatprep.subr.bf16.mxu0 0
    %6007 = vmatpush1.bf16.msra.mxu0 0
    %6008 = vmatprep.subr.bf16.mxu0 0
    %6009 = vmatpush1.bf16.msra.mxu0 0
    %6010 = vmatprep.subr.bf16.mxu0 0
    %6011 = vmatpush1.bf16.msra.mxu0 0
    %6012 = vmatprep.subr.bf16.mxu0 0
    %6013 = vmatpush1.bf16.msra.mxu0 0
    %6014 = vmatprep.mubr.bf16.mxu0 0
    %6015 = vmatmul.mubr.bf16.gmra.mrb[0].mxu0 %v5981
    %v6016 = vpop.f32.mrb[0].mxu0
    %v6017 = vadd.f32 %v3116, %v6016
    %v6018 = vpop.f32.mrb[0].mxu0
    %v6019 = vadd.f32 %v3120, %v6018
    %v6020 = vpop.f32.mrb[0].mxu0
    %v6021 = vpop.f32.mrb[0].mxu0
    %6022 = vdwg.mxu0
    %6023 = vmatprep.subr.bf16.mxu0 0
    %6024 = vmatpush1.bf16.msra.mxu0 %v3210
    %6025 = vmatprep.subr.bf16.mxu0 0
    %6026 = vmatpush1.bf16.msra.mxu0 %v3213
    %6027 = vmatprep.subr.bf16.mxu0 0
    %6028 = vmatpush1.bf16.msra.mxu0 %v3216
    %6029 = vmatprep.subr.bf16.mxu0 0
    %6030 = vmatpush1.bf16.msra.mxu0 %v3219
    %6031 = vmatprep.subr.bf16.mxu0 0
    %6032 = vmatpush1.bf16.msra.mxu0 %v3222
    %6033 = vmatprep.subr.bf16.mxu0 0
    %6034 = vmatpush1.bf16.msra.mxu0 %v3225
    %6035 = vmatprep.subr.bf16.mxu0 0
    %6036 = vmatpush1.bf16.msra.mxu0 %v3228
    %6037 = vmatprep.subr.bf16.mxu0 0
    %6038 = vmatpush1.bf16.msra.mxu0 %v3231
    %6039 = vmatprep.subr.bf16.mxu0 0
    %6040 = vmatpush1.bf16.msra.mxu0 0
    %6041 = vmatprep.subr.bf16.mxu0 0
    %6042 = vmatpush1.bf16.msra.mxu0 0
    %6043 = vmatprep.subr.bf16.mxu0 0
    %6044 = vmatpush1.bf16.msra.mxu0 0
    %6045 = vmatprep.subr.bf16.mxu0 0
    %6046 = vmatpush1.bf16.msra.mxu0 0
    %6047 = vmatprep.subr.bf16.mxu0 0
    %6048 = vmatpush1.bf16.msra.mxu0 0
    %6049 = vmatprep.subr.bf16.mxu0 0
    %6050 = vmatpush1.bf16.msra.mxu0 0
    %6051 = vmatprep.subr.bf16.mxu0 0
    %6052 = vmatpush1.bf16.msra.mxu0 0
    %6053 = vmatprep.subr.bf16.mxu0 0
    %6054 = vmatpush1.bf16.msra.mxu0 0
    %6055 = vmatprep.mubr.bf16.mxu0 0
    %6056 = vmatmul.mubr.bf16.gmra.mrb[0].mxu0 %v5981
    %v6057 = vpop.f32.mrb[0].mxu0
    %v6058 = vadd.f32 %v3124, %v6057
    %v6059 = vpop.f32.mrb[0].mxu0
    %v6060 = vpop.f32.mrb[0].mxu0
    %v6061 = vpop.f32.mrb[0].mxu0
    %6062 = vdwg.mxu0
    %v6063 = vpack.c.bf16 %v5878, %v5878
    %6064 = vmatprep.subr.bf16.mxu0 %v3434
    %6065 = vmatpush1.bf16.msra.mxu0 %v3433
    %6066 = vmatprep.subr.bf16.mxu0 %v3437
    %6067 = vmatpush1.bf16.msra.mxu0 %v3436
    %6068 = vmatprep.subr.bf16.mxu0 %v3440
    %6069 = vmatpush1.bf16.msra.mxu0 %v3439
    %6070 = vmatprep.subr.bf16.mxu0 %v3443
    %6071 = vmatpush1.bf16.msra.mxu0 %v3442
    %6072 = vmatprep.subr.bf16.mxu0 %v3446
    %6073 = vmatpush1.bf16.msra.mxu0 %v3445
    %6074 = vmatprep.subr.bf16.mxu0 %v3449
    %6075 = vmatpush1.bf16.msra.mxu0 %v3448
    %6076 = vmatprep.subr.bf16.mxu0 %v3452
    %6077 = vmatpush1.bf16.msra.mxu0 %v3451
    %6078 = vmatprep.subr.bf16.mxu0 %v3455
    %6079 = vmatpush1.bf16.msra.mxu0 %v3454
    %6080 = vmatprep.subr.bf16.mxu0 0
    %6081 = vmatpush1.bf16.msra.mxu0 0
    %6082 = vmatprep.subr.bf16.mxu0 0
    %6083 = vmatpush1.bf16.msra.mxu0 0
    %6084 = vmatprep.subr.bf16.mxu0 0
    %6085 = vmatpush1.bf16.msra.mxu0 0
    %6086 = vmatprep.subr.bf16.mxu0 0
    %6087 = vmatpush1.bf16.msra.mxu0 0
    %6088 = vmatprep.subr.bf16.mxu0 0
    %6089 = vmatpush1.bf16.msra.mxu0 0
    %6090 = vmatprep.subr.bf16.mxu0 0
    %6091 = vmatpush1.bf16.msra.mxu0 0
    %6092 = vmatprep.subr.bf16.mxu0 0
    %6093 = vmatpush1.bf16.msra.mxu0 0
    %6094 = vmatprep.subr.bf16.mxu0 0
    %6095 = vmatpush1.bf16.msra.mxu0 0
    %6096 = vmatprep.mubr.bf16.mxu0 0
    %6097 = vmatmul.mubr.bf16.gmra.mrb[0].mxu0 %v6063
    %v6098 = vpop.f32.mrb[0].mxu0
    %v6099 = vadd.f32 %v3341, %v6098
    %v6100 = vpop.f32.mrb[0].mxu0
    %v6101 = vadd.f32 %v3345, %v6100
    %v6102 = vpop.f32.mrb[0].mxu0
    %v6103 = vpop.f32.mrb[0].mxu0
    %6104 = vdwg.mxu0
    %6105 = vmatprep.subr.bf16.mxu0 0
    %6106 = vmatpush1.bf16.msra.mxu0 %v3435
    %6107 = vmatprep.subr.bf16.mxu0 0
    %6108 = vmatpush1.bf16.msra.mxu0 %v3438
    %6109 = vmatprep.subr.bf16.mxu0 0
    %6110 = vmatpush1.bf16.msra.mxu0 %v3441
    %6111 = vmatprep.subr.bf16.mxu0 0
    %6112 = vmatpush1.bf16.msra.mxu0 %v3444
    %6113 = vmatprep.subr.bf16.mxu0 0
    %6114 = vmatpush1.bf16.msra.mxu0 %v3447
    %6115 = vmatprep.subr.bf16.mxu0 0
    %6116 = vmatpush1.bf16.msra.mxu0 %v3450
    %6117 = vmatprep.subr.bf16.mxu0 0
    %6118 = vmatpush1.bf16.msra.mxu0 %v3453
    %6119 = vmatprep.subr.bf16.mxu0 0
    %6120 = vmatpush1.bf16.msra.mxu0 %v3456
    %6121 = vmatprep.subr.bf16.mxu0 0
    %6122 = vmatpush1.bf16.msra.mxu0 0
    %6123 = vmatprep.subr.bf16.mxu0 0
    %6124 = vmatpush1.bf16.msra.mxu0 0
    %6125 = vmatprep.subr.bf16.mxu0 0
    %6126 = vmatpush1.bf16.msra.mxu0 0
    %6127 = vmatprep.subr.bf16.mxu0 0
    %6128 = vmatpush1.bf16.msra.mxu0 0
    %6129 = vmatprep.subr.bf16.mxu0 0
    %6130 = vmatpush1.bf16.msra.mxu0 0
    %6131 = vmatprep.subr.bf16.mxu0 0
    %6132 = vmatpush1.bf16.msra.mxu0 0
    %6133 = vmatprep.subr.bf16.mxu0 0
    %6134 = vmatpush1.bf16.msra.mxu0 0
    %6135 = vmatprep.subr.bf16.mxu0 0
    %6136 = vmatpush1.bf16.msra.mxu0 0
    %6137 = vmatprep.mubr.bf16.mxu0 0
    %6138 = vmatmul.mubr.bf16.gmra.mrb[0].mxu0 %v6063
    %v6139 = vpop.f32.mrb[0].mxu0
    %v6140 = vadd.f32 %v3349, %v6139
    %v6141 = vpop.f32.mrb[0].mxu0
    %v6142 = vpop.f32.mrb[0].mxu0
    %v6143 = vpop.f32.mrb[0].mxu0
    %6144 = vdwg.mxu0
    %v6145 = vadd.f32 %v6017, %v6099
    %v6146 = vxor.u32 %v6145, 2147483648
    %v6147 = vmul.f32 %v6146, 1.442695
    %v6148 = vpow.pop %v6147
    %v6149 = vadd.f32 %v6148, 1.0
    %v6150 = vrcp.pop %v6149
    %v6151 = vmul.f32 1.0, %v6150
    %v6152 = vadd.f32 %v6019, %v6101
    %v6153 = vxor.u32 %v6152, 2147483648
    %v6154 = vmul.f32 %v6153, 1.442695
    %v6155 = vpow.pop %v6154
    %v6156 = vadd.f32 %v6155, 1.0
    %v6157 = vrcp.pop %v6156
    %v6158 = vmul.f32 1.0, %v6157
    %v6159 = vmul.f32 %v6151, %v6140
    %v6160 = vadd.f32 %v6058, %v6159
    %v6161 = vtanh.pop %v6160
    %v6162 = vsub.f32 1.0, %v6158
    %v6163 = vmul.f32 %v6162, %v6161
    %v6164 = vmul.f32 %v6158, %v5878
    %v6165 = vadd.f32 %v6163, %v6164
    %6166 = vmatprep.subr.bf16.mxu0 %v2962
    %6167 = vmatpush1.bf16.msra.mxu0 %v2961
    %6168 = vmatprep.subr.bf16.mxu0 %v2965
    %6169 = vmatpush1.bf16.msra.mxu0 %v2964
    %6170 = vmatprep.subr.bf16.mxu0 %v2968
    %6171 = vmatpush1.bf16.msra.mxu0 %v2967
    %6172 = vmatprep.subr.bf16.mxu0 %v2971
    %6173 = vmatpush1.bf16.msra.mxu0 %v2970
    %6174 = vmatprep.subr.bf16.mxu0 %v2974
    %6175 = vmatpush1.bf16.msra.mxu0 %v2973
    %6176 = vmatprep.subr.bf16.mxu0 %v2977
    %6177 = vmatpush1.bf16.msra.mxu0 %v2976
    %6178 = vmatprep.subr.bf16.mxu0 %v2980
    %6179 = vmatpush1.bf16.msra.mxu0 %v2979
    %6180 = vmatprep.subr.bf16.mxu0 %v2983
    %6181 = vmatpush1.bf16.msra.mxu0 %v2982
    %6182 = vmatprep.subr.bf16.mxu0 0
    %6183 = vmatpush1.bf16.msra.mxu0 0
    %6184 = vmatprep.subr.bf16.mxu0 0
    %6185 = vmatpush1.bf16.msra.mxu0 0
    %6186 = vmatprep.subr.bf16.mxu0 0
    %6187 = vmatpush1.bf16.msra.mxu0 0
    %6188 = vmatprep.subr.bf16.mxu0 0
    %6189 = vmatpush1.bf16.msra.mxu0 0
    %6190 = vmatprep.subr.bf16.mxu0 0
    %6191 = vmatpush1.bf16.msra.mxu0 0
    %6192 = vmatprep.subr.bf16.mxu0 0
    %6193 = vmatpush1.bf16.msra.mxu0 0
    %6194 = vmatprep.subr.bf16.mxu0 0
    %6195 = vmatpush1.bf16.msra.mxu0 0
    %6196 = vmatprep.subr.bf16.mxu0 0
    %6197 = vmatpush1.bf16.msra.mxu0 0
    %6198 = vmatprep.mubr.bf16.mxu0 0
    %6199 = vmatmul.mubr.bf16.gmra.mrb[0].mxu0 %v5981
    %v6200 = vpop.f32.mrb[0].mxu0
    %v6201 = vadd.f32 %v2869, %v6200
    %v6202 = vpop.f32.mrb[0].mxu0
    %v6203 = vadd.f32 %v2873, %v6202
    %v6204 = vpop.f32.mrb[0].mxu0
    %v6205 = vpop.f32.mrb[0].mxu0
    %6206 = vdwg.mxu0
    %6207 = vmatprep.subr.bf16.mxu0 0
    %6208 = vmatpush1.bf16.msra.mxu0 %v2963
    %6209 = vmatprep.subr.bf16.mxu0 0
    %6210 = vmatpush1.bf16.msra.mxu0 %v2966
    %6211 = vmatprep.subr.bf16.mxu0 0
    %6212 = vmatpush1.bf16.msra.mxu0 %v2969
    %6213 = vmatprep.subr.bf16.mxu0 0
    %6214 = vmatpush1.bf16.msra.mxu0 %v2972
    %6215 = vmatprep.subr.bf16.mxu0 0
    %6216 = vmatpush1.bf16.msra.mxu0 %v2975
    %6217 = vmatprep.subr.bf16.mxu0 0
    %6218 = vmatpush1.bf16.msra.mxu0 %v2978
    %6219 = vmatprep.subr.bf16.mxu0 0
    %6220 = vmatpush1.bf16.msra.mxu0 %v2981
    %6221 = vmatprep.subr.bf16.mxu0 0
    %6222 = vmatpush1.bf16.msra.mxu0 %v2984
    %6223 = vmatprep.subr.bf16.mxu0 0
    %6224 = vmatpush1.bf16.msra.mxu0 0
    %6225 = vmatprep.subr.bf16.mxu0 0
    %6226 = vmatpush1.bf16.msra.mxu0 0
    %6227 = vmatprep.subr.bf16.mxu0 0
    %6228 = vmatpush1.bf16.msra.mxu0 0
    %6229 = vmatprep.subr.bf16.mxu0 0
    %6230 = vmatpush1.bf16.msra.mxu0 0
    %6231 = vmatprep.subr.bf16.mxu0 0
    %6232 = vmatpush1.bf16.msra.mxu0 0
    %6233 = vmatprep.subr.bf16.mxu0 0
    %6234 = vmatpush1.bf16.msra.mxu0 0
    %6235 = vmatprep.subr.bf16.mxu0 0
    %6236 = vmatpush1.bf16.msra.mxu0 0
    %6237 = vmatprep.subr.bf16.mxu0 0
    %6238 = vmatpush1.bf16.msra.mxu0 0
    %6239 = vmatprep.mubr.bf16.mxu0 0
    %6240 = vmatmul.mubr.bf16.gmra.mrb[0].mxu0 %v5981
    %v6241 = vpop.f32.mrb[0].mxu0
    %v6242 = vadd.f32 %v2877, %v6241
    %v6243 = vpop.f32.mrb[0].mxu0
    %v6244 = vpop.f32.mrb[0].mxu0
    %v6245 = vpop.f32.mrb[0].mxu0
    %6246 = vdwg.mxu0
    %v6247 = vadd.f32 %v2641, %v6201
    %v6248 = vxor.u32 %v6247, 2147483648
    %v6249 = vmul.f32 %v6248, 1.442695
    %v6250 = vpow.pop %v6249
    %v6251 = vadd.f32 %v6250, 1.0
    %v6252 = vrcp.pop %v6251
    %v6253 = vmul.f32 1.0, %v6252
    %v6254 = vadd.f32 %v2643, %v6203
    %v6255 = vxor.u32 %v6254, 2147483648
    %v6256 = vmul.f32 %v6255, 1.442695
    %v6257 = vpow.pop %v6256
    %v6258 = vadd.f32 %v6257, 1.0
    %v6259 = vrcp.pop %v6258
    %v6260 = vmul.f32 1.0, %v6259
    %v6261 = vmul.f32 %v6253, %v6242
    %v6262 = vadd.f32 %v2744, %v6261
    %v6263 = vtanh.pop %v6262
    %v6264 = vsub.f32 1.0, %v6260
    %v6265 = vmul.f32 %v6264, %v6263
    %v6266 = vmul.f32 %v6260, %v5980
    %v6267 = vadd.f32 %v6265, %v6266
    %v6268 = vpack.c.bf16 %v6267, %v6267
    %6269 = vmatprep.subr.bf16.mxu0 %v3209
    %6270 = vmatpush1.bf16.msra.mxu0 %v3208
    %6271 = vmatprep.subr.bf16.mxu0 %v3212
    %6272 = vmatpush1.bf16.msra.mxu0 %v3211
    %6273 = vmatprep.subr.bf16.mxu0 %v3215
    %6274 = vmatpush1.bf16.msra.mxu0 %v3214
    %6275 = vmatprep.subr.bf16.mxu0 %v3218
    %6276 = vmatpush1.bf16.msra.mxu0 %v3217
    %6277 = vmatprep.subr.bf16.mxu0 %v3221
    %6278 = vmatpush1.bf16.msra.mxu0 %v3220
    %6279 = vmatprep.subr.bf16.mxu0 %v3224
    %6280 = vmatpush1.bf16.msra.mxu0 %v3223
    %6281 = vmatprep.subr.bf16.mxu0 %v3227
    %6282 = vmatpush1.bf16.msra.mxu0 %v3226
    %6283 = vmatprep.subr.bf16.mxu0 %v3230
    %6284 = vmatpush1.bf16.msra.mxu0 %v3229
    %6285 = vmatprep.subr.bf16.mxu0 0
    %6286 = vmatpush1.bf16.msra.mxu0 0
    %6287 = vmatprep.subr.bf16.mxu0 0
    %6288 = vmatpush1.bf16.msra.mxu0 0
    %6289 = vmatprep.subr.bf16.mxu0 0
    %6290 = vmatpush1.bf16.msra.mxu0 0
    %6291 = vmatprep.subr.bf16.mxu0 0
    %6292 = vmatpush1.bf16.msra.mxu0 0
    %6293 = vmatprep.subr.bf16.mxu0 0
    %6294 = vmatpush1.bf16.msra.mxu0 0
    %6295 = vmatprep.subr.bf16.mxu0 0
    %6296 = vmatpush1.bf16.msra.mxu0 0
    %6297 = vmatprep.subr.bf16.mxu0 0
    %6298 = vmatpush1.bf16.msra.mxu0 0
    %6299 = vmatprep.subr.bf16.mxu0 0
    %6300 = vmatpush1.bf16.msra.mxu0 0
    %6301 = vmatprep.mubr.bf16.mxu0 0
    %6302 = vmatmul.mubr.bf16.gmra.mrb[0].mxu0 %v6268
    %v6303 = vpop.f32.mrb[0].mxu0
    %v6304 = vadd.f32 %v3116, %v6303
    %v6305 = vpop.f32.mrb[0].mxu0
    %v6306 = vadd.f32 %v3120, %v6305
    %v6307 = vpop.f32.mrb[0].mxu0
    %v6308 = vpop.f32.mrb[0].mxu0
    %6309 = vdwg.mxu0
    %6310 = vmatprep.subr.bf16.mxu0 0
    %6311 = vmatpush1.bf16.msra.mxu0 %v3210
    %6312 = vmatprep.subr.bf16.mxu0 0
    %6313 = vmatpush1.bf16.msra.mxu0 %v3213
    %6314 = vmatprep.subr.bf16.mxu0 0
    %6315 = vmatpush1.bf16.msra.mxu0 %v3216
    %6316 = vmatprep.subr.bf16.mxu0 0
    %6317 = vmatpush1.bf16.msra.mxu0 %v3219
    %6318 = vmatprep.subr.bf16.mxu0 0
    %6319 = vmatpush1.bf16.msra.mxu0 %v3222
    %6320 = vmatprep.subr.bf16.mxu0 0
    %6321 = vmatpush1.bf16.msra.mxu0 %v3225
    %6322 = vmatprep.subr.bf16.mxu0 0
    %6323 = vmatpush1.bf16.msra.mxu0 %v3228
    %6324 = vmatprep.subr.bf16.mxu0 0
    %6325 = vmatpush1.bf16.msra.mxu0 %v3231
    %6326 = vmatprep.subr.bf16.mxu0 0
    %6327 = vmatpush1.bf16.msra.mxu0 0
    %6328 = vmatprep.subr.bf16.mxu0 0
    %6329 = vmatpush1.bf16.msra.mxu0 0
    %6330 = vmatprep.subr.bf16.mxu0 0
    %6331 = vmatpush1.bf16.msra.mxu0 0
    %6332 = vmatprep.subr.bf16.mxu0 0
    %6333 = vmatpush1.bf16.msra.mxu0 0
    %6334 = vmatprep.subr.bf16.mxu0 0
    %6335 = vmatpush1.bf16.msra.mxu0 0
    %6336 = vmatprep.subr.bf16.mxu0 0
    %6337 = vmatpush1.bf16.msra.mxu0 0
    %6338 = vmatprep.subr.bf16.mxu0 0
    %6339 = vmatpush1.bf16.msra.mxu0 0
    %6340 = vmatprep.subr.bf16.mxu0 0
    %6341 = vmatpush1.bf16.msra.mxu0 0
    %6342 = vmatprep.mubr.bf16.mxu0 0
    %6343 = vmatmul.mubr.bf16.gmra.mrb[0].mxu0 %v6268
    %v6344 = vpop.f32.mrb[0].mxu0
    %v6345 = vadd.f32 %v3124, %v6344
    %v6346 = vpop.f32.mrb[0].mxu0
    %v6347 = vpop.f32.mrb[0].mxu0
    %v6348 = vpop.f32.mrb[0].mxu0
    %6349 = vdwg.mxu0
    %v6350 = vpack.c.bf16 %v6165, %v6165
    %6351 = vmatprep.subr.bf16.mxu0 %v3434
    %6352 = vmatpush1.bf16.msra.mxu0 %v3433
    %6353 = vmatprep.subr.bf16.mxu0 %v3437
    %6354 = vmatpush1.bf16.msra.mxu0 %v3436
    %6355 = vmatprep.subr.bf16.mxu0 %v3440
    %6356 = vmatpush1.bf16.msra.mxu0 %v3439
    %6357 = vmatprep.subr.bf16.mxu0 %v3443
    %6358 = vmatpush1.bf16.msra.mxu0 %v3442
    %6359 = vmatprep.subr.bf16.mxu0 %v3446
    %6360 = vmatpush1.bf16.msra.mxu0 %v3445
    %6361 = vmatprep.subr.bf16.mxu0 %v3449
    %6362 = vmatpush1.bf16.msra.mxu0 %v3448
    %6363 = vmatprep.subr.bf16.mxu0 %v3452
    %6364 = vmatpush1.bf16.msra.mxu0 %v3451
    %6365 = vmatprep.subr.bf16.mxu0 %v3455
    %6366 = vmatpush1.bf16.msra.mxu0 %v3454
    %6367 = vmatprep.subr.bf16.mxu0 0
    %6368 = vmatpush1.bf16.msra.mxu0 0
    %6369 = vmatprep.subr.bf16.mxu0 0
    %6370 = vmatpush1.bf16.msra.mxu0 0
    %6371 = vmatprep.subr.bf16.mxu0 0
    %6372 = vmatpush1.bf16.msra.mxu0 0
    %6373 = vmatprep.subr.bf16.mxu0 0
    %6374 = vmatpush1.bf16.msra.mxu0 0
    %6375 = vmatprep.subr.bf16.mxu0 0
    %6376 = vmatpush1.bf16.msra.mxu0 0
    %6377 = vmatprep.subr.bf16.mxu0 0
    %6378 = vmatpush1.bf16.msra.mxu0 0
    %6379 = vmatprep.subr.bf16.mxu0 0
    %6380 = vmatpush1.bf16.msra.mxu0 0
    %6381 = vmatprep.subr.bf16.mxu0 0
    %6382 = vmatpush1.bf16.msra.mxu0 0
    %6383 = vmatprep.mubr.bf16.mxu0 0
    %6384 = vmatmul.mubr.bf16.gmra.mrb[0].mxu0 %v6350
    %v6385 = vpop.f32.mrb[0].mxu0
    %v6386 = vadd.f32 %v3341, %v6385
    %v6387 = vpop.f32.mrb[0].mxu0
    %v6388 = vadd.f32 %v3345, %v6387
    %v6389 = vpop.f32.mrb[0].mxu0
    %v6390 = vpop.f32.mrb[0].mxu0
    %6391 = vdwg.mxu0
    %6392 = vmatprep.subr.bf16.mxu0 0
    %6393 = vmatpush1.bf16.msra.mxu0 %v3435
    %6394 = vmatprep.subr.bf16.mxu0 0
    %6395 = vmatpush1.bf16.msra.mxu0 %v3438
    %6396 = vmatprep.subr.bf16.mxu0 0
    %6397 = vmatpush1.bf16.msra.mxu0 %v3441
    %6398 = vmatprep.subr.bf16.mxu0 0
    %6399 = vmatpush1.bf16.msra.mxu0 %v3444
    %6400 = vmatprep.subr.bf16.mxu0 0
    %6401 = vmatpush1.bf16.msra.mxu0 %v3447
    %6402 = vmatprep.subr.bf16.mxu0 0
    %6403 = vmatpush1.bf16.msra.mxu0 %v3450
    %6404 = vmatprep.subr.bf16.mxu0 0
    %6405 = vmatpush1.bf16.msra.mxu0 %v3453
    %6406 = vmatprep.subr.bf16.mxu0 0
    %6407 = vmatpush1.bf16.msra.mxu0 %v3456
    %6408 = vmatprep.subr.bf16.mxu0 0
    %6409 = vmatpush1.bf16.msra.mxu0 0
    %6410 = vmatprep.subr.bf16.mxu0 0
    %6411 = vmatpush1.bf16.msra.mxu0 0
    %6412 = vmatprep.subr.bf16.mxu0 0
    %6413 = vmatpush1.bf16.msra.mxu0 0
    %6414 = vmatprep.subr.bf16.mxu0 0
    %6415 = vmatpush1.bf16.msra.mxu0 0
    %6416 = vmatprep.subr.bf16.mxu0 0
    %6417 = vmatpush1.bf16.msra.mxu0 0
    %6418 = vmatprep.subr.bf16.mxu0 0
    %6419 = vmatpush1.bf16.msra.mxu0 0
    %6420 = vmatprep.subr.bf16.mxu0 0
    %6421 = vmatpush1.bf16.msra.mxu0 0
    %6422 = vmatprep.subr.bf16.mxu0 0
    %6423 = vmatpush1.bf16.msra.mxu0 0
    %6424 = vmatprep.mubr.bf16.mxu0 0
    %6425 = vmatmul.mubr.bf16.gmra.mrb[0].mxu0 %v6350
    %v6426 = vpop.f32.mrb[0].mxu0
    %v6427 = vadd.f32 %v3349, %v6426
    %v6428 = vpop.f32.mrb[0].mxu0
    %v6429 = vpop.f32.mrb[0].mxu0
    %v6430 = vpop.f32.mrb[0].mxu0
    %6431 = vdwg.mxu0
    %v6432 = vadd.f32 %v6304, %v6386
    %v6433 = vxor.u32 %v6432, 2147483648
    %v6434 = vmul.f32 %v6433, 1.442695
    %v6435 = vpow.pop %v6434
    %v6436 = vadd.f32 %v6435, 1.0
    %v6437 = vrcp.pop %v6436
    %v6438 = vmul.f32 1.0, %v6437
    %v6439 = vadd.f32 %v6306, %v6388
    %v6440 = vxor.u32 %v6439, 2147483648
    %v6441 = vmul.f32 %v6440, 1.442695
    %v6442 = vpow.pop %v6441
    %v6443 = vadd.f32 %v6442, 1.0
    %v6444 = vrcp.pop %v6443
    %v6445 = vmul.f32 1.0, %v6444
    %v6446 = vmul.f32 %v6438, %v6427
    %v6447 = vadd.f32 %v6345, %v6446
    %v6448 = vtanh.pop %v6447
    %v6449 = vsub.f32 1.0, %v6445
    %v6450 = vmul.f32 %v6449, %v6448
    %v6451 = vmul.f32 %v6445, %v6165
    %v6452 = vadd.f32 %v6450, %v6451
    %6453 = vmatprep.subr.bf16.mxu0 %v2962
    %6454 = vmatpush1.bf16.msra.mxu0 %v2961
    %6455 = vmatprep.subr.bf16.mxu0 %v2965
    %6456 = vmatpush1.bf16.msra.mxu0 %v2964
    %6457 = vmatprep.subr.bf16.mxu0 %v2968
    %6458 = vmatpush1.bf16.msra.mxu0 %v2967
    %6459 = vmatprep.subr.bf16.mxu0 %v2971
    %6460 = vmatpush1.bf16.msra.mxu0 %v2970
    %6461 = vmatprep.subr.bf16.mxu0 %v2974
    %6462 = vmatpush1.bf16.msra.mxu0 %v2973
    %6463 = vmatprep.subr.bf16.mxu0 %v2977
    %6464 = vmatpush1.bf16.msra.mxu0 %v2976
    %6465 = vmatprep.subr.bf16.mxu0 %v2980
    %6466 = vmatpush1.bf16.msra.mxu0 %v2979
    %6467 = vmatprep.subr.bf16.mxu0 %v2983
    %6468 = vmatpush1.bf16.msra.mxu0 %v2982
    %6469 = vmatprep.subr.bf16.mxu0 0
    %6470 = vmatpush1.bf16.msra.mxu0 0
    %6471 = vmatprep.subr.bf16.mxu0 0
    %6472 = vmatpush1.bf16.msra.mxu0 0
    %6473 = vmatprep.subr.bf16.mxu0 0
    %6474 = vmatpush1.bf16.msra.mxu0 0
    %6475 = vmatprep.subr.bf16.mxu0 0
    %6476 = vmatpush1.bf16.msra.mxu0 0
    %6477 = vmatprep.subr.bf16.mxu0 0
    %6478 = vmatpush1.bf16.msra.mxu0 0
    %6479 = vmatprep.subr.bf16.mxu0 0
    %6480 = vmatpush1.bf16.msra.mxu0 0
    %6481 = vmatprep.subr.bf16.mxu0 0
    %6482 = vmatpush1.bf16.msra.mxu0 0
    %6483 = vmatprep.subr.bf16.mxu0 0
    %6484 = vmatpush1.bf16.msra.mxu0 0
    %6485 = vmatprep.mubr.bf16.mxu0 0
    %6486 = vmatmul.mubr.bf16.gmra.mrb[0].mxu0 %v6268
    %v6487 = vpop.f32.mrb[0].mxu0
    %v6488 = vadd.f32 %v2869, %v6487
    %v6489 = vpop.f32.mrb[0].mxu0
    %v6490 = vadd.f32 %v2873, %v6489
    %v6491 = vpop.f32.mrb[0].mxu0
    %v6492 = vpop.f32.mrb[0].mxu0
    %6493 = vdwg.mxu0
    %6494 = vmatprep.subr.bf16.mxu0 0
    %6495 = vmatpush1.bf16.msra.mxu0 %v2963
    %6496 = vmatprep.subr.bf16.mxu0 0
    %6497 = vmatpush1.bf16.msra.mxu0 %v2966
    %6498 = vmatprep.subr.bf16.mxu0 0
    %6499 = vmatpush1.bf16.msra.mxu0 %v2969
    %6500 = vmatprep.subr.bf16.mxu0 0
    %6501 = vmatpush1.bf16.msra.mxu0 %v2972
    %6502 = vmatprep.subr.bf16.mxu0 0
    %6503 = vmatpush1.bf16.msra.mxu0 %v2975
    %6504 = vmatprep.subr.bf16.mxu0 0
    %6505 = vmatpush1.bf16.msra.mxu0 %v2978
    %6506 = vmatprep.subr.bf16.mxu0 0
    %6507 = vmatpush1.bf16.msra.mxu0 %v2981
    %6508 = vmatprep.subr.bf16.mxu0 0
    %6509 = vmatpush1.bf16.msra.mxu0 %v2984
    %6510 = vmatprep.subr.bf16.mxu0 0
    %6511 = vmatpush1.bf16.msra.mxu0 0
    %6512 = vmatprep.subr.bf16.mxu0 0
    %6513 = vmatpush1.bf16.msra.mxu0 0
    %6514 = vmatprep.subr.bf16.mxu0 0
    %6515 = vmatpush1.bf16.msra.mxu0 0
    %6516 = vmatprep.subr.bf16.mxu0 0
    %6517 = vmatpush1.bf16.msra.mxu0 0
    %6518 = vmatprep.subr.bf16.mxu0 0
    %6519 = vmatpush1.bf16.msra.mxu0 0
    %6520 = vmatprep.subr.bf16.mxu0 0
    %6521 = vmatpush1.bf16.msra.mxu0 0
    %6522 = vmatprep.subr.bf16.mxu0 0
    %6523 = vmatpush1.bf16.msra.mxu0 0
    %6524 = vmatprep.subr.bf16.mxu0 0
    %6525 = vmatpush1.bf16.msra.mxu0 0
    %6526 = vmatprep.mubr.bf16.mxu0 0
    %6527 = vmatmul.mubr.bf16.gmra.mrb[0].mxu0 %v6268
    %v6528 = vpop.f32.mrb[0].mxu0
    %v6529 = vadd.f32 %v2877, %v6528
    %v6530 = vpop.f32.mrb[0].mxu0
    %v6531 = vpop.f32.mrb[0].mxu0
    %v6532 = vpop.f32.mrb[0].mxu0
    %6533 = vdwg.mxu0
    %v6534 = vadd.f32 %v2645, %v6488
    %v6535 = vxor.u32 %v6534, 2147483648
    %v6536 = vmul.f32 %v6535, 1.442695
    %v6537 = vpow.pop %v6536
    %v6538 = vadd.f32 %v6537, 1.0
    %v6539 = vrcp.pop %v6538
    %v6540 = vmul.f32 1.0, %v6539
    %v6541 = vadd.f32 %v2647, %v6490
    %v6542 = vxor.u32 %v6541, 2147483648
    %v6543 = vmul.f32 %v6542, 1.442695
    %v6544 = vpow.pop %v6543
    %v6545 = vadd.f32 %v6544, 1.0
    %v6546 = vrcp.pop %v6545
    %v6547 = vmul.f32 1.0, %v6546
    %v6548 = vmul.f32 %v6540, %v6529
    %v6549 = vadd.f32 %v2747, %v6548
    %v6550 = vtanh.pop %v6549
    %v6551 = vsub.f32 1.0, %v6547
    %v6552 = vmul.f32 %v6551, %v6550
    %v6553 = vmul.f32 %v6547, %v6267
    %v6554 = vadd.f32 %v6552, %v6553
    %v6555 = vpack.c.bf16 %v6554, %v6554
    %6556 = vmatprep.subr.bf16.mxu0 %v3209
    %6557 = vmatpush1.bf16.msra.mxu0 %v3208
    %6558 = vmatprep.subr.bf16.mxu0 %v3212
    %6559 = vmatpush1.bf16.msra.mxu0 %v3211
    %6560 = vmatprep.subr.bf16.mxu0 %v3215
    %6561 = vmatpush1.bf16.msra.mxu0 %v3214
    %6562 = vmatprep.subr.bf16.mxu0 %v3218
    %6563 = vmatpush1.bf16.msra.mxu0 %v3217
    %6564 = vmatprep.subr.bf16.mxu0 %v3221
    %6565 = vmatpush1.bf16.msra.mxu0 %v3220
    %6566 = vmatprep.subr.bf16.mxu0 %v3224
    %6567 = vmatpush1.bf16.msra.mxu0 %v3223
    %6568 = vmatprep.subr.bf16.mxu0 %v3227
    %6569 = vmatpush1.bf16.msra.mxu0 %v3226
    %6570 = vmatprep.subr.bf16.mxu0 %v3230
    %6571 = vmatpush1.bf16.msra.mxu0 %v3229
    %6572 = vmatprep.subr.bf16.mxu0 0
    %6573 = vmatpush1.bf16.msra.mxu0 0
    %6574 = vmatprep.subr.bf16.mxu0 0
    %6575 = vmatpush1.bf16.msra.mxu0 0
    %6576 = vmatprep.subr.bf16.mxu0 0
    %6577 = vmatpush1.bf16.msra.mxu0 0
    %6578 = vmatprep.subr.bf16.mxu0 0
    %6579 = vmatpush1.bf16.msra.mxu0 0
    %6580 = vmatprep.subr.bf16.mxu0 0
    %6581 = vmatpush1.bf16.msra.mxu0 0
    %6582 = vmatprep.subr.bf16.mxu0 0
    %6583 = vmatpush1.bf16.msra.mxu0 0
    %6584 = vmatprep.subr.bf16.mxu0 0
    %6585 = vmatpush1.bf16.msra.mxu0 0
    %6586 = vmatprep.subr.bf16.mxu0 0
    %6587 = vmatpush1.bf16.msra.mxu0 0
    %6588 = vmatprep.mubr.bf16.mxu0 0
    %6589 = vmatmul.mubr.bf16.gmra.mrb[0].mxu0 %v6555
    %v6590 = vpop.f32.mrb[0].mxu0
    %v6591 = vadd.f32 %v3116, %v6590
    %v6592 = vpop.f32.mrb[0].mxu0
    %v6593 = vadd.f32 %v3120, %v6592
    %v6594 = vpop.f32.mrb[0].mxu0
    %v6595 = vpop.f32.mrb[0].mxu0
    %6596 = vdwg.mxu0
    %6597 = vmatprep.subr.bf16.mxu0 0
    %6598 = vmatpush1.bf16.msra.mxu0 %v3210
    %6599 = vmatprep.subr.bf16.mxu0 0
    %6600 = vmatpush1.bf16.msra.mxu0 %v3213
    %6601 = vmatprep.subr.bf16.mxu0 0
    %6602 = vmatpush1.bf16.msra.mxu0 %v3216
    %6603 = vmatprep.subr.bf16.mxu0 0
    %6604 = vmatpush1.bf16.msra.mxu0 %v3219
    %6605 = vmatprep.subr.bf16.mxu0 0
    %6606 = vmatpush1.bf16.msra.mxu0 %v3222
    %6607 = vmatprep.subr.bf16.mxu0 0
    %6608 = vmatpush1.bf16.msra.mxu0 %v3225
    %6609 = vmatprep.subr.bf16.mxu0 0
    %6610 = vmatpush1.bf16.msra.mxu0 %v3228
    %6611 = vmatprep.subr.bf16.mxu0 0
    %6612 = vmatpush1.bf16.msra.mxu0 %v3231
    %6613 = vmatprep.subr.bf16.mxu0 0
    %6614 = vmatpush1.bf16.msra.mxu0 0
    %6615 = vmatprep.subr.bf16.mxu0 0
    %6616 = vmatpush1.bf16.msra.mxu0 0
    %6617 = vmatprep.subr.bf16.mxu0 0
    %6618 = vmatpush1.bf16.msra.mxu0 0
    %6619 = vmatprep.subr.bf16.mxu0 0
    %6620 = vmatpush1.bf16.msra.mxu0 0
    %6621 = vmatprep.subr.bf16.mxu0 0
    %6622 = vmatpush1.bf16.msra.mxu0 0
    %6623 = vmatprep.subr.bf16.mxu0 0
    %6624 = vmatpush1.bf16.msra.mxu0 0
    %6625 = vmatprep.subr.bf16.mxu0 0
    %6626 = vmatpush1.bf16.msra.mxu0 0
    %6627 = vmatprep.subr.bf16.mxu0 0
    %6628 = vmatpush1.bf16.msra.mxu0 0
    %6629 = vmatprep.mubr.bf16.mxu0 0
    %6630 = vmatmul.mubr.bf16.gmra.mrb[0].mxu0 %v6555
    %v6631 = vpop.f32.mrb[0].mxu0
    %v6632 = vadd.f32 %v3124, %v6631
    %v6633 = vpop.f32.mrb[0].mxu0
    %v6634 = vpop.f32.mrb[0].mxu0
    %v6635 = vpop.f32.mrb[0].mxu0
    %6636 = vdwg.mxu0
    %v6637 = vpack.c.bf16 %v6452, %v6452
    %6638 = vmatprep.subr.bf16.mxu0 %v3434
    %6639 = vmatpush1.bf16.msra.mxu0 %v3433
    %6640 = vmatprep.subr.bf16.mxu0 %v3437
    %6641 = vmatpush1.bf16.msra.mxu0 %v3436
    %6642 = vmatprep.subr.bf16.mxu0 %v3440
    %6643 = vmatpush1.bf16.msra.mxu0 %v3439
    %6644 = vmatprep.subr.bf16.mxu0 %v3443
    %6645 = vmatpush1.bf16.msra.mxu0 %v3442
    %6646 = vmatprep.subr.bf16.mxu0 %v3446
    %6647 = vmatpush1.bf16.msra.mxu0 %v3445
    %6648 = vmatprep.subr.bf16.mxu0 %v3449
    %6649 = vmatpush1.bf16.msra.mxu0 %v3448
    %6650 = vmatprep.subr.bf16.mxu0 %v3452
    %6651 = vmatpush1.bf16.msra.mxu0 %v3451
    %6652 = vmatprep.subr.bf16.mxu0 %v3455
    %6653 = vmatpush1.bf16.msra.mxu0 %v3454
    %6654 = vmatprep.subr.bf16.mxu0 0
    %6655 = vmatpush1.bf16.msra.mxu0 0
    %6656 = vmatprep.subr.bf16.mxu0 0
    %6657 = vmatpush1.bf16.msra.mxu0 0
    %6658 = vmatprep.subr.bf16.mxu0 0
    %6659 = vmatpush1.bf16.msra.mxu0 0
    %6660 = vmatprep.subr.bf16.mxu0 0
    %6661 = vmatpush1.bf16.msra.mxu0 0
    %6662 = vmatprep.subr.bf16.mxu0 0
    %6663 = vmatpush1.bf16.msra.mxu0 0
    %6664 = vmatprep.subr.bf16.mxu0 0
    %6665 = vmatpush1.bf16.msra.mxu0 0
    %6666 = vmatprep.subr.bf16.mxu0 0
    %6667 = vmatpush1.bf16.msra.mxu0 0
    %6668 = vmatprep.subr.bf16.mxu0 0
    %6669 = vmatpush1.bf16.msra.mxu0 0
    %6670 = vmatprep.mubr.bf16.mxu0 0
    %6671 = vmatmul.mubr.bf16.gmra.mrb[0].mxu0 %v6637
    %v6672 = vpop.f32.mrb[0].mxu0
    %v6673 = vadd.f32 %v3341, %v6672
    %v6674 = vpop.f32.mrb[0].mxu0
    %v6675 = vadd.f32 %v3345, %v6674
    %v6676 = vpop.f32.mrb[0].mxu0
    %v6677 = vpop.f32.mrb[0].mxu0
    %6678 = vdwg.mxu0
    %6679 = vmatprep.subr.bf16.mxu0 0
    %6680 = vmatpush1.bf16.msra.mxu0 %v3435
    %6681 = vmatprep.subr.bf16.mxu0 0
    %6682 = vmatpush1.bf16.msra.mxu0 %v3438
    %6683 = vmatprep.subr.bf16.mxu0 0
    %6684 = vmatpush1.bf16.msra.mxu0 %v3441
    %6685 = vmatprep.subr.bf16.mxu0 0
    %6686 = vmatpush1.bf16.msra.mxu0 %v3444
    %6687 = vmatprep.subr.bf16.mxu0 0
    %6688 = vmatpush1.bf16.msra.mxu0 %v3447
    %6689 = vmatprep.subr.bf16.mxu0 0
    %6690 = vmatpush1.bf16.msra.mxu0 %v3450
    %6691 = vmatprep.subr.bf16.mxu0 0
    %6692 = vmatpush1.bf16.msra.mxu0 %v3453
    %6693 = vmatprep.subr.bf16.mxu0 0
    %6694 = vmatpush1.bf16.msra.mxu0 %v3456
    %6695 = vmatprep.subr.bf16.mxu0 0
    %6696 = vmatpush1.bf16.msra.mxu0 0
    %6697 = vmatprep.subr.bf16.mxu0 0
    %6698 = vmatpush1.bf16.msra.mxu0 0
    %6699 = vmatprep.subr.bf16.mxu0 0
    %6700 = vmatpush1.bf16.msra.mxu0 0
    %6701 = vmatprep.subr.bf16.mxu0 0
    %6702 = vmatpush1.bf16.msra.mxu0 0
    %6703 = vmatprep.subr.bf16.mxu0 0
    %6704 = vmatpush1.bf16.msra.mxu0 0
    %6705 = vmatprep.subr.bf16.mxu0 0
    %6706 = vmatpush1.bf16.msra.mxu0 0
    %6707 = vmatprep.subr.bf16.mxu0 0
    %6708 = vmatpush1.bf16.msra.mxu0 0
    %6709 = vmatprep.subr.bf16.mxu0 0
    %6710 = vmatpush1.bf16.msra.mxu0 0
    %6711 = vmatprep.mubr.bf16.mxu0 0
    %6712 = vmatmul.mubr.bf16.gmra.mrb[0].mxu0 %v6637
    %v6713 = vpop.f32.mrb[0].mxu0
    %v6714 = vadd.f32 %v3349, %v6713
    %v6715 = vpop.f32.mrb[0].mxu0
    %v6716 = vpop.f32.mrb[0].mxu0
    %v6717 = vpop.f32.mrb[0].mxu0
    %6718 = vdwg.mxu0
    %v6719 = vadd.f32 %v6591, %v6673
    %v6720 = vxor.u32 %v6719, 2147483648
    %v6721 = vmul.f32 %v6720, 1.442695
    %v6722 = vpow.pop %v6721
    %v6723 = vadd.f32 %v6722, 1.0
    %v6724 = vrcp.pop %v6723
    %v6725 = vmul.f32 1.0, %v6724
    %v6726 = vadd.f32 %v6593, %v6675
    %v6727 = vxor.u32 %v6726, 2147483648
    %v6728 = vmul.f32 %v6727, 1.442695
    %v6729 = vpow.pop %v6728
    %v6730 = vadd.f32 %v6729, 1.0
    %v6731 = vrcp.pop %v6730
    %v6732 = vmul.f32 1.0, %v6731
    %v6733 = vmul.f32 %v6725, %v6714
    %v6734 = vadd.f32 %v6632, %v6733
    %v6735 = vtanh.pop %v6734
    %v6736 = vsub.f32 1.0, %v6732
    %v6737 = vmul.f32 %v6736, %v6735
    %v6738 = vmul.f32 %v6732, %v6452
    %v6739 = vadd.f32 %v6737, %v6738
    %6740 = vmatprep.subr.bf16.mxu0 %v2962
    %6741 = vmatpush1.bf16.msra.mxu0 %v2961
    %6742 = vmatprep.subr.bf16.mxu0 %v2965
    %6743 = vmatpush1.bf16.msra.mxu0 %v2964
    %6744 = vmatprep.subr.bf16.mxu0 %v2968
    %6745 = vmatpush1.bf16.msra.mxu0 %v2967
    %6746 = vmatprep.subr.bf16.mxu0 %v2971
    %6747 = vmatpush1.bf16.msra.mxu0 %v2970
    %6748 = vmatprep.subr.bf16.mxu0 %v2974
    %6749 = vmatpush1.bf16.msra.mxu0 %v2973
    %6750 = vmatprep.subr.bf16.mxu0 %v2977
    %6751 = vmatpush1.bf16.msra.mxu0 %v2976
    %6752 = vmatprep.subr.bf16.mxu0 %v2980
    %6753 = vmatpush1.bf16.msra.mxu0 %v2979
    %6754 = vmatprep.subr.bf16.mxu0 %v2983
    %6755 = vmatpush1.bf16.msra.mxu0 %v2982
    %6756 = vmatprep.subr.bf16.mxu0 0
    %6757 = vmatpush1.bf16.msra.mxu0 0
    %6758 = vmatprep.subr.bf16.mxu0 0
    %6759 = vmatpush1.bf16.msra.mxu0 0
    %6760 = vmatprep.subr.bf16.mxu0 0
    %6761 = vmatpush1.bf16.msra.mxu0 0
    %6762 = vmatprep.subr.bf16.mxu0 0
    %6763 = vmatpush1.bf16.msra.mxu0 0
    %6764 = vmatprep.subr.bf16.mxu0 0
    %6765 = vmatpush1.bf16.msra.mxu0 0
    %6766 = vmatprep.subr.bf16.mxu0 0
    %6767 = vmatpush1.bf16.msra.mxu0 0
    %6768 = vmatprep.subr.bf16.mxu0 0
    %6769 = vmatpush1.bf16.msra.mxu0 0
    %6770 = vmatprep.subr.bf16.mxu0 0
    %6771 = vmatpush1.bf16.msra.mxu0 0
    %6772 = vmatprep.mubr.bf16.mxu0 0
    %6773 = vmatmul.mubr.bf16.gmra.mrb[0].mxu0 %v6555
    %v6774 = vpop.f32.mrb[0].mxu0
    %v6775 = vadd.f32 %v2869, %v6774
    %v6776 = vpop.f32.mrb[0].mxu0
    %v6777 = vadd.f32 %v2873, %v6776
    %v6778 = vpop.f32.mrb[0].mxu0
    %v6779 = vpop.f32.mrb[0].mxu0
    %6780 = vdwg.mxu0
    %6781 = vmatprep.subr.bf16.mxu0 0
    %6782 = vmatpush1.bf16.msra.mxu0 %v2963
    %6783 = vmatprep.subr.bf16.mxu0 0
    %6784 = vmatpush1.bf16.msra.mxu0 %v2966
    %6785 = vmatprep.subr.bf16.mxu0 0
    %6786 = vmatpush1.bf16.msra.mxu0 %v2969
    %6787 = vmatprep.subr.bf16.mxu0 0
    %6788 = vmatpush1.bf16.msra.mxu0 %v2972
    %6789 = vmatprep.subr.bf16.mxu0 0
    %6790 = vmatpush1.bf16.msra.mxu0 %v2975
    %6791 = vmatprep.subr.bf16.mxu0 0
    %6792 = vmatpush1.bf16.msra.mxu0 %v2978
    %6793 = vmatprep.subr.bf16.mxu0 0
    %6794 = vmatpush1.bf16.msra.mxu0 %v2981
    %6795 = vmatprep.subr.bf16.mxu0 0
    %6796 = vmatpush1.bf16.msra.mxu0 %v2984
    %6797 = vmatprep.subr.bf16.mxu0 0
    %6798 = vmatpush1.bf16.msra.mxu0 0
    %6799 = vmatprep.subr.bf16.mxu0 0
    %6800 = vmatpush1.bf16.msra.mxu0 0
    %6801 = vmatprep.subr.bf16.mxu0 0
    %6802 = vmatpush1.bf16.msra.mxu0 0
    %6803 = vmatprep.subr.bf16.mxu0 0
    %6804 = vmatpush1.bf16.msra.mxu0 0
    %6805 = vmatprep.subr.bf16.mxu0 0
    %6806 = vmatpush1.bf16.msra.mxu0 0
    %6807 = vmatprep.subr.bf16.mxu0 0
    %6808 = vmatpush1.bf16.msra.mxu0 0
    %6809 = vmatprep.subr.bf16.mxu0 0
    %6810 = vmatpush1.bf16.msra.mxu0 0
    %6811 = vmatprep.subr.bf16.mxu0 0
    %6812 = vmatpush1.bf16.msra.mxu0 0
    %6813 = vmatprep.mubr.bf16.mxu0 0
    %6814 = vmatmul.mubr.bf16.gmra.mrb[0].mxu0 %v6555
    %v6815 = vpop.f32.mrb[0].mxu0
    %v6816 = vadd.f32 %v2877, %v6815
    %v6817 = vpop.f32.mrb[0].mxu0
    %v6818 = vpop.f32.mrb[0].mxu0
    %v6819 = vpop.f32.mrb[0].mxu0
    %6820 = vdwg.mxu0
    %v6821 = vadd.f32 %v2651, %v6775
    %v6822 = vxor.u32 %v6821, 2147483648
    %v6823 = vmul.f32 %v6822, 1.442695
    %v6824 = vpow.pop %v6823
    %v6825 = vadd.f32 %v6824, 1.0
    %v6826 = vrcp.pop %v6825
    %v6827 = vmul.f32 1.0, %v6826
    %v6828 = vadd.f32 %v2653, %v6777
    %v6829 = vxor.u32 %v6828, 2147483648
    %v6830 = vmul.f32 %v6829, 1.442695
    %v6831 = vpow.pop %v6830
    %v6832 = vadd.f32 %v6831, 1.0
    %v6833 = vrcp.pop %v6832
    %v6834 = vmul.f32 1.0, %v6833
    %v6835 = vmul.f32 %v6827, %v6816
    %v6836 = vadd.f32 %v2752, %v6835
    %v6837 = vtanh.pop %v6836
    %v6838 = vsub.f32 1.0, %v6834
    %v6839 = vmul.f32 %v6838, %v6837
    %v6840 = vmul.f32 %v6834, %v6554
    %v6841 = vadd.f32 %v6839, %v6840
    %v6842 = vpack.c.bf16 %v6841, %v6841
    %6843 = vmatprep.subr.bf16.mxu0 %v3209
    %6844 = vmatpush1.bf16.msra.mxu0 %v3208
    %6845 = vmatprep.subr.bf16.mxu0 %v3212
    %6846 = vmatpush1.bf16.msra.mxu0 %v3211
    %6847 = vmatprep.subr.bf16.mxu0 %v3215
    %6848 = vmatpush1.bf16.msra.mxu0 %v3214
    %6849 = vmatprep.subr.bf16.mxu0 %v3218
    %6850 = vmatpush1.bf16.msra.mxu0 %v3217
    %6851 = vmatprep.subr.bf16.mxu0 %v3221
    %6852 = vmatpush1.bf16.msra.mxu0 %v3220
    %6853 = vmatprep.subr.bf16.mxu0 %v3224
    %6854 = vmatpush1.bf16.msra.mxu0 %v3223
    %6855 = vmatprep.subr.bf16.mxu0 %v3227
    %6856 = vmatpush1.bf16.msra.mxu0 %v3226
    %6857 = vmatprep.subr.bf16.mxu0 %v3230
    %6858 = vmatpush1.bf16.msra.mxu0 %v3229
    %6859 = vmatprep.subr.bf16.mxu0 0
    %6860 = vmatpush1.bf16.msra.mxu0 0
    %6861 = vmatprep.subr.bf16.mxu0 0
    %6862 = vmatpush1.bf16.msra.mxu0 0
    %6863 = vmatprep.subr.bf16.mxu0 0
    %6864 = vmatpush1.bf16.msra.mxu0 0
    %6865 = vmatprep.subr.bf16.mxu0 0
    %6866 = vmatpush1.bf16.msra.mxu0 0
    %6867 = vmatprep.subr.bf16.mxu0 0
    %6868 = vmatpush1.bf16.msra.mxu0 0
    %6869 = vmatprep.subr.bf16.mxu0 0
    %6870 = vmatpush1.bf16.msra.mxu0 0
    %6871 = vmatprep.subr.bf16.mxu0 0
    %6872 = vmatpush1.bf16.msra.mxu0 0
    %6873 = vmatprep.subr.bf16.mxu0 0
    %6874 = vmatpush1.bf16.msra.mxu0 0
    %6875 = vmatprep.mubr.bf16.mxu0 0
    %6876 = vmatmul.mubr.bf16.gmra.mrb[0].mxu0 %v6842
    %v6877 = vpop.f32.mrb[0].mxu0
    %v6878 = vadd.f32 %v3116, %v6877
    %v6879 = vpop.f32.mrb[0].mxu0
    %v6880 = vadd.f32 %v3120, %v6879
    %v6881 = vpop.f32.mrb[0].mxu0
    %v6882 = vpop.f32.mrb[0].mxu0
    %6883 = vdwg.mxu0
    %6884 = vmatprep.subr.bf16.mxu0 0
    %6885 = vmatpush1.bf16.msra.mxu0 %v3210
    %6886 = vmatprep.subr.bf16.mxu0 0
    %6887 = vmatpush1.bf16.msra.mxu0 %v3213
    %6888 = vmatprep.subr.bf16.mxu0 0
    %6889 = vmatpush1.bf16.msra.mxu0 %v3216
    %6890 = vmatprep.subr.bf16.mxu0 0
    %6891 = vmatpush1.bf16.msra.mxu0 %v3219
    %6892 = vmatprep.subr.bf16.mxu0 0
    %6893 = vmatpush1.bf16.msra.mxu0 %v3222
    %6894 = vmatprep.subr.bf16.mxu0 0
    %6895 = vmatpush1.bf16.msra.mxu0 %v3225
    %6896 = vmatprep.subr.bf16.mxu0 0
    %6897 = vmatpush1.bf16.msra.mxu0 %v3228
    %6898 = vmatprep.subr.bf16.mxu0 0
    %6899 = vmatpush1.bf16.msra.mxu0 %v3231
    %6900 = vmatprep.subr.bf16.mxu0 0
    %6901 = vmatpush1.bf16.msra.mxu0 0
    %6902 = vmatprep.subr.bf16.mxu0 0
    %6903 = vmatpush1.bf16.msra.mxu0 0
    %6904 = vmatprep.subr.bf16.mxu0 0
    %6905 = vmatpush1.bf16.msra.mxu0 0
    %6906 = vmatprep.subr.bf16.mxu0 0
    %6907 = vmatpush1.bf16.msra.mxu0 0
    %6908 = vmatprep.subr.bf16.mxu0 0
    %6909 = vmatpush1.bf16.msra.mxu0 0
    %6910 = vmatprep.subr.bf16.mxu0 0
    %6911 = vmatpush1.bf16.msra.mxu0 0
    %6912 = vmatprep.subr.bf16.mxu0 0
    %6913 = vmatpush1.bf16.msra.mxu0 0
    %6914 = vmatprep.subr.bf16.mxu0 0
    %6915 = vmatpush1.bf16.msra.mxu0 0
    %6916 = vmatprep.mubr.bf16.mxu0 0
    %6917 = vmatmul.mubr.bf16.gmra.mrb[0].mxu0 %v6842
    %v6918 = vpop.f32.mrb[0].mxu0
    %v6919 = vadd.f32 %v3124, %v6918
    %v6920 = vpop.f32.mrb[0].mxu0
    %v6921 = vpop.f32.mrb[0].mxu0
    %v6922 = vpop.f32.mrb[0].mxu0
    %6923 = vdwg.mxu0
    %v6924 = vpack.c.bf16 %v6739, %v6739
    %6925 = vmatprep.subr.bf16.mxu0 %v3434
    %6926 = vmatpush1.bf16.msra.mxu0 %v3433
    %6927 = vmatprep.subr.bf16.mxu0 %v3437
    %6928 = vmatpush1.bf16.msra.mxu0 %v3436
    %6929 = vmatprep.subr.bf16.mxu0 %v3440
    %6930 = vmatpush1.bf16.msra.mxu0 %v3439
    %6931 = vmatprep.subr.bf16.mxu0 %v3443
    %6932 = vmatpush1.bf16.msra.mxu0 %v3442
    %6933 = vmatprep.subr.bf16.mxu0 %v3446
    %6934 = vmatpush1.bf16.msra.mxu0 %v3445
    %6935 = vmatprep.subr.bf16.mxu0 %v3449
    %6936 = vmatpush1.bf16.msra.mxu0 %v3448
    %6937 = vmatprep.subr.bf16.mxu0 %v3452
    %6938 = vmatpush1.bf16.msra.mxu0 %v3451
    %6939 = vmatprep.subr.bf16.mxu0 %v3455
    %6940 = vmatpush1.bf16.msra.mxu0 %v3454
    %6941 = vmatprep.subr.bf16.mxu0 0
    %6942 = vmatpush1.bf16.msra.mxu0 0
    %6943 = vmatprep.subr.bf16.mxu0 0
    %6944 = vmatpush1.bf16.msra.mxu0 0
    %6945 = vmatprep.subr.bf16.mxu0 0
    %6946 = vmatpush1.bf16.msra.mxu0 0
    %6947 = vmatprep.subr.bf16.mxu0 0
    %6948 = vmatpush1.bf16.msra.mxu0 0
    %6949 = vmatprep.subr.bf16.mxu0 0
    %6950 = vmatpush1.bf16.msra.mxu0 0
    %6951 = vmatprep.subr.bf16.mxu0 0
    %6952 = vmatpush1.bf16.msra.mxu0 0
    %6953 = vmatprep.subr.bf16.mxu0 0
    %6954 = vmatpush1.bf16.msra.mxu0 0
    %6955 = vmatprep.subr.bf16.mxu0 0
    %6956 = vmatpush1.bf16.msra.mxu0 0
    %6957 = vmatprep.mubr.bf16.mxu0 0
    %6958 = vmatmul.mubr.bf16.gmra.mrb[0].mxu0 %v6924
    %v6959 = vpop.f32.mrb[0].mxu0
    %v6960 = vadd.f32 %v3341, %v6959
    %v6961 = vpop.f32.mrb[0].mxu0
    %v6962 = vadd.f32 %v3345, %v6961
    %v6963 = vpop.f32.mrb[0].mxu0
    %v6964 = vpop.f32.mrb[0].mxu0
    %6965 = vdwg.mxu0
    %6966 = vmatprep.subr.bf16.mxu0 0
    %6967 = vmatpush1.bf16.msra.mxu0 %v3435
    %6968 = vmatprep.subr.bf16.mxu0 0
    %6969 = vmatpush1.bf16.msra.mxu0 %v3438
    %6970 = vmatprep.subr.bf16.mxu0 0
    %6971 = vmatpush1.bf16.msra.mxu0 %v3441
    %6972 = vmatprep.subr.bf16.mxu0 0
    %6973 = vmatpush1.bf16.msra.mxu0 %v3444
    %6974 = vmatprep.subr.bf16.mxu0 0
    %6975 = vmatpush1.bf16.msra.mxu0 %v3447
    %6976 = vmatprep.subr.bf16.mxu0 0
    %6977 = vmatpush1.bf16.msra.mxu0 %v3450
    %6978 = vmatprep.subr.bf16.mxu0 0
    %6979 = vmatpush1.bf16.msra.mxu0 %v3453
    %6980 = vmatprep.subr.bf16.mxu0 0
    %6981 = vmatpush1.bf16.msra.mxu0 %v3456
    %6982 = vmatprep.subr.bf16.mxu0 0
    %6983 = vmatpush1.bf16.msra.mxu0 0
    %6984 = vmatprep.subr.bf16.mxu0 0
    %6985 = vmatpush1.bf16.msra.mxu0 0
    %6986 = vmatprep.subr.bf16.mxu0 0
    %6987 = vmatpush1.bf16.msra.mxu0 0
    %6988 = vmatprep.subr.bf16.mxu0 0
    %6989 = vmatpush1.bf16.msra.mxu0 0
    %6990 = vmatprep.subr.bf16.mxu0 0
    %6991 = vmatpush1.bf16.msra.mxu0 0
    %6992 = vmatprep.subr.bf16.mxu0 0
    %6993 = vmatpush1.bf16.msra.mxu0 0
    %6994 = vmatprep.subr.bf16.mxu0 0
    %6995 = vmatpush1.bf16.msra.mxu0 0
    %6996 = vmatprep.subr.bf16.mxu0 0
    %6997 = vmatpush1.bf16.msra.mxu0 0
    %6998 = vmatprep.mubr.bf16.mxu0 0
    %6999 = vmatmul.mubr.bf16.gmra.mrb[0].mxu0 %v6924
    %v7000 = vpop.f32.mrb[0].mxu0
    %v7001 = vadd.f32 %v3349, %v7000
    %v7002 = vpop.f32.mrb[0].mxu0
    %v7003 = vpop.f32.mrb[0].mxu0
    %v7004 = vpop.f32.mrb[0].mxu0
    %7005 = vdwg.mxu0
    %v7006 = vadd.f32 %v6878, %v6960
    %v7007 = vxor.u32 %v7006, 2147483648
    %v7008 = vmul.f32 %v7007, 1.442695
    %v7009 = vpow.pop %v7008
    %v7010 = vadd.f32 %v7009, 1.0
    %v7011 = vrcp.pop %v7010
    %v7012 = vmul.f32 1.0, %v7011
    %v7013 = vadd.f32 %v6880, %v6962
    %v7014 = vxor.u32 %v7013, 2147483648
    %v7015 = vmul.f32 %v7014, 1.442695
    %v7016 = vpow.pop %v7015
    %v7017 = vadd.f32 %v7016, 1.0
    %v7018 = vrcp.pop %v7017
    %v7019 = vmul.f32 1.0, %v7018
    %v7020 = vmul.f32 %v7012, %v7001
    %v7021 = vadd.f32 %v6919, %v7020
    %v7022 = vtanh.pop %v7021
    %v7023 = vsub.f32 1.0, %v7019
    %v7024 = vmul.f32 %v7023, %v7022
    %v7025 = vmul.f32 %v7019, %v6739
    %v7026 = vadd.f32 %v7024, %v7025
    %7027 = vmatprep.subr.bf16.mxu0 %v2962
    %7028 = vmatpush1.bf16.msra.mxu0 %v2961
    %7029 = vmatprep.subr.bf16.mxu0 %v2965
    %7030 = vmatpush1.bf16.msra.mxu0 %v2964
    %7031 = vmatprep.subr.bf16.mxu0 %v2968
    %7032 = vmatpush1.bf16.msra.mxu0 %v2967
    %7033 = vmatprep.subr.bf16.mxu0 %v2971
    %7034 = vmatpush1.bf16.msra.mxu0 %v2970
    %7035 = vmatprep.subr.bf16.mxu0 %v2974
    %7036 = vmatpush1.bf16.msra.mxu0 %v2973
    %7037 = vmatprep.subr.bf16.mxu0 %v2977
    %7038 = vmatpush1.bf16.msra.mxu0 %v2976
    %7039 = vmatprep.subr.bf16.mxu0 %v2980
    %7040 = vmatpush1.bf16.msra.mxu0 %v2979
    %7041 = vmatprep.subr.bf16.mxu0 %v2983
    %7042 = vmatpush1.bf16.msra.mxu0 %v2982
    %7043 = vmatprep.subr.bf16.mxu0 0
    %7044 = vmatpush1.bf16.msra.mxu0 0
    %7045 = vmatprep.subr.bf16.mxu0 0
    %7046 = vmatpush1.bf16.msra.mxu0 0
    %7047 = vmatprep.subr.bf16.mxu0 0
    %7048 = vmatpush1.bf16.msra.mxu0 0
    %7049 = vmatprep.subr.bf16.mxu0 0
    %7050 = vmatpush1.bf16.msra.mxu0 0
    %7051 = vmatprep.subr.bf16.mxu0 0
    %7052 = vmatpush1.bf16.msra.mxu0 0
    %7053 = vmatprep.subr.bf16.mxu0 0
    %7054 = vmatpush1.bf16.msra.mxu0 0
    %7055 = vmatprep.subr.bf16.mxu0 0
    %7056 = vmatpush1.bf16.msra.mxu0 0
    %7057 = vmatprep.subr.bf16.mxu0 0
    %7058 = vmatpush1.bf16.msra.mxu0 0
    %7059 = vmatprep.mubr.bf16.mxu0 0
    %7060 = vmatmul.mubr.bf16.gmra.mrb[0].mxu0 %v6842
    %v7061 = vpop.f32.mrb[0].mxu0
    %v7062 = vadd.f32 %v2869, %v7061
    %v7063 = vpop.f32.mrb[0].mxu0
    %v7064 = vadd.f32 %v2873, %v7063
    %v7065 = vpop.f32.mrb[0].mxu0
    %v7066 = vpop.f32.mrb[0].mxu0
    %7067 = vdwg.mxu0
    %7068 = vmatprep.subr.bf16.mxu0 0
    %7069 = vmatpush1.bf16.msra.mxu0 %v2963
    %7070 = vmatprep.subr.bf16.mxu0 0
    %7071 = vmatpush1.bf16.msra.mxu0 %v2966
    %7072 = vmatprep.subr.bf16.mxu0 0
    %7073 = vmatpush1.bf16.msra.mxu0 %v2969
    %7074 = vmatprep.subr.bf16.mxu0 0
    %7075 = vmatpush1.bf16.msra.mxu0 %v2972
    %7076 = vmatprep.subr.bf16.mxu0 0
    %7077 = vmatpush1.bf16.msra.mxu0 %v2975
    %7078 = vmatprep.subr.bf16.mxu0 0
    %7079 = vmatpush1.bf16.msra.mxu0 %v2978
    %7080 = vmatprep.subr.bf16.mxu0 0
    %7081 = vmatpush1.bf16.msra.mxu0 %v2981
    %7082 = vmatprep.subr.bf16.mxu0 0
    %7083 = vmatpush1.bf16.msra.mxu0 %v2984
    %7084 = vmatprep.subr.bf16.mxu0 0
    %7085 = vmatpush1.bf16.msra.mxu0 0
    %7086 = vmatprep.subr.bf16.mxu0 0
    %7087 = vmatpush1.bf16.msra.mxu0 0
    %7088 = vmatprep.subr.bf16.mxu0 0
    %7089 = vmatpush1.bf16.msra.mxu0 0
    %7090 = vmatprep.subr.bf16.mxu0 0
    %7091 = vmatpush1.bf16.msra.mxu0 0
    %7092 = vmatprep.subr.bf16.mxu0 0
    %7093 = vmatpush1.bf16.msra.mxu0 0
    %7094 = vmatprep.subr.bf16.mxu0 0
    %7095 = vmatpush1.bf16.msra.mxu0 0
    %7096 = vmatprep.subr.bf16.mxu0 0
    %7097 = vmatpush1.bf16.msra.mxu0 0
    %7098 = vmatprep.subr.bf16.mxu0 0
    %7099 = vmatpush1.bf16.msra.mxu0 0
    %7100 = vmatprep.mubr.bf16.mxu0 0
    %7101 = vmatmul.mubr.bf16.gmra.mrb[0].mxu0 %v6842
    %v7102 = vpop.f32.mrb[0].mxu0
    %v7103 = vadd.f32 %v2877, %v7102
    %v7104 = vpop.f32.mrb[0].mxu0
    %v7105 = vpop.f32.mrb[0].mxu0
    %v7106 = vpop.f32.mrb[0].mxu0
    %7107 = vdwg.mxu0
    %v7108 = vadd.f32 %v2655, %v7062
    %v7109 = vxor.u32 %v7108, 2147483648
    %v7110 = vmul.f32 %v7109, 1.442695
    %v7111 = vpow.pop %v7110
    %v7112 = vadd.f32 %v7111, 1.0
    %v7113 = vrcp.pop %v7112
    %v7114 = vmul.f32 1.0, %v7113
    %v7115 = vadd.f32 %v2657, %v7064
    %v7116 = vxor.u32 %v7115, 2147483648
    %v7117 = vmul.f32 %v7116, 1.442695
    %v7118 = vpow.pop %v7117
    %v7119 = vadd.f32 %v7118, 1.0
    %v7120 = vrcp.pop %v7119
    %v7121 = vmul.f32 1.0, %v7120
    %v7122 = vmul.f32 %v7114, %v7103
    %v7123 = vadd.f32 %v2755, %v7122
    %v7124 = vtanh.pop %v7123
    %v7125 = vsub.f32 1.0, %v7121
    %v7126 = vmul.f32 %v7125, %v7124
    %v7127 = vmul.f32 %v7121, %v6841
    %v7128 = vadd.f32 %v7126, %v7127
    %v7129 = vpack.c.bf16 %v7128, %v7128
    %7130 = vmatprep.subr.bf16.mxu0 %v3209
    %7131 = vmatpush1.bf16.msra.mxu0 %v3208
    %7132 = vmatprep.subr.bf16.mxu0 %v3212
    %7133 = vmatpush1.bf16.msra.mxu0 %v3211
    %7134 = vmatprep.subr.bf16.mxu0 %v3215
    %7135 = vmatpush1.bf16.msra.mxu0 %v3214
    %7136 = vmatprep.subr.bf16.mxu0 %v3218
    %7137 = vmatpush1.bf16.msra.mxu0 %v3217
    %7138 = vmatprep.subr.bf16.mxu0 %v3221
    %7139 = vmatpush1.bf16.msra.mxu0 %v3220
    %7140 = vmatprep.subr.bf16.mxu0 %v3224
    %7141 = vmatpush1.bf16.msra.mxu0 %v3223
    %7142 = vmatprep.subr.bf16.mxu0 %v3227
    %7143 = vmatpush1.bf16.msra.mxu0 %v3226
    %7144 = vmatprep.subr.bf16.mxu0 %v3230
    %7145 = vmatpush1.bf16.msra.mxu0 %v3229
    %7146 = vmatprep.subr.bf16.mxu0 0
    %7147 = vmatpush1.bf16.msra.mxu0 0
    %7148 = vmatprep.subr.bf16.mxu0 0
    %7149 = vmatpush1.bf16.msra.mxu0 0
    %7150 = vmatprep.subr.bf16.mxu0 0
    %7151 = vmatpush1.bf16.msra.mxu0 0
    %7152 = vmatprep.subr.bf16.mxu0 0
    %7153 = vmatpush1.bf16.msra.mxu0 0
    %7154 = vmatprep.subr.bf16.mxu0 0
    %7155 = vmatpush1.bf16.msra.mxu0 0
    %7156 = vmatprep.subr.bf16.mxu0 0
    %7157 = vmatpush1.bf16.msra.mxu0 0
    %7158 = vmatprep.subr.bf16.mxu0 0
    %7159 = vmatpush1.bf16.msra.mxu0 0
    %7160 = vmatprep.subr.bf16.mxu0 0
    %7161 = vmatpush1.bf16.msra.mxu0 0
    %7162 = vmatprep.mubr.bf16.mxu0 0
    %7163 = vmatmul.mubr.bf16.gmra.mrb[0].mxu0 %v7129
    %v7164 = vpop.f32.mrb[0].mxu0
    %v7165 = vadd.f32 %v3116, %v7164
    %v7166 = vpop.f32.mrb[0].mxu0
    %v7167 = vadd.f32 %v3120, %v7166
    %v7168 = vpop.f32.mrb[0].mxu0
    %v7169 = vpop.f32.mrb[0].mxu0
    %7170 = vdwg.mxu0
    %7171 = vmatprep.subr.bf16.mxu0 0
    %7172 = vmatpush1.bf16.msra.mxu0 %v3210
    %7173 = vmatprep.subr.bf16.mxu0 0
    %7174 = vmatpush1.bf16.msra.mxu0 %v3213
    %7175 = vmatprep.subr.bf16.mxu0 0
    %7176 = vmatpush1.bf16.msra.mxu0 %v3216
    %7177 = vmatprep.subr.bf16.mxu0 0
    %7178 = vmatpush1.bf16.msra.mxu0 %v3219
    %7179 = vmatprep.subr.bf16.mxu0 0
    %7180 = vmatpush1.bf16.msra.mxu0 %v3222
    %7181 = vmatprep.subr.bf16.mxu0 0
    %7182 = vmatpush1.bf16.msra.mxu0 %v3225
    %7183 = vmatprep.subr.bf16.mxu0 0
    %7184 = vmatpush1.bf16.msra.mxu0 %v3228
    %7185 = vmatprep.subr.bf16.mxu0 0
    %7186 = vmatpush1.bf16.msra.mxu0 %v3231
    %7187 = vmatprep.subr.bf16.mxu0 0
    %7188 = vmatpush1.bf16.msra.mxu0 0
    %7189 = vmatprep.subr.bf16.mxu0 0
    %7190 = vmatpush1.bf16.msra.mxu0 0
    %7191 = vmatprep.subr.bf16.mxu0 0
    %7192 = vmatpush1.bf16.msra.mxu0 0
    %7193 = vmatprep.subr.bf16.mxu0 0
    %7194 = vmatpush1.bf16.msra.mxu0 0
    %7195 = vmatprep.subr.bf16.mxu0 0
    %7196 = vmatpush1.bf16.msra.mxu0 0
    %7197 = vmatprep.subr.bf16.mxu0 0
    %7198 = vmatpush1.bf16.msra.mxu0 0
    %7199 = vmatprep.subr.bf16.mxu0 0
    %7200 = vmatpush1.bf16.msra.mxu0 0
    %7201 = vmatprep.subr.bf16.mxu0 0
    %7202 = vmatpush1.bf16.msra.mxu0 0
    %7203 = vmatprep.mubr.bf16.mxu0 0
    %7204 = vmatmul.mubr.bf16.gmra.mrb[0].mxu0 %v7129
    %v7205 = vpop.f32.mrb[0].mxu0
    %v7206 = vadd.f32 %v3124, %v7205
    %v7207 = vpop.f32.mrb[0].mxu0
    %v7208 = vpop.f32.mrb[0].mxu0
    %v7209 = vpop.f32.mrb[0].mxu0
    %7210 = vdwg.mxu0
    %v7211 = vpack.c.bf16 %v7026, %v7026
    %7212 = vmatprep.subr.bf16.mxu0 %v3434
    %7213 = vmatpush1.bf16.msra.mxu0 %v3433
    %7214 = vmatprep.subr.bf16.mxu0 %v3437
    %7215 = vmatpush1.bf16.msra.mxu0 %v3436
    %7216 = vmatprep.subr.bf16.mxu0 %v3440
    %7217 = vmatpush1.bf16.msra.mxu0 %v3439
    %7218 = vmatprep.subr.bf16.mxu0 %v3443
    %7219 = vmatpush1.bf16.msra.mxu0 %v3442
    %7220 = vmatprep.subr.bf16.mxu0 %v3446
    %7221 = vmatpush1.bf16.msra.mxu0 %v3445
    %7222 = vmatprep.subr.bf16.mxu0 %v3449
    %7223 = vmatpush1.bf16.msra.mxu0 %v3448
    %7224 = vmatprep.subr.bf16.mxu0 %v3452
    %7225 = vmatpush1.bf16.msra.mxu0 %v3451
    %7226 = vmatprep.subr.bf16.mxu0 %v3455
    %7227 = vmatpush1.bf16.msra.mxu0 %v3454
    %7228 = vmatprep.subr.bf16.mxu0 0
    %7229 = vmatpush1.bf16.msra.mxu0 0
    %7230 = vmatprep.subr.bf16.mxu0 0
    %7231 = vmatpush1.bf16.msra.mxu0 0
    %7232 = vmatprep.subr.bf16.mxu0 0
    %7233 = vmatpush1.bf16.msra.mxu0 0
    %7234 = vmatprep.subr.bf16.mxu0 0
    %7235 = vmatpush1.bf16.msra.mxu0 0
    %7236 = vmatprep.subr.bf16.mxu0 0
    %7237 = vmatpush1.bf16.msra.mxu0 0
    %7238 = vmatprep.subr.bf16.mxu0 0
    %7239 = vmatpush1.bf16.msra.mxu0 0
    %7240 = vmatprep.subr.bf16.mxu0 0
    %7241 = vmatpush1.bf16.msra.mxu0 0
    %7242 = vmatprep.subr.bf16.mxu0 0
    %7243 = vmatpush1.bf16.msra.mxu0 0
    %7244 = vmatprep.mubr.bf16.mxu0 0
    %7245 = vmatmul.mubr.bf16.gmra.mrb[0].mxu0 %v7211
    %v7246 = vpop.f32.mrb[0].mxu0
    %v7247 = vadd.f32 %v3341, %v7246
    %v7248 = vpop.f32.mrb[0].mxu0
    %v7249 = vadd.f32 %v3345, %v7248
    %v7250 = vpop.f32.mrb[0].mxu0
    %v7251 = vpop.f32.mrb[0].mxu0
    %7252 = vdwg.mxu0
    %7253 = vmatprep.subr.bf16.mxu0 0
    %7254 = vmatpush1.bf16.msra.mxu0 %v3435
    %7255 = vmatprep.subr.bf16.mxu0 0
    %7256 = vmatpush1.bf16.msra.mxu0 %v3438
    %7257 = vmatprep.subr.bf16.mxu0 0
    %7258 = vmatpush1.bf16.msra.mxu0 %v3441
    %7259 = vmatprep.subr.bf16.mxu0 0
    %7260 = vmatpush1.bf16.msra.mxu0 %v3444
    %7261 = vmatprep.subr.bf16.mxu0 0
    %7262 = vmatpush1.bf16.msra.mxu0 %v3447
    %7263 = vmatprep.subr.bf16.mxu0 0
    %7264 = vmatpush1.bf16.msra.mxu0 %v3450
    %7265 = vmatprep.subr.bf16.mxu0 0
    %7266 = vmatpush1.bf16.msra.mxu0 %v3453
    %7267 = vmatprep.subr.bf16.mxu0 0
    %7268 = vmatpush1.bf16.msra.mxu0 %v3456
    %7269 = vmatprep.subr.bf16.mxu0 0
    %7270 = vmatpush1.bf16.msra.mxu0 0
    %7271 = vmatprep.subr.bf16.mxu0 0
    %7272 = vmatpush1.bf16.msra.mxu0 0
    %7273 = vmatprep.subr.bf16.mxu0 0
    %7274 = vmatpush1.bf16.msra.mxu0 0
    %7275 = vmatprep.subr.bf16.mxu0 0
    %7276 = vmatpush1.bf16.msra.mxu0 0
    %7277 = vmatprep.subr.bf16.mxu0 0
    %7278 = vmatpush1.bf16.msra.mxu0 0
    %7279 = vmatprep.subr.bf16.mxu0 0
    %7280 = vmatpush1.bf16.msra.mxu0 0
    %7281 = vmatprep.subr.bf16.mxu0 0
    %7282 = vmatpush1.bf16.msra.mxu0 0
    %7283 = vmatprep.subr.bf16.mxu0 0
    %7284 = vmatpush1.bf16.msra.mxu0 0
    %7285 = vmatprep.mubr.bf16.mxu0 0
    %7286 = vmatmul.mubr.bf16.gmra.mrb[0].mxu0 %v7211
    %v7287 = vpop.f32.mrb[0].mxu0
    %v7288 = vadd.f32 %v3349, %v7287
    %v7289 = vpop.f32.mrb[0].mxu0
    %v7290 = vpop.f32.mrb[0].mxu0
    %v7291 = vpop.f32.mrb[0].mxu0
    %7292 = vdwg.mxu0
    %v7293 = vadd.f32 %v7165, %v7247
    %v7294 = vxor.u32 %v7293, 2147483648
    %v7295 = vmul.f32 %v7294, 1.442695
    %v7296 = vpow.pop %v7295
    %v7297 = vadd.f32 %v7296, 1.0
    %v7298 = vrcp.pop %v7297
    %v7299 = vmul.f32 1.0, %v7298
    %v7300 = vadd.f32 %v7167, %v7249
    %v7301 = vxor.u32 %v7300, 2147483648
    %v7302 = vmul.f32 %v7301, 1.442695
    %v7303 = vpow.pop %v7302
    %v7304 = vadd.f32 %v7303, 1.0
    %v7305 = vrcp.pop %v7304
    %v7306 = vmul.f32 1.0, %v7305
    %v7307 = vmul.f32 %v7299, %v7288
    %v7308 = vadd.f32 %v7206, %v7307
    %v7309 = vtanh.pop %v7308
    %v7310 = vsub.f32 1.0, %v7306
    %v7311 = vmul.f32 %v7310, %v7309
    %v7312 = vmul.f32 %v7306, %v7026
    %v7313 = vadd.f32 %v7311, %v7312
    %7314 = vmatprep.subr.bf16.mxu0 %v2962
    %7315 = vmatpush1.bf16.msra.mxu0 %v2961
    %7316 = vmatprep.subr.bf16.mxu0 %v2965
    %7317 = vmatpush1.bf16.msra.mxu0 %v2964
    %7318 = vmatprep.subr.bf16.mxu0 %v2968
    %7319 = vmatpush1.bf16.msra.mxu0 %v2967
    %7320 = vmatprep.subr.bf16.mxu0 %v2971
    %7321 = vmatpush1.bf16.msra.mxu0 %v2970
    %7322 = vmatprep.subr.bf16.mxu0 %v2974
    %7323 = vmatpush1.bf16.msra.mxu0 %v2973
    %7324 = vmatprep.subr.bf16.mxu0 %v2977
    %7325 = vmatpush1.bf16.msra.mxu0 %v2976
    %7326 = vmatprep.subr.bf16.mxu0 %v2980
    %7327 = vmatpush1.bf16.msra.mxu0 %v2979
    %7328 = vmatprep.subr.bf16.mxu0 %v2983
    %7329 = vmatpush1.bf16.msra.mxu0 %v2982
    %7330 = vmatprep.subr.bf16.mxu0 0
    %7331 = vmatpush1.bf16.msra.mxu0 0
    %7332 = vmatprep.subr.bf16.mxu0 0
    %7333 = vmatpush1.bf16.msra.mxu0 0
    %7334 = vmatprep.subr.bf16.mxu0 0
    %7335 = vmatpush1.bf16.msra.mxu0 0
    %7336 = vmatprep.subr.bf16.mxu0 0
    %7337 = vmatpush1.bf16.msra.mxu0 0
    %7338 = vmatprep.subr.bf16.mxu0 0
    %7339 = vmatpush1.bf16.msra.mxu0 0
    %7340 = vmatprep.subr.bf16.mxu0 0
    %7341 = vmatpush1.bf16.msra.mxu0 0
    %7342 = vmatprep.subr.bf16.mxu0 0
    %7343 = vmatpush1.bf16.msra.mxu0 0
    %7344 = vmatprep.subr.bf16.mxu0 0
    %7345 = vmatpush1.bf16.msra.mxu0 0
    %7346 = vmatprep.mubr.bf16.mxu0 0
    %7347 = vmatmul.mubr.bf16.gmra.mrb[0].mxu0 %v7129
    %v7348 = vpop.f32.mrb[0].mxu0
    %v7349 = vadd.f32 %v2869, %v7348
    %v7350 = vpop.f32.mrb[0].mxu0
    %v7351 = vadd.f32 %v2873, %v7350
    %v7352 = vpop.f32.mrb[0].mxu0
    %v7353 = vpop.f32.mrb[0].mxu0
    %7354 = vdwg.mxu0
    %7355 = vmatprep.subr.bf16.mxu0 0
    %7356 = vmatpush1.bf16.msra.mxu0 %v2963
    %7357 = vmatprep.subr.bf16.mxu0 0
    %7358 = vmatpush1.bf16.msra.mxu0 %v2966
    %7359 = vmatprep.subr.bf16.mxu0 0
    %7360 = vmatpush1.bf16.msra.mxu0 %v2969
    %7361 = vmatprep.subr.bf16.mxu0 0
    %7362 = vmatpush1.bf16.msra.mxu0 %v2972
    %7363 = vmatprep.subr.bf16.mxu0 0
    %7364 = vmatpush1.bf16.msra.mxu0 %v2975
    %7365 = vmatprep.subr.bf16.mxu0 0
    %7366 = vmatpush1.bf16.msra.mxu0 %v2978
    %7367 = vmatprep.subr.bf16.mxu0 0
    %7368 = vmatpush1.bf16.msra.mxu0 %v2981
    %7369 = vmatprep.subr.bf16.mxu0 0
    %7370 = vmatpush1.bf16.msra.mxu0 %v2984
    %7371 = vmatprep.subr.bf16.mxu0 0
    %7372 = vmatpush1.bf16.msra.mxu0 0
    %7373 = vmatprep.subr.bf16.mxu0 0
    %7374 = vmatpush1.bf16.msra.mxu0 0
    %7375 = vmatprep.subr.bf16.mxu0 0
    %7376 = vmatpush1.bf16.msra.mxu0 0
    %7377 = vmatprep.subr.bf16.mxu0 0
    %7378 = vmatpush1.bf16.msra.mxu0 0
    %7379 = vmatprep.subr.bf16.mxu0 0
    %7380 = vmatpush1.bf16.msra.mxu0 0
    %7381 = vmatprep.subr.bf16.mxu0 0
    %7382 = vmatpush1.bf16.msra.mxu0 0
    %7383 = vmatprep.subr.bf16.mxu0 0
    %7384 = vmatpush1.bf16.msra.mxu0 0
    %7385 = vmatprep.subr.bf16.mxu0 0
    %7386 = vmatpush1.bf16.msra.mxu0 0
    %7387 = vmatprep.mubr.bf16.mxu0 0
    %7388 = vmatmul.mubr.bf16.gmra.mrb[0].mxu0 %v7129
    %v7389 = vpop.f32.mrb[0].mxu0
    %v7390 = vadd.f32 %v2877, %v7389
    %v7391 = vpop.f32.mrb[0].mxu0
    %v7392 = vpop.f32.mrb[0].mxu0
    %v7393 = vpop.f32.mrb[0].mxu0
    %7394 = vdwg.mxu0
    %v7395 = vadd.f32 %v2661, %v7349
    %v7396 = vxor.u32 %v7395, 2147483648
    %v7397 = vmul.f32 %v7396, 1.442695
    %v7398 = vpow.pop %v7397
    %v7399 = vadd.f32 %v7398, 1.0
    %v7400 = vrcp.pop %v7399
    %v7401 = vmul.f32 1.0, %v7400
    %v7402 = vadd.f32 %v2663, %v7351
    %v7403 = vxor.u32 %v7402, 2147483648
    %v7404 = vmul.f32 %v7403, 1.442695
    %v7405 = vpow.pop %v7404
    %v7406 = vadd.f32 %v7405, 1.0
    %v7407 = vrcp.pop %v7406
    %v7408 = vmul.f32 1.0, %v7407
    %v7409 = vmul.f32 %v7401, %v7390
    %v7410 = vadd.f32 %v2760, %v7409
    %v7411 = vtanh.pop %v7410
    %v7412 = vsub.f32 1.0, %v7408
    %v7413 = vmul.f32 %v7412, %v7411
    %v7414 = vmul.f32 %v7408, %v7128
    %v7415 = vadd.f32 %v7413, %v7414
    %v7416 = vpack.c.bf16 %v7415, %v7415
    %7417 = vmatprep.subr.bf16.mxu0 %v3209
    %7418 = vmatpush1.bf16.msra.mxu0 %v3208
    %7419 = vmatprep.subr.bf16.mxu0 %v3212
    %7420 = vmatpush1.bf16.msra.mxu0 %v3211
    %7421 = vmatprep.subr.bf16.mxu0 %v3215
    %7422 = vmatpush1.bf16.msra.mxu0 %v3214
    %7423 = vmatprep.subr.bf16.mxu0 %v3218
    %7424 = vmatpush1.bf16.msra.mxu0 %v3217
    %7425 = vmatprep.subr.bf16.mxu0 %v3221
    %7426 = vmatpush1.bf16.msra.mxu0 %v3220
    %7427 = vmatprep.subr.bf16.mxu0 %v3224
    %7428 = vmatpush1.bf16.msra.mxu0 %v3223
    %7429 = vmatprep.subr.bf16.mxu0 %v3227
    %7430 = vmatpush1.bf16.msra.mxu0 %v3226
    %7431 = vmatprep.subr.bf16.mxu0 %v3230
    %7432 = vmatpush1.bf16.msra.mxu0 %v3229
    %7433 = vmatprep.subr.bf16.mxu0 0
    %7434 = vmatpush1.bf16.msra.mxu0 0
    %7435 = vmatprep.subr.bf16.mxu0 0
    %7436 = vmatpush1.bf16.msra.mxu0 0
    %7437 = vmatprep.subr.bf16.mxu0 0
    %7438 = vmatpush1.bf16.msra.mxu0 0
    %7439 = vmatprep.subr.bf16.mxu0 0
    %7440 = vmatpush1.bf16.msra.mxu0 0
    %7441 = vmatprep.subr.bf16.mxu0 0
    %7442 = vmatpush1.bf16.msra.mxu0 0
    %7443 = vmatprep.subr.bf16.mxu0 0
    %7444 = vmatpush1.bf16.msra.mxu0 0
    %7445 = vmatprep.subr.bf16.mxu0 0
    %7446 = vmatpush1.bf16.msra.mxu0 0
    %7447 = vmatprep.subr.bf16.mxu0 0
    %7448 = vmatpush1.bf16.msra.mxu0 0
    %7449 = vmatprep.mubr.bf16.mxu0 0
    %7450 = vmatmul.mubr.bf16.gmra.mrb[0].mxu0 %v7416
    %v7451 = vpop.f32.mrb[0].mxu0
    %v7452 = vadd.f32 %v3116, %v7451
    %v7453 = vpop.f32.mrb[0].mxu0
    %v7454 = vadd.f32 %v3120, %v7453
    %v7455 = vpop.f32.mrb[0].mxu0
    %v7456 = vpop.f32.mrb[0].mxu0
    %7457 = vdwg.mxu0
    %7458 = vmatprep.subr.bf16.mxu0 0
    %7459 = vmatpush1.bf16.msra.mxu0 %v3210
    %7460 = vmatprep.subr.bf16.mxu0 0
    %7461 = vmatpush1.bf16.msra.mxu0 %v3213
    %7462 = vmatprep.subr.bf16.mxu0 0
    %7463 = vmatpush1.bf16.msra.mxu0 %v3216
    %7464 = vmatprep.subr.bf16.mxu0 0
    %7465 = vmatpush1.bf16.msra.mxu0 %v3219
    %7466 = vmatprep.subr.bf16.mxu0 0
    %7467 = vmatpush1.bf16.msra.mxu0 %v3222
    %7468 = vmatprep.subr.bf16.mxu0 0
    %7469 = vmatpush1.bf16.msra.mxu0 %v3225
    %7470 = vmatprep.subr.bf16.mxu0 0
    %7471 = vmatpush1.bf16.msra.mxu0 %v3228
    %7472 = vmatprep.subr.bf16.mxu0 0
    %7473 = vmatpush1.bf16.msra.mxu0 %v3231
    %7474 = vmatprep.subr.bf16.mxu0 0
    %7475 = vmatpush1.bf16.msra.mxu0 0
    %7476 = vmatprep.subr.bf16.mxu0 0
    %7477 = vmatpush1.bf16.msra.mxu0 0
    %7478 = vmatprep.subr.bf16.mxu0 0
    %7479 = vmatpush1.bf16.msra.mxu0 0
    %7480 = vmatprep.subr.bf16.mxu0 0
    %7481 = vmatpush1.bf16.msra.mxu0 0
    %7482 = vmatprep.subr.bf16.mxu0 0
    %7483 = vmatpush1.bf16.msra.mxu0 0
    %7484 = vmatprep.subr.bf16.mxu0 0
    %7485 = vmatpush1.bf16.msra.mxu0 0
    %7486 = vmatprep.subr.bf16.mxu0 0
    %7487 = vmatpush1.bf16.msra.mxu0 0
    %7488 = vmatprep.subr.bf16.mxu0 0
    %7489 = vmatpush1.bf16.msra.mxu0 0
    %7490 = vmatprep.mubr.bf16.mxu0 0
    %7491 = vmatmul.mubr.bf16.gmra.mrb[0].mxu0 %v7416
    %v7492 = vpop.f32.mrb[0].mxu0
    %v7493 = vadd.f32 %v3124, %v7492
    %v7494 = vpop.f32.mrb[0].mxu0
    %v7495 = vpop.f32.mrb[0].mxu0
    %v7496 = vpop.f32.mrb[0].mxu0
    %7497 = vdwg.mxu0
    %v7498 = vpack.c.bf16 %v7313, %v7313
    %7499 = vmatprep.subr.bf16.mxu0 %v3434
    %7500 = vmatpush1.bf16.msra.mxu0 %v3433
    %7501 = vmatprep.subr.bf16.mxu0 %v3437
    %7502 = vmatpush1.bf16.msra.mxu0 %v3436
    %7503 = vmatprep.subr.bf16.mxu0 %v3440
    %7504 = vmatpush1.bf16.msra.mxu0 %v3439
    %7505 = vmatprep.subr.bf16.mxu0 %v3443
    %7506 = vmatpush1.bf16.msra.mxu0 %v3442
    %7507 = vmatprep.subr.bf16.mxu0 %v3446
    %7508 = vmatpush1.bf16.msra.mxu0 %v3445
    %7509 = vmatprep.subr.bf16.mxu0 %v3449
    %7510 = vmatpush1.bf16.msra.mxu0 %v3448
    %7511 = vmatprep.subr.bf16.mxu0 %v3452
    %7512 = vmatpush1.bf16.msra.mxu0 %v3451
    %7513 = vmatprep.subr.bf16.mxu0 %v3455
    %7514 = vmatpush1.bf16.msra.mxu0 %v3454
    %7515 = vmatprep.subr.bf16.mxu0 0
    %7516 = vmatpush1.bf16.msra.mxu0 0
    %7517 = vmatprep.subr.bf16.mxu0 0
    %7518 = vmatpush1.bf16.msra.mxu0 0
    %7519 = vmatprep.subr.bf16.mxu0 0
    %7520 = vmatpush1.bf16.msra.mxu0 0
    %7521 = vmatprep.subr.bf16.mxu0 0
    %7522 = vmatpush1.bf16.msra.mxu0 0
    %7523 = vmatprep.subr.bf16.mxu0 0
    %7524 = vmatpush1.bf16.msra.mxu0 0
    %7525 = vmatprep.subr.bf16.mxu0 0
    %7526 = vmatpush1.bf16.msra.mxu0 0
    %7527 = vmatprep.subr.bf16.mxu0 0
    %7528 = vmatpush1.bf16.msra.mxu0 0
    %7529 = vmatprep.subr.bf16.mxu0 0
    %7530 = vmatpush1.bf16.msra.mxu0 0
    %7531 = vmatprep.mubr.bf16.mxu0 0
    %7532 = vmatmul.mubr.bf16.gmra.mrb[0].mxu0 %v7498
    %v7533 = vpop.f32.mrb[0].mxu0
    %v7534 = vadd.f32 %v3341, %v7533
    %v7535 = vpop.f32.mrb[0].mxu0
    %v7536 = vadd.f32 %v3345, %v7535
    %v7537 = vpop.f32.mrb[0].mxu0
    %v7538 = vpop.f32.mrb[0].mxu0
    %7539 = vdwg.mxu0
    %7540 = vmatprep.subr.bf16.mxu0 0
    %7541 = vmatpush1.bf16.msra.mxu0 %v3435
    %7542 = vmatprep.subr.bf16.mxu0 0
    %7543 = vmatpush1.bf16.msra.mxu0 %v3438
    %7544 = vmatprep.subr.bf16.mxu0 0
    %7545 = vmatpush1.bf16.msra.mxu0 %v3441
    %7546 = vmatprep.subr.bf16.mxu0 0
    %7547 = vmatpush1.bf16.msra.mxu0 %v3444
    %7548 = vmatprep.subr.bf16.mxu0 0
    %7549 = vmatpush1.bf16.msra.mxu0 %v3447
    %7550 = vmatprep.subr.bf16.mxu0 0
    %7551 = vmatpush1.bf16.msra.mxu0 %v3450
    %7552 = vmatprep.subr.bf16.mxu0 0
    %7553 = vmatpush1.bf16.msra.mxu0 %v3453
    %7554 = vmatprep.subr.bf16.mxu0 0
    %7555 = vmatpush1.bf16.msra.mxu0 %v3456
    %7556 = vmatprep.subr.bf16.mxu0 0
    %7557 = vmatpush1.bf16.msra.mxu0 0
    %7558 = vmatprep.subr.bf16.mxu0 0
    %7559 = vmatpush1.bf16.msra.mxu0 0
    %7560 = vmatprep.subr.bf16.mxu0 0
    %7561 = vmatpush1.bf16.msra.mxu0 0
    %7562 = vmatprep.subr.bf16.mxu0 0
    %7563 = vmatpush1.bf16.msra.mxu0 0
    %7564 = vmatprep.subr.bf16.mxu0 0
    %7565 = vmatpush1.bf16.msra.mxu0 0
    %7566 = vmatprep.subr.bf16.mxu0 0
    %7567 = vmatpush1.bf16.msra.mxu0 0
    %7568 = vmatprep.subr.bf16.mxu0 0
    %7569 = vmatpush1.bf16.msra.mxu0 0
    %7570 = vmatprep.subr.bf16.mxu0 0
    %7571 = vmatpush1.bf16.msra.mxu0 0
    %7572 = vmatprep.mubr.bf16.mxu0 0
    %7573 = vmatmul.mubr.bf16.gmra.mrb[0].mxu0 %v7498
    %v7574 = vpop.f32.mrb[0].mxu0
    %v7575 = vadd.f32 %v3349, %v7574
    %v7576 = vpop.f32.mrb[0].mxu0
    %v7577 = vpop.f32.mrb[0].mxu0
    %v7578 = vpop.f32.mrb[0].mxu0
    %7579 = vdwg.mxu0
    %v7580 = vadd.f32 %v7452, %v7534
    %v7581 = vxor.u32 %v7580, 2147483648
    %v7582 = vmul.f32 %v7581, 1.442695
    %v7583 = vpow.pop %v7582
    %v7584 = vadd.f32 %v7583, 1.0
    %v7585 = vrcp.pop %v7584
    %v7586 = vmul.f32 1.0, %v7585
    %v7587 = vadd.f32 %v7454, %v7536
    %v7588 = vxor.u32 %v7587, 2147483648
    %v7589 = vmul.f32 %v7588, 1.442695
    %v7590 = vpow.pop %v7589
    %v7591 = vadd.f32 %v7590, 1.0
    %v7592 = vrcp.pop %v7591
    %v7593 = vmul.f32 1.0, %v7592
    %v7594 = vmul.f32 %v7586, %v7575
    %v7595 = vadd.f32 %v7493, %v7594
    %v7596 = vtanh.pop %v7595
    %v7597 = vsub.f32 1.0, %v7593
    %v7598 = vmul.f32 %v7597, %v7596
    %v7599 = vmul.f32 %v7593, %v7313
    %v7600 = vadd.f32 %v7598, %v7599
    %7601 = vmatprep.subr.bf16.mxu0 %v2962
    %7602 = vmatpush1.bf16.msra.mxu0 %v2961
    %7603 = vmatprep.subr.bf16.mxu0 %v2965
    %7604 = vmatpush1.bf16.msra.mxu0 %v2964
    %7605 = vmatprep.subr.bf16.mxu0 %v2968
    %7606 = vmatpush1.bf16.msra.mxu0 %v2967
    %7607 = vmatprep.subr.bf16.mxu0 %v2971
    %7608 = vmatpush1.bf16.msra.mxu0 %v2970
    %7609 = vmatprep.subr.bf16.mxu0 %v2974
    %7610 = vmatpush1.bf16.msra.mxu0 %v2973
    %7611 = vmatprep.subr.bf16.mxu0 %v2977
    %7612 = vmatpush1.bf16.msra.mxu0 %v2976
    %7613 = vmatprep.subr.bf16.mxu0 %v2980
    %7614 = vmatpush1.bf16.msra.mxu0 %v2979
    %7615 = vmatprep.subr.bf16.mxu0 %v2983
    %7616 = vmatpush1.bf16.msra.mxu0 %v2982
    %7617 = vmatprep.subr.bf16.mxu0 0
    %7618 = vmatpush1.bf16.msra.mxu0 0
    %7619 = vmatprep.subr.bf16.mxu0 0
    %7620 = vmatpush1.bf16.msra.mxu0 0
    %7621 = vmatprep.subr.bf16.mxu0 0
    %7622 = vmatpush1.bf16.msra.mxu0 0
    %7623 = vmatprep.subr.bf16.mxu0 0
    %7624 = vmatpush1.bf16.msra.mxu0 0
    %7625 = vmatprep.subr.bf16.mxu0 0
    %7626 = vmatpush1.bf16.msra.mxu0 0
    %7627 = vmatprep.subr.bf16.mxu0 0
    %7628 = vmatpush1.bf16.msra.mxu0 0
    %7629 = vmatprep.subr.bf16.mxu0 0
    %7630 = vmatpush1.bf16.msra.mxu0 0
    %7631 = vmatprep.subr.bf16.mxu0 0
    %7632 = vmatpush1.bf16.msra.mxu0 0
    %7633 = vmatprep.mubr.bf16.mxu0 0
    %7634 = vmatmul.mubr.bf16.gmra.mrb[0].mxu0 %v7416
    %v7635 = vpop.f32.mrb[0].mxu0
    %v7636 = vadd.f32 %v2869, %v7635
    %v7637 = vpop.f32.mrb[0].mxu0
    %v7638 = vadd.f32 %v2873, %v7637
    %v7639 = vpop.f32.mrb[0].mxu0
    %v7640 = vpop.f32.mrb[0].mxu0
    %7641 = vdwg.mxu0
    %7642 = vmatprep.subr.bf16.mxu0 0
    %7643 = vmatpush1.bf16.msra.mxu0 %v2963
    %7644 = vmatprep.subr.bf16.mxu0 0
    %7645 = vmatpush1.bf16.msra.mxu0 %v2966
    %7646 = vmatprep.subr.bf16.mxu0 0
    %7647 = vmatpush1.bf16.msra.mxu0 %v2969
    %7648 = vmatprep.subr.bf16.mxu0 0
    %7649 = vmatpush1.bf16.msra.mxu0 %v2972
    %7650 = vmatprep.subr.bf16.mxu0 0
    %7651 = vmatpush1.bf16.msra.mxu0 %v2975
    %7652 = vmatprep.subr.bf16.mxu0 0
    %7653 = vmatpush1.bf16.msra.mxu0 %v2978
    %7654 = vmatprep.subr.bf16.mxu0 0
    %7655 = vmatpush1.bf16.msra.mxu0 %v2981
    %7656 = vmatprep.subr.bf16.mxu0 0
    %7657 = vmatpush1.bf16.msra.mxu0 %v2984
    %7658 = vmatprep.subr.bf16.mxu0 0
    %7659 = vmatpush1.bf16.msra.mxu0 0
    %7660 = vmatprep.subr.bf16.mxu0 0
    %7661 = vmatpush1.bf16.msra.mxu0 0
    %7662 = vmatprep.subr.bf16.mxu0 0
    %7663 = vmatpush1.bf16.msra.mxu0 0
    %7664 = vmatprep.subr.bf16.mxu0 0
    %7665 = vmatpush1.bf16.msra.mxu0 0
    %7666 = vmatprep.subr.bf16.mxu0 0
    %7667 = vmatpush1.bf16.msra.mxu0 0
    %7668 = vmatprep.subr.bf16.mxu0 0
    %7669 = vmatpush1.bf16.msra.mxu0 0
    %7670 = vmatprep.subr.bf16.mxu0 0
    %7671 = vmatpush1.bf16.msra.mxu0 0
    %7672 = vmatprep.subr.bf16.mxu0 0
    %7673 = vmatpush1.bf16.msra.mxu0 0
    %7674 = vmatprep.mubr.bf16.mxu0 0
    %7675 = vmatmul.mubr.bf16.gmra.mrb[0].mxu0 %v7416
    %v7676 = vpop.f32.mrb[0].mxu0
    %v7677 = vadd.f32 %v2877, %v7676
    %v7678 = vpop.f32.mrb[0].mxu0
    %v7679 = vpop.f32.mrb[0].mxu0
    %v7680 = vpop.f32.mrb[0].mxu0
    %7681 = vdwg.mxu0
    %v7682 = vadd.f32 %v2665, %v7636
    %v7683 = vxor.u32 %v7682, 2147483648
    %v7684 = vmul.f32 %v7683, 1.442695
    %v7685 = vpow.pop %v7684
    %v7686 = vadd.f32 %v7685, 1.0
    %v7687 = vrcp.pop %v7686
    %v7688 = vmul.f32 1.0, %v7687
    %v7689 = vadd.f32 %v2667, %v7638
    %v7690 = vxor.u32 %v7689, 2147483648
    %v7691 = vmul.f32 %v7690, 1.442695
    %v7692 = vpow.pop %v7691
    %v7693 = vadd.f32 %v7692, 1.0
    %v7694 = vrcp.pop %v7693
    %v7695 = vmul.f32 1.0, %v7694
    %v7696 = vmul.f32 %v7688, %v7677
    %v7697 = vadd.f32 %v2763, %v7696
    %v7698 = vtanh.pop %v7697
    %v7699 = vsub.f32 1.0, %v7695
    %v7700 = vmul.f32 %v7699, %v7698
    %v7701 = vmul.f32 %v7695, %v7415
    %v7702 = vadd.f32 %v7700, %v7701
    %v7703 = vpack.c.bf16 %v7702, %v7702
    %7704 = vmatprep.subr.bf16.mxu0 %v3209
    %7705 = vmatpush1.bf16.msra.mxu0 %v3208
    %7706 = vmatprep.subr.bf16.mxu0 %v3212
    %7707 = vmatpush1.bf16.msra.mxu0 %v3211
    %7708 = vmatprep.subr.bf16.mxu0 %v3215
    %7709 = vmatpush1.bf16.msra.mxu0 %v3214
    %7710 = vmatprep.subr.bf16.mxu0 %v3218
    %7711 = vmatpush1.bf16.msra.mxu0 %v3217
    %7712 = vmatprep.subr.bf16.mxu0 %v3221
    %7713 = vmatpush1.bf16.msra.mxu0 %v3220
    %7714 = vmatprep.subr.bf16.mxu0 %v3224
    %7715 = vmatpush1.bf16.msra.mxu0 %v3223
    %7716 = vmatprep.subr.bf16.mxu0 %v3227
    %7717 = vmatpush1.bf16.msra.mxu0 %v3226
    %7718 = vmatprep.subr.bf16.mxu0 %v3230
    %7719 = vmatpush1.bf16.msra.mxu0 %v3229
    %7720 = vmatprep.subr.bf16.mxu0 0
    %7721 = vmatpush1.bf16.msra.mxu0 0
    %7722 = vmatprep.subr.bf16.mxu0 0
    %7723 = vmatpush1.bf16.msra.mxu0 0
    %7724 = vmatprep.subr.bf16.mxu0 0
    %7725 = vmatpush1.bf16.msra.mxu0 0
    %7726 = vmatprep.subr.bf16.mxu0 0
    %7727 = vmatpush1.bf16.msra.mxu0 0
    %7728 = vmatprep.subr.bf16.mxu0 0
    %7729 = vmatpush1.bf16.msra.mxu0 0
    %7730 = vmatprep.subr.bf16.mxu0 0
    %7731 = vmatpush1.bf16.msra.mxu0 0
    %7732 = vmatprep.subr.bf16.mxu0 0
    %7733 = vmatpush1.bf16.msra.mxu0 0
    %7734 = vmatprep.subr.bf16.mxu0 0
    %7735 = vmatpush1.bf16.msra.mxu0 0
    %7736 = vmatprep.mubr.bf16.mxu0 0
    %7737 = vmatmul.mubr.bf16.gmra.mrb[0].mxu0 %v7703
    %v7738 = vpop.f32.mrb[0].mxu0
    %v7739 = vadd.f32 %v3116, %v7738
    %v7740 = vpop.f32.mrb[0].mxu0
    %v7741 = vadd.f32 %v3120, %v7740
    %v7742 = vpop.f32.mrb[0].mxu0
    %v7743 = vpop.f32.mrb[0].mxu0
    %7744 = vdwg.mxu0
    %7745 = vmatprep.subr.bf16.mxu0 0
    %7746 = vmatpush1.bf16.msra.mxu0 %v3210
    %7747 = vmatprep.subr.bf16.mxu0 0
    %7748 = vmatpush1.bf16.msra.mxu0 %v3213
    %7749 = vmatprep.subr.bf16.mxu0 0
    %7750 = vmatpush1.bf16.msra.mxu0 %v3216
    %7751 = vmatprep.subr.bf16.mxu0 0
    %7752 = vmatpush1.bf16.msra.mxu0 %v3219
    %7753 = vmatprep.subr.bf16.mxu0 0
    %7754 = vmatpush1.bf16.msra.mxu0 %v3222
    %7755 = vmatprep.subr.bf16.mxu0 0
    %7756 = vmatpush1.bf16.msra.mxu0 %v3225
    %7757 = vmatprep.subr.bf16.mxu0 0
    %7758 = vmatpush1.bf16.msra.mxu0 %v3228
    %7759 = vmatprep.subr.bf16.mxu0 0
    %7760 = vmatpush1.bf16.msra.mxu0 %v3231
    %7761 = vmatprep.subr.bf16.mxu0 0
    %7762 = vmatpush1.bf16.msra.mxu0 0
    %7763 = vmatprep.subr.bf16.mxu0 0
    %7764 = vmatpush1.bf16.msra.mxu0 0
    %7765 = vmatprep.subr.bf16.mxu0 0
    %7766 = vmatpush1.bf16.msra.mxu0 0
    %7767 = vmatprep.subr.bf16.mxu0 0
    %7768 = vmatpush1.bf16.msra.mxu0 0
    %7769 = vmatprep.subr.bf16.mxu0 0
    %7770 = vmatpush1.bf16.msra.mxu0 0
    %7771 = vmatprep.subr.bf16.mxu0 0
    %7772 = vmatpush1.bf16.msra.mxu0 0
    %7773 = vmatprep.subr.bf16.mxu0 0
    %7774 = vmatpush1.bf16.msra.mxu0 0
    %7775 = vmatprep.subr.bf16.mxu0 0
    %7776 = vmatpush1.bf16.msra.mxu0 0
    %7777 = vmatprep.mubr.bf16.mxu0 0
    %7778 = vmatmul.mubr.bf16.gmra.mrb[0].mxu0 %v7703
    %v7779 = vpop.f32.mrb[0].mxu0
    %v7780 = vadd.f32 %v3124, %v7779
    %v7781 = vpop.f32.mrb[0].mxu0
    %v7782 = vpop.f32.mrb[0].mxu0
    %v7783 = vpop.f32.mrb[0].mxu0
    %7784 = vdwg.mxu0
    %v7785 = vpack.c.bf16 %v7600, %v7600
    %7786 = vmatprep.subr.bf16.mxu0 %v3434
    %7787 = vmatpush1.bf16.msra.mxu0 %v3433
    %7788 = vmatprep.subr.bf16.mxu0 %v3437
    %7789 = vmatpush1.bf16.msra.mxu0 %v3436
    %7790 = vmatprep.subr.bf16.mxu0 %v3440
    %7791 = vmatpush1.bf16.msra.mxu0 %v3439
    %7792 = vmatprep.subr.bf16.mxu0 %v3443
    %7793 = vmatpush1.bf16.msra.mxu0 %v3442
    %7794 = vmatprep.subr.bf16.mxu0 %v3446
    %7795 = vmatpush1.bf16.msra.mxu0 %v3445
    %7796 = vmatprep.subr.bf16.mxu0 %v3449
    %7797 = vmatpush1.bf16.msra.mxu0 %v3448
    %7798 = vmatprep.subr.bf16.mxu0 %v3452
    %7799 = vmatpush1.bf16.msra.mxu0 %v3451
    %7800 = vmatprep.subr.bf16.mxu0 %v3455
    %7801 = vmatpush1.bf16.msra.mxu0 %v3454
    %7802 = vmatprep.subr.bf16.mxu0 0
    %7803 = vmatpush1.bf16.msra.mxu0 0
    %7804 = vmatprep.subr.bf16.mxu0 0
    %7805 = vmatpush1.bf16.msra.mxu0 0
    %7806 = vmatprep.subr.bf16.mxu0 0
    %7807 = vmatpush1.bf16.msra.mxu0 0
    %7808 = vmatprep.subr.bf16.mxu0 0
    %7809 = vmatpush1.bf16.msra.mxu0 0
    %7810 = vmatprep.subr.bf16.mxu0 0
    %7811 = vmatpush1.bf16.msra.mxu0 0
    %7812 = vmatprep.subr.bf16.mxu0 0
    %7813 = vmatpush1.bf16.msra.mxu0 0
    %7814 = vmatprep.subr.bf16.mxu0 0
    %7815 = vmatpush1.bf16.msra.mxu0 0
    %7816 = vmatprep.subr.bf16.mxu0 0
    %7817 = vmatpush1.bf16.msra.mxu0 0
    %7818 = vmatprep.mubr.bf16.mxu0 0
    %7819 = vmatmul.mubr.bf16.gmra.mrb[0].mxu0 %v7785
    %v7820 = vpop.f32.mrb[0].mxu0
    %v7821 = vadd.f32 %v3341, %v7820
    %v7822 = vpop.f32.mrb[0].mxu0
    %v7823 = vadd.f32 %v3345, %v7822
    %v7824 = vpop.f32.mrb[0].mxu0
    %v7825 = vpop.f32.mrb[0].mxu0
    %7826 = vdwg.mxu0
    %7827 = vmatprep.subr.bf16.mxu0 0
    %7828 = vmatpush1.bf16.msra.mxu0 %v3435
    %7829 = vmatprep.subr.bf16.mxu0 0
    %7830 = vmatpush1.bf16.msra.mxu0 %v3438
    %7831 = vmatprep.subr.bf16.mxu0 0
    %7832 = vmatpush1.bf16.msra.mxu0 %v3441
    %7833 = vmatprep.subr.bf16.mxu0 0
    %7834 = vmatpush1.bf16.msra.mxu0 %v3444
    %7835 = vmatprep.subr.bf16.mxu0 0
    %7836 = vmatpush1.bf16.msra.mxu0 %v3447
    %7837 = vmatprep.subr.bf16.mxu0 0
    %7838 = vmatpush1.bf16.msra.mxu0 %v3450
    %7839 = vmatprep.subr.bf16.mxu0 0
    %7840 = vmatpush1.bf16.msra.mxu0 %v3453
    %7841 = vmatprep.subr.bf16.mxu0 0
    %7842 = vmatpush1.bf16.msra.mxu0 %v3456
    %7843 = vmatprep.subr.bf16.mxu0 0
    %7844 = vmatpush1.bf16.msra.mxu0 0
    %7845 = vmatprep.subr.bf16.mxu0 0
    %7846 = vmatpush1.bf16.msra.mxu0 0
    %7847 = vmatprep.subr.bf16.mxu0 0
    %7848 = vmatpush1.bf16.msra.mxu0 0
    %7849 = vmatprep.subr.bf16.mxu0 0
    %7850 = vmatpush1.bf16.msra.mxu0 0
    %7851 = vmatprep.subr.bf16.mxu0 0
    %7852 = vmatpush1.bf16.msra.mxu0 0
    %7853 = vmatprep.subr.bf16.mxu0 0
    %7854 = vmatpush1.bf16.msra.mxu0 0
    %7855 = vmatprep.subr.bf16.mxu0 0
    %7856 = vmatpush1.bf16.msra.mxu0 0
    %7857 = vmatprep.subr.bf16.mxu0 0
    %7858 = vmatpush1.bf16.msra.mxu0 0
    %7859 = vmatprep.mubr.bf16.mxu0 0
    %7860 = vmatmul.mubr.bf16.gmra.mrb[0].mxu0 %v7785
    %v7861 = vpop.f32.mrb[0].mxu0
    %v7862 = vadd.f32 %v3349, %v7861
    %v7863 = vpop.f32.mrb[0].mxu0
    %v7864 = vpop.f32.mrb[0].mxu0
    %v7865 = vpop.f32.mrb[0].mxu0
    %7866 = vdwg.mxu0
    %v7867 = vadd.f32 %v7739, %v7821
    %v7868 = vxor.u32 %v7867, 2147483648
    %v7869 = vmul.f32 %v7868, 1.442695
    %v7870 = vpow.pop %v7869
    %v7871 = vadd.f32 %v7870, 1.0
    %v7872 = vrcp.pop %v7871
    %v7873 = vmul.f32 1.0, %v7872
    %v7874 = vadd.f32 %v7741, %v7823
    %v7875 = vxor.u32 %v7874, 2147483648
    %v7876 = vmul.f32 %v7875, 1.442695
    %v7877 = vpow.pop %v7876
    %v7878 = vadd.f32 %v7877, 1.0
    %v7879 = vrcp.pop %v7878
    %v7880 = vmul.f32 1.0, %v7879
    %v7881 = vmul.f32 %v7873, %v7862
    %v7882 = vadd.f32 %v7780, %v7881
    %v7883 = vtanh.pop %v7882
    %v7884 = vsub.f32 1.0, %v7880
    %v7885 = vmul.f32 %v7884, %v7883
    %v7886 = vmul.f32 %v7880, %v7600
    %v7887 = vadd.f32 %v7885, %v7886
    %v7888 = vpack.c.bf16 %v7887, %v7702
    %v7889 = vlaneseq
    %v7890 = vshrl.u32 %v7889, 7
    %v7891 = vlaneseq
    %v7892 = vand.u32 %v7891, 127
    %v7893 = vmul.u32 %v7890, 2
    %vm7894 = vcmp.eq.s32.totalorder %v7892, %v7893
    %v7895 = vsel %vm7894, 1, 0
    %v7896 = vcvt.s32.f32 %v7895
    %v7897 = vpack.c.bf16 %v7896, %v7896
    %v7898 = vadd.s32 %v7893, 1
    %vm7899 = vcmp.eq.s32.totalorder %v7892, %v7898
    %v7900 = vsel %vm7899, 1, 0
    %v7901 = vcvt.s32.f32 %v7900
    %v7902 = vpack.c.bf16 %v7901, %v7901
    %vm7903 = vcmask 130048
    %v7905 = vsel %vm7903, %v7897, 0
    %7907 = vmatprep.subr.bf16.mxu0 0
    %7908 = vmatpush1.bf16.msra.mxu0 %v7888
    %7909 = vmatprep.subr.bf16.mxu0 0
    %7910 = vmatpush1.bf16.msra.mxu0 0
    %7911 = vmatprep.subr.bf16.mxu0 0
    %7912 = vmatpush1.bf16.msra.mxu0 0
    %7913 = vmatprep.subr.bf16.mxu0 0
    %7914 = vmatpush1.bf16.msra.mxu0 0
    %7915 = vmatprep.subr.bf16.mxu0 0
    %7916 = vmatpush1.bf16.msra.mxu0 0
    %7917 = vmatprep.subr.bf16.mxu0 0
    %7918 = vmatpush1.bf16.msra.mxu0 0
    %7919 = vmatprep.subr.bf16.mxu0 0
    %7920 = vmatpush1.bf16.msra.mxu0 0
    %7921 = vmatprep.subr.bf16.mxu0 0
    %7922 = vmatpush1.bf16.msra.mxu0 0
    %7923 = vmatprep.subr.bf16.mxu0 0
    %7924 = vmatpush1.bf16.msra.mxu0 0
    %7925 = vmatprep.subr.bf16.mxu0 0
    %7926 = vmatpush1.bf16.msra.mxu0 0
    %7927 = vmatprep.subr.bf16.mxu0 0
    %7928 = vmatpush1.bf16.msra.mxu0 0
    %7929 = vmatprep.subr.bf16.mxu0 0
    %7930 = vmatpush1.bf16.msra.mxu0 0
    %7931 = vmatprep.subr.bf16.mxu0 0
    %7932 = vmatpush1.bf16.msra.mxu0 0
    %7933 = vmatprep.subr.bf16.mxu0 0
    %7934 = vmatpush1.bf16.msra.mxu0 0
    %7935 = vmatprep.subr.bf16.mxu0 0
    %7936 = vmatpush1.bf16.msra.mxu0 0
    %7937 = vmatprep.subr.bf16.mxu0 0
    %7938 = vmatpush1.bf16.msra.mxu0 0
    %7939 = vmatprep.mubr.bf16.mxu0 0
    %7940 = vmatmul.mubr.bf16.gmra.mrb[0].mxu0 %v7905
    %v7941 = vpop.f32.mrb[0].mxu0
    %v7942 = vadd.f32 0.0, %v7941
    %v7943 = vpop.f32.mrb[0].mxu0
    %v7944 = vpop.f32.mrb[0].mxu0
    %v7945 = vpop.f32.mrb[0].mxu0
    %7946 = vdwg.mxu0
    %v7948 = vsel %vm7903, %v7902, 0
    %7950 = vmatprep.subr.bf16.mxu0 0
    %7951 = vmatpush1.bf16.msra.mxu0 %v7888
    %7952 = vmatprep.subr.bf16.mxu0 0
    %7953 = vmatpush1.bf16.msra.mxu0 0
    %7954 = vmatprep.subr.bf16.mxu0 0
    %7955 = vmatpush1.bf16.msra.mxu0 0
    %7956 = vmatprep.subr.bf16.mxu0 0
    %7957 = vmatpush1.bf16.msra.mxu0 0
    %7958 = vmatprep.subr.bf16.mxu0 0
    %7959 = vmatpush1.bf16.msra.mxu0 0
    %7960 = vmatprep.subr.bf16.mxu0 0
    %7961 = vmatpush1.bf16.msra.mxu0 0
    %7962 = vmatprep.subr.bf16.mxu0 0
    %7963 = vmatpush1.bf16.msra.mxu0 0
    %7964 = vmatprep.subr.bf16.mxu0 0
    %7965 = vmatpush1.bf16.msra.mxu0 0
    %7966 = vmatprep.subr.bf16.mxu0 0
    %7967 = vmatpush1.bf16.msra.mxu0 0
    %7968 = vmatprep.subr.bf16.mxu0 0
    %7969 = vmatpush1.bf16.msra.mxu0 0
    %7970 = vmatprep.subr.bf16.mxu0 0
    %7971 = vmatpush1.bf16.msra.mxu0 0
    %7972 = vmatprep.subr.bf16.mxu0 0
    %7973 = vmatpush1.bf16.msra.mxu0 0
    %7974 = vmatprep.subr.bf16.mxu0 0
    %7975 = vmatpush1.bf16.msra.mxu0 0
    %7976 = vmatprep.subr.bf16.mxu0 0
    %7977 = vmatpush1.bf16.msra.mxu0 0
    %7978 = vmatprep.subr.bf16.mxu0 0
    %7979 = vmatpush1.bf16.msra.mxu0 0
    %7980 = vmatprep.subr.bf16.mxu0 0
    %7981 = vmatpush1.bf16.msra.mxu0 0
    %7982 = vmatprep.mubr.bf16.mxu0 0
    %7983 = vmatmul.mubr.bf16.gmra.mrb[0].mxu0 %v7948
    %v7984 = vpop.f32.mrb[0].mxu0
    %v7985 = vadd.f32 0.0, %v7984
    %v7986 = vpop.f32.mrb[0].mxu0
    %v7987 = vpop.f32.mrb[0].mxu0
    %v7988 = vpop.f32.mrb[0].mxu0
    %7989 = vdwg.mxu0
    %v7990 = vpack.c.bf16 %v7942, %v7942
    %v7991 = vpack.c.bf16 %v7985, %v7985
    %v7992 = vld [vmem:[%s18] sm:$0xf]
    %v7993 = vld [vmem:[%s18 + $0x4] sm:$0xf]
    %v7994 = vld [vmem:[%s18 + $0x8] sm:$0xf]
    %v7995 = vld [vmem:[%s18 + $0xc] sm:$0xf]
    %v7996 = vld [vmem:[%s18 + $0x10] sm:$0xf]
    %v7997 = vld [vmem:[%s18 + $0x14] sm:$0xf]
    %v7998 = vld [vmem:[%s18 + $0x18] sm:$0xf]
    %v7999 = vld [vmem:[%s18 + $0x1c] sm:$0xf]
    %v8000 = vld [vmem:[%s18 + $0x20] sm:$0xf]
    %v8001 = vld [vmem:[%s18 + $0x24] sm:$0xf]
    %v8002 = vld [vmem:[%s18 + $0x28] sm:$0xf]
    %v8003 = vld [vmem:[%s18 + $0x2c] sm:$0xf]
    %v8004 = vld [vmem:[%s18 + $0x30] sm:$0xf]
    %v8005 = vld [vmem:[%s18 + $0x34] sm:$0xf]
    %v8006 = vld [vmem:[%s18 + $0x38] sm:$0xf]
    %v8007 = vld [vmem:[%s18 + $0x3c] sm:$0xf]
    %v8008 = vld [vmem:[%s18 + $0x40] sm:$0xf]
    %v8009 = vld [vmem:[%s18 + $0x44] sm:$0xf]
    %v8010 = vld [vmem:[%s18 + $0x48] sm:$0xf]
    %v8011 = vld [vmem:[%s18 + $0x4c] sm:$0xf]
    %v8012 = vld [vmem:[%s18 + $0x50] sm:$0xf]
    %v8013 = vld [vmem:[%s18 + $0x54] sm:$0xf]
    %v8014 = vld [vmem:[%s18 + $0x58] sm:$0xf]
    %v8015 = vld [vmem:[%s18 + $0x5c] sm:$0xf]
    %v8016 = vld [vmem:[%s18 + $0x60] sm:$0xf]
    %v8017 = vld [vmem:[%s18 + $0x64] sm:$0xf]
    %v8018 = vld [vmem:[%s18 + $0x68] sm:$0xf]
    %v8019 = vld [vmem:[%s18 + $0x6c] sm:$0xf]
    %v8020 = vld [vmem:[%s18 + $0x70] sm:$0xf]
    %v8021 = vld [vmem:[%s18 + $0x74] sm:$0xf]
    %v8022 = vld [vmem:[%s18 + $0x78] sm:$0xf]
    %v8023 = vld [vmem:[%s18 + $0x7c] sm:$0xf]
    %v8024 = vld [vmem:[#allocation13] sm:$0x1]
    %v8026 = vlaneseq
    %v8027 = vshrl.u32 %v8026, 7
    %v8028 = vsub.s32 0, %v8027
    %v8029 = vrot.slane %v8024, %v8028
    %v8063 = vunpack.c.l.b16 %v7992
    %v8064 = vunpack.c.l.b16 %v7993
    %v8065 = vunpack.c.l.b16 %v7994
    %v8066 = vunpack.c.l.b16 %v7995
    %v8067 = vunpack.c.l.b16 %v7996
    %v8068 = vunpack.c.l.b16 %v7997
    %v8069 = vunpack.c.l.b16 %v7998
    %v8070 = vunpack.c.l.b16 %v7999
    %v8071 = vunpack.c.l.b16 %v8000
    %v8072 = vunpack.c.l.b16 %v8001
    %v8073 = vunpack.c.l.b16 %v8002
    %v8074 = vunpack.c.l.b16 %v8003
    %v8075 = vunpack.c.l.b16 %v8004
    %v8076 = vunpack.c.l.b16 %v8005
    %v8077 = vunpack.c.l.b16 %v8006
    %v8078 = vunpack.c.l.b16 %v8007
    %v8079 = vunpack.c.l.b16 %v8008
    %v8080 = vunpack.c.l.b16 %v8009
    %v8081 = vunpack.c.l.b16 %v8010
    %v8082 = vunpack.c.l.b16 %v8011
    %v8083 = vunpack.c.l.b16 %v8012
    %v8084 = vunpack.c.l.b16 %v8013
    %v8085 = vunpack.c.l.b16 %v8014
    %v8086 = vunpack.c.l.b16 %v8015
    %v8087 = vunpack.c.l.b16 %v8016
    %v8088 = vunpack.c.l.b16 %v8017
    %v8089 = vunpack.c.l.b16 %v8018
    %v8090 = vunpack.c.l.b16 %v8019
    %v8091 = vunpack.c.l.b16 %v8020
    %v8092 = vunpack.c.l.b16 %v8021
    %v8093 = vunpack.c.l.b16 %v8022
    %v8094 = vunpack.c.l.b16 %v8023
    %v8095 = vpack.c.b16 %v8064, %v8063
    %v8096 = vpack.c.b16 %v8066, %v8065
    %v8097 = vpack.c.b16 %v8068, %v8067
    %v8098 = vpack.c.b16 %v8070, %v8069
    %v8099 = vpack.c.b16 %v8072, %v8071
    %v8100 = vpack.c.b16 %v8074, %v8073
    %v8101 = vpack.c.b16 %v8076, %v8075
    %v8102 = vpack.c.b16 %v8078, %v8077
    %v8103 = vpack.c.b16 %v8080, %v8079
    %v8104 = vpack.c.b16 %v8082, %v8081
    %v8105 = vpack.c.b16 %v8084, %v8083
    %v8106 = vpack.c.b16 %v8086, %v8085
    %v8107 = vpack.c.b16 %v8088, %v8087
    %v8108 = vpack.c.b16 %v8090, %v8089
    %v8109 = vpack.c.b16 %v8092, %v8091
    %v8110 = vpack.c.b16 %v8094, %v8093
    %8127 = vmatprep.subr.bf16.mxu0 0
    %8128 = vmatpush1.bf16.msra.mxu0 %v8095
    %8129 = vmatprep.subr.bf16.mxu0 0
    %8130 = vmatpush1.bf16.msra.mxu0 %v8096
    %8131 = vmatprep.subr.bf16.mxu0 0
    %8132 = vmatpush1.bf16.msra.mxu0 %v8097
    %8133 = vmatprep.subr.bf16.mxu0 0
    %8134 = vmatpush1.bf16.msra.mxu0 %v8098
    %8135 = vmatprep.subr.bf16.mxu0 0
    %8136 = vmatpush1.bf16.msra.mxu0 %v8099
    %8137 = vmatprep.subr.bf16.mxu0 0
    %8138 = vmatpush1.bf16.msra.mxu0 %v8100
    %8139 = vmatprep.subr.bf16.mxu0 0
    %8140 = vmatpush1.bf16.msra.mxu0 %v8101
    %8141 = vmatprep.subr.bf16.mxu0 0
    %8142 = vmatpush1.bf16.msra.mxu0 %v8102
    %8143 = vmatprep.subr.bf16.mxu0 0
    %8144 = vmatpush1.bf16.msra.mxu0 %v8103
    %8145 = vmatprep.subr.bf16.mxu0 0
    %8146 = vmatpush1.bf16.msra.mxu0 %v8104
    %8147 = vmatprep.subr.bf16.mxu0 0
    %8148 = vmatpush1.bf16.msra.mxu0 %v8105
    %8149 = vmatprep.subr.bf16.mxu0 0
    %8150 = vmatpush1.bf16.msra.mxu0 %v8106
    %8151 = vmatprep.subr.bf16.mxu0 0
    %8152 = vmatpush1.bf16.msra.mxu0 %v8107
    %8153 = vmatprep.subr.bf16.mxu0 0
    %8154 = vmatpush1.bf16.msra.mxu0 %v8108
    %8155 = vmatprep.subr.bf16.mxu0 0
    %8156 = vmatpush1.bf16.msra.mxu0 %v8109
    %8157 = vmatprep.subr.bf16.mxu0 0
    %8158 = vmatpush1.bf16.msra.mxu0 %v8110
    %8159 = vmatprep.mubr.bf16.mxu0 %v7991
    %8160 = vmatmul.mubr.bf16.gmra.mrb[0].mxu0 %v7990
    %v8161 = vpop.f32.mrb[0].mxu0
    %v8162 = vadd.f32 %v8029, %v8161
    %v8163 = vpop.f32.mrb[0].mxu0
    %v8164 = vpop.f32.mrb[0].mxu0
    %v8165 = vpop.f32.mrb[0].mxu0
    %8166 = vdwg.mxu0
    %v8167 = vmax.f32 %v8162, 0.0
    %v8168 = vpack.c.bf16 %v8167, %v8167
    %v8169 = vld [vmem:[%s20] sm:$0xf]
    %v8170 = vld [vmem:[%s20 + $0x4] sm:$0xf]
    %v8171 = vld [vmem:[%s20 + $0x8] sm:$0xf]
    %v8172 = vld [vmem:[%s20 + $0xc] sm:$0xf]
    %v8173 = vld [vmem:[#allocation15] sm:$0x1]
    %v8175 = vlaneseq
    %v8176 = vshrl.u32 %v8175, 7
    %v8177 = vsub.s32 0, %v8176
    %v8178 = vrot.slane %v8173, %v8177
    %v8184 = vunpack.c.l.b16 %v8169
    %v8185 = vunpack.c.l.b16 %v8170
    %v8186 = vunpack.c.l.b16 %v8171
    %v8187 = vunpack.c.l.b16 %v8172
    %v8188 = vpack.c.b16 %v8185, %v8184
    %v8189 = vpack.c.b16 %v8187, %v8186
    %v8193 = vsel %vm1011, %v8168, 0
    %8195 = vmatprep.subr.bf16.mxu0 0
    %8196 = vmatpush1.bf16.msra.mxu0 %v8188
    %8197 = vmatprep.subr.bf16.mxu0 0
    %8198 = vmatpush1.bf16.msra.mxu0 %v8189
    %8199 = vmatprep.subr.bf16.mxu0 0
    %8200 = vmatpush1.bf16.msra.mxu0 0
    %8201 = vmatprep.subr.bf16.mxu0 0
    %8202 = vmatpush1.bf16.msra.mxu0 0
    %8203 = vmatprep.subr.bf16.mxu0 0
    %8204 = vmatpush1.bf16.msra.mxu0 0
    %8205 = vmatprep.subr.bf16.mxu0 0
    %8206 = vmatpush1.bf16.msra.mxu0 0
    %8207 = vmatprep.subr.bf16.mxu0 0
    %8208 = vmatpush1.bf16.msra.mxu0 0
    %8209 = vmatprep.subr.bf16.mxu0 0
    %8210 = vmatpush1.bf16.msra.mxu0 0
    %8211 = vmatprep.subr.bf16.mxu0 0
    %8212 = vmatpush1.bf16.msra.mxu0 0
    %8213 = vmatprep.subr.bf16.mxu0 0
    %8214 = vmatpush1.bf16.msra.mxu0 0
    %8215 = vmatprep.subr.bf16.mxu0 0
    %8216 = vmatpush1.bf16.msra.mxu0 0
    %8217 = vmatprep.subr.bf16.mxu0 0
    %8218 = vmatpush1.bf16.msra.mxu0 0
    %8219 = vmatprep.subr.bf16.mxu0 0
    %8220 = vmatpush1.bf16.msra.mxu0 0
    %8221 = vmatprep.subr.bf16.mxu0 0
    %8222 = vmatpush1.bf16.msra.mxu0 0
    %8223 = vmatprep.subr.bf16.mxu0 0
    %8224 = vmatpush1.bf16.msra.mxu0 0
    %8225 = vmatprep.subr.bf16.mxu0 0
    %8226 = vmatpush1.bf16.msra.mxu0 0
    %8227 = vmatprep.mubr.bf16.mxu0 0
    %8228 = vmatmul.mubr.bf16.gmra.mrb[0].mxu0 %v8193
    %v8229 = vpop.f32.mrb[0].mxu0
    %v8230 = vadd.f32 %v8178, %v8229
    %v8231 = vpop.f32.mrb[0].mxu0
    %v8232 = vpop.f32.mrb[0].mxu0
    %v8233 = vpop.f32.mrb[0].mxu0
    %8234 = vdwg.mxu0
    %v8235 = vmax.f32 %v8230, 0.0
    %v8236 = vpack.c.bf16 %v8235, %v8235
    %v8237 = vld [vmem:[%s22] sm:$0xf]
    %v8238 = vld [vmem:[%s22 + $0x4] sm:$0xf]
    %v8239 = vld [vmem:[%s22 + $0x8] sm:$0x1]
    %v8240 = vld [vmem:[#allocation16] sm:$0x1]
    %v8242 = vlaneseq
    %v8243 = vshrl.u32 %v8242, 7
    %v8244 = vsub.s32 0, %v8243
    %v8245 = vrot.slane %v8240, %v8244
    %v8250 = vunpack.c.l.b16 %v8237
    %v8251 = vunpack.c.l.b16 %v8238
    %v8252 = vunpack.c.l.b16 %v8239
    %v8253 = vpack.c.b16 %v8251, %v8250
    %v8254 = vpack.c.b16 %v8252, %v8252
    %v8257 = vsel %vm2521, %v8236, 0
    %v8260 = vsel %vm2546, %v8254, 0
    %8262 = vmatprep.subr.bf16.mxu0 0
    %8263 = vmatpush1.bf16.msra.mxu0 %v8253
    %8264 = vmatprep.subr.bf16.mxu0 0
    %8265 = vmatpush1.bf16.msra.mxu0 %v8260
    %8266 = vmatprep.subr.bf16.mxu0 0
    %8267 = vmatpush1.bf16.msra.mxu0 0
    %8268 = vmatprep.subr.bf16.mxu0 0
    %8269 = vmatpush1.bf16.msra.mxu0 0
    %8270 = vmatprep.subr.bf16.mxu0 0
    %8271 = vmatpush1.bf16.msra.mxu0 0
    %8272 = vmatprep.subr.bf16.mxu0 0
    %8273 = vmatpush1.bf16.msra.mxu0 0
    %8274 = vmatprep.subr.bf16.mxu0 0
    %8275 = vmatpush1.bf16.msra.mxu0 0
    %8276 = vmatprep.subr.bf16.mxu0 0
    %8277 = vmatpush1.bf16.msra.mxu0 0
    %8278 = vmatprep.subr.bf16.mxu0 0
    %8279 = vmatpush1.bf16.msra.mxu0 0
    %8280 = vmatprep.subr.bf16.mxu0 0
    %8281 = vmatpush1.bf16.msra.mxu0 0
    %8282 = vmatprep.subr.bf16.mxu0 0
    %8283 = vmatpush1.bf16.msra.mxu0 0
    %8284 = vmatprep.subr.bf16.mxu0 0
    %8285 = vmatpush1.bf16.msra.mxu0 0
    %8286 = vmatprep.subr.bf16.mxu0 0
    %8287 = vmatpush1.bf16.msra.mxu0 0
    %8288 = vmatprep.subr.bf16.mxu0 0
    %8289 = vmatpush1.bf16.msra.mxu0 0
    %8290 = vmatprep.subr.bf16.mxu0 0
    %8291 = vmatpush1.bf16.msra.mxu0 0
    %8292 = vmatprep.subr.bf16.mxu0 0
    %8293 = vmatpush1.bf16.msra.mxu0 0
    %8294 = vmatprep.mubr.bf16.mxu0 0
    %8295 = vmatmul.mubr.bf16.gmra.mrb[0].mxu0 %v8257
    %v8296 = vpop.f32.mrb[0].mxu0
    %v8297 = vadd.f32 %v8245, %v8296
    %v8298 = vpop.f32.mrb[0].mxu0
    %v8299 = vpop.f32.mrb[0].mxu0
    %v8300 = vpop.f32.mrb[0].mxu0
    %8301 = vdwg.mxu0
    %vm8302 = vcmask 15360
    %v8303 = vsel %vm8302, %v8297, -inf
    %8304 = vmax.xlane.f32.xlu0 %v8303
    %v8305 = vpop.xlane.xlu0 %8304
    %v8306 = vsub.f32 %v8297, %v8305
    %v8307 = vmul.f32 %v8306, 1.442695
    %v8308 = vpow.pop %v8307
    %v8309 = vsel %vm8302, %v8308, 0.0
    %8310 = vadd.xlane.f32.xlu0 %v8309
    %v8311 = vpop.xlane.xlu0 %8310
    %v8312 = vrcp.pop %v8311
    %v8313 = vmul.f32 %v8308, %v8312
    %8314 = vst.msk [vmem:[%s24] sm:$0xff] %vm8302, %v8313
    // Predicated region
    $region138: #{_forward_impl.1} parent=1 // pred_check
      _
    $region139: #{_forward_impl.1} parent=1 // pred_check_branch
      %8316 = sbr.rel (0) target = $region141
    $region140: #{_forward_impl.1} parent=1 // pred_region
      _
    $region141: #{_forward_impl.1} parent=1 // pred_fallthru
      _
    // Predicated region
    $region142: #{_forward_impl.1} parent=1 // pred_check
      _
    $region143: #{_forward_impl.1} parent=1 // pred_check_branch
      %8318 = sbr.rel (0) target = $region145
    $region144: #{_forward_impl.1} parent=1 // pred_region
      _
    $region145: #{_forward_impl.1} parent=1 // pred_fallthru
      _
    %8319 = vsyncpa [#allocation3], 1
    %8320 = vsyncpa [#allocation5], 1
    %8321 = vsyncpa [#allocation8], 1
    %8322 = vsyncpa [#allocation11], 1
    %8323 = vsyncpa [#allocation14], 1
    %8324 = vsyncpa [#allocation17], 1

</llo_original>
